<compile_context>
chip_gen: v7x
topology: tpu7x:2x2x1
jax: 0.10.0
libtpu: 0.0.40
codegen_flags: <defaults>
</compile_context>

<pallas_src>
import math

import numpy as np
import jax
import jax.numpy as jnp
from jax.experimental import pallas as pl
from jax.experimental.pallas import tpu as pltpu

# ----------------------- scaled-down hyper-parameters -----------------------
N_LAYER = 2
BATCH = 2
C_IN = 2
W_IN, H_IN, T_IN = 12, 8, 3          # PyTorch input: (B, 2, 12, 8, 3) NCDHW
DIM = 32
DEPTH = 2
HEADS = 2
DIM_HEAD = 16
MLP_DIM = 64
NUM_CLASSES = 26

# geometry implied by the module (ViT channels == T_IN == 3)
W_CONV = W_IN - 2 * N_LAYER                      # 8   (ViT image height)
H_CONV = H_IN - 2 * N_LAYER                      # 4   (ViT image width)
N_PATCH = math.gcd(W_CONV, H_CONV)               # 4
P1, P2 = W_CONV // N_PATCH, H_CONV // N_PATCH    # patch (height, width) = (2, 1)
NPH = W_CONV // P1                               # 4 patch rows
NPW = H_CONV // P2                               # 4 patch cols
NUM_PATCHES = NPH * NPW                          # 16
PATCH_DIM = T_IN * P1 * P2                       # 6
N_PATCH_TERMS = P1 * P2 * NPW                    # 8 selection-matmul terms
INNER = HEADS * DIM_HEAD                         # 32
CONV_GELU = (False,) + (True,) * (N_LAYER - 1)   # GELU after the 2nd conv of later pairs

_GELU_C = math.sqrt(2.0 / math.pi)


def _gelu(x):
    # TODO(synk): PyTorch nn.GELU() defaults to the exact erf formulation; tanh
    # approximation is used here (erf lowering not guaranteed in Mosaic).
    return 0.5 * x * (1.0 + jnp.tanh(_GELU_C * (x + 0.044715 * x * x * x)))


# ======================= single fused kernel (per batch) =======================
# Conv activation layout: rows = W (kept at W_IN, valid prefix shrinks),
# lanes = (h, t, c) with c fastest (H kept at H_IN, valid h prefix shrinks).
#   conv331+conv113 pair: a <- sum_dw (S[dw] @ a) @ B_pair[dw] + bias_pair
#   conv2 (1x1x1):        a <- a @ M4 + bias4
#   patchify:             patches <- sum_k L_k @ a @ R_k   (precomputed 0/1 matrices)
# ViT keeps cls / token streams separate (no in-kernel concatenation).
def _separated_kernel(*refs):
    out_ref = refs[-1]
    args = list(refs[:-1])
    pos = [0]

    def take(n):
        i = pos[0]
        pos[0] = i + n
        return args[i:i + n]

    x_ref, s_ref, bm0_ref, bs0_ref = take(4)
    later_pairs = [take(2) for _ in range(N_LAYER - 1)]
    m4_ref, c4_ref, pL_ref, pR_ref = take(4)
    cls_ref, pos_ref = take(2)
    pe_g1, pe_b1, pe_w, pe_b, pe_g2, pe_b2 = take(6)
    layer_refs = [take(11) for _ in range(DEPTH)]
    fin_g, fin_b, head_w, head_b = take(4)

    f32 = jnp.float32
    bf16 = jnp.bfloat16
    scale = DIM_HEAD ** -0.5

    def ln(v, g_ref, b_ref):
        mu = jnp.mean(v, axis=-1, keepdims=True)
        d = v - mu
        var = jnp.mean(d * d, axis=-1, keepdims=True)
        return d * jax.lax.rsqrt(var + 1e-5) * g_ref[...] + b_ref[...]

    def mm(aa, ww):  # bf16 MXU operands, f32 accumulation
        return jnp.dot(aa.astype(bf16), ww.astype(bf16),
                       preferred_element_type=f32)

    # ---------------- Conv3d stack (algebraically folded to matmuls) ----------------
    # first (3,3,1)+(1,1,3) pair: input channels arrive as separate (W, H*T) planes
    acc = None
    for c in range(C_IN):
        xc = x_ref[0, c]                                           # (W_IN, H_IN*T)
        for dw in range(3):
            shifted = jnp.dot(s_ref[dw], xc, preferred_element_type=f32)
            term = jnp.dot(shifted, bm0_ref[c, dw], preferred_element_type=f32)
            acc = term if acc is None else acc + term
    a = acc + bs0_ref[...]
    if CONV_GELU[0]:
        a = _gelu(a)
    # later pairs (GELU fused into the pair epilogue, matching the ModuleList order)
    for pi, (bm_ref, bs_ref) in enumerate(later_pairs):
        acc = None
        for dw in range(3):
            shifted = jnp.dot(s_ref[dw], a, preferred_element_type=f32)
            term = jnp.dot(shifted, bm_ref[dw], preferred_element_type=f32)
            acc = term if acc is None else acc + term
        a = acc + bs_ref[...]
        if CONV_GELU[pi + 1]:
            a = _gelu(a)
    # conv2 (1x1x1) channel mix + squeeze
    a = jnp.dot(a, m4_ref[...], preferred_element_type=f32) + c4_ref[...]   # (W_IN, H_IN*T)

    # ---------------- patchify: 'b w h t -> b t w h' + ViT patch rearrange ----------------
    patches = None
    for k in range(N_PATCH_TERMS):
        t1 = jnp.dot(pL_ref[k], a, preferred_element_type=f32)     # (NUM_PATCHES, H_IN*T)
        t2 = jnp.dot(t1, pR_ref[k], preferred_element_type=f32)    # (NUM_PATCHES, PATCH_DIM)
        patches = t2 if patches is None else patches + t2

    # ---------------- ViT: patch embedding (LN -> Linear -> LN), +pos ----------------
    tok = ln(patches, pe_g1, pe_b1)
    tok = mm(tok, pe_w[...]) + pe_b[...]                           # (n, DIM)
    tok = ln(tok, pe_g2, pe_b2)
    x_t = tok + pos_ref[...]                                       # tokens + pos[1:]
    x_c = cls_ref[...]                                             # (1, DIM) = cls + pos[0]

    for (a_g, a_b, wqkv, wout, bout, f_g, f_b, w1, b1, w2, b2) in layer_refs:
        # ---------- Attention (pre-norm) ----------
        h_t = ln(x_t, a_g, a_b)
        h_c = ln(x_c, a_g, a_b)
        at_t = jnp.zeros_like(x_t)
        at_c = jnp.zeros_like(x_c)
        for hh in range(HEADS):
            wq = wqkv[0, hh]                                       # (DIM, Dh) bf16
            wk = wqkv[1, hh]
            wv = wqkv[2, hh]
            q_t = mm(h_t, wq); k_t = mm(h_t, wk); v_t = mm(h_t, wv)
            q_c = mm(h_c, wq); k_c = mm(h_c, wk); v_c = mm(h_c, wv)
            wo = wout[hh]                                          # (Dh, DIM) bf16

            def attend(q):
                s_t = jax.lax.dot_general(
                    q.astype(bf16), k_t.astype(bf16),
                    (((1,), (1,)), ((), ())),
                    preferred_element_type=f32) * scale            # (R, n)
                s_c = jnp.sum(q * k_c, axis=-1, keepdims=True) * scale   # (R, 1)
                m = jnp.maximum(jnp.max(s_t, axis=-1, keepdims=True), s_c)
                e_t = jnp.exp(s_t - m)
                e_c = jnp.exp(s_c - m)
                denom = jnp.sum(e_t, axis=-1, keepdims=True) + e_c
                r = pl.reciprocal(denom, approx=True)
                return mm(e_t * r, v_t) + (e_c * r) * v_c          # (R, Dh)

            at_t = at_t + mm(attend(q_t), wo)
            at_c = at_c + mm(attend(q_c), wo)
        x_t = x_t + at_t + bout[...]
        x_c = x_c + at_c + bout[...]
        # ---------- FeedForward (pre-norm) ----------
        h_t = ln(x_t, f_g, f_b)
        h_c = ln(x_c, f_g, f_b)
        h_t = mm(_gelu(mm(h_t, w1[...]) + b1[...]), w2[...]) + b2[...]
        h_c = mm(_gelu(mm(h_c, w1[...]) + b1[...]), w2[...]) + b2[...]
        x_t = x_t + h_t
        x_c = x_c + h_c

    xc = ln(x_c, fin_g, fin_b)                                     # pool = 'cls'
    out_ref[0] = mm(xc, head_w[...]) + head_b[...]                 # (1, NUM_CLASSES)


# ------------------------------- parameters ---------------------------------
def build_params(key):
    ks = iter(jax.random.split(key, 64))

    def nrm(shape, scale=0.1):
        return scale * jax.random.normal(next(ks), shape, jnp.float32)

    p = {}
    convs = [
        dict(kind="331", w=nrm((3, 3, 2, 2)), b=nrm((2,))),
        dict(kind="113", w=nrm((3, 2, 2)), b=nrm((2,))),
    ]
    in_c, tmp_c, out_c = 2, 4, 8
    for _ in range(N_LAYER - 1):
        convs.append(dict(kind="331", w=nrm((3, 3, in_c, tmp_c)), b=nrm((tmp_c,))))
        convs.append(dict(kind="113", w=nrm((3, tmp_c, out_c)), b=nrm((out_c,))))
        in_c, tmp_c, out_c = out_c, out_c * 2, out_c * 4
    p["convs"] = convs
    p["conv2_w"] = nrm((in_c, 1))
    p["conv2_b"] = nrm((1,))

    p["pe_ln1_g"] = jnp.ones((PATCH_DIM,), jnp.float32)
    p["pe_ln1_b"] = jnp.zeros((PATCH_DIM,), jnp.float32)
    p["pe_w"] = nrm((PATCH_DIM, DIM), 0.05)
    p["pe_b"] = jnp.zeros((DIM,), jnp.float32)
    p["pe_ln2_g"] = jnp.ones((DIM,), jnp.float32)
    p["pe_ln2_b"] = jnp.zeros((DIM,), jnp.float32)
    p["pos_embedding"] = nrm((1, NUM_PATCHES + 1, DIM), 0.02)
    p["cls_token"] = nrm((1, 1, DIM), 0.02)

    layers = []
    for _ in range(DEPTH):
        layers.append(dict(
            attn_ln_g=jnp.ones((DIM,), jnp.float32),
            attn_ln_b=jnp.zeros((DIM,), jnp.float32),
            w_qkv=nrm((DIM, 3 * INNER), 0.05),            # to_qkv has no bias
            w_out=nrm((INNER, DIM), 0.05),
            b_out=jnp.zeros((DIM,), jnp.float32),
            ff_ln_g=jnp.ones((DIM,), jnp.float32),
            ff_ln_b=jnp.zeros((DIM,), jnp.float32),
            ff_w1=nrm((DIM, MLP_DIM), 0.05),
            ff_b1=jnp.zeros((MLP_DIM,), jnp.float32),
            ff_w2=nrm((MLP_DIM, DIM), 0.05),
            ff_b2=jnp.zeros((DIM,), jnp.float32),
        ))
    p["layers"] = layers
    p["final_ln_g"] = jnp.ones((DIM,), jnp.float32)
    p["final_ln_b"] = jnp.zeros((DIM,), jnp.float32)
    p["head_w"] = nrm((DIM, NUM_CLASSES), 0.05)
    p["head_b"] = jnp.zeros((NUM_CLASSES,), jnp.float32)
    return p


def prepare_params(p):
    """Eager, one-time conversion of module weights into kernel-ready tensors."""
    f32 = jnp.float32
    bf16 = jnp.bfloat16
    eyeH = np.eye(H_IN, dtype=np.float32)
    eyeT = np.eye(T_IN, dtype=np.float32)

    def conv331_taps(w331):              # (3,3,Ci,Co) -> (3, H*T*Ci, H*T*Co)
        w = np.asarray(w331, np.float32)
        mats = []
        for dw in range(3):
            m = np.zeros((H_IN * T_IN * w.shape[2], H_IN * T_IN * w.shape[3]), np.float32)
            for dh in range(3):
                m += np.kron(np.eye(H_IN, H_IN, -dh, dtype=np.float32),
                             np.kron(eyeT, w[dw, dh]))
            mats.append(m)
        return np.stack(mats)

    def conv113_mat(w113):               # (3,Ci,Co) -> (H*T*Ci, H*T*Co), t-padding built in
        w = np.asarray(w113, np.float32)
        m = np.zeros((H_IN * T_IN * w.shape[1], H_IN * T_IN * w.shape[2]), np.float32)
        for dt in range(3):
            m += np.kron(eyeH, np.kron(np.eye(T_IN, T_IN, 1 - dt, dtype=np.float32), w[dt]))
        return m

    def tile_bias(b):                    # per-channel bias tiled over (h, t) lanes
        return np.tile(np.asarray(b, np.float32), H_IN * T_IN)[None, :]

    convs = p["convs"]
    pairs = []
    for i in range(0, len(convs), 2):
        c331, c113 = convs[i], convs[i + 1]
        taps = conv331_taps(c331["w"])
        m113 = conv113_mat(c113["w"])
        bm = np.einsum("dij,jk->dik", taps, m113)                  # fold 113 into 331 taps
        bs = tile_bias(c331["b"]) @ m113 + tile_bias(c113["b"])
        pairs.append((bm, bs))

    # split the first pair by input channel so the kernel consumes x in NC(W)(H*T) layout
    bm0, bs0 = pairs[0]
    bm0_split = np.stack([bm0[:, c::C_IN, :] for c in range(C_IN)])  # (C_IN, 3, H*T, K1)

    conv_S = np.stack([np.eye(W_IN, W_IN, dw, dtype=np.float32) for dw in range(3)])
    m4 = np.kron(eyeH, np.kron(eyeT, np.asarray(p["conv2_w"], np.float32)))
    c4 = tile_bias(p["conv2_b"])

    # patchify 'b c (h p1) (w p2) -> b (h w) (p1 p2 c)' as 0/1 selection-matrix terms
    L_list, R_list = [], []
    for pi1 in range(P1):
        for pi2 in range(P2):
            for wblk in range(NPW):
                L = np.zeros((NUM_PATCHES, W_IN), np.float32)
                R = np.zeros((H_IN * T_IN, PATCH_DIM), np.float32)
                for hblk in range(NPH):
                    L[hblk * NPW + wblk, hblk * P1 + pi1] = 1.0
                for t in range(T_IN):
                    R[(wblk * P2 + pi2) * T_IN + t,
                      pi1 * P2 * T_IN + pi2 * T_IN + t] = 1.0
                L_list.append(L)
                R_list.append(R)
    patch_L = np.stack(L_list)                                     # (8, NUM_PATCHES, W_IN)
    patch_R = np.stack(R_list)                                     # (8, H_IN*T, PATCH_DIM)

    def r2(v):
        return jnp.asarray(v, f32).reshape(1, -1)

    cls_row = (p["cls_token"][0] + p["pos_embedding"][0, 0:1, :]).astype(f32)
    pos_rest = p["pos_embedding"][0, 1:NUM_PATCHES + 1, :].astype(f32)

    args = [jnp.asarray(conv_S, f32),
            jnp.asarray(bm0_split, f32), jnp.asarray(bs0, f32)]
    for bm, bs in pairs[1:]:
        args += [jnp.asarray(bm, f32), jnp.asarray(bs, f32)]
    args += [jnp.asarray(m4, f32), jnp.asarray(c4, f32),
             jnp.asarray(patch_L, f32), jnp.asarray(patch_R, f32)]

    # ViT weights: per-head leading dims, 2-D biases, bf16 MXU operands pre-cast.
    args += [cls_row, pos_rest,
             r2(p["pe_ln1_g"]), r2(p["pe_ln1_b"]),
             p["pe_w"].astype(bf16), r2(p["pe_b"]),
             r2(p["pe_ln2_g"]), r2(p["pe_ln2_b"])]
    for layer in p["layers"]:
        wqkv = (layer["w_qkv"].reshape(DIM, 3, HEADS, DIM_HEAD)
                .transpose(1, 2, 0, 3)).astype(bf16)               # (3, H, DIM, Dh)
        wout = layer["w_out"].reshape(HEADS, DIM_HEAD, DIM).astype(bf16)
        args += [r2(layer["attn_ln_g"]), r2(layer["attn_ln_b"]),
                 wqkv, wout, r2(layer["b_out"]),
                 r2(layer["ff_ln_g"]), r2(layer["ff_ln_b"]),
                 layer["ff_w1"].astype(bf16), r2(layer["ff_b1"]),
                 layer["ff_w2"].astype(bf16), r2(layer["ff_b2"])]
    args += [r2(p["final_ln_g"]), r2(p["final_ln_b"]),
             p["head_w"].astype(bf16), r2(p["head_b"])]

    return dict(kernel_args=tuple(args))


# --------------------------------- forward ----------------------------------
def separated_forward(x_ncdhw, prep):
    nb = x_ncdhw.shape[0]
    # NCDHW -> (B, C, W, H*T): contiguous reshape only (channel handling folded into pair 0)
    x = x_ncdhw.astype(jnp.float32).reshape(nb, C_IN, W_IN, H_IN * T_IN)
    kernel_args = prep["kernel_args"]

    in_specs = [pl.BlockSpec((1, C_IN, W_IN, H_IN * T_IN), lambda b: (b, 0, 0, 0))]
    in_specs += [pl.BlockSpec(a.shape, lambda b, nd=a.ndim: (0,) * nd)
                 for a in kernel_args]
    out_shape = jax.ShapeDtypeStruct((nb, 1, NUM_CLASSES), jnp.float32)

    logits = pl.pallas_call(
        _separated_kernel,
        out_shape=out_shape,
        grid=(nb,),
        in_specs=in_specs,
        out_specs=pl.BlockSpec((1, 1, NUM_CLASSES), lambda b: (b, 0, 0)),
        compiler_params=pltpu.CompilerParams(
            dimension_semantics=("parallel",)),        # megacore over batch on v7x
    )(x, *kernel_args)
    return logits.reshape(nb, NUM_CLASSES)


if __name__ == "__main__":
    key = jax.random.PRNGKey(0)
    pkey, xkey = jax.random.split(key)
    params = build_params(pkey)
    prep = prepare_params(params)                                  # eager, once
    x = jax.random.normal(xkey, (BATCH, C_IN, W_IN, H_IN, T_IN), jnp.float32)

    fwd = jax.jit(separated_forward)
    out = jax.block_until_ready(fwd(x, prep))
    assert out.shape == (BATCH, NUM_CLASSES), out.shape
    assert bool(jnp.all(jnp.isfinite(out)))
    print("KERNEL_OK")
</pallas_src>

<mosaic_0001>
module attributes {stable_mosaic.version = 11 : i64} {
  func.func @_separated_kernel(%arg0: i32, %arg1: memref<1x2x12x24xf32, #tpu.memory_space<vmem>>, %arg2: memref<3x12x12xf32, #tpu.memory_space<vmem>>, %arg3: memref<2x3x24x48xf32, #tpu.memory_space<vmem>>, %arg4: memref<1x48xf32, #tpu.memory_space<vmem>>, %arg5: memref<3x48x192xf32, #tpu.memory_space<vmem>>, %arg6: memref<1x192xf32, #tpu.memory_space<vmem>>, %arg7: memref<192x24xf32, #tpu.memory_space<vmem>>, %arg8: memref<1x24xf32, #tpu.memory_space<vmem>>, %arg9: memref<8x16x12xf32, #tpu.memory_space<vmem>>, %arg10: memref<8x24x6xf32, #tpu.memory_space<vmem>>, %arg11: memref<1x32xf32, #tpu.memory_space<vmem>>, %arg12: memref<16x32xf32, #tpu.memory_space<vmem>>, %arg13: memref<1x6xf32, #tpu.memory_space<vmem>>, %arg14: memref<1x6xf32, #tpu.memory_space<vmem>>, %arg15: memref<6x32xbf16, #tpu.memory_space<vmem>>, %arg16: memref<1x32xf32, #tpu.memory_space<vmem>>, %arg17: memref<1x32xf32, #tpu.memory_space<vmem>>, %arg18: memref<1x32xf32, #tpu.memory_space<vmem>>, %arg19: memref<1x32xf32, #tpu.memory_space<vmem>>, %arg20: memref<1x32xf32, #tpu.memory_space<vmem>>, %arg21: memref<3x2x32x16xbf16, #tpu.memory_space<vmem>>, %arg22: memref<2x16x32xbf16, #tpu.memory_space<vmem>>, %arg23: memref<1x32xf32, #tpu.memory_space<vmem>>, %arg24: memref<1x32xf32, #tpu.memory_space<vmem>>, %arg25: memref<1x32xf32, #tpu.memory_space<vmem>>, %arg26: memref<32x64xbf16, #tpu.memory_space<vmem>>, %arg27: memref<1x64xf32, #tpu.memory_space<vmem>>, %arg28: memref<64x32xbf16, #tpu.memory_space<vmem>>, %arg29: memref<1x32xf32, #tpu.memory_space<vmem>>, %arg30: memref<1x32xf32, #tpu.memory_space<vmem>>, %arg31: memref<1x32xf32, #tpu.memory_space<vmem>>, %arg32: memref<3x2x32x16xbf16, #tpu.memory_space<vmem>>, %arg33: memref<2x16x32xbf16, #tpu.memory_space<vmem>>, %arg34: memref<1x32xf32, #tpu.memory_space<vmem>>, %arg35: memref<1x32xf32, #tpu.memory_space<vmem>>, %arg36: memref<1x32xf32, #tpu.memory_space<vmem>>, %arg37: memref<32x64xbf16, #tpu.memory_space<vmem>>, %arg38: memref<1x64xf32, #tpu.memory_space<vmem>>, %arg39: memref<64x32xbf16, #tpu.memory_space<vmem>>, %arg40: memref<1x32xf32, #tpu.memory_space<vmem>>, %arg41: memref<1x32xf32, #tpu.memory_space<vmem>>, %arg42: memref<1x32xf32, #tpu.memory_space<vmem>>, %arg43: memref<32x26xbf16, #tpu.memory_space<vmem>>, %arg44: memref<1x26xf32, #tpu.memory_space<vmem>>, %arg45: memref<1x1x26xf32, #tpu.memory_space<vmem>>) attributes {dimension_semantics = [#tpu.dimension_semantics<parallel>], iteration_bounds = array<i64: 2>, scalar_prefetch = 0 : i64, scratch_operands = 0 : i64, tpu.core_type = #tpu.core_type<tc>, window_params = [{transform_indices = @transform_0, window_bounds = array<i64: 1, 2, 12, 24>}, {pipeline_mode = #tpu.pipeline_mode<synchronous>, transform_indices = @transform_1, window_bounds = array<i64: 3, 12, 12>}, {pipeline_mode = #tpu.pipeline_mode<synchronous>, transform_indices = @transform_2, window_bounds = array<i64: 2, 3, 24, 48>}, {pipeline_mode = #tpu.pipeline_mode<synchronous>, transform_indices = @transform_3, window_bounds = array<i64: 1, 48>}, {pipeline_mode = #tpu.pipeline_mode<synchronous>, transform_indices = @transform_4, window_bounds = array<i64: 3, 48, 192>}, {pipeline_mode = #tpu.pipeline_mode<synchronous>, transform_indices = @transform_5, window_bounds = array<i64: 1, 192>}, {pipeline_mode = #tpu.pipeline_mode<synchronous>, transform_indices = @transform_6, window_bounds = array<i64: 192, 24>}, {pipeline_mode = #tpu.pipeline_mode<synchronous>, transform_indices = @transform_7, window_bounds = array<i64: 1, 24>}, {pipeline_mode = #tpu.pipeline_mode<synchronous>, transform_indices = @transform_8, window_bounds = array<i64: 8, 16, 12>}, {pipeline_mode = #tpu.pipeline_mode<synchronous>, transform_indices = @transform_9, window_bounds = array<i64: 8, 24, 6>}, {pipeline_mode = #tpu.pipeline_mode<synchronous>, transform_indices = @transform_10, window_bounds = array<i64: 1, 32>}, {pipeline_mode = #tpu.pipeline_mode<synchronous>, transform_indices = @transform_11, window_bounds = array<i64: 16, 32>}, {pipeline_mode = #tpu.pipeline_mode<synchronous>, transform_indices = @transform_12, window_bounds = array<i64: 1, 6>}, {pipeline_mode = #tpu.pipeline_mode<synchronous>, transform_indices = @transform_13, window_bounds = array<i64: 1, 6>}, {pipeline_mode = #tpu.pipeline_mode<synchronous>, transform_indices = @transform_14, window_bounds = array<i64: 6, 32>}, {pipeline_mode = #tpu.pipeline_mode<synchronous>, transform_indices = @transform_15, window_bounds = array<i64: 1, 32>}, {pipeline_mode = #tpu.pipeline_mode<synchronous>, transform_indices = @transform_16, window_bounds = array<i64: 1, 32>}, {pipeline_mode = #tpu.pipeline_mode<synchronous>, transform_indices = @transform_17, window_bounds = array<i64: 1, 32>}, {pipeline_mode = #tpu.pipeline_mode<synchronous>, transform_indices = @transform_18, window_bounds = array<i64: 1, 32>}, {pipeline_mode = #tpu.pipeline_mode<synchronous>, transform_indices = @transform_19, window_bounds = array<i64: 1, 32>}, {pipeline_mode = #tpu.pipeline_mode<synchronous>, transform_indices = @transform_20, window_bounds = array<i64: 3, 2, 32, 16>}, {pipeline_mode = #tpu.pipeline_mode<synchronous>, transform_indices = @transform_21, window_bounds = array<i64: 2, 16, 32>}, {pipeline_mode = #tpu.pipeline_mode<synchronous>, transform_indices = @transform_22, window_bounds = array<i64: 1, 32>}, {pipeline_mode = #tpu.pipeline_mode<synchronous>, transform_indices = @transform_23, window_bounds = array<i64: 1, 32>}, {pipeline_mode = #tpu.pipeline_mode<synchronous>, transform_indices = @transform_24, window_bounds = array<i64: 1, 32>}, {pipeline_mode = #tpu.pipeline_mode<synchronous>, transform_indices = @transform_25, window_bounds = array<i64: 32, 64>}, {pipeline_mode = #tpu.pipeline_mode<synchronous>, transform_indices = @transform_26, window_bounds = array<i64: 1, 64>}, {pipeline_mode = #tpu.pipeline_mode<synchronous>, transform_indices = @transform_27, window_bounds = array<i64: 64, 32>}, {pipeline_mode = #tpu.pipeline_mode<synchronous>, transform_indices = @transform_28, window_bounds = array<i64: 1, 32>}, {pipeline_mode = #tpu.pipeline_mode<synchronous>, transform_indices = @transform_29, window_bounds = array<i64: 1, 32>}, {pipeline_mode = #tpu.pipeline_mode<synchronous>, transform_indices = @transform_30, window_bounds = array<i64: 1, 32>}, {pipeline_mode = #tpu.pipeline_mode<synchronous>, transform_indices = @transform_31, window_bounds = array<i64: 3, 2, 32, 16>}, {pipeline_mode = #tpu.pipeline_mode<synchronous>, transform_indices = @transform_32, window_bounds = array<i64: 2, 16, 32>}, {pipeline_mode = #tpu.pipeline_mode<synchronous>, transform_indices = @transform_33, window_bounds = array<i64: 1, 32>}, {pipeline_mode = #tpu.pipeline_mode<synchronous>, transform_indices = @transform_34, window_bounds = array<i64: 1, 32>}, {pipeline_mode = #tpu.pipeline_mode<synchronous>, transform_indices = @transform_35, window_bounds = array<i64: 1, 32>}, {pipeline_mode = #tpu.pipeline_mode<synchronous>, transform_indices = @transform_36, window_bounds = array<i64: 32, 64>}, {pipeline_mode = #tpu.pipeline_mode<synchronous>, transform_indices = @transform_37, window_bounds = array<i64: 1, 64>}, {pipeline_mode = #tpu.pipeline_mode<synchronous>, transform_indices = @transform_38, window_bounds = array<i64: 64, 32>}, {pipeline_mode = #tpu.pipeline_mode<synchronous>, transform_indices = @transform_39, window_bounds = array<i64: 1, 32>}, {pipeline_mode = #tpu.pipeline_mode<synchronous>, transform_indices = @transform_40, window_bounds = array<i64: 1, 32>}, {pipeline_mode = #tpu.pipeline_mode<synchronous>, transform_indices = @transform_41, window_bounds = array<i64: 1, 32>}, {pipeline_mode = #tpu.pipeline_mode<synchronous>, transform_indices = @transform_42, window_bounds = array<i64: 32, 26>}, {pipeline_mode = #tpu.pipeline_mode<synchronous>, transform_indices = @transform_43, window_bounds = array<i64: 1, 26>}, {transform_indices = @transform_44, window_bounds = array<i64: 1, 1, 26>}]} {
    %c0 = arith.constant 0 : index
    %c0_0 = arith.constant 0 : index
    %c0_1 = arith.constant 0 : index
    %c0_2 = arith.constant 0 : index
    %0 = vector.load %arg1[%c0, %c0_0, %c0_1, %c0_2] : memref<1x2x12x24xf32, #tpu.memory_space<vmem>>, vector<1x1x12x24xf32>
    %1 = vector.shape_cast %0 : vector<1x1x12x24xf32> to vector<12x24xf32>
    %c0_3 = arith.constant 0 : index
    %c0_4 = arith.constant 0 : index
    %c0_5 = arith.constant 0 : index
    %2 = vector.load %arg2[%c0_3, %c0_4, %c0_5] : memref<3x12x12xf32, #tpu.memory_space<vmem>>, vector<1x12x12xf32>
    %3 = vector.shape_cast %2 : vector<1x12x12xf32> to vector<12x12xf32>
    %cst = arith.constant dense<0.000000e+00> : vector<12x24xf32>
    %4 = tpu.matmul %3, %1, %cst {dimension_numbers = #tpu.dot_dimension_numbers<[1], [0], [0], [1], [0, 0, 1, 1], [], []>} : vector<12x12xf32>, vector<12x24xf32>, vector<12x24xf32> -> vector<12x24xf32>
    %c0_6 = arith.constant 0 : index
    %c0_7 = arith.constant 0 : index
    %c0_8 = arith.constant 0 : index
    %c0_9 = arith.constant 0 : index
    %5 = vector.load %arg3[%c0_6, %c0_7, %c0_8, %c0_9] : memref<2x3x24x48xf32, #tpu.memory_space<vmem>>, vector<1x1x24x48xf32>
    %6 = vector.shape_cast %5 : vector<1x1x24x48xf32> to vector<24x48xf32>
    %cst_10 = arith.constant dense<0.000000e+00> : vector<12x48xf32>
    %7 = tpu.matmul %4, %6, %cst_10 {dimension_numbers = #tpu.dot_dimension_numbers<[1], [0], [0], [1], [0, 0, 1, 1], [], []>} : vector<12x24xf32>, vector<24x48xf32>, vector<12x48xf32> -> vector<12x48xf32>
    %c1 = arith.constant 1 : index
    %c0_11 = arith.constant 0 : index
    %c0_12 = arith.constant 0 : index
    %8 = vector.load %arg2[%c1, %c0_11, %c0_12] : memref<3x12x12xf32, #tpu.memory_space<vmem>>, vector<1x12x12xf32>
    %9 = vector.shape_cast %8 : vector<1x12x12xf32> to vector<12x12xf32>
    %cst_13 = arith.constant dense<0.000000e+00> : vector<12x24xf32>
    %10 = tpu.matmul %9, %1, %cst_13 {dimension_numbers = #tpu.dot_dimension_numbers<[1], [0], [0], [1], [0, 0, 1, 1], [], []>} : vector<12x12xf32>, vector<12x24xf32>, vector<12x24xf32> -> vector<12x24xf32>
    %c0_14 = arith.constant 0 : index
    %c1_15 = arith.constant 1 : index
    %c0_16 = arith.constant 0 : index
    %c0_17 = arith.constant 0 : index
    %11 = vector.load %arg3[%c0_14, %c1_15, %c0_16, %c0_17] : memref<2x3x24x48xf32, #tpu.memory_space<vmem>>, vector<1x1x24x48xf32>
    %12 = vector.shape_cast %11 : vector<1x1x24x48xf32> to vector<24x48xf32>
    %cst_18 = arith.constant dense<0.000000e+00> : vector<12x48xf32>
    %13 = tpu.matmul %10, %12, %cst_18 {dimension_numbers = #tpu.dot_dimension_numbers<[1], [0], [0], [1], [0, 0, 1, 1], [], []>} : vector<12x24xf32>, vector<24x48xf32>, vector<12x48xf32> -> vector<12x48xf32>
    %14 = arith.addf %7, %13 : vector<12x48xf32>
    %c2 = arith.constant 2 : index
    %c0_19 = arith.constant 0 : index
    %c0_20 = arith.constant 0 : index
    %15 = vector.load %arg2[%c2, %c0_19, %c0_20] : memref<3x12x12xf32, #tpu.memory_space<vmem>>, vector<1x12x12xf32>
    %16 = vector.shape_cast %15 : vector<1x12x12xf32> to vector<12x12xf32>
    %cst_21 = arith.constant dense<0.000000e+00> : vector<12x24xf32>
    %17 = tpu.matmul %16, %1, %cst_21 {dimension_numbers = #tpu.dot_dimension_numbers<[1], [0], [0], [1], [0, 0, 1, 1], [], []>} : vector<12x12xf32>, vector<12x24xf32>, vector<12x24xf32> -> vector<12x24xf32>
    %c0_22 = arith.constant 0 : index
    %c2_23 = arith.constant 2 : index
    %c0_24 = arith.constant 0 : index
    %c0_25 = arith.constant 0 : index
    %18 = vector.load %arg3[%c0_22, %c2_23, %c0_24, %c0_25] : memref<2x3x24x48xf32, #tpu.memory_space<vmem>>, vector<1x1x24x48xf32>
    %19 = vector.shape_cast %18 : vector<1x1x24x48xf32> to vector<24x48xf32>
    %cst_26 = arith.constant dense<0.000000e+00> : vector<12x48xf32>
    %20 = tpu.matmul %17, %19, %cst_26 {dimension_numbers = #tpu.dot_dimension_numbers<[1], [0], [0], [1], [0, 0, 1, 1], [], []>} : vector<12x24xf32>, vector<24x48xf32>, vector<12x48xf32> -> vector<12x48xf32>
    %21 = arith.addf %14, %20 : vector<12x48xf32>
    %c0_27 = arith.constant 0 : index
    %c1_28 = arith.constant 1 : index
    %c0_29 = arith.constant 0 : index
    %c0_30 = arith.constant 0 : index
    %22 = vector.load %arg1[%c0_27, %c1_28, %c0_29, %c0_30] : memref<1x2x12x24xf32, #tpu.memory_space<vmem>>, vector<1x1x12x24xf32>
    %23 = vector.shape_cast %22 : vector<1x1x12x24xf32> to vector<12x24xf32>
    %c0_31 = arith.constant 0 : index
    %c0_32 = arith.constant 0 : index
    %c0_33 = arith.constant 0 : index
    %24 = vector.load %arg2[%c0_31, %c0_32, %c0_33] : memref<3x12x12xf32, #tpu.memory_space<vmem>>, vector<1x12x12xf32>
    %25 = vector.shape_cast %24 : vector<1x12x12xf32> to vector<12x12xf32>
    %cst_34 = arith.constant dense<0.000000e+00> : vector<12x24xf32>
    %26 = tpu.matmul %25, %23, %cst_34 {dimension_numbers = #tpu.dot_dimension_numbers<[1], [0], [0], [1], [0, 0, 1, 1], [], []>} : vector<12x12xf32>, vector<12x24xf32>, vector<12x24xf32> -> vector<12x24xf32>
    %c1_35 = arith.constant 1 : index
    %c0_36 = arith.constant 0 : index
    %c0_37 = arith.constant 0 : index
    %c0_38 = arith.constant 0 : index
    %27 = vector.load %arg3[%c1_35, %c0_36, %c0_37, %c0_38] : memref<2x3x24x48xf32, #tpu.memory_space<vmem>>, vector<1x1x24x48xf32>
    %28 = vector.shape_cast %27 : vector<1x1x24x48xf32> to vector<24x48xf32>
    %cst_39 = arith.constant dense<0.000000e+00> : vector<12x48xf32>
    %29 = tpu.matmul %26, %28, %cst_39 {dimension_numbers = #tpu.dot_dimension_numbers<[1], [0], [0], [1], [0, 0, 1, 1], [], []>} : vector<12x24xf32>, vector<24x48xf32>, vector<12x48xf32> -> vector<12x48xf32>
    %30 = arith.addf %21, %29 : vector<12x48xf32>
    %c1_40 = arith.constant 1 : index
    %c0_41 = arith.constant 0 : index
    %c0_42 = arith.constant 0 : index
    %31 = vector.load %arg2[%c1_40, %c0_41, %c0_42] : memref<3x12x12xf32, #tpu.memory_space<vmem>>, vector<1x12x12xf32>
    %32 = vector.shape_cast %31 : vector<1x12x12xf32> to vector<12x12xf32>
    %cst_43 = arith.constant dense<0.000000e+00> : vector<12x24xf32>
    %33 = tpu.matmul %32, %23, %cst_43 {dimension_numbers = #tpu.dot_dimension_numbers<[1], [0], [0], [1], [0, 0, 1, 1], [], []>} : vector<12x12xf32>, vector<12x24xf32>, vector<12x24xf32> -> vector<12x24xf32>
    %c1_44 = arith.constant 1 : index
    %c1_45 = arith.constant 1 : index
    %c0_46 = arith.constant 0 : index
    %c0_47 = arith.constant 0 : index
    %34 = vector.load %arg3[%c1_44, %c1_45, %c0_46, %c0_47] : memref<2x3x24x48xf32, #tpu.memory_space<vmem>>, vector<1x1x24x48xf32>
    %35 = vector.shape_cast %34 : vector<1x1x24x48xf32> to vector<24x48xf32>
    %cst_48 = arith.constant dense<0.000000e+00> : vector<12x48xf32>
    %36 = tpu.matmul %33, %35, %cst_48 {dimension_numbers = #tpu.dot_dimension_numbers<[1], [0], [0], [1], [0, 0, 1, 1], [], []>} : vector<12x24xf32>, vector<24x48xf32>, vector<12x48xf32> -> vector<12x48xf32>
    %37 = arith.addf %30, %36 : vector<12x48xf32>
    %c2_49 = arith.constant 2 : index
    %c0_50 = arith.constant 0 : index
    %c0_51 = arith.constant 0 : index
    %38 = vector.load %arg2[%c2_49, %c0_50, %c0_51] : memref<3x12x12xf32, #tpu.memory_space<vmem>>, vector<1x12x12xf32>
    %39 = vector.shape_cast %38 : vector<1x12x12xf32> to vector<12x12xf32>
    %cst_52 = arith.constant dense<0.000000e+00> : vector<12x24xf32>
    %40 = tpu.matmul %39, %23, %cst_52 {dimension_numbers = #tpu.dot_dimension_numbers<[1], [0], [0], [1], [0, 0, 1, 1], [], []>} : vector<12x12xf32>, vector<12x24xf32>, vector<12x24xf32> -> vector<12x24xf32>
    %c1_53 = arith.constant 1 : index
    %c2_54 = arith.constant 2 : index
    %c0_55 = arith.constant 0 : index
    %c0_56 = arith.constant 0 : index
    %41 = vector.load %arg3[%c1_53, %c2_54, %c0_55, %c0_56] : memref<2x3x24x48xf32, #tpu.memory_space<vmem>>, vector<1x1x24x48xf32>
    %42 = vector.shape_cast %41 : vector<1x1x24x48xf32> to vector<24x48xf32>
    %cst_57 = arith.constant dense<0.000000e+00> : vector<12x48xf32>
    %43 = tpu.matmul %40, %42, %cst_57 {dimension_numbers = #tpu.dot_dimension_numbers<[1], [0], [0], [1], [0, 0, 1, 1], [], []>} : vector<12x24xf32>, vector<24x48xf32>, vector<12x48xf32> -> vector<12x48xf32>
    %44 = arith.addf %37, %43 : vector<12x48xf32>
    %c0_58 = arith.constant 0 : index
    %c0_59 = arith.constant 0 : index
    %45 = vector.load %arg4[%c0_58, %c0_59] : memref<1x48xf32, #tpu.memory_space<vmem>>, vector<1x48xf32>
    %46 = vector.broadcast %45 : vector<1x48xf32> to vector<12x48xf32>
    %47 = arith.addf %44, %46 : vector<12x48xf32>
    %c0_60 = arith.constant 0 : index
    %c0_61 = arith.constant 0 : index
    %c0_62 = arith.constant 0 : index
    %48 = vector.load %arg2[%c0_60, %c0_61, %c0_62] : memref<3x12x12xf32, #tpu.memory_space<vmem>>, vector<1x12x12xf32>
    %49 = vector.shape_cast %48 : vector<1x12x12xf32> to vector<12x12xf32>
    %cst_63 = arith.constant dense<0.000000e+00> : vector<12x48xf32>
    %50 = tpu.matmul %49, %47, %cst_63 {dimension_numbers = #tpu.dot_dimension_numbers<[1], [0], [0], [1], [0, 0, 1, 1], [], []>} : vector<12x12xf32>, vector<12x48xf32>, vector<12x48xf32> -> vector<12x48xf32>
    %c0_64 = arith.constant 0 : index
    %c0_65 = arith.constant 0 : index
    %c0_66 = arith.constant 0 : index
    %51 = vector.load %arg5[%c0_64, %c0_65, %c0_66] : memref<3x48x192xf32, #tpu.memory_space<vmem>>, vector<1x48x192xf32>
    %52 = vector.shape_cast %51 : vector<1x48x192xf32> to vector<48x192xf32>
    %cst_67 = arith.constant dense<0.000000e+00> : vector<12x192xf32>
    %53 = tpu.matmul %50, %52, %cst_67 {dimension_numbers = #tpu.dot_dimension_numbers<[1], [0], [0], [1], [0, 0, 1, 1], [], []>} : vector<12x48xf32>, vector<48x192xf32>, vector<12x192xf32> -> vector<12x192xf32>
    %c1_68 = arith.constant 1 : index
    %c0_69 = arith.constant 0 : index
    %c0_70 = arith.constant 0 : index
    %54 = vector.load %arg2[%c1_68, %c0_69, %c0_70] : memref<3x12x12xf32, #tpu.memory_space<vmem>>, vector<1x12x12xf32>
    %55 = vector.shape_cast %54 : vector<1x12x12xf32> to vector<12x12xf32>
    %cst_71 = arith.constant dense<0.000000e+00> : vector<12x48xf32>
    %56 = tpu.matmul %55, %47, %cst_71 {dimension_numbers = #tpu.dot_dimension_numbers<[1], [0], [0], [1], [0, 0, 1, 1], [], []>} : vector<12x12xf32>, vector<12x48xf32>, vector<12x48xf32> -> vector<12x48xf32>
    %c1_72 = arith.constant 1 : index
    %c0_73 = arith.constant 0 : index
    %c0_74 = arith.constant 0 : index
    %57 = vector.load %arg5[%c1_72, %c0_73, %c0_74] : memref<3x48x192xf32, #tpu.memory_space<vmem>>, vector<1x48x192xf32>
    %58 = vector.shape_cast %57 : vector<1x48x192xf32> to vector<48x192xf32>
    %cst_75 = arith.constant dense<0.000000e+00> : vector<12x192xf32>
    %59 = tpu.matmul %56, %58, %cst_75 {dimension_numbers = #tpu.dot_dimension_numbers<[1], [0], [0], [1], [0, 0, 1, 1], [], []>} : vector<12x48xf32>, vector<48x192xf32>, vector<12x192xf32> -> vector<12x192xf32>
    %60 = arith.addf %53, %59 : vector<12x192xf32>
    %c2_76 = arith.constant 2 : index
    %c0_77 = arith.constant 0 : index
    %c0_78 = arith.constant 0 : index
    %61 = vector.load %arg2[%c2_76, %c0_77, %c0_78] : memref<3x12x12xf32, #tpu.memory_space<vmem>>, vector<1x12x12xf32>
    %62 = vector.shape_cast %61 : vector<1x12x12xf32> to vector<12x12xf32>
    %cst_79 = arith.constant dense<0.000000e+00> : vector<12x48xf32>
    %63 = tpu.matmul %62, %47, %cst_79 {dimension_numbers = #tpu.dot_dimension_numbers<[1], [0], [0], [1], [0, 0, 1, 1], [], []>} : vector<12x12xf32>, vector<12x48xf32>, vector<12x48xf32> -> vector<12x48xf32>
    %c2_80 = arith.constant 2 : index
    %c0_81 = arith.constant 0 : index
    %c0_82 = arith.constant 0 : index
    %64 = vector.load %arg5[%c2_80, %c0_81, %c0_82] : memref<3x48x192xf32, #tpu.memory_space<vmem>>, vector<1x48x192xf32>
    %65 = vector.shape_cast %64 : vector<1x48x192xf32> to vector<48x192xf32>
    %cst_83 = arith.constant dense<0.000000e+00> : vector<12x192xf32>
    %66 = tpu.matmul %63, %65, %cst_83 {dimension_numbers = #tpu.dot_dimension_numbers<[1], [0], [0], [1], [0, 0, 1, 1], [], []>} : vector<12x48xf32>, vector<48x192xf32>, vector<12x192xf32> -> vector<12x192xf32>
    %67 = arith.addf %60, %66 : vector<12x192xf32>
    %c0_84 = arith.constant 0 : index
    %c0_85 = arith.constant 0 : index
    %68 = vector.load %arg6[%c0_84, %c0_85] : memref<1x192xf32, #tpu.memory_space<vmem>>, vector<1x192xf32>
    %69 = vector.broadcast %68 : vector<1x192xf32> to vector<12x192xf32>
    %70 = arith.addf %67, %69 : vector<12x192xf32>
    %cst_86 = arith.constant 5.000000e-01 : f32
    %71 = vector.broadcast %cst_86 : f32 to vector<12x192xf32>
    %72 = arith.mulf %71, %70 : vector<12x192xf32>
    %cst_87 = arith.constant 4.471500e-02 : f32
    %73 = vector.broadcast %cst_87 : f32 to vector<12x192xf32>
    %74 = arith.mulf %73, %70 : vector<12x192xf32>
    %75 = arith.mulf %74, %70 : vector<12x192xf32>
    %76 = arith.mulf %75, %70 : vector<12x192xf32>
    %77 = arith.addf %70, %76 : vector<12x192xf32>
    %cst_88 = arith.constant 0.797884583 : f32
    %78 = vector.broadcast %cst_88 : f32 to vector<12x192xf32>
    %79 = arith.mulf %78, %77 : vector<12x192xf32>
    %80 = math.tanh %79 : vector<12x192xf32>
    %cst_89 = arith.constant 1.000000e+00 : f32
    %81 = vector.broadcast %cst_89 : f32 to vector<12x192xf32>
    %82 = arith.addf %81, %80 : vector<12x192xf32>
    %83 = arith.mulf %72, %82 : vector<12x192xf32>
    %c0_90 = arith.constant 0 : index
    %c0_91 = arith.constant 0 : index
    %84 = vector.load %arg7[%c0_90, %c0_91] : memref<192x24xf32, #tpu.memory_space<vmem>>, vector<192x24xf32>
    %cst_92 = arith.constant dense<0.000000e+00> : vector<12x24xf32>
    %85 = tpu.matmul %83, %84, %cst_92 {dimension_numbers = #tpu.dot_dimension_numbers<[1], [0], [0], [1], [0, 0, 1, 1], [], []>} : vector<12x192xf32>, vector<192x24xf32>, vector<12x24xf32> -> vector<12x24xf32>
    %c0_93 = arith.constant 0 : index
    %c0_94 = arith.constant 0 : index
    %86 = vector.load %arg8[%c0_93, %c0_94] : memref<1x24xf32, #tpu.memory_space<vmem>>, vector<1x24xf32>
    %87 = vector.broadcast %86 : vector<1x24xf32> to vector<12x24xf32>
    %88 = arith.addf %85, %87 : vector<12x24xf32>
    %c0_95 = arith.constant 0 : index
    %c0_96 = arith.constant 0 : index
    %c0_97 = arith.constant 0 : index
    %89 = vector.load %arg9[%c0_95, %c0_96, %c0_97] : memref<8x16x12xf32, #tpu.memory_space<vmem>>, vector<1x16x12xf32>
    %90 = vector.shape_cast %89 : vector<1x16x12xf32> to vector<16x12xf32>
    %cst_98 = arith.constant dense<0.000000e+00> : vector<16x24xf32>
    %91 = tpu.matmul %90, %88, %cst_98 {dimension_numbers = #tpu.dot_dimension_numbers<[1], [0], [0], [1], [0, 0, 1, 1], [], []>} : vector<16x12xf32>, vector<12x24xf32>, vector<16x24xf32> -> vector<16x24xf32>
    %c0_99 = arith.constant 0 : index
    %c0_100 = arith.constant 0 : index
    %c0_101 = arith.constant 0 : index
    %92 = vector.load %arg10[%c0_99, %c0_100, %c0_101] : memref<8x24x6xf32, #tpu.memory_space<vmem>>, vector<1x24x6xf32>
    %93 = vector.shape_cast %92 : vector<1x24x6xf32> to vector<24x6xf32>
    %cst_102 = arith.constant dense<0.000000e+00> : vector<16x6xf32>
    %94 = tpu.matmul %91, %93, %cst_102 {dimension_numbers = #tpu.dot_dimension_numbers<[1], [0], [0], [1], [0, 0, 1, 1], [], []>} : vector<16x24xf32>, vector<24x6xf32>, vector<16x6xf32> -> vector<16x6xf32>
    %c1_103 = arith.constant 1 : index
    %c0_104 = arith.constant 0 : index
    %c0_105 = arith.constant 0 : index
    %95 = vector.load %arg9[%c1_103, %c0_104, %c0_105] : memref<8x16x12xf32, #tpu.memory_space<vmem>>, vector<1x16x12xf32>
    %96 = vector.shape_cast %95 : vector<1x16x12xf32> to vector<16x12xf32>
    %cst_106 = arith.constant dense<0.000000e+00> : vector<16x24xf32>
    %97 = tpu.matmul %96, %88, %cst_106 {dimension_numbers = #tpu.dot_dimension_numbers<[1], [0], [0], [1], [0, 0, 1, 1], [], []>} : vector<16x12xf32>, vector<12x24xf32>, vector<16x24xf32> -> vector<16x24xf32>
    %c1_107 = arith.constant 1 : index
    %c0_108 = arith.constant 0 : index
    %c0_109 = arith.constant 0 : index
    %98 = vector.load %arg10[%c1_107, %c0_108, %c0_109] : memref<8x24x6xf32, #tpu.memory_space<vmem>>, vector<1x24x6xf32>
    %99 = vector.shape_cast %98 : vector<1x24x6xf32> to vector<24x6xf32>
    %cst_110 = arith.constant dense<0.000000e+00> : vector<16x6xf32>
    %100 = tpu.matmul %97, %99, %cst_110 {dimension_numbers = #tpu.dot_dimension_numbers<[1], [0], [0], [1], [0, 0, 1, 1], [], []>} : vector<16x24xf32>, vector<24x6xf32>, vector<16x6xf32> -> vector<16x6xf32>
    %101 = arith.addf %94, %100 : vector<16x6xf32>
    %c2_111 = arith.constant 2 : index
    %c0_112 = arith.constant 0 : index
    %c0_113 = arith.constant 0 : index
    %102 = vector.load %arg9[%c2_111, %c0_112, %c0_113] : memref<8x16x12xf32, #tpu.memory_space<vmem>>, vector<1x16x12xf32>
    %103 = vector.shape_cast %102 : vector<1x16x12xf32> to vector<16x12xf32>
    %cst_114 = arith.constant dense<0.000000e+00> : vector<16x24xf32>
    %104 = tpu.matmul %103, %88, %cst_114 {dimension_numbers = #tpu.dot_dimension_numbers<[1], [0], [0], [1], [0, 0, 1, 1], [], []>} : vector<16x12xf32>, vector<12x24xf32>, vector<16x24xf32> -> vector<16x24xf32>
    %c2_115 = arith.constant 2 : index
    %c0_116 = arith.constant 0 : index
    %c0_117 = arith.constant 0 : index
    %105 = vector.load %arg10[%c2_115, %c0_116, %c0_117] : memref<8x24x6xf32, #tpu.memory_space<vmem>>, vector<1x24x6xf32>
    %106 = vector.shape_cast %105 : vector<1x24x6xf32> to vector<24x6xf32>
    %cst_118 = arith.constant dense<0.000000e+00> : vector<16x6xf32>
    %107 = tpu.matmul %104, %106, %cst_118 {dimension_numbers = #tpu.dot_dimension_numbers<[1], [0], [0], [1], [0, 0, 1, 1], [], []>} : vector<16x24xf32>, vector<24x6xf32>, vector<16x6xf32> -> vector<16x6xf32>
    %108 = arith.addf %101, %107 : vector<16x6xf32>
    %c3 = arith.constant 3 : index
    %c0_119 = arith.constant 0 : index
    %c0_120 = arith.constant 0 : index
    %109 = vector.load %arg9[%c3, %c0_119, %c0_120] : memref<8x16x12xf32, #tpu.memory_space<vmem>>, vector<1x16x12xf32>
    %110 = vector.shape_cast %109 : vector<1x16x12xf32> to vector<16x12xf32>
    %cst_121 = arith.constant dense<0.000000e+00> : vector<16x24xf32>
    %111 = tpu.matmul %110, %88, %cst_121 {dimension_numbers = #tpu.dot_dimension_numbers<[1], [0], [0], [1], [0, 0, 1, 1], [], []>} : vector<16x12xf32>, vector<12x24xf32>, vector<16x24xf32> -> vector<16x24xf32>
    %c3_122 = arith.constant 3 : index
    %c0_123 = arith.constant 0 : index
    %c0_124 = arith.constant 0 : index
    %112 = vector.load %arg10[%c3_122, %c0_123, %c0_124] : memref<8x24x6xf32, #tpu.memory_space<vmem>>, vector<1x24x6xf32>
    %113 = vector.shape_cast %112 : vector<1x24x6xf32> to vector<24x6xf32>
    %cst_125 = arith.constant dense<0.000000e+00> : vector<16x6xf32>
    %114 = tpu.matmul %111, %113, %cst_125 {dimension_numbers = #tpu.dot_dimension_numbers<[1], [0], [0], [1], [0, 0, 1, 1], [], []>} : vector<16x24xf32>, vector<24x6xf32>, vector<16x6xf32> -> vector<16x6xf32>
    %115 = arith.addf %108, %114 : vector<16x6xf32>
    %c4 = arith.constant 4 : index
    %c0_126 = arith.constant 0 : index
    %c0_127 = arith.constant 0 : index
    %116 = vector.load %arg9[%c4, %c0_126, %c0_127] : memref<8x16x12xf32, #tpu.memory_space<vmem>>, vector<1x16x12xf32>
    %117 = vector.shape_cast %116 : vector<1x16x12xf32> to vector<16x12xf32>
    %cst_128 = arith.constant dense<0.000000e+00> : vector<16x24xf32>
    %118 = tpu.matmul %117, %88, %cst_128 {dimension_numbers = #tpu.dot_dimension_numbers<[1], [0], [0], [1], [0, 0, 1, 1], [], []>} : vector<16x12xf32>, vector<12x24xf32>, vector<16x24xf32> -> vector<16x24xf32>
    %c4_129 = arith.constant 4 : index
    %c0_130 = arith.constant 0 : index
    %c0_131 = arith.constant 0 : index
    %119 = vector.load %arg10[%c4_129, %c0_130, %c0_131] : memref<8x24x6xf32, #tpu.memory_space<vmem>>, vector<1x24x6xf32>
    %120 = vector.shape_cast %119 : vector<1x24x6xf32> to vector<24x6xf32>
    %cst_132 = arith.constant dense<0.000000e+00> : vector<16x6xf32>
    %121 = tpu.matmul %118, %120, %cst_132 {dimension_numbers = #tpu.dot_dimension_numbers<[1], [0], [0], [1], [0, 0, 1, 1], [], []>} : vector<16x24xf32>, vector<24x6xf32>, vector<16x6xf32> -> vector<16x6xf32>
    %122 = arith.addf %115, %121 : vector<16x6xf32>
    %c5 = arith.constant 5 : index
    %c0_133 = arith.constant 0 : index
    %c0_134 = arith.constant 0 : index
    %123 = vector.load %arg9[%c5, %c0_133, %c0_134] : memref<8x16x12xf32, #tpu.memory_space<vmem>>, vector<1x16x12xf32>
    %124 = vector.shape_cast %123 : vector<1x16x12xf32> to vector<16x12xf32>
    %cst_135 = arith.constant dense<0.000000e+00> : vector<16x24xf32>
    %125 = tpu.matmul %124, %88, %cst_135 {dimension_numbers = #tpu.dot_dimension_numbers<[1], [0], [0], [1], [0, 0, 1, 1], [], []>} : vector<16x12xf32>, vector<12x24xf32>, vector<16x24xf32> -> vector<16x24xf32>
    %c5_136 = arith.constant 5 : index
    %c0_137 = arith.constant 0 : index
    %c0_138 = arith.constant 0 : index
    %126 = vector.load %arg10[%c5_136, %c0_137, %c0_138] : memref<8x24x6xf32, #tpu.memory_space<vmem>>, vector<1x24x6xf32>
    %127 = vector.shape_cast %126 : vector<1x24x6xf32> to vector<24x6xf32>
    %cst_139 = arith.constant dense<0.000000e+00> : vector<16x6xf32>
    %128 = tpu.matmul %125, %127, %cst_139 {dimension_numbers = #tpu.dot_dimension_numbers<[1], [0], [0], [1], [0, 0, 1, 1], [], []>} : vector<16x24xf32>, vector<24x6xf32>, vector<16x6xf32> -> vector<16x6xf32>
    %129 = arith.addf %122, %128 : vector<16x6xf32>
    %c6 = arith.constant 6 : index
    %c0_140 = arith.constant 0 : index
    %c0_141 = arith.constant 0 : index
    %130 = vector.load %arg9[%c6, %c0_140, %c0_141] : memref<8x16x12xf32, #tpu.memory_space<vmem>>, vector<1x16x12xf32>
    %131 = vector.shape_cast %130 : vector<1x16x12xf32> to vector<16x12xf32>
    %cst_142 = arith.constant dense<0.000000e+00> : vector<16x24xf32>
    %132 = tpu.matmul %131, %88, %cst_142 {dimension_numbers = #tpu.dot_dimension_numbers<[1], [0], [0], [1], [0, 0, 1, 1], [], []>} : vector<16x12xf32>, vector<12x24xf32>, vector<16x24xf32> -> vector<16x24xf32>
    %c6_143 = arith.constant 6 : index
    %c0_144 = arith.constant 0 : index
    %c0_145 = arith.constant 0 : index
    %133 = vector.load %arg10[%c6_143, %c0_144, %c0_145] : memref<8x24x6xf32, #tpu.memory_space<vmem>>, vector<1x24x6xf32>
    %134 = vector.shape_cast %133 : vector<1x24x6xf32> to vector<24x6xf32>
    %cst_146 = arith.constant dense<0.000000e+00> : vector<16x6xf32>
    %135 = tpu.matmul %132, %134, %cst_146 {dimension_numbers = #tpu.dot_dimension_numbers<[1], [0], [0], [1], [0, 0, 1, 1], [], []>} : vector<16x24xf32>, vector<24x6xf32>, vector<16x6xf32> -> vector<16x6xf32>
    %136 = arith.addf %129, %135 : vector<16x6xf32>
    %c7 = arith.constant 7 : index
    %c0_147 = arith.constant 0 : index
    %c0_148 = arith.constant 0 : index
    %137 = vector.load %arg9[%c7, %c0_147, %c0_148] : memref<8x16x12xf32, #tpu.memory_space<vmem>>, vector<1x16x12xf32>
    %138 = vector.shape_cast %137 : vector<1x16x12xf32> to vector<16x12xf32>
    %cst_149 = arith.constant dense<0.000000e+00> : vector<16x24xf32>
    %139 = tpu.matmul %138, %88, %cst_149 {dimension_numbers = #tpu.dot_dimension_numbers<[1], [0], [0], [1], [0, 0, 1, 1], [], []>} : vector<16x12xf32>, vector<12x24xf32>, vector<16x24xf32> -> vector<16x24xf32>
    %c7_150 = arith.constant 7 : index
    %c0_151 = arith.constant 0 : index
    %c0_152 = arith.constant 0 : index
    %140 = vector.load %arg10[%c7_150, %c0_151, %c0_152] : memref<8x24x6xf32, #tpu.memory_space<vmem>>, vector<1x24x6xf32>
    %141 = vector.shape_cast %140 : vector<1x24x6xf32> to vector<24x6xf32>
    %cst_153 = arith.constant dense<0.000000e+00> : vector<16x6xf32>
    %142 = tpu.matmul %139, %141, %cst_153 {dimension_numbers = #tpu.dot_dimension_numbers<[1], [0], [0], [1], [0, 0, 1, 1], [], []>} : vector<16x24xf32>, vector<24x6xf32>, vector<16x6xf32> -> vector<16x6xf32>
    %143 = arith.addf %136, %142 : vector<16x6xf32>
    %cst_154 = arith.constant dense<0.000000e+00> : vector<16xf32>
    %144 = vector.multi_reduction <add>, %143, %cst_154 [1] : vector<16x6xf32> to vector<16xf32>
    %145 = vector.shape_cast %144 : vector<16xf32> to vector<16x1xf32>
    %cst_155 = arith.constant 6.000000e+00 : f32
    %146 = vector.broadcast %cst_155 : f32 to vector<16x1xf32>
    %147 = arith.divf %145, %146 : vector<16x1xf32>
    %148 = vector.broadcast %147 : vector<16x1xf32> to vector<16x6xf32>
    %149 = arith.subf %143, %148 : vector<16x6xf32>
    %150 = arith.mulf %149, %149 : vector<16x6xf32>
    %cst_156 = arith.constant dense<0.000000e+00> : vector<16xf32>
    %151 = vector.multi_reduction <add>, %150, %cst_156 [1] : vector<16x6xf32> to vector<16xf32>
    %152 = vector.shape_cast %151 : vector<16xf32> to vector<16x1xf32>
    %cst_157 = arith.constant 6.000000e+00 : f32
    %153 = vector.broadcast %cst_157 : f32 to vector<16x1xf32>
    %154 = arith.divf %152, %153 : vector<16x1xf32>
    %cst_158 = arith.constant 9.99999974E-6 : f32
    %155 = vector.broadcast %cst_158 : f32 to vector<16x1xf32>
    %156 = arith.addf %154, %155 : vector<16x1xf32>
    %157 = math.rsqrt %156 : vector<16x1xf32>
    %158 = vector.broadcast %157 : vector<16x1xf32> to vector<16x6xf32>
    %159 = arith.mulf %149, %158 : vector<16x6xf32>
    %c0_159 = arith.constant 0 : index
    %c0_160 = arith.constant 0 : index
    %160 = vector.load %arg13[%c0_159, %c0_160] : memref<1x6xf32, #tpu.memory_space<vmem>>, vector<1x6xf32>
    %161 = vector.broadcast %160 : vector<1x6xf32> to vector<16x6xf32>
    %162 = arith.mulf %159, %161 : vector<16x6xf32>
    %c0_161 = arith.constant 0 : index
    %c0_162 = arith.constant 0 : index
    %163 = vector.load %arg14[%c0_161, %c0_162] : memref<1x6xf32, #tpu.memory_space<vmem>>, vector<1x6xf32>
    %164 = vector.broadcast %163 : vector<1x6xf32> to vector<16x6xf32>
    %165 = arith.addf %162, %164 : vector<16x6xf32>
    %c0_163 = arith.constant 0 : index
    %c0_164 = arith.constant 0 : index
    %166 = vector.load %arg15[%c0_163, %c0_164] : memref<6x32xbf16, #tpu.memory_space<vmem>>, vector<6x32xbf16>
    %167 = arith.truncf %165 : vector<16x6xf32> to vector<16x6xbf16>
    %cst_165 = arith.constant dense<0.000000e+00> : vector<16x32xf32>
    %168 = tpu.matmul %167, %166, %cst_165 {dimension_numbers = #tpu.dot_dimension_numbers<[1], [0], [0], [1], [0, 0, 1, 1], [], []>} : vector<16x6xbf16>, vector<6x32xbf16>, vector<16x32xf32> -> vector<16x32xf32>
    %c0_166 = arith.constant 0 : index
    %c0_167 = arith.constant 0 : index
    %169 = vector.load %arg16[%c0_166, %c0_167] : memref<1x32xf32, #tpu.memory_space<vmem>>, vector<1x32xf32>
    %170 = vector.broadcast %169 : vector<1x32xf32> to vector<16x32xf32>
    %171 = arith.addf %168, %170 : vector<16x32xf32>
    %cst_168 = arith.constant dense<0.000000e+00> : vector<16xf32>
    %172 = vector.multi_reduction <add>, %171, %cst_168 [1] : vector<16x32xf32> to vector<16xf32>
    %173 = vector.shape_cast %172 : vector<16xf32> to vector<16x1xf32>
    %cst_169 = arith.constant 3.200000e+01 : f32
    %174 = vector.broadcast %cst_169 : f32 to vector<16x1xf32>
    %175 = arith.divf %173, %174 : vector<16x1xf32>
    %176 = vector.broadcast %175 : vector<16x1xf32> to vector<16x32xf32>
    %177 = arith.subf %171, %176 : vector<16x32xf32>
    %178 = arith.mulf %177, %177 : vector<16x32xf32>
    %cst_170 = arith.constant dense<0.000000e+00> : vector<16xf32>
    %179 = vector.multi_reduction <add>, %178, %cst_170 [1] : vector<16x32xf32> to vector<16xf32>
    %180 = vector.shape_cast %179 : vector<16xf32> to vector<16x1xf32>
    %cst_171 = arith.constant 3.200000e+01 : f32
    %181 = vector.broadcast %cst_171 : f32 to vector<16x1xf32>
    %182 = arith.divf %180, %181 : vector<16x1xf32>
    %cst_172 = arith.constant 9.99999974E-6 : f32
    %183 = vector.broadcast %cst_172 : f32 to vector<16x1xf32>
    %184 = arith.addf %182, %183 : vector<16x1xf32>
    %185 = math.rsqrt %184 : vector<16x1xf32>
    %186 = vector.broadcast %185 : vector<16x1xf32> to vector<16x32xf32>
    %187 = arith.mulf %177, %186 : vector<16x32xf32>
    %c0_173 = arith.constant 0 : index
    %c0_174 = arith.constant 0 : index
    %188 = vector.load %arg17[%c0_173, %c0_174] : memref<1x32xf32, #tpu.memory_space<vmem>>, vector<1x32xf32>
    %189 = vector.broadcast %188 : vector<1x32xf32> to vector<16x32xf32>
    %190 = arith.mulf %187, %189 : vector<16x32xf32>
    %c0_175 = arith.constant 0 : index
    %c0_176 = arith.constant 0 : index
    %191 = vector.load %arg18[%c0_175, %c0_176] : memref<1x32xf32, #tpu.memory_space<vmem>>, vector<1x32xf32>
    %192 = vector.broadcast %191 : vector<1x32xf32> to vector<16x32xf32>
    %193 = arith.addf %190, %192 : vector<16x32xf32>
    %c0_177 = arith.constant 0 : index
    %c0_178 = arith.constant 0 : index
    %194 = vector.load %arg12[%c0_177, %c0_178] : memref<16x32xf32, #tpu.memory_space<vmem>>, vector<16x32xf32>
    %195 = arith.addf %193, %194 : vector<16x32xf32>
    %c0_179 = arith.constant 0 : index
    %c0_180 = arith.constant 0 : index
    %196 = vector.load %arg11[%c0_179, %c0_180] : memref<1x32xf32, #tpu.memory_space<vmem>>, vector<1x32xf32>
    %cst_181 = arith.constant dense<0.000000e+00> : vector<16xf32>
    %197 = vector.multi_reduction <add>, %195, %cst_181 [1] : vector<16x32xf32> to vector<16xf32>
    %198 = vector.shape_cast %197 : vector<16xf32> to vector<16x1xf32>
    %cst_182 = arith.constant 3.200000e+01 : f32
    %199 = vector.broadcast %cst_182 : f32 to vector<16x1xf32>
    %200 = arith.divf %198, %199 : vector<16x1xf32>
    %201 = vector.broadcast %200 : vector<16x1xf32> to vector<16x32xf32>
    %202 = arith.subf %195, %201 : vector<16x32xf32>
    %203 = arith.mulf %202, %202 : vector<16x32xf32>
    %cst_183 = arith.constant dense<0.000000e+00> : vector<16xf32>
    %204 = vector.multi_reduction <add>, %203, %cst_183 [1] : vector<16x32xf32> to vector<16xf32>
    %205 = vector.shape_cast %204 : vector<16xf32> to vector<16x1xf32>
    %cst_184 = arith.constant 3.200000e+01 : f32
    %206 = vector.broadcast %cst_184 : f32 to vector<16x1xf32>
    %207 = arith.divf %205, %206 : vector<16x1xf32>
    %cst_185 = arith.constant 9.99999974E-6 : f32
    %208 = vector.broadcast %cst_185 : f32 to vector<16x1xf32>
    %209 = arith.addf %207, %208 : vector<16x1xf32>
    %210 = math.rsqrt %209 : vector<16x1xf32>
    %211 = vector.broadcast %210 : vector<16x1xf32> to vector<16x32xf32>
    %212 = arith.mulf %202, %211 : vector<16x32xf32>
    %c0_186 = arith.constant 0 : index
    %c0_187 = arith.constant 0 : index
    %213 = vector.load %arg19[%c0_186, %c0_187] : memref<1x32xf32, #tpu.memory_space<vmem>>, vector<1x32xf32>
    %214 = vector.broadcast %213 : vector<1x32xf32> to vector<16x32xf32>
    %215 = arith.mulf %212, %214 : vector<16x32xf32>
    %c0_188 = arith.constant 0 : index
    %c0_189 = arith.constant 0 : index
    %216 = vector.load %arg20[%c0_188, %c0_189] : memref<1x32xf32, #tpu.memory_space<vmem>>, vector<1x32xf32>
    %217 = vector.broadcast %216 : vector<1x32xf32> to vector<16x32xf32>
    %218 = arith.addf %215, %217 : vector<16x32xf32>
    %cst_190 = arith.constant dense<0.000000e+00> : vector<1xf32>
    %219 = vector.multi_reduction <add>, %196, %cst_190 [1] : vector<1x32xf32> to vector<1xf32>
    %220 = vector.shape_cast %219 : vector<1xf32> to vector<1x1xf32>
    %cst_191 = arith.constant 3.200000e+01 : f32
    %221 = vector.broadcast %cst_191 : f32 to vector<1x1xf32>
    %222 = arith.divf %220, %221 : vector<1x1xf32>
    %223 = vector.broadcast %222 : vector<1x1xf32> to vector<1x32xf32>
    %224 = arith.subf %196, %223 : vector<1x32xf32>
    %225 = arith.mulf %224, %224 : vector<1x32xf32>
    %cst_192 = arith.constant dense<0.000000e+00> : vector<1xf32>
    %226 = vector.multi_reduction <add>, %225, %cst_192 [1] : vector<1x32xf32> to vector<1xf32>
    %227 = vector.shape_cast %226 : vector<1xf32> to vector<1x1xf32>
    %cst_193 = arith.constant 3.200000e+01 : f32
    %228 = vector.broadcast %cst_193 : f32 to vector<1x1xf32>
    %229 = arith.divf %227, %228 : vector<1x1xf32>
    %cst_194 = arith.constant 9.99999974E-6 : f32
    %230 = vector.broadcast %cst_194 : f32 to vector<1x1xf32>
    %231 = arith.addf %229, %230 : vector<1x1xf32>
    %232 = math.rsqrt %231 : vector<1x1xf32>
    %233 = vector.broadcast %232 : vector<1x1xf32> to vector<1x32xf32>
    %234 = arith.mulf %224, %233 : vector<1x32xf32>
    %c0_195 = arith.constant 0 : index
    %c0_196 = arith.constant 0 : index
    %235 = vector.load %arg19[%c0_195, %c0_196] : memref<1x32xf32, #tpu.memory_space<vmem>>, vector<1x32xf32>
    %236 = arith.mulf %234, %235 : vector<1x32xf32>
    %c0_197 = arith.constant 0 : index
    %c0_198 = arith.constant 0 : index
    %237 = vector.load %arg20[%c0_197, %c0_198] : memref<1x32xf32, #tpu.memory_space<vmem>>, vector<1x32xf32>
    %238 = arith.addf %236, %237 : vector<1x32xf32>
    %cst_199 = arith.constant 0.000000e+00 : f32
    %239 = vector.broadcast %cst_199 : f32 to vector<16x32xf32>
    %cst_200 = arith.constant 0.000000e+00 : f32
    %240 = vector.broadcast %cst_200 : f32 to vector<1x32xf32>
    %c0_201 = arith.constant 0 : index
    %c0_202 = arith.constant 0 : index
    %c0_203 = arith.constant 0 : index
    %c0_204 = arith.constant 0 : index
    %241 = vector.load %arg21[%c0_201, %c0_202, %c0_203, %c0_204] : memref<3x2x32x16xbf16, #tpu.memory_space<vmem>>, vector<1x1x32x16xbf16>
    %242 = vector.shape_cast %241 : vector<1x1x32x16xbf16> to vector<32x16xbf16>
    %c1_205 = arith.constant 1 : index
    %c0_206 = arith.constant 0 : index
    %c0_207 = arith.constant 0 : index
    %c0_208 = arith.constant 0 : index
    %243 = vector.load %arg21[%c1_205, %c0_206, %c0_207, %c0_208] : memref<3x2x32x16xbf16, #tpu.memory_space<vmem>>, vector<1x1x32x16xbf16>
    %244 = vector.shape_cast %243 : vector<1x1x32x16xbf16> to vector<32x16xbf16>
    %c2_209 = arith.constant 2 : index
    %c0_210 = arith.constant 0 : index
    %c0_211 = arith.constant 0 : index
    %c0_212 = arith.constant 0 : index
    %245 = vector.load %arg21[%c2_209, %c0_210, %c0_211, %c0_212] : memref<3x2x32x16xbf16, #tpu.memory_space<vmem>>, vector<1x1x32x16xbf16>
    %246 = vector.shape_cast %245 : vector<1x1x32x16xbf16> to vector<32x16xbf16>
    %247 = arith.truncf %218 : vector<16x32xf32> to vector<16x32xbf16>
    %cst_213 = arith.constant dense<0.000000e+00> : vector<16x16xf32>
    %248 = tpu.matmul %247, %242, %cst_213 {dimension_numbers = #tpu.dot_dimension_numbers<[1], [0], [0], [1], [0, 0, 1, 1], [], []>} : vector<16x32xbf16>, vector<32x16xbf16>, vector<16x16xf32> -> vector<16x16xf32>
    %249 = arith.truncf %218 : vector<16x32xf32> to vector<16x32xbf16>
    %cst_214 = arith.constant dense<0.000000e+00> : vector<16x16xf32>
    %250 = tpu.matmul %249, %244, %cst_214 {dimension_numbers = #tpu.dot_dimension_numbers<[1], [0], [0], [1], [0, 0, 1, 1], [], []>} : vector<16x32xbf16>, vector<32x16xbf16>, vector<16x16xf32> -> vector<16x16xf32>
    %251 = arith.truncf %218 : vector<16x32xf32> to vector<16x32xbf16>
    %cst_215 = arith.constant dense<0.000000e+00> : vector<16x16xf32>
    %252 = tpu.matmul %251, %246, %cst_215 {dimension_numbers = #tpu.dot_dimension_numbers<[1], [0], [0], [1], [0, 0, 1, 1], [], []>} : vector<16x32xbf16>, vector<32x16xbf16>, vector<16x16xf32> -> vector<16x16xf32>
    %253 = arith.truncf %238 : vector<1x32xf32> to vector<1x32xbf16>
    %cst_216 = arith.constant dense<0.000000e+00> : vector<1x16xf32>
    %254 = tpu.matmul %253, %242, %cst_216 {dimension_numbers = #tpu.dot_dimension_numbers<[1], [0], [0], [1], [0, 0, 1, 1], [], []>} : vector<1x32xbf16>, vector<32x16xbf16>, vector<1x16xf32> -> vector<1x16xf32>
    %255 = arith.truncf %238 : vector<1x32xf32> to vector<1x32xbf16>
    %cst_217 = arith.constant dense<0.000000e+00> : vector<1x16xf32>
    %256 = tpu.matmul %255, %244, %cst_217 {dimension_numbers = #tpu.dot_dimension_numbers<[1], [0], [0], [1], [0, 0, 1, 1], [], []>} : vector<1x32xbf16>, vector<32x16xbf16>, vector<1x16xf32> -> vector<1x16xf32>
    %257 = arith.truncf %238 : vector<1x32xf32> to vector<1x32xbf16>
    %cst_218 = arith.constant dense<0.000000e+00> : vector<1x16xf32>
    %258 = tpu.matmul %257, %246, %cst_218 {dimension_numbers = #tpu.dot_dimension_numbers<[1], [0], [0], [1], [0, 0, 1, 1], [], []>} : vector<1x32xbf16>, vector<32x16xbf16>, vector<1x16xf32> -> vector<1x16xf32>
    %c0_219 = arith.constant 0 : index
    %c0_220 = arith.constant 0 : index
    %c0_221 = arith.constant 0 : index
    %259 = vector.load %arg22[%c0_219, %c0_220, %c0_221] : memref<2x16x32xbf16, #tpu.memory_space<vmem>>, vector<1x16x32xbf16>
    %260 = vector.shape_cast %259 : vector<1x16x32xbf16> to vector<16x32xbf16>
    %261 = arith.truncf %248 : vector<16x16xf32> to vector<16x16xbf16>
    %262 = arith.truncf %250 : vector<16x16xf32> to vector<16x16xbf16>
    %cst_222 = arith.constant dense<0.000000e+00> : vector<16x16xf32>
    %263 = tpu.matmul %261, %262, %cst_222 {dimension_numbers = #tpu.dot_dimension_numbers<[1], [1], [0], [0], [0, 0, 1, 0], [], []>} : vector<16x16xbf16>, vector<16x16xbf16>, vector<16x16xf32> -> vector<16x16xf32>
    %cst_223 = arith.constant 2.500000e-01 : f32
    %264 = vector.broadcast %cst_223 : f32 to vector<16x16xf32>
    %265 = arith.mulf %263, %264 : vector<16x16xf32>
    %266 = vector.broadcast %256 : vector<1x16xf32> to vector<16x16xf32>
    %267 = arith.mulf %248, %266 : vector<16x16xf32>
    %cst_224 = arith.constant dense<0.000000e+00> : vector<16xf32>
    %268 = vector.multi_reduction <add>, %267, %cst_224 [1] : vector<16x16xf32> to vector<16xf32>
    %269 = vector.shape_cast %268 : vector<16xf32> to vector<16x1xf32>
    %cst_225 = arith.constant 2.500000e-01 : f32
    %270 = vector.broadcast %cst_225 : f32 to vector<16x1xf32>
    %271 = arith.mulf %269, %270 : vector<16x1xf32>
    %cst_226 = arith.constant dense<0xFF800000> : vector<16xf32>
    %272 = vector.multi_reduction <maximumf>, %265, %cst_226 [1] : vector<16x16xf32> to vector<16xf32>
    %273 = vector.shape_cast %272 : vector<16xf32> to vector<16x1xf32>
    %274 = arith.maximumf %273, %271 : vector<16x1xf32>
    %275 = vector.broadcast %274 : vector<16x1xf32> to vector<16x16xf32>
    %276 = arith.subf %265, %275 : vector<16x16xf32>
    %277 = math.exp %276 : vector<16x16xf32>
    %278 = arith.subf %271, %274 : vector<16x1xf32>
    %279 = math.exp %278 : vector<16x1xf32>
    %cst_227 = arith.constant dense<0.000000e+00> : vector<16xf32>
    %280 = vector.multi_reduction <add>, %277, %cst_227 [1] : vector<16x16xf32> to vector<16xf32>
    %281 = vector.shape_cast %280 : vector<16xf32> to vector<16x1xf32>
    %282 = arith.addf %281, %279 : vector<16x1xf32>
    %283 = tpu.reciprocal %282 {approx = true} : vector<16x1xf32> -> vector<16x1xf32>
    %284 = vector.broadcast %283 : vector<16x1xf32> to vector<16x16xf32>
    %285 = arith.mulf %277, %284 : vector<16x16xf32>
    %286 = arith.truncf %285 : vector<16x16xf32> to vector<16x16xbf16>
    %287 = arith.truncf %252 : vector<16x16xf32> to vector<16x16xbf16>
    %cst_228 = arith.constant dense<0.000000e+00> : vector<16x16xf32>
    %288 = tpu.matmul %286, %287, %cst_228 {dimension_numbers = #tpu.dot_dimension_numbers<[1], [0], [0], [1], [0, 0, 1, 1], [], []>} : vector<16x16xbf16>, vector<16x16xbf16>, vector<16x16xf32> -> vector<16x16xf32>
    %289 = arith.mulf %279, %283 : vector<16x1xf32>
    %290 = vector.broadcast %289 : vector<16x1xf32> to vector<16x16xf32>
    %291 = vector.broadcast %258 : vector<1x16xf32> to vector<16x16xf32>
    %292 = arith.mulf %290, %291 : vector<16x16xf32>
    %293 = arith.addf %288, %292 : vector<16x16xf32>
    %294 = arith.truncf %293 : vector<16x16xf32> to vector<16x16xbf16>
    %cst_229 = arith.constant dense<0.000000e+00> : vector<16x32xf32>
    %295 = tpu.matmul %294, %260, %cst_229 {dimension_numbers = #tpu.dot_dimension_numbers<[1], [0], [0], [1], [0, 0, 1, 1], [], []>} : vector<16x16xbf16>, vector<16x32xbf16>, vector<16x32xf32> -> vector<16x32xf32>
    %296 = arith.addf %239, %295 : vector<16x32xf32>
    %297 = arith.truncf %254 : vector<1x16xf32> to vector<1x16xbf16>
    %298 = arith.truncf %250 : vector<16x16xf32> to vector<16x16xbf16>
    %cst_230 = arith.constant dense<0.000000e+00> : vector<1x16xf32>
    %299 = tpu.matmul %297, %298, %cst_230 {dimension_numbers = #tpu.dot_dimension_numbers<[1], [1], [0], [0], [0, 0, 1, 0], [], []>} : vector<1x16xbf16>, vector<16x16xbf16>, vector<1x16xf32> -> vector<1x16xf32>
    %cst_231 = arith.constant 2.500000e-01 : f32
    %300 = vector.broadcast %cst_231 : f32 to vector<1x16xf32>
    %301 = arith.mulf %299, %300 : vector<1x16xf32>
    %302 = arith.mulf %254, %256 : vector<1x16xf32>
    %cst_232 = arith.constant dense<0.000000e+00> : vector<1xf32>
    %303 = vector.multi_reduction <add>, %302, %cst_232 [1] : vector<1x16xf32> to vector<1xf32>
    %304 = vector.shape_cast %303 : vector<1xf32> to vector<1x1xf32>
    %cst_233 = arith.constant 2.500000e-01 : f32
    %305 = vector.broadcast %cst_233 : f32 to vector<1x1xf32>
    %306 = arith.mulf %304, %305 : vector<1x1xf32>
    %cst_234 = arith.constant dense<0xFF800000> : vector<1xf32>
    %307 = vector.multi_reduction <maximumf>, %301, %cst_234 [1] : vector<1x16xf32> to vector<1xf32>
    %308 = vector.shape_cast %307 : vector<1xf32> to vector<1x1xf32>
    %309 = arith.maximumf %308, %306 : vector<1x1xf32>
    %310 = vector.broadcast %309 : vector<1x1xf32> to vector<1x16xf32>
    %311 = arith.subf %301, %310 : vector<1x16xf32>
    %312 = math.exp %311 : vector<1x16xf32>
    %313 = arith.subf %306, %309 : vector<1x1xf32>
    %314 = math.exp %313 : vector<1x1xf32>
    %cst_235 = arith.constant dense<0.000000e+00> : vector<1xf32>
    %315 = vector.multi_reduction <add>, %312, %cst_235 [1] : vector<1x16xf32> to vector<1xf32>
    %316 = vector.shape_cast %315 : vector<1xf32> to vector<1x1xf32>
    %317 = arith.addf %316, %314 : vector<1x1xf32>
    %318 = tpu.reciprocal %317 {approx = true} : vector<1x1xf32> -> vector<1x1xf32>
    %319 = vector.broadcast %318 : vector<1x1xf32> to vector<1x16xf32>
    %320 = arith.mulf %312, %319 : vector<1x16xf32>
    %321 = arith.truncf %320 : vector<1x16xf32> to vector<1x16xbf16>
    %322 = arith.truncf %252 : vector<16x16xf32> to vector<16x16xbf16>
    %cst_236 = arith.constant dense<0.000000e+00> : vector<1x16xf32>
    %323 = tpu.matmul %321, %322, %cst_236 {dimension_numbers = #tpu.dot_dimension_numbers<[1], [0], [0], [1], [0, 0, 1, 1], [], []>} : vector<1x16xbf16>, vector<16x16xbf16>, vector<1x16xf32> -> vector<1x16xf32>
    %324 = arith.mulf %314, %318 : vector<1x1xf32>
    %325 = vector.broadcast %324 : vector<1x1xf32> to vector<1x16xf32>
    %326 = arith.mulf %325, %258 : vector<1x16xf32>
    %327 = arith.addf %323, %326 : vector<1x16xf32>
    %328 = arith.truncf %327 : vector<1x16xf32> to vector<1x16xbf16>
    %cst_237 = arith.constant dense<0.000000e+00> : vector<1x32xf32>
    %329 = tpu.matmul %328, %260, %cst_237 {dimension_numbers = #tpu.dot_dimension_numbers<[1], [0], [0], [1], [0, 0, 1, 1], [], []>} : vector<1x16xbf16>, vector<16x32xbf16>, vector<1x32xf32> -> vector<1x32xf32>
    %330 = arith.addf %240, %329 : vector<1x32xf32>
    %c0_238 = arith.constant 0 : index
    %c1_239 = arith.constant 1 : index
    %c0_240 = arith.constant 0 : index
    %c0_241 = arith.constant 0 : index
    %331 = vector.load %arg21[%c0_238, %c1_239, %c0_240, %c0_241] : memref<3x2x32x16xbf16, #tpu.memory_space<vmem>>, vector<1x1x32x16xbf16>
    %332 = vector.shape_cast %331 : vector<1x1x32x16xbf16> to vector<32x16xbf16>
    %c1_242 = arith.constant 1 : index
    %c1_243 = arith.constant 1 : index
    %c0_244 = arith.constant 0 : index
    %c0_245 = arith.constant 0 : index
    %333 = vector.load %arg21[%c1_242, %c1_243, %c0_244, %c0_245] : memref<3x2x32x16xbf16, #tpu.memory_space<vmem>>, vector<1x1x32x16xbf16>
    %334 = vector.shape_cast %333 : vector<1x1x32x16xbf16> to vector<32x16xbf16>
    %c2_246 = arith.constant 2 : index
    %c1_247 = arith.constant 1 : index
    %c0_248 = arith.constant 0 : index
    %c0_249 = arith.constant 0 : index
    %335 = vector.load %arg21[%c2_246, %c1_247, %c0_248, %c0_249] : memref<3x2x32x16xbf16, #tpu.memory_space<vmem>>, vector<1x1x32x16xbf16>
    %336 = vector.shape_cast %335 : vector<1x1x32x16xbf16> to vector<32x16xbf16>
    %337 = arith.truncf %218 : vector<16x32xf32> to vector<16x32xbf16>
    %cst_250 = arith.constant dense<0.000000e+00> : vector<16x16xf32>
    %338 = tpu.matmul %337, %332, %cst_250 {dimension_numbers = #tpu.dot_dimension_numbers<[1], [0], [0], [1], [0, 0, 1, 1], [], []>} : vector<16x32xbf16>, vector<32x16xbf16>, vector<16x16xf32> -> vector<16x16xf32>
    %339 = arith.truncf %218 : vector<16x32xf32> to vector<16x32xbf16>
    %cst_251 = arith.constant dense<0.000000e+00> : vector<16x16xf32>
    %340 = tpu.matmul %339, %334, %cst_251 {dimension_numbers = #tpu.dot_dimension_numbers<[1], [0], [0], [1], [0, 0, 1, 1], [], []>} : vector<16x32xbf16>, vector<32x16xbf16>, vector<16x16xf32> -> vector<16x16xf32>
    %341 = arith.truncf %218 : vector<16x32xf32> to vector<16x32xbf16>
    %cst_252 = arith.constant dense<0.000000e+00> : vector<16x16xf32>
    %342 = tpu.matmul %341, %336, %cst_252 {dimension_numbers = #tpu.dot_dimension_numbers<[1], [0], [0], [1], [0, 0, 1, 1], [], []>} : vector<16x32xbf16>, vector<32x16xbf16>, vector<16x16xf32> -> vector<16x16xf32>
    %343 = arith.truncf %238 : vector<1x32xf32> to vector<1x32xbf16>
    %cst_253 = arith.constant dense<0.000000e+00> : vector<1x16xf32>
    %344 = tpu.matmul %343, %332, %cst_253 {dimension_numbers = #tpu.dot_dimension_numbers<[1], [0], [0], [1], [0, 0, 1, 1], [], []>} : vector<1x32xbf16>, vector<32x16xbf16>, vector<1x16xf32> -> vector<1x16xf32>
    %345 = arith.truncf %238 : vector<1x32xf32> to vector<1x32xbf16>
    %cst_254 = arith.constant dense<0.000000e+00> : vector<1x16xf32>
    %346 = tpu.matmul %345, %334, %cst_254 {dimension_numbers = #tpu.dot_dimension_numbers<[1], [0], [0], [1], [0, 0, 1, 1], [], []>} : vector<1x32xbf16>, vector<32x16xbf16>, vector<1x16xf32> -> vector<1x16xf32>
    %347 = arith.truncf %238 : vector<1x32xf32> to vector<1x32xbf16>
    %cst_255 = arith.constant dense<0.000000e+00> : vector<1x16xf32>
    %348 = tpu.matmul %347, %336, %cst_255 {dimension_numbers = #tpu.dot_dimension_numbers<[1], [0], [0], [1], [0, 0, 1, 1], [], []>} : vector<1x32xbf16>, vector<32x16xbf16>, vector<1x16xf32> -> vector<1x16xf32>
    %c1_256 = arith.constant 1 : index
    %c0_257 = arith.constant 0 : index
    %c0_258 = arith.constant 0 : index
    %349 = vector.load %arg22[%c1_256, %c0_257, %c0_258] : memref<2x16x32xbf16, #tpu.memory_space<vmem>>, vector<1x16x32xbf16>
    %350 = vector.shape_cast %349 : vector<1x16x32xbf16> to vector<16x32xbf16>
    %351 = arith.truncf %338 : vector<16x16xf32> to vector<16x16xbf16>
    %352 = arith.truncf %340 : vector<16x16xf32> to vector<16x16xbf16>
    %cst_259 = arith.constant dense<0.000000e+00> : vector<16x16xf32>
    %353 = tpu.matmul %351, %352, %cst_259 {dimension_numbers = #tpu.dot_dimension_numbers<[1], [1], [0], [0], [0, 0, 1, 0], [], []>} : vector<16x16xbf16>, vector<16x16xbf16>, vector<16x16xf32> -> vector<16x16xf32>
    %cst_260 = arith.constant 2.500000e-01 : f32
    %354 = vector.broadcast %cst_260 : f32 to vector<16x16xf32>
    %355 = arith.mulf %353, %354 : vector<16x16xf32>
    %356 = vector.broadcast %346 : vector<1x16xf32> to vector<16x16xf32>
    %357 = arith.mulf %338, %356 : vector<16x16xf32>
    %cst_261 = arith.constant dense<0.000000e+00> : vector<16xf32>
    %358 = vector.multi_reduction <add>, %357, %cst_261 [1] : vector<16x16xf32> to vector<16xf32>
    %359 = vector.shape_cast %358 : vector<16xf32> to vector<16x1xf32>
    %cst_262 = arith.constant 2.500000e-01 : f32
    %360 = vector.broadcast %cst_262 : f32 to vector<16x1xf32>
    %361 = arith.mulf %359, %360 : vector<16x1xf32>
    %cst_263 = arith.constant dense<0xFF800000> : vector<16xf32>
    %362 = vector.multi_reduction <maximumf>, %355, %cst_263 [1] : vector<16x16xf32> to vector<16xf32>
    %363 = vector.shape_cast %362 : vector<16xf32> to vector<16x1xf32>
    %364 = arith.maximumf %363, %361 : vector<16x1xf32>
    %365 = vector.broadcast %364 : vector<16x1xf32> to vector<16x16xf32>
    %366 = arith.subf %355, %365 : vector<16x16xf32>
    %367 = math.exp %366 : vector<16x16xf32>
    %368 = arith.subf %361, %364 : vector<16x1xf32>
    %369 = math.exp %368 : vector<16x1xf32>
    %cst_264 = arith.constant dense<0.000000e+00> : vector<16xf32>
    %370 = vector.multi_reduction <add>, %367, %cst_264 [1] : vector<16x16xf32> to vector<16xf32>
    %371 = vector.shape_cast %370 : vector<16xf32> to vector<16x1xf32>
    %372 = arith.addf %371, %369 : vector<16x1xf32>
    %373 = tpu.reciprocal %372 {approx = true} : vector<16x1xf32> -> vector<16x1xf32>
    %374 = vector.broadcast %373 : vector<16x1xf32> to vector<16x16xf32>
    %375 = arith.mulf %367, %374 : vector<16x16xf32>
    %376 = arith.truncf %375 : vector<16x16xf32> to vector<16x16xbf16>
    %377 = arith.truncf %342 : vector<16x16xf32> to vector<16x16xbf16>
    %cst_265 = arith.constant dense<0.000000e+00> : vector<16x16xf32>
    %378 = tpu.matmul %376, %377, %cst_265 {dimension_numbers = #tpu.dot_dimension_numbers<[1], [0], [0], [1], [0, 0, 1, 1], [], []>} : vector<16x16xbf16>, vector<16x16xbf16>, vector<16x16xf32> -> vector<16x16xf32>
    %379 = arith.mulf %369, %373 : vector<16x1xf32>
    %380 = vector.broadcast %379 : vector<16x1xf32> to vector<16x16xf32>
    %381 = vector.broadcast %348 : vector<1x16xf32> to vector<16x16xf32>
    %382 = arith.mulf %380, %381 : vector<16x16xf32>
    %383 = arith.addf %378, %382 : vector<16x16xf32>
    %384 = arith.truncf %383 : vector<16x16xf32> to vector<16x16xbf16>
    %cst_266 = arith.constant dense<0.000000e+00> : vector<16x32xf32>
    %385 = tpu.matmul %384, %350, %cst_266 {dimension_numbers = #tpu.dot_dimension_numbers<[1], [0], [0], [1], [0, 0, 1, 1], [], []>} : vector<16x16xbf16>, vector<16x32xbf16>, vector<16x32xf32> -> vector<16x32xf32>
    %386 = arith.addf %296, %385 : vector<16x32xf32>
    %387 = arith.truncf %344 : vector<1x16xf32> to vector<1x16xbf16>
    %388 = arith.truncf %340 : vector<16x16xf32> to vector<16x16xbf16>
    %cst_267 = arith.constant dense<0.000000e+00> : vector<1x16xf32>
    %389 = tpu.matmul %387, %388, %cst_267 {dimension_numbers = #tpu.dot_dimension_numbers<[1], [1], [0], [0], [0, 0, 1, 0], [], []>} : vector<1x16xbf16>, vector<16x16xbf16>, vector<1x16xf32> -> vector<1x16xf32>
    %cst_268 = arith.constant 2.500000e-01 : f32
    %390 = vector.broadcast %cst_268 : f32 to vector<1x16xf32>
    %391 = arith.mulf %389, %390 : vector<1x16xf32>
    %392 = arith.mulf %344, %346 : vector<1x16xf32>
    %cst_269 = arith.constant dense<0.000000e+00> : vector<1xf32>
    %393 = vector.multi_reduction <add>, %392, %cst_269 [1] : vector<1x16xf32> to vector<1xf32>
    %394 = vector.shape_cast %393 : vector<1xf32> to vector<1x1xf32>
    %cst_270 = arith.constant 2.500000e-01 : f32
    %395 = vector.broadcast %cst_270 : f32 to vector<1x1xf32>
    %396 = arith.mulf %394, %395 : vector<1x1xf32>
    %cst_271 = arith.constant dense<0xFF800000> : vector<1xf32>
    %397 = vector.multi_reduction <maximumf>, %391, %cst_271 [1] : vector<1x16xf32> to vector<1xf32>
    %398 = vector.shape_cast %397 : vector<1xf32> to vector<1x1xf32>
    %399 = arith.maximumf %398, %396 : vector<1x1xf32>
    %400 = vector.broadcast %399 : vector<1x1xf32> to vector<1x16xf32>
    %401 = arith.subf %391, %400 : vector<1x16xf32>
    %402 = math.exp %401 : vector<1x16xf32>
    %403 = arith.subf %396, %399 : vector<1x1xf32>
    %404 = math.exp %403 : vector<1x1xf32>
    %cst_272 = arith.constant dense<0.000000e+00> : vector<1xf32>
    %405 = vector.multi_reduction <add>, %402, %cst_272 [1] : vector<1x16xf32> to vector<1xf32>
    %406 = vector.shape_cast %405 : vector<1xf32> to vector<1x1xf32>
    %407 = arith.addf %406, %404 : vector<1x1xf32>
    %408 = tpu.reciprocal %407 {approx = true} : vector<1x1xf32> -> vector<1x1xf32>
    %409 = vector.broadcast %408 : vector<1x1xf32> to vector<1x16xf32>
    %410 = arith.mulf %402, %409 : vector<1x16xf32>
    %411 = arith.truncf %410 : vector<1x16xf32> to vector<1x16xbf16>
    %412 = arith.truncf %342 : vector<16x16xf32> to vector<16x16xbf16>
    %cst_273 = arith.constant dense<0.000000e+00> : vector<1x16xf32>
    %413 = tpu.matmul %411, %412, %cst_273 {dimension_numbers = #tpu.dot_dimension_numbers<[1], [0], [0], [1], [0, 0, 1, 1], [], []>} : vector<1x16xbf16>, vector<16x16xbf16>, vector<1x16xf32> -> vector<1x16xf32>
    %414 = arith.mulf %404, %408 : vector<1x1xf32>
    %415 = vector.broadcast %414 : vector<1x1xf32> to vector<1x16xf32>
    %416 = arith.mulf %415, %348 : vector<1x16xf32>
    %417 = arith.addf %413, %416 : vector<1x16xf32>
    %418 = arith.truncf %417 : vector<1x16xf32> to vector<1x16xbf16>
    %cst_274 = arith.constant dense<0.000000e+00> : vector<1x32xf32>
    %419 = tpu.matmul %418, %350, %cst_274 {dimension_numbers = #tpu.dot_dimension_numbers<[1], [0], [0], [1], [0, 0, 1, 1], [], []>} : vector<1x16xbf16>, vector<16x32xbf16>, vector<1x32xf32> -> vector<1x32xf32>
    %420 = arith.addf %330, %419 : vector<1x32xf32>
    %421 = arith.addf %195, %386 : vector<16x32xf32>
    %c0_275 = arith.constant 0 : index
    %c0_276 = arith.constant 0 : index
    %422 = vector.load %arg23[%c0_275, %c0_276] : memref<1x32xf32, #tpu.memory_space<vmem>>, vector<1x32xf32>
    %423 = vector.broadcast %422 : vector<1x32xf32> to vector<16x32xf32>
    %424 = arith.addf %421, %423 : vector<16x32xf32>
    %425 = arith.addf %196, %420 : vector<1x32xf32>
    %c0_277 = arith.constant 0 : index
    %c0_278 = arith.constant 0 : index
    %426 = vector.load %arg23[%c0_277, %c0_278] : memref<1x32xf32, #tpu.memory_space<vmem>>, vector<1x32xf32>
    %427 = arith.addf %425, %426 : vector<1x32xf32>
    %cst_279 = arith.constant dense<0.000000e+00> : vector<16xf32>
    %428 = vector.multi_reduction <add>, %424, %cst_279 [1] : vector<16x32xf32> to vector<16xf32>
    %429 = vector.shape_cast %428 : vector<16xf32> to vector<16x1xf32>
    %cst_280 = arith.constant 3.200000e+01 : f32
    %430 = vector.broadcast %cst_280 : f32 to vector<16x1xf32>
    %431 = arith.divf %429, %430 : vector<16x1xf32>
    %432 = vector.broadcast %431 : vector<16x1xf32> to vector<16x32xf32>
    %433 = arith.subf %424, %432 : vector<16x32xf32>
    %434 = arith.mulf %433, %433 : vector<16x32xf32>
    %cst_281 = arith.constant dense<0.000000e+00> : vector<16xf32>
    %435 = vector.multi_reduction <add>, %434, %cst_281 [1] : vector<16x32xf32> to vector<16xf32>
    %436 = vector.shape_cast %435 : vector<16xf32> to vector<16x1xf32>
    %cst_282 = arith.constant 3.200000e+01 : f32
    %437 = vector.broadcast %cst_282 : f32 to vector<16x1xf32>
    %438 = arith.divf %436, %437 : vector<16x1xf32>
    %cst_283 = arith.constant 9.99999974E-6 : f32
    %439 = vector.broadcast %cst_283 : f32 to vector<16x1xf32>
    %440 = arith.addf %438, %439 : vector<16x1xf32>
    %441 = math.rsqrt %440 : vector<16x1xf32>
    %442 = vector.broadcast %441 : vector<16x1xf32> to vector<16x32xf32>
    %443 = arith.mulf %433, %442 : vector<16x32xf32>
    %c0_284 = arith.constant 0 : index
    %c0_285 = arith.constant 0 : index
    %444 = vector.load %arg24[%c0_284, %c0_285] : memref<1x32xf32, #tpu.memory_space<vmem>>, vector<1x32xf32>
    %445 = vector.broadcast %444 : vector<1x32xf32> to vector<16x32xf32>
    %446 = arith.mulf %443, %445 : vector<16x32xf32>
    %c0_286 = arith.constant 0 : index
    %c0_287 = arith.constant 0 : index
    %447 = vector.load %arg25[%c0_286, %c0_287] : memref<1x32xf32, #tpu.memory_space<vmem>>, vector<1x32xf32>
    %448 = vector.broadcast %447 : vector<1x32xf32> to vector<16x32xf32>
    %449 = arith.addf %446, %448 : vector<16x32xf32>
    %cst_288 = arith.constant dense<0.000000e+00> : vector<1xf32>
    %450 = vector.multi_reduction <add>, %427, %cst_288 [1] : vector<1x32xf32> to vector<1xf32>
    %451 = vector.shape_cast %450 : vector<1xf32> to vector<1x1xf32>
    %cst_289 = arith.constant 3.200000e+01 : f32
    %452 = vector.broadcast %cst_289 : f32 to vector<1x1xf32>
    %453 = arith.divf %451, %452 : vector<1x1xf32>
    %454 = vector.broadcast %453 : vector<1x1xf32> to vector<1x32xf32>
    %455 = arith.subf %427, %454 : vector<1x32xf32>
    %456 = arith.mulf %455, %455 : vector<1x32xf32>
    %cst_290 = arith.constant dense<0.000000e+00> : vector<1xf32>
    %457 = vector.multi_reduction <add>, %456, %cst_290 [1] : vector<1x32xf32> to vector<1xf32>
    %458 = vector.shape_cast %457 : vector<1xf32> to vector<1x1xf32>
    %cst_291 = arith.constant 3.200000e+01 : f32
    %459 = vector.broadcast %cst_291 : f32 to vector<1x1xf32>
    %460 = arith.divf %458, %459 : vector<1x1xf32>
    %cst_292 = arith.constant 9.99999974E-6 : f32
    %461 = vector.broadcast %cst_292 : f32 to vector<1x1xf32>
    %462 = arith.addf %460, %461 : vector<1x1xf32>
    %463 = math.rsqrt %462 : vector<1x1xf32>
    %464 = vector.broadcast %463 : vector<1x1xf32> to vector<1x32xf32>
    %465 = arith.mulf %455, %464 : vector<1x32xf32>
    %c0_293 = arith.constant 0 : index
    %c0_294 = arith.constant 0 : index
    %466 = vector.load %arg24[%c0_293, %c0_294] : memref<1x32xf32, #tpu.memory_space<vmem>>, vector<1x32xf32>
    %467 = arith.mulf %465, %466 : vector<1x32xf32>
    %c0_295 = arith.constant 0 : index
    %c0_296 = arith.constant 0 : index
    %468 = vector.load %arg25[%c0_295, %c0_296] : memref<1x32xf32, #tpu.memory_space<vmem>>, vector<1x32xf32>
    %469 = arith.addf %467, %468 : vector<1x32xf32>
    %c0_297 = arith.constant 0 : index
    %c0_298 = arith.constant 0 : index
    %470 = vector.load %arg26[%c0_297, %c0_298] : memref<32x64xbf16, #tpu.memory_space<vmem>>, vector<32x64xbf16>
    %471 = arith.truncf %449 : vector<16x32xf32> to vector<16x32xbf16>
    %cst_299 = arith.constant dense<0.000000e+00> : vector<16x64xf32>
    %472 = tpu.matmul %471, %470, %cst_299 {dimension_numbers = #tpu.dot_dimension_numbers<[1], [0], [0], [1], [0, 0, 1, 1], [], []>} : vector<16x32xbf16>, vector<32x64xbf16>, vector<16x64xf32> -> vector<16x64xf32>
    %c0_300 = arith.constant 0 : index
    %c0_301 = arith.constant 0 : index
    %473 = vector.load %arg27[%c0_300, %c0_301] : memref<1x64xf32, #tpu.memory_space<vmem>>, vector<1x64xf32>
    %474 = vector.broadcast %473 : vector<1x64xf32> to vector<16x64xf32>
    %475 = arith.addf %472, %474 : vector<16x64xf32>
    %cst_302 = arith.constant 5.000000e-01 : f32
    %476 = vector.broadcast %cst_302 : f32 to vector<16x64xf32>
    %477 = arith.mulf %476, %475 : vector<16x64xf32>
    %cst_303 = arith.constant 4.471500e-02 : f32
    %478 = vector.broadcast %cst_303 : f32 to vector<16x64xf32>
    %479 = arith.mulf %478, %475 : vector<16x64xf32>
    %480 = arith.mulf %479, %475 : vector<16x64xf32>
    %481 = arith.mulf %480, %475 : vector<16x64xf32>
    %482 = arith.addf %475, %481 : vector<16x64xf32>
    %cst_304 = arith.constant 0.797884583 : f32
    %483 = vector.broadcast %cst_304 : f32 to vector<16x64xf32>
    %484 = arith.mulf %483, %482 : vector<16x64xf32>
    %485 = math.tanh %484 : vector<16x64xf32>
    %cst_305 = arith.constant 1.000000e+00 : f32
    %486 = vector.broadcast %cst_305 : f32 to vector<16x64xf32>
    %487 = arith.addf %486, %485 : vector<16x64xf32>
    %488 = arith.mulf %477, %487 : vector<16x64xf32>
    %c0_306 = arith.constant 0 : index
    %c0_307 = arith.constant 0 : index
    %489 = vector.load %arg28[%c0_306, %c0_307] : memref<64x32xbf16, #tpu.memory_space<vmem>>, vector<64x32xbf16>
    %490 = arith.truncf %488 : vector<16x64xf32> to vector<16x64xbf16>
    %cst_308 = arith.constant dense<0.000000e+00> : vector<16x32xf32>
    %491 = tpu.matmul %490, %489, %cst_308 {dimension_numbers = #tpu.dot_dimension_numbers<[1], [0], [0], [1], [0, 0, 1, 1], [], []>} : vector<16x64xbf16>, vector<64x32xbf16>, vector<16x32xf32> -> vector<16x32xf32>
    %c0_309 = arith.constant 0 : index
    %c0_310 = arith.constant 0 : index
    %492 = vector.load %arg29[%c0_309, %c0_310] : memref<1x32xf32, #tpu.memory_space<vmem>>, vector<1x32xf32>
    %493 = vector.broadcast %492 : vector<1x32xf32> to vector<16x32xf32>
    %494 = arith.addf %491, %493 : vector<16x32xf32>
    %c0_311 = arith.constant 0 : index
    %c0_312 = arith.constant 0 : index
    %495 = vector.load %arg26[%c0_311, %c0_312] : memref<32x64xbf16, #tpu.memory_space<vmem>>, vector<32x64xbf16>
    %496 = arith.truncf %469 : vector<1x32xf32> to vector<1x32xbf16>
    %cst_313 = arith.constant dense<0.000000e+00> : vector<1x64xf32>
    %497 = tpu.matmul %496, %495, %cst_313 {dimension_numbers = #tpu.dot_dimension_numbers<[1], [0], [0], [1], [0, 0, 1, 1], [], []>} : vector<1x32xbf16>, vector<32x64xbf16>, vector<1x64xf32> -> vector<1x64xf32>
    %c0_314 = arith.constant 0 : index
    %c0_315 = arith.constant 0 : index
    %498 = vector.load %arg27[%c0_314, %c0_315] : memref<1x64xf32, #tpu.memory_space<vmem>>, vector<1x64xf32>
    %499 = arith.addf %497, %498 : vector<1x64xf32>
    %cst_316 = arith.constant 5.000000e-01 : f32
    %500 = vector.broadcast %cst_316 : f32 to vector<1x64xf32>
    %501 = arith.mulf %500, %499 : vector<1x64xf32>
    %cst_317 = arith.constant 4.471500e-02 : f32
    %502 = vector.broadcast %cst_317 : f32 to vector<1x64xf32>
    %503 = arith.mulf %502, %499 : vector<1x64xf32>
    %504 = arith.mulf %503, %499 : vector<1x64xf32>
    %505 = arith.mulf %504, %499 : vector<1x64xf32>
    %506 = arith.addf %499, %505 : vector<1x64xf32>
    %cst_318 = arith.constant 0.797884583 : f32
    %507 = vector.broadcast %cst_318 : f32 to vector<1x64xf32>
    %508 = arith.mulf %507, %506 : vector<1x64xf32>
    %509 = math.tanh %508 : vector<1x64xf32>
    %cst_319 = arith.constant 1.000000e+00 : f32
    %510 = vector.broadcast %cst_319 : f32 to vector<1x64xf32>
    %511 = arith.addf %510, %509 : vector<1x64xf32>
    %512 = arith.mulf %501, %511 : vector<1x64xf32>
    %c0_320 = arith.constant 0 : index
    %c0_321 = arith.constant 0 : index
    %513 = vector.load %arg28[%c0_320, %c0_321] : memref<64x32xbf16, #tpu.memory_space<vmem>>, vector<64x32xbf16>
    %514 = arith.truncf %512 : vector<1x64xf32> to vector<1x64xbf16>
    %cst_322 = arith.constant dense<0.000000e+00> : vector<1x32xf32>
    %515 = tpu.matmul %514, %513, %cst_322 {dimension_numbers = #tpu.dot_dimension_numbers<[1], [0], [0], [1], [0, 0, 1, 1], [], []>} : vector<1x64xbf16>, vector<64x32xbf16>, vector<1x32xf32> -> vector<1x32xf32>
    %c0_323 = arith.constant 0 : index
    %c0_324 = arith.constant 0 : index
    %516 = vector.load %arg29[%c0_323, %c0_324] : memref<1x32xf32, #tpu.memory_space<vmem>>, vector<1x32xf32>
    %517 = arith.addf %515, %516 : vector<1x32xf32>
    %518 = arith.addf %424, %494 : vector<16x32xf32>
    %519 = arith.addf %427, %517 : vector<1x32xf32>
    %cst_325 = arith.constant dense<0.000000e+00> : vector<16xf32>
    %520 = vector.multi_reduction <add>, %518, %cst_325 [1] : vector<16x32xf32> to vector<16xf32>
    %521 = vector.shape_cast %520 : vector<16xf32> to vector<16x1xf32>
    %cst_326 = arith.constant 3.200000e+01 : f32
    %522 = vector.broadcast %cst_326 : f32 to vector<16x1xf32>
    %523 = arith.divf %521, %522 : vector<16x1xf32>
    %524 = vector.broadcast %523 : vector<16x1xf32> to vector<16x32xf32>
    %525 = arith.subf %518, %524 : vector<16x32xf32>
    %526 = arith.mulf %525, %525 : vector<16x32xf32>
    %cst_327 = arith.constant dense<0.000000e+00> : vector<16xf32>
    %527 = vector.multi_reduction <add>, %526, %cst_327 [1] : vector<16x32xf32> to vector<16xf32>
    %528 = vector.shape_cast %527 : vector<16xf32> to vector<16x1xf32>
    %cst_328 = arith.constant 3.200000e+01 : f32
    %529 = vector.broadcast %cst_328 : f32 to vector<16x1xf32>
    %530 = arith.divf %528, %529 : vector<16x1xf32>
    %cst_329 = arith.constant 9.99999974E-6 : f32
    %531 = vector.broadcast %cst_329 : f32 to vector<16x1xf32>
    %532 = arith.addf %530, %531 : vector<16x1xf32>
    %533 = math.rsqrt %532 : vector<16x1xf32>
    %534 = vector.broadcast %533 : vector<16x1xf32> to vector<16x32xf32>
    %535 = arith.mulf %525, %534 : vector<16x32xf32>
    %c0_330 = arith.constant 0 : index
    %c0_331 = arith.constant 0 : index
    %536 = vector.load %arg30[%c0_330, %c0_331] : memref<1x32xf32, #tpu.memory_space<vmem>>, vector<1x32xf32>
    %537 = vector.broadcast %536 : vector<1x32xf32> to vector<16x32xf32>
    %538 = arith.mulf %535, %537 : vector<16x32xf32>
    %c0_332 = arith.constant 0 : index
    %c0_333 = arith.constant 0 : index
    %539 = vector.load %arg31[%c0_332, %c0_333] : memref<1x32xf32, #tpu.memory_space<vmem>>, vector<1x32xf32>
    %540 = vector.broadcast %539 : vector<1x32xf32> to vector<16x32xf32>
    %541 = arith.addf %538, %540 : vector<16x32xf32>
    %cst_334 = arith.constant dense<0.000000e+00> : vector<1xf32>
    %542 = vector.multi_reduction <add>, %519, %cst_334 [1] : vector<1x32xf32> to vector<1xf32>
    %543 = vector.shape_cast %542 : vector<1xf32> to vector<1x1xf32>
    %cst_335 = arith.constant 3.200000e+01 : f32
    %544 = vector.broadcast %cst_335 : f32 to vector<1x1xf32>
    %545 = arith.divf %543, %544 : vector<1x1xf32>
    %546 = vector.broadcast %545 : vector<1x1xf32> to vector<1x32xf32>
    %547 = arith.subf %519, %546 : vector<1x32xf32>
    %548 = arith.mulf %547, %547 : vector<1x32xf32>
    %cst_336 = arith.constant dense<0.000000e+00> : vector<1xf32>
    %549 = vector.multi_reduction <add>, %548, %cst_336 [1] : vector<1x32xf32> to vector<1xf32>
    %550 = vector.shape_cast %549 : vector<1xf32> to vector<1x1xf32>
    %cst_337 = arith.constant 3.200000e+01 : f32
    %551 = vector.broadcast %cst_337 : f32 to vector<1x1xf32>
    %552 = arith.divf %550, %551 : vector<1x1xf32>
    %cst_338 = arith.constant 9.99999974E-6 : f32
    %553 = vector.broadcast %cst_338 : f32 to vector<1x1xf32>
    %554 = arith.addf %552, %553 : vector<1x1xf32>
    %555 = math.rsqrt %554 : vector<1x1xf32>
    %556 = vector.broadcast %555 : vector<1x1xf32> to vector<1x32xf32>
    %557 = arith.mulf %547, %556 : vector<1x32xf32>
    %c0_339 = arith.constant 0 : index
    %c0_340 = arith.constant 0 : index
    %558 = vector.load %arg30[%c0_339, %c0_340] : memref<1x32xf32, #tpu.memory_space<vmem>>, vector<1x32xf32>
    %559 = arith.mulf %557, %558 : vector<1x32xf32>
    %c0_341 = arith.constant 0 : index
    %c0_342 = arith.constant 0 : index
    %560 = vector.load %arg31[%c0_341, %c0_342] : memref<1x32xf32, #tpu.memory_space<vmem>>, vector<1x32xf32>
    %561 = arith.addf %559, %560 : vector<1x32xf32>
    %cst_343 = arith.constant 0.000000e+00 : f32
    %562 = vector.broadcast %cst_343 : f32 to vector<1x32xf32>
    %c0_344 = arith.constant 0 : index
    %c0_345 = arith.constant 0 : index
    %c0_346 = arith.constant 0 : index
    %c0_347 = arith.constant 0 : index
    %563 = vector.load %arg32[%c0_344, %c0_345, %c0_346, %c0_347] : memref<3x2x32x16xbf16, #tpu.memory_space<vmem>>, vector<1x1x32x16xbf16>
    %564 = vector.shape_cast %563 : vector<1x1x32x16xbf16> to vector<32x16xbf16>
    %c1_348 = arith.constant 1 : index
    %c0_349 = arith.constant 0 : index
    %c0_350 = arith.constant 0 : index
    %c0_351 = arith.constant 0 : index
    %565 = vector.load %arg32[%c1_348, %c0_349, %c0_350, %c0_351] : memref<3x2x32x16xbf16, #tpu.memory_space<vmem>>, vector<1x1x32x16xbf16>
    %566 = vector.shape_cast %565 : vector<1x1x32x16xbf16> to vector<32x16xbf16>
    %c2_352 = arith.constant 2 : index
    %c0_353 = arith.constant 0 : index
    %c0_354 = arith.constant 0 : index
    %c0_355 = arith.constant 0 : index
    %567 = vector.load %arg32[%c2_352, %c0_353, %c0_354, %c0_355] : memref<3x2x32x16xbf16, #tpu.memory_space<vmem>>, vector<1x1x32x16xbf16>
    %568 = vector.shape_cast %567 : vector<1x1x32x16xbf16> to vector<32x16xbf16>
    %569 = arith.truncf %541 : vector<16x32xf32> to vector<16x32xbf16>
    %cst_356 = arith.constant dense<0.000000e+00> : vector<16x16xf32>
    %570 = tpu.matmul %569, %566, %cst_356 {dimension_numbers = #tpu.dot_dimension_numbers<[1], [0], [0], [1], [0, 0, 1, 1], [], []>} : vector<16x32xbf16>, vector<32x16xbf16>, vector<16x16xf32> -> vector<16x16xf32>
    %571 = arith.truncf %541 : vector<16x32xf32> to vector<16x32xbf16>
    %cst_357 = arith.constant dense<0.000000e+00> : vector<16x16xf32>
    %572 = tpu.matmul %571, %568, %cst_357 {dimension_numbers = #tpu.dot_dimension_numbers<[1], [0], [0], [1], [0, 0, 1, 1], [], []>} : vector<16x32xbf16>, vector<32x16xbf16>, vector<16x16xf32> -> vector<16x16xf32>
    %573 = arith.truncf %561 : vector<1x32xf32> to vector<1x32xbf16>
    %cst_358 = arith.constant dense<0.000000e+00> : vector<1x16xf32>
    %574 = tpu.matmul %573, %564, %cst_358 {dimension_numbers = #tpu.dot_dimension_numbers<[1], [0], [0], [1], [0, 0, 1, 1], [], []>} : vector<1x32xbf16>, vector<32x16xbf16>, vector<1x16xf32> -> vector<1x16xf32>
    %575 = arith.truncf %561 : vector<1x32xf32> to vector<1x32xbf16>
    %cst_359 = arith.constant dense<0.000000e+00> : vector<1x16xf32>
    %576 = tpu.matmul %575, %566, %cst_359 {dimension_numbers = #tpu.dot_dimension_numbers<[1], [0], [0], [1], [0, 0, 1, 1], [], []>} : vector<1x32xbf16>, vector<32x16xbf16>, vector<1x16xf32> -> vector<1x16xf32>
    %577 = arith.truncf %561 : vector<1x32xf32> to vector<1x32xbf16>
    %cst_360 = arith.constant dense<0.000000e+00> : vector<1x16xf32>
    %578 = tpu.matmul %577, %568, %cst_360 {dimension_numbers = #tpu.dot_dimension_numbers<[1], [0], [0], [1], [0, 0, 1, 1], [], []>} : vector<1x32xbf16>, vector<32x16xbf16>, vector<1x16xf32> -> vector<1x16xf32>
    %c0_361 = arith.constant 0 : index
    %c0_362 = arith.constant 0 : index
    %c0_363 = arith.constant 0 : index
    %579 = vector.load %arg33[%c0_361, %c0_362, %c0_363] : memref<2x16x32xbf16, #tpu.memory_space<vmem>>, vector<1x16x32xbf16>
    %580 = vector.shape_cast %579 : vector<1x16x32xbf16> to vector<16x32xbf16>
    %581 = arith.truncf %574 : vector<1x16xf32> to vector<1x16xbf16>
    %582 = arith.truncf %570 : vector<16x16xf32> to vector<16x16xbf16>
    %cst_364 = arith.constant dense<0.000000e+00> : vector<1x16xf32>
    %583 = tpu.matmul %581, %582, %cst_364 {dimension_numbers = #tpu.dot_dimension_numbers<[1], [1], [0], [0], [0, 0, 1, 0], [], []>} : vector<1x16xbf16>, vector<16x16xbf16>, vector<1x16xf32> -> vector<1x16xf32>
    %cst_365 = arith.constant 2.500000e-01 : f32
    %584 = vector.broadcast %cst_365 : f32 to vector<1x16xf32>
    %585 = arith.mulf %583, %584 : vector<1x16xf32>
    %586 = arith.mulf %574, %576 : vector<1x16xf32>
    %cst_366 = arith.constant dense<0.000000e+00> : vector<1xf32>
    %587 = vector.multi_reduction <add>, %586, %cst_366 [1] : vector<1x16xf32> to vector<1xf32>
    %588 = vector.shape_cast %587 : vector<1xf32> to vector<1x1xf32>
    %cst_367 = arith.constant 2.500000e-01 : f32
    %589 = vector.broadcast %cst_367 : f32 to vector<1x1xf32>
    %590 = arith.mulf %588, %589 : vector<1x1xf32>
    %cst_368 = arith.constant dense<0xFF800000> : vector<1xf32>
    %591 = vector.multi_reduction <maximumf>, %585, %cst_368 [1] : vector<1x16xf32> to vector<1xf32>
    %592 = vector.shape_cast %591 : vector<1xf32> to vector<1x1xf32>
    %593 = arith.maximumf %592, %590 : vector<1x1xf32>
    %594 = vector.broadcast %593 : vector<1x1xf32> to vector<1x16xf32>
    %595 = arith.subf %585, %594 : vector<1x16xf32>
    %596 = math.exp %595 : vector<1x16xf32>
    %597 = arith.subf %590, %593 : vector<1x1xf32>
    %598 = math.exp %597 : vector<1x1xf32>
    %cst_369 = arith.constant dense<0.000000e+00> : vector<1xf32>
    %599 = vector.multi_reduction <add>, %596, %cst_369 [1] : vector<1x16xf32> to vector<1xf32>
    %600 = vector.shape_cast %599 : vector<1xf32> to vector<1x1xf32>
    %601 = arith.addf %600, %598 : vector<1x1xf32>
    %602 = tpu.reciprocal %601 {approx = true} : vector<1x1xf32> -> vector<1x1xf32>
    %603 = vector.broadcast %602 : vector<1x1xf32> to vector<1x16xf32>
    %604 = arith.mulf %596, %603 : vector<1x16xf32>
    %605 = arith.truncf %604 : vector<1x16xf32> to vector<1x16xbf16>
    %606 = arith.truncf %572 : vector<16x16xf32> to vector<16x16xbf16>
    %cst_370 = arith.constant dense<0.000000e+00> : vector<1x16xf32>
    %607 = tpu.matmul %605, %606, %cst_370 {dimension_numbers = #tpu.dot_dimension_numbers<[1], [0], [0], [1], [0, 0, 1, 1], [], []>} : vector<1x16xbf16>, vector<16x16xbf16>, vector<1x16xf32> -> vector<1x16xf32>
    %608 = arith.mulf %598, %602 : vector<1x1xf32>
    %609 = vector.broadcast %608 : vector<1x1xf32> to vector<1x16xf32>
    %610 = arith.mulf %609, %578 : vector<1x16xf32>
    %611 = arith.addf %607, %610 : vector<1x16xf32>
    %612 = arith.truncf %611 : vector<1x16xf32> to vector<1x16xbf16>
    %cst_371 = arith.constant dense<0.000000e+00> : vector<1x32xf32>
    %613 = tpu.matmul %612, %580, %cst_371 {dimension_numbers = #tpu.dot_dimension_numbers<[1], [0], [0], [1], [0, 0, 1, 1], [], []>} : vector<1x16xbf16>, vector<16x32xbf16>, vector<1x32xf32> -> vector<1x32xf32>
    %614 = arith.addf %562, %613 : vector<1x32xf32>
    %c0_372 = arith.constant 0 : index
    %c1_373 = arith.constant 1 : index
    %c0_374 = arith.constant 0 : index
    %c0_375 = arith.constant 0 : index
    %615 = vector.load %arg32[%c0_372, %c1_373, %c0_374, %c0_375] : memref<3x2x32x16xbf16, #tpu.memory_space<vmem>>, vector<1x1x32x16xbf16>
    %616 = vector.shape_cast %615 : vector<1x1x32x16xbf16> to vector<32x16xbf16>
    %c1_376 = arith.constant 1 : index
    %c1_377 = arith.constant 1 : index
    %c0_378 = arith.constant 0 : index
    %c0_379 = arith.constant 0 : index
    %617 = vector.load %arg32[%c1_376, %c1_377, %c0_378, %c0_379] : memref<3x2x32x16xbf16, #tpu.memory_space<vmem>>, vector<1x1x32x16xbf16>
    %618 = vector.shape_cast %617 : vector<1x1x32x16xbf16> to vector<32x16xbf16>
    %c2_380 = arith.constant 2 : index
    %c1_381 = arith.constant 1 : index
    %c0_382 = arith.constant 0 : index
    %c0_383 = arith.constant 0 : index
    %619 = vector.load %arg32[%c2_380, %c1_381, %c0_382, %c0_383] : memref<3x2x32x16xbf16, #tpu.memory_space<vmem>>, vector<1x1x32x16xbf16>
    %620 = vector.shape_cast %619 : vector<1x1x32x16xbf16> to vector<32x16xbf16>
    %621 = arith.truncf %541 : vector<16x32xf32> to vector<16x32xbf16>
    %cst_384 = arith.constant dense<0.000000e+00> : vector<16x16xf32>
    %622 = tpu.matmul %621, %618, %cst_384 {dimension_numbers = #tpu.dot_dimension_numbers<[1], [0], [0], [1], [0, 0, 1, 1], [], []>} : vector<16x32xbf16>, vector<32x16xbf16>, vector<16x16xf32> -> vector<16x16xf32>
    %623 = arith.truncf %541 : vector<16x32xf32> to vector<16x32xbf16>
    %cst_385 = arith.constant dense<0.000000e+00> : vector<16x16xf32>
    %624 = tpu.matmul %623, %620, %cst_385 {dimension_numbers = #tpu.dot_dimension_numbers<[1], [0], [0], [1], [0, 0, 1, 1], [], []>} : vector<16x32xbf16>, vector<32x16xbf16>, vector<16x16xf32> -> vector<16x16xf32>
    %625 = arith.truncf %561 : vector<1x32xf32> to vector<1x32xbf16>
    %cst_386 = arith.constant dense<0.000000e+00> : vector<1x16xf32>
    %626 = tpu.matmul %625, %616, %cst_386 {dimension_numbers = #tpu.dot_dimension_numbers<[1], [0], [0], [1], [0, 0, 1, 1], [], []>} : vector<1x32xbf16>, vector<32x16xbf16>, vector<1x16xf32> -> vector<1x16xf32>
    %627 = arith.truncf %561 : vector<1x32xf32> to vector<1x32xbf16>
    %cst_387 = arith.constant dense<0.000000e+00> : vector<1x16xf32>
    %628 = tpu.matmul %627, %618, %cst_387 {dimension_numbers = #tpu.dot_dimension_numbers<[1], [0], [0], [1], [0, 0, 1, 1], [], []>} : vector<1x32xbf16>, vector<32x16xbf16>, vector<1x16xf32> -> vector<1x16xf32>
    %629 = arith.truncf %561 : vector<1x32xf32> to vector<1x32xbf16>
    %cst_388 = arith.constant dense<0.000000e+00> : vector<1x16xf32>
    %630 = tpu.matmul %629, %620, %cst_388 {dimension_numbers = #tpu.dot_dimension_numbers<[1], [0], [0], [1], [0, 0, 1, 1], [], []>} : vector<1x32xbf16>, vector<32x16xbf16>, vector<1x16xf32> -> vector<1x16xf32>
    %c1_389 = arith.constant 1 : index
    %c0_390 = arith.constant 0 : index
    %c0_391 = arith.constant 0 : index
    %631 = vector.load %arg33[%c1_389, %c0_390, %c0_391] : memref<2x16x32xbf16, #tpu.memory_space<vmem>>, vector<1x16x32xbf16>
    %632 = vector.shape_cast %631 : vector<1x16x32xbf16> to vector<16x32xbf16>
    %633 = arith.truncf %626 : vector<1x16xf32> to vector<1x16xbf16>
    %634 = arith.truncf %622 : vector<16x16xf32> to vector<16x16xbf16>
    %cst_392 = arith.constant dense<0.000000e+00> : vector<1x16xf32>
    %635 = tpu.matmul %633, %634, %cst_392 {dimension_numbers = #tpu.dot_dimension_numbers<[1], [1], [0], [0], [0, 0, 1, 0], [], []>} : vector<1x16xbf16>, vector<16x16xbf16>, vector<1x16xf32> -> vector<1x16xf32>
    %cst_393 = arith.constant 2.500000e-01 : f32
    %636 = vector.broadcast %cst_393 : f32 to vector<1x16xf32>
    %637 = arith.mulf %635, %636 : vector<1x16xf32>
    %638 = arith.mulf %626, %628 : vector<1x16xf32>
    %cst_394 = arith.constant dense<0.000000e+00> : vector<1xf32>
    %639 = vector.multi_reduction <add>, %638, %cst_394 [1] : vector<1x16xf32> to vector<1xf32>
    %640 = vector.shape_cast %639 : vector<1xf32> to vector<1x1xf32>
    %cst_395 = arith.constant 2.500000e-01 : f32
    %641 = vector.broadcast %cst_395 : f32 to vector<1x1xf32>
    %642 = arith.mulf %640, %641 : vector<1x1xf32>
    %cst_396 = arith.constant dense<0xFF800000> : vector<1xf32>
    %643 = vector.multi_reduction <maximumf>, %637, %cst_396 [1] : vector<1x16xf32> to vector<1xf32>
    %644 = vector.shape_cast %643 : vector<1xf32> to vector<1x1xf32>
    %645 = arith.maximumf %644, %642 : vector<1x1xf32>
    %646 = vector.broadcast %645 : vector<1x1xf32> to vector<1x16xf32>
    %647 = arith.subf %637, %646 : vector<1x16xf32>
    %648 = math.exp %647 : vector<1x16xf32>
    %649 = arith.subf %642, %645 : vector<1x1xf32>
    %650 = math.exp %649 : vector<1x1xf32>
    %cst_397 = arith.constant dense<0.000000e+00> : vector<1xf32>
    %651 = vector.multi_reduction <add>, %648, %cst_397 [1] : vector<1x16xf32> to vector<1xf32>
    %652 = vector.shape_cast %651 : vector<1xf32> to vector<1x1xf32>
    %653 = arith.addf %652, %650 : vector<1x1xf32>
    %654 = tpu.reciprocal %653 {approx = true} : vector<1x1xf32> -> vector<1x1xf32>
    %655 = vector.broadcast %654 : vector<1x1xf32> to vector<1x16xf32>
    %656 = arith.mulf %648, %655 : vector<1x16xf32>
    %657 = arith.truncf %656 : vector<1x16xf32> to vector<1x16xbf16>
    %658 = arith.truncf %624 : vector<16x16xf32> to vector<16x16xbf16>
    %cst_398 = arith.constant dense<0.000000e+00> : vector<1x16xf32>
    %659 = tpu.matmul %657, %658, %cst_398 {dimension_numbers = #tpu.dot_dimension_numbers<[1], [0], [0], [1], [0, 0, 1, 1], [], []>} : vector<1x16xbf16>, vector<16x16xbf16>, vector<1x16xf32> -> vector<1x16xf32>
    %660 = arith.mulf %650, %654 : vector<1x1xf32>
    %661 = vector.broadcast %660 : vector<1x1xf32> to vector<1x16xf32>
    %662 = arith.mulf %661, %630 : vector<1x16xf32>
    %663 = arith.addf %659, %662 : vector<1x16xf32>
    %664 = arith.truncf %663 : vector<1x16xf32> to vector<1x16xbf16>
    %cst_399 = arith.constant dense<0.000000e+00> : vector<1x32xf32>
    %665 = tpu.matmul %664, %632, %cst_399 {dimension_numbers = #tpu.dot_dimension_numbers<[1], [0], [0], [1], [0, 0, 1, 1], [], []>} : vector<1x16xbf16>, vector<16x32xbf16>, vector<1x32xf32> -> vector<1x32xf32>
    %666 = arith.addf %614, %665 : vector<1x32xf32>
    %667 = arith.addf %519, %666 : vector<1x32xf32>
    %c0_400 = arith.constant 0 : index
    %c0_401 = arith.constant 0 : index
    %668 = vector.load %arg34[%c0_400, %c0_401] : memref<1x32xf32, #tpu.memory_space<vmem>>, vector<1x32xf32>
    %669 = arith.addf %667, %668 : vector<1x32xf32>
    %cst_402 = arith.constant dense<0.000000e+00> : vector<1xf32>
    %670 = vector.multi_reduction <add>, %669, %cst_402 [1] : vector<1x32xf32> to vector<1xf32>
    %671 = vector.shape_cast %670 : vector<1xf32> to vector<1x1xf32>
    %cst_403 = arith.constant 3.200000e+01 : f32
    %672 = vector.broadcast %cst_403 : f32 to vector<1x1xf32>
    %673 = arith.divf %671, %672 : vector<1x1xf32>
    %674 = vector.broadcast %673 : vector<1x1xf32> to vector<1x32xf32>
    %675 = arith.subf %669, %674 : vector<1x32xf32>
    %676 = arith.mulf %675, %675 : vector<1x32xf32>
    %cst_404 = arith.constant dense<0.000000e+00> : vector<1xf32>
    %677 = vector.multi_reduction <add>, %676, %cst_404 [1] : vector<1x32xf32> to vector<1xf32>
    %678 = vector.shape_cast %677 : vector<1xf32> to vector<1x1xf32>
    %cst_405 = arith.constant 3.200000e+01 : f32
    %679 = vector.broadcast %cst_405 : f32 to vector<1x1xf32>
    %680 = arith.divf %678, %679 : vector<1x1xf32>
    %cst_406 = arith.constant 9.99999974E-6 : f32
    %681 = vector.broadcast %cst_406 : f32 to vector<1x1xf32>
    %682 = arith.addf %680, %681 : vector<1x1xf32>
    %683 = math.rsqrt %682 : vector<1x1xf32>
    %684 = vector.broadcast %683 : vector<1x1xf32> to vector<1x32xf32>
    %685 = arith.mulf %675, %684 : vector<1x32xf32>
    %c0_407 = arith.constant 0 : index
    %c0_408 = arith.constant 0 : index
    %686 = vector.load %arg35[%c0_407, %c0_408] : memref<1x32xf32, #tpu.memory_space<vmem>>, vector<1x32xf32>
    %687 = arith.mulf %685, %686 : vector<1x32xf32>
    %c0_409 = arith.constant 0 : index
    %c0_410 = arith.constant 0 : index
    %688 = vector.load %arg36[%c0_409, %c0_410] : memref<1x32xf32, #tpu.memory_space<vmem>>, vector<1x32xf32>
    %689 = arith.addf %687, %688 : vector<1x32xf32>
    %c0_411 = arith.constant 0 : index
    %c0_412 = arith.constant 0 : index
    %690 = vector.load %arg37[%c0_411, %c0_412] : memref<32x64xbf16, #tpu.memory_space<vmem>>, vector<32x64xbf16>
    %691 = arith.truncf %689 : vector<1x32xf32> to vector<1x32xbf16>
    %cst_413 = arith.constant dense<0.000000e+00> : vector<1x64xf32>
    %692 = tpu.matmul %691, %690, %cst_413 {dimension_numbers = #tpu.dot_dimension_numbers<[1], [0], [0], [1], [0, 0, 1, 1], [], []>} : vector<1x32xbf16>, vector<32x64xbf16>, vector<1x64xf32> -> vector<1x64xf32>
    %c0_414 = arith.constant 0 : index
    %c0_415 = arith.constant 0 : index
    %693 = vector.load %arg38[%c0_414, %c0_415] : memref<1x64xf32, #tpu.memory_space<vmem>>, vector<1x64xf32>
    %694 = arith.addf %692, %693 : vector<1x64xf32>
    %cst_416 = arith.constant 5.000000e-01 : f32
    %695 = vector.broadcast %cst_416 : f32 to vector<1x64xf32>
    %696 = arith.mulf %695, %694 : vector<1x64xf32>
    %cst_417 = arith.constant 4.471500e-02 : f32
    %697 = vector.broadcast %cst_417 : f32 to vector<1x64xf32>
    %698 = arith.mulf %697, %694 : vector<1x64xf32>
    %699 = arith.mulf %698, %694 : vector<1x64xf32>
    %700 = arith.mulf %699, %694 : vector<1x64xf32>
    %701 = arith.addf %694, %700 : vector<1x64xf32>
    %cst_418 = arith.constant 0.797884583 : f32
    %702 = vector.broadcast %cst_418 : f32 to vector<1x64xf32>
    %703 = arith.mulf %702, %701 : vector<1x64xf32>
    %704 = math.tanh %703 : vector<1x64xf32>
    %cst_419 = arith.constant 1.000000e+00 : f32
    %705 = vector.broadcast %cst_419 : f32 to vector<1x64xf32>
    %706 = arith.addf %705, %704 : vector<1x64xf32>
    %707 = arith.mulf %696, %706 : vector<1x64xf32>
    %c0_420 = arith.constant 0 : index
    %c0_421 = arith.constant 0 : index
    %708 = vector.load %arg39[%c0_420, %c0_421] : memref<64x32xbf16, #tpu.memory_space<vmem>>, vector<64x32xbf16>
    %709 = arith.truncf %707 : vector<1x64xf32> to vector<1x64xbf16>
    %cst_422 = arith.constant dense<0.000000e+00> : vector<1x32xf32>
    %710 = tpu.matmul %709, %708, %cst_422 {dimension_numbers = #tpu.dot_dimension_numbers<[1], [0], [0], [1], [0, 0, 1, 1], [], []>} : vector<1x64xbf16>, vector<64x32xbf16>, vector<1x32xf32> -> vector<1x32xf32>
    %c0_423 = arith.constant 0 : index
    %c0_424 = arith.constant 0 : index
    %711 = vector.load %arg40[%c0_423, %c0_424] : memref<1x32xf32, #tpu.memory_space<vmem>>, vector<1x32xf32>
    %712 = arith.addf %710, %711 : vector<1x32xf32>
    %713 = arith.addf %669, %712 : vector<1x32xf32>
    %cst_425 = arith.constant dense<0.000000e+00> : vector<1xf32>
    %714 = vector.multi_reduction <add>, %713, %cst_425 [1] : vector<1x32xf32> to vector<1xf32>
    %715 = vector.shape_cast %714 : vector<1xf32> to vector<1x1xf32>
    %cst_426 = arith.constant 3.200000e+01 : f32
    %716 = vector.broadcast %cst_426 : f32 to vector<1x1xf32>
    %717 = arith.divf %715, %716 : vector<1x1xf32>
    %718 = vector.broadcast %717 : vector<1x1xf32> to vector<1x32xf32>
    %719 = arith.subf %713, %718 : vector<1x32xf32>
    %720 = arith.mulf %719, %719 : vector<1x32xf32>
    %cst_427 = arith.constant dense<0.000000e+00> : vector<1xf32>
    %721 = vector.multi_reduction <add>, %720, %cst_427 [1] : vector<1x32xf32> to vector<1xf32>
    %722 = vector.shape_cast %721 : vector<1xf32> to vector<1x1xf32>
    %cst_428 = arith.constant 3.200000e+01 : f32
    %723 = vector.broadcast %cst_428 : f32 to vector<1x1xf32>
    %724 = arith.divf %722, %723 : vector<1x1xf32>
    %cst_429 = arith.constant 9.99999974E-6 : f32
    %725 = vector.broadcast %cst_429 : f32 to vector<1x1xf32>
    %726 = arith.addf %724, %725 : vector<1x1xf32>
    %727 = math.rsqrt %726 : vector<1x1xf32>
    %728 = vector.broadcast %727 : vector<1x1xf32> to vector<1x32xf32>
    %729 = arith.mulf %719, %728 : vector<1x32xf32>
    %c0_430 = arith.constant 0 : index
    %c0_431 = arith.constant 0 : index
    %730 = vector.load %arg41[%c0_430, %c0_431] : memref<1x32xf32, #tpu.memory_space<vmem>>, vector<1x32xf32>
    %731 = arith.mulf %729, %730 : vector<1x32xf32>
    %c0_432 = arith.constant 0 : index
    %c0_433 = arith.constant 0 : index
    %732 = vector.load %arg42[%c0_432, %c0_433] : memref<1x32xf32, #tpu.memory_space<vmem>>, vector<1x32xf32>
    %733 = arith.addf %731, %732 : vector<1x32xf32>
    %c0_434 = arith.constant 0 : index
    %c0_435 = arith.constant 0 : index
    %734 = vector.load %arg43[%c0_434, %c0_435] : memref<32x26xbf16, #tpu.memory_space<vmem>>, vector<32x26xbf16>
    %735 = arith.truncf %733 : vector<1x32xf32> to vector<1x32xbf16>
    %cst_436 = arith.constant dense<0.000000e+00> : vector<1x26xf32>
    %736 = tpu.matmul %735, %734, %cst_436 {dimension_numbers = #tpu.dot_dimension_numbers<[1], [0], [0], [1], [0, 0, 1, 1], [], []>} : vector<1x32xbf16>, vector<32x26xbf16>, vector<1x26xf32> -> vector<1x26xf32>
    %c0_437 = arith.constant 0 : index
    %c0_438 = arith.constant 0 : index
    %737 = vector.load %arg44[%c0_437, %c0_438] : memref<1x26xf32, #tpu.memory_space<vmem>>, vector<1x26xf32>
    %738 = arith.addf %736, %737 : vector<1x26xf32>
    %c0_439 = arith.constant 0 : index
    %c0_440 = arith.constant 0 : index
    %c0_441 = arith.constant 0 : index
    %739 = vector.load %arg45[%c0_439, %c0_440, %c0_441] : memref<1x1x26xf32, #tpu.memory_space<vmem>>, vector<1x1x26xf32>
    %740 = vector.shape_cast %739 : vector<1x1x26xf32> to vector<1x26xf32>
    %741 = vector.shape_cast %738 : vector<1x26xf32> to vector<1x1x26xf32>
    tpu.vector_store %arg45[%c0_439, %c0_440, %c0_441], %741 {strides = array<i32>} : memref<1x1x26xf32, #tpu.memory_space<vmem>>, vector<1x1x26xf32>,
    return
  }
  func.func @transform_0(%arg0: i32) -> (i32, i32, i32, i32) {
    %c0_i32 = arith.constant 0 : i32
    %c0_i32_0 = arith.constant 0 : i32
    %c0_i32_1 = arith.constant 0 : i32
    %c0_i32_2 = arith.constant 0 : i32
    return %arg0, %c0_i32, %c0_i32_0, %c0_i32_1 : i32, i32, i32, i32
  }
  func.func @transform_1(%arg0: i32) -> (i32, i32, i32) {
    %c0_i32 = arith.constant 0 : i32
    %c0_i32_0 = arith.constant 0 : i32
    %c0_i32_1 = arith.constant 0 : i32
    %c0_i32_2 = arith.constant 0 : i32
    return %c0_i32, %c0_i32_0, %c0_i32_1 : i32, i32, i32
  }
  func.func @transform_2(%arg0: i32) -> (i32, i32, i32, i32) {
    %c0_i32 = arith.constant 0 : i32
    %c0_i32_0 = arith.constant 0 : i32
    %c0_i32_1 = arith.constant 0 : i32
    %c0_i32_2 = arith.constant 0 : i32
    %c0_i32_3 = arith.constant 0 : i32
    return %c0_i32, %c0_i32_0, %c0_i32_1, %c0_i32_2 : i32, i32, i32, i32
  }
  func.func @transform_3(%arg0: i32) -> (i32, i32) {
    %c0_i32 = arith.constant 0 : i32
    %c0_i32_0 = arith.constant 0 : i32
    %c0_i32_1 = arith.constant 0 : i32
    return %c0_i32, %c0_i32_0 : i32, i32
  }
  func.func @transform_4(%arg0: i32) -> (i32, i32, i32) {
    %c0_i32 = arith.constant 0 : i32
    %c0_i32_0 = arith.constant 0 : i32
    %c0_i32_1 = arith.constant 0 : i32
    %c0_i32_2 = arith.constant 0 : i32
    return %c0_i32, %c0_i32_0, %c0_i32_1 : i32, i32, i32
  }
  func.func @transform_5(%arg0: i32) -> (i32, i32) {
    %c0_i32 = arith.constant 0 : i32
    %c0_i32_0 = arith.constant 0 : i32
    %c0_i32_1 = arith.constant 0 : i32
    return %c0_i32, %c0_i32_0 : i32, i32
  }
  func.func @transform_6(%arg0: i32) -> (i32, i32) {
    %c0_i32 = arith.constant 0 : i32
    %c0_i32_0 = arith.constant 0 : i32
    %c0_i32_1 = arith.constant 0 : i32
    return %c0_i32, %c0_i32_0 : i32, i32
  }
  func.func @transform_7(%arg0: i32) -> (i32, i32) {
    %c0_i32 = arith.constant 0 : i32
    %c0_i32_0 = arith.constant 0 : i32
    %c0_i32_1 = arith.constant 0 : i32
    return %c0_i32, %c0_i32_0 : i32, i32
  }
  func.func @transform_8(%arg0: i32) -> (i32, i32, i32) {
    %c0_i32 = arith.constant 0 : i32
    %c0_i32_0 = arith.constant 0 : i32
    %c0_i32_1 = arith.constant 0 : i32
    %c0_i32_2 = arith.constant 0 : i32
    return %c0_i32, %c0_i32_0, %c0_i32_1 : i32, i32, i32
  }
  func.func @transform_9(%arg0: i32) -> (i32, i32, i32) {
    %c0_i32 = arith.constant 0 : i32
    %c0_i32_0 = arith.constant 0 : i32
    %c0_i32_1 = arith.constant 0 : i32
    %c0_i32_2 = arith.constant 0 : i32
    return %c0_i32, %c0_i32_0, %c0_i32_1 : i32, i32, i32
  }
  func.func @transform_10(%arg0: i32) -> (i32, i32) {
    %c0_i32 = arith.constant 0 : i32
    %c0_i32_0 = arith.constant 0 : i32
    %c0_i32_1 = arith.constant 0 : i32
    return %c0_i32, %c0_i32_0 : i32, i32
  }
  func.func @transform_11(%arg0: i32) -> (i32, i32) {
    %c0_i32 = arith.constant 0 : i32
    %c0_i32_0 = arith.constant 0 : i32
    %c0_i32_1 = arith.constant 0 : i32
    return %c0_i32, %c0_i32_0 : i32, i32
  }
  func.func @transform_12(%arg0: i32) -> (i32, i32) {
    %c0_i32 = arith.constant 0 : i32
    %c0_i32_0 = arith.constant 0 : i32
    %c0_i32_1 = arith.constant 0 : i32
    return %c0_i32, %c0_i32_0 : i32, i32
  }
  func.func @transform_13(%arg0: i32) -> (i32, i32) {
    %c0_i32 = arith.constant 0 : i32
    %c0_i32_0 = arith.constant 0 : i32
    %c0_i32_1 = arith.constant 0 : i32
    return %c0_i32, %c0_i32_0 : i32, i32
  }
  func.func @transform_14(%arg0: i32) -> (i32, i32) {
    %c0_i32 = arith.constant 0 : i32
    %c0_i32_0 = arith.constant 0 : i32
    %c0_i32_1 = arith.constant 0 : i32
    return %c0_i32, %c0_i32_0 : i32, i32
  }
  func.func @transform_15(%arg0: i32) -> (i32, i32) {
    %c0_i32 = arith.constant 0 : i32
    %c0_i32_0 = arith.constant 0 : i32
    %c0_i32_1 = arith.constant 0 : i32
    return %c0_i32, %c0_i32_0 : i32, i32
  }
  func.func @transform_16(%arg0: i32) -> (i32, i32) {
    %c0_i32 = arith.constant 0 : i32
    %c0_i32_0 = arith.constant 0 : i32
    %c0_i32_1 = arith.constant 0 : i32
    return %c0_i32, %c0_i32_0 : i32, i32
  }
  func.func @transform_17(%arg0: i32) -> (i32, i32) {
    %c0_i32 = arith.constant 0 : i32
    %c0_i32_0 = arith.constant 0 : i32
    %c0_i32_1 = arith.constant 0 : i32
    return %c0_i32, %c0_i32_0 : i32, i32
  }
  func.func @transform_18(%arg0: i32) -> (i32, i32) {
    %c0_i32 = arith.constant 0 : i32
    %c0_i32_0 = arith.constant 0 : i32
    %c0_i32_1 = arith.constant 0 : i32
    return %c0_i32, %c0_i32_0 : i32, i32
  }
  func.func @transform_19(%arg0: i32) -> (i32, i32) {
    %c0_i32 = arith.constant 0 : i32
    %c0_i32_0 = arith.constant 0 : i32
    %c0_i32_1 = arith.constant 0 : i32
    return %c0_i32, %c0_i32_0 : i32, i32
  }
  func.func @transform_20(%arg0: i32) -> (i32, i32, i32, i32) {
    %c0_i32 = arith.constant 0 : i32
    %c0_i32_0 = arith.constant 0 : i32
    %c0_i32_1 = arith.constant 0 : i32
    %c0_i32_2 = arith.constant 0 : i32
    %c0_i32_3 = arith.constant 0 : i32
    return %c0_i32, %c0_i32_0, %c0_i32_1, %c0_i32_2 : i32, i32, i32, i32
  }
  func.func @transform_21(%arg0: i32) -> (i32, i32, i32) {
    %c0_i32 = arith.constant 0 : i32
    %c0_i32_0 = arith.constant 0 : i32
    %c0_i32_1 = arith.constant 0 : i32
    %c0_i32_2 = arith.constant 0 : i32
    return %c0_i32, %c0_i32_0, %c0_i32_1 : i32, i32, i32
  }
  func.func @transform_22(%arg0: i32) -> (i32, i32) {
    %c0_i32 = arith.constant 0 : i32
    %c0_i32_0 = arith.constant 0 : i32
    %c0_i32_1 = arith.constant 0 : i32
    return %c0_i32, %c0_i32_0 : i32, i32
  }
  func.func @transform_23(%arg0: i32) -> (i32, i32) {
    %c0_i32 = arith.constant 0 : i32
    %c0_i32_0 = arith.constant 0 : i32
    %c0_i32_1 = arith.constant 0 : i32
    return %c0_i32, %c0_i32_0 : i32, i32
  }
  func.func @transform_24(%arg0: i32) -> (i32, i32) {
    %c0_i32 = arith.constant 0 : i32
    %c0_i32_0 = arith.constant 0 : i32
    %c0_i32_1 = arith.constant 0 : i32
    return %c0_i32, %c0_i32_0 : i32, i32
  }
  func.func @transform_25(%arg0: i32) -> (i32, i32) {
    %c0_i32 = arith.constant 0 : i32
    %c0_i32_0 = arith.constant 0 : i32
    %c0_i32_1 = arith.constant 0 : i32
    return %c0_i32, %c0_i32_0 : i32, i32
  }
  func.func @transform_26(%arg0: i32) -> (i32, i32) {
    %c0_i32 = arith.constant 0 : i32
    %c0_i32_0 = arith.constant 0 : i32
    %c0_i32_1 = arith.constant 0 : i32
    return %c0_i32, %c0_i32_0 : i32, i32
  }
  func.func @transform_27(%arg0: i32) -> (i32, i32) {
    %c0_i32 = arith.constant 0 : i32
    %c0_i32_0 = arith.constant 0 : i32
    %c0_i32_1 = arith.constant 0 : i32
    return %c0_i32, %c0_i32_0 : i32, i32
  }
  func.func @transform_28(%arg0: i32) -> (i32, i32) {
    %c0_i32 = arith.constant 0 : i32
    %c0_i32_0 = arith.constant 0 : i32
    %c0_i32_1 = arith.constant 0 : i32
    return %c0_i32, %c0_i32_0 : i32, i32
  }
  func.func @transform_29(%arg0: i32) -> (i32, i32) {
    %c0_i32 = arith.constant 0 : i32
    %c0_i32_0 = arith.constant 0 : i32
    %c0_i32_1 = arith.constant 0 : i32
    return %c0_i32, %c0_i32_0 : i32, i32
  }
  func.func @transform_30(%arg0: i32) -> (i32, i32) {
    %c0_i32 = arith.constant 0 : i32
    %c0_i32_0 = arith.constant 0 : i32
    %c0_i32_1 = arith.constant 0 : i32
    return %c0_i32, %c0_i32_0 : i32, i32
  }
  func.func @transform_31(%arg0: i32) -> (i32, i32, i32, i32) {
    %c0_i32 = arith.constant 0 : i32
    %c0_i32_0 = arith.constant 0 : i32
    %c0_i32_1 = arith.constant 0 : i32
    %c0_i32_2 = arith.constant 0 : i32
    %c0_i32_3 = arith.constant 0 : i32
    return %c0_i32, %c0_i32_0, %c0_i32_1, %c0_i32_2 : i32, i32, i32, i32
  }
  func.func @transform_32(%arg0: i32) -> (i32, i32, i32) {
    %c0_i32 = arith.constant 0 : i32
    %c0_i32_0 = arith.constant 0 : i32
    %c0_i32_1 = arith.constant 0 : i32
    %c0_i32_2 = arith.constant 0 : i32
    return %c0_i32, %c0_i32_0, %c0_i32_1 : i32, i32, i32
  }
  func.func @transform_33(%arg0: i32) -> (i32, i32) {
    %c0_i32 = arith.constant 0 : i32
    %c0_i32_0 = arith.constant 0 : i32
    %c0_i32_1 = arith.constant 0 : i32
    return %c0_i32, %c0_i32_0 : i32, i32
  }
  func.func @transform_34(%arg0: i32) -> (i32, i32) {
    %c0_i32 = arith.constant 0 : i32
    %c0_i32_0 = arith.constant 0 : i32
    %c0_i32_1 = arith.constant 0 : i32
    return %c0_i32, %c0_i32_0 : i32, i32
  }
  func.func @transform_35(%arg0: i32) -> (i32, i32) {
    %c0_i32 = arith.constant 0 : i32
    %c0_i32_0 = arith.constant 0 : i32
    %c0_i32_1 = arith.constant 0 : i32
    return %c0_i32, %c0_i32_0 : i32, i32
  }
  func.func @transform_36(%arg0: i32) -> (i32, i32) {
    %c0_i32 = arith.constant 0 : i32
    %c0_i32_0 = arith.constant 0 : i32
    %c0_i32_1 = arith.constant 0 : i32
    return %c0_i32, %c0_i32_0 : i32, i32
  }
  func.func @transform_37(%arg0: i32) -> (i32, i32) {
    %c0_i32 = arith.constant 0 : i32
    %c0_i32_0 = arith.constant 0 : i32
    %c0_i32_1 = arith.constant 0 : i32
    return %c0_i32, %c0_i32_0 : i32, i32
  }
  func.func @transform_38(%arg0: i32) -> (i32, i32) {
    %c0_i32 = arith.constant 0 : i32
    %c0_i32_0 = arith.constant 0 : i32
    %c0_i32_1 = arith.constant 0 : i32
    return %c0_i32, %c0_i32_0 : i32, i32
  }
  func.func @transform_39(%arg0: i32) -> (i32, i32) {
    %c0_i32 = arith.constant 0 : i32
    %c0_i32_0 = arith.constant 0 : i32
    %c0_i32_1 = arith.constant 0 : i32
    return %c0_i32, %c0_i32_0 : i32, i32
  }
  func.func @transform_40(%arg0: i32) -> (i32, i32) {
    %c0_i32 = arith.constant 0 : i32
    %c0_i32_0 = arith.constant 0 : i32
    %c0_i32_1 = arith.constant 0 : i32
    return %c0_i32, %c0_i32_0 : i32, i32
  }
  func.func @transform_41(%arg0: i32) -> (i32, i32) {
    %c0_i32 = arith.constant 0 : i32
    %c0_i32_0 = arith.constant 0 : i32
    %c0_i32_1 = arith.constant 0 : i32
    return %c0_i32, %c0_i32_0 : i32, i32
  }
  func.func @transform_42(%arg0: i32) -> (i32, i32) {
    %c0_i32 = arith.constant 0 : i32
    %c0_i32_0 = arith.constant 0 : i32
    %c0_i32_1 = arith.constant 0 : i32
    return %c0_i32, %c0_i32_0 : i32, i32
  }
  func.func @transform_43(%arg0: i32) -> (i32, i32) {
    %c0_i32 = arith.constant 0 : i32
    %c0_i32_0 = arith.constant 0 : i32
    %c0_i32_1 = arith.constant 0 : i32
    return %c0_i32, %c0_i32_0 : i32, i32
  }
  func.func @transform_44(%arg0: i32) -> (i32, i32, i32) {
    %c0_i32 = arith.constant 0 : i32
    %c0_i32_0 = arith.constant 0 : i32
    %c0_i32_1 = arith.constant 0 : i32
    return %arg0, %c0_i32, %c0_i32_0 : i32, i32, i32
  }
}

</mosaic_0001>

<llo_original>
// kernel: separated_forward.1
$region0: #{separated_forward.1}
  #allocation0 [shape = 'u32[]', space=smem, size = 0x4, offset = 0x4, fixed_abs, tag = 'smem constant byte address 0x4 - core index']
  #allocation1 [shape = 'u32[144,128]{1,0:T(1,128)}', space=vmem, size = 0x12000, scoped, tag = 'internal scratch']
  %s0 = inlined_call_operand.smem [shape: u32[45], index: -1, kind: input, shape index: {}]
  %s1 = sld [smem:[%s0]]
  %s2 = scalar_lea.smem %s0, 1
  %s3 = sld [smem:[%s2]]
  %s4 = scalar_lea.smem %s0, 2
  %s5 = sld [smem:[%s4]]
  %s6 = scalar_lea.smem %s0, 3
  %s7 = sld [smem:[%s6]]
  %s8 = scalar_lea.smem %s0, 4
  %s9 = sld [smem:[%s8]]
  %s10 = scalar_lea.smem %s0, 5
  %s11 = sld [smem:[%s10]]
  %s12 = scalar_lea.smem %s0, 6
  %s13 = sld [smem:[%s12]]
  %s14 = scalar_lea.smem %s0, 7
  %s15 = sld [smem:[%s14]]
  %s16 = scalar_lea.smem %s0, 8
  %s17 = sld [smem:[%s16]]
  %s18 = scalar_lea.smem %s0, 9
  %s19 = sld [smem:[%s18]]
  %s20 = scalar_lea.smem %s0, 10
  %s21 = sld [smem:[%s20]]
  %s22 = scalar_lea.smem %s0, 11
  %s23 = sld [smem:[%s22]]
  %s24 = scalar_lea.smem %s0, 12
  %s25 = sld [smem:[%s24]]
  %s26 = scalar_lea.smem %s0, 13
  %s27 = sld [smem:[%s26]]
  %s28 = scalar_lea.smem %s0, 14
  %s29 = sld [smem:[%s28]]
  %s30 = scalar_lea.smem %s0, 15
  %s31 = sld [smem:[%s30]]
  %s32 = scalar_lea.smem %s0, 16
  %s33 = sld [smem:[%s32]]
  %s34 = scalar_lea.smem %s0, 17
  %s35 = sld [smem:[%s34]]
  %s36 = scalar_lea.smem %s0, 18
  %s37 = sld [smem:[%s36]]
  %s38 = scalar_lea.smem %s0, 19
  %s39 = sld [smem:[%s38]]
  %s40 = scalar_lea.smem %s0, 20
  %s41 = sld [smem:[%s40]]
  %s42 = scalar_lea.smem %s0, 21
  %s43 = sld [smem:[%s42]]
  %s44 = scalar_lea.smem %s0, 22
  %s45 = sld [smem:[%s44]]
  %s46 = scalar_lea.smem %s0, 23
  %s47 = sld [smem:[%s46]]
  %s48 = scalar_lea.smem %s0, 24
  %s49 = sld [smem:[%s48]]
  %s50 = scalar_lea.smem %s0, 25
  %s51 = sld [smem:[%s50]]
  %s52 = scalar_lea.smem %s0, 26
  %s53 = sld [smem:[%s52]]
  %s54 = scalar_lea.smem %s0, 27
  %s55 = sld [smem:[%s54]]
  %s56 = scalar_lea.smem %s0, 28
  %s57 = sld [smem:[%s56]]
  %s58 = scalar_lea.smem %s0, 29
  %s59 = sld [smem:[%s58]]
  %s60 = scalar_lea.smem %s0, 30
  %s61 = sld [smem:[%s60]]
  %s62 = scalar_lea.smem %s0, 31
  %s63 = sld [smem:[%s62]]
  %s64 = scalar_lea.smem %s0, 32
  %s65 = sld [smem:[%s64]]
  %s66 = scalar_lea.smem %s0, 33
  %s67 = sld [smem:[%s66]]
  %s68 = scalar_lea.smem %s0, 34
  %s69 = sld [smem:[%s68]]
  %s70 = scalar_lea.smem %s0, 35
  %s71 = sld [smem:[%s70]]
  %s72 = scalar_lea.smem %s0, 36
  %s73 = sld [smem:[%s72]]
  %s74 = scalar_lea.smem %s0, 37
  %s75 = sld [smem:[%s74]]
  %s76 = scalar_lea.smem %s0, 38
  %s77 = sld [smem:[%s76]]
  %s78 = scalar_lea.smem %s0, 39
  %s79 = sld [smem:[%s78]]
  %s80 = scalar_lea.smem %s0, 40
  %s81 = sld [smem:[%s80]]
  %s82 = scalar_lea.smem %s0, 41
  %s83 = sld [smem:[%s82]]
  %s84 = scalar_lea.smem %s0, 42
  %s85 = sld [smem:[%s84]]
  %s86 = scalar_lea.smem %s0, 43
  %s87 = sld [smem:[%s86]]
  %s88 = scalar_lea.smem %s0, 44
  %s89 = sld [smem:[%s88]]
  %s90 = sld [smem:[#allocation0]]
  $region209: #{separated_forward.1} parent=0
    _
  %s92 = ssub.s32 1, %s90
  %s93 = scalar_select 0, %s92, %s90
  $region1: #{separated_forward.1} parent=0
    #allocation2 [shape = 'u8[1024]{0}', space=vmem, size = 0x400, scoped, tag = 'output window, operand 0']
    #allocation3 [shape = 's32[2]{0}', space=sflag, size = 0x8, scoped, tag = 'scoped memory for separated_forward.1']
    %94 = vsyncpa [#allocation3], 0
    %s95 = scalar_lea.sflag [#allocation3], 1
    %96 = vsyncpa %s95, 0
    loop: start=0, step=1, limit=4
    $region2: #{separated_forward.1} parent=1 // loop_pre_header
      _
    $region3: #{separated_forward.1} parent=1 // loop_header
      %s98 = sphi 0, %s102
      %p99 = scmp.ge.s32.totalorder %s98, 4
      %s108 = sphi 0, %s110
      %s111 = sphi 0, %s108
      %s112 = sphi 0, %s111
      %s128 = sphi 0, %s112
      %s132 = sphi 0, %s132
      %s134 = sphi 0, %s132
      %s135 = sphi 0, %s134
      %s149 = sphi 0, %s135
      %s153 = sphi 0, %s153
      %s155 = sphi 0, %s153
      %s156 = sphi 0, %s155
      %s170 = sphi 0, %s156
      %s174 = sphi 0, %s174
      %s176 = sphi 0, %s174
      %s177 = sphi 0, %s176
      %s191 = sphi 0, %s177
      %s195 = sphi 0, %s195
      %s197 = sphi 0, %s195
      %s198 = sphi 0, %s197
      %s212 = sphi 0, %s198
      %s216 = sphi 0, %s216
      %s218 = sphi 0, %s216
      %s219 = sphi 0, %s218
      %s233 = sphi 0, %s219
      %s237 = sphi 0, %s237
      %s239 = sphi 0, %s237
      %s240 = sphi 0, %s239
      %s254 = sphi 0, %s240
      %s258 = sphi 0, %s258
      %s260 = sphi 0, %s258
      %s261 = sphi 0, %s260
      %s275 = sphi 0, %s261
      %s279 = sphi 0, %s279
      %s281 = sphi 0, %s279
      %s282 = sphi 0, %s281
      %s296 = sphi 0, %s282
      %s300 = sphi 0, %s300
      %s302 = sphi 0, %s300
      %s303 = sphi 0, %s302
      %s317 = sphi 0, %s303
      %s321 = sphi 0, %s321
      %s323 = sphi 0, %s321
      %s324 = sphi 0, %s323
      %s338 = sphi 0, %s324
      %s342 = sphi 0, %s342
      %s344 = sphi 0, %s342
      %s345 = sphi 0, %s344
      %s359 = sphi 0, %s345
      %s363 = sphi 0, %s363
      %s365 = sphi 0, %s363
      %s366 = sphi 0, %s365
      %s380 = sphi 0, %s366
      %s384 = sphi 0, %s384
      %s386 = sphi 0, %s384
      %s387 = sphi 0, %s386
      %s401 = sphi 0, %s387
      %s405 = sphi 0, %s405
      %s407 = sphi 0, %s405
      %s408 = sphi 0, %s407
      %s422 = sphi 0, %s408
      %s426 = sphi 0, %s426
      %s428 = sphi 0, %s426
      %s429 = sphi 0, %s428
      %s443 = sphi 0, %s429
      %s447 = sphi 0, %s447
      %s449 = sphi 0, %s447
      %s450 = sphi 0, %s449
      %s464 = sphi 0, %s450
      %s468 = sphi 0, %s468
      %s470 = sphi 0, %s468
      %s471 = sphi 0, %s470
      %s485 = sphi 0, %s471
      %s489 = sphi 0, %s489
      %s491 = sphi 0, %s489
      %s492 = sphi 0, %s491
      %s506 = sphi 0, %s492
      %s510 = sphi 0, %s510
      %s512 = sphi 0, %s510
      %s513 = sphi 0, %s512
      %s527 = sphi 0, %s513
      %s531 = sphi 0, %s531
      %s533 = sphi 0, %s531
      %s534 = sphi 0, %s533
      %s548 = sphi 0, %s534
      %s552 = sphi 0, %s552
      %s554 = sphi 0, %s552
      %s555 = sphi 0, %s554
      %s569 = sphi 0, %s555
      %s573 = sphi 0, %s573
      %s575 = sphi 0, %s573
      %s576 = sphi 0, %s575
      %s590 = sphi 0, %s576
      %s594 = sphi 0, %s594
      %s596 = sphi 0, %s594
      %s597 = sphi 0, %s596
      %s611 = sphi 0, %s597
      %s615 = sphi 0, %s615
      %s617 = sphi 0, %s615
      %s618 = sphi 0, %s617
      %s632 = sphi 0, %s618
      %s636 = sphi 0, %s636
      %s638 = sphi 0, %s636
      %s639 = sphi 0, %s638
      %s653 = sphi 0, %s639
      %s657 = sphi 0, %s657
      %s659 = sphi 0, %s657
      %s660 = sphi 0, %s659
      %s674 = sphi 0, %s660
      %s678 = sphi 0, %s678
      %s680 = sphi 0, %s678
      %s681 = sphi 0, %s680
      %s695 = sphi 0, %s681
      %s699 = sphi 0, %s699
      %s701 = sphi 0, %s699
      %s702 = sphi 0, %s701
      %s716 = sphi 0, %s702
      %s720 = sphi 0, %s720
      %s722 = sphi 0, %s720
      %s723 = sphi 0, %s722
      %s737 = sphi 0, %s723
      %s741 = sphi 0, %s741
      %s743 = sphi 0, %s741
      %s744 = sphi 0, %s743
      %s758 = sphi 0, %s744
      %s762 = sphi 0, %s762
      %s764 = sphi 0, %s762
      %s765 = sphi 0, %s764
      %s779 = sphi 0, %s765
      %s783 = sphi 0, %s783
      %s785 = sphi 0, %s783
      %s786 = sphi 0, %s785
      %s800 = sphi 0, %s786
      %s804 = sphi 0, %s804
      %s806 = sphi 0, %s804
      %s807 = sphi 0, %s806
      %s821 = sphi 0, %s807
      %s825 = sphi 0, %s825
      %s827 = sphi 0, %s825
      %s828 = sphi 0, %s827
      %s842 = sphi 0, %s828
      %s846 = sphi 0, %s846
      %s848 = sphi 0, %s846
      %s849 = sphi 0, %s848
      %s863 = sphi 0, %s849
      %s867 = sphi 0, %s867
      %s869 = sphi 0, %s867
      %s870 = sphi 0, %s869
      %s884 = sphi 0, %s870
      %s888 = sphi 0, %s888
      %s890 = sphi 0, %s888
      %s891 = sphi 0, %s890
      %s905 = sphi 0, %s891
      %s909 = sphi 0, %s909
      %s911 = sphi 0, %s909
      %s912 = sphi 0, %s911
      %s926 = sphi 0, %s912
      %s930 = sphi 0, %s930
      %s932 = sphi 0, %s930
      %s933 = sphi 0, %s932
      %s947 = sphi 0, %s933
      %s951 = sphi 0, %s951
      %s953 = sphi 0, %s951
      %s954 = sphi 0, %s953
      %s968 = sphi 0, %s954
      %s972 = sphi 0, %s972
      %s974 = sphi 0, %s972
      %s975 = sphi 0, %s974
      %s989 = sphi 0, %s975
      %s993 = sphi 0, %s993
      %s995 = sphi 0, %s993
      %s996 = sphi 0, %s995
      %s1010 = sphi 0, %s996
      %s1014 = sphi 0, %s1014
      %s1016 = sphi 0, %s1014
      %s1017 = sphi 0, %s1016
      %s1031 = sphi 0, %s1017
      %s1037 = sphi 0, %s1039
      %s1040 = sphi 0, %s1037
      %s1041 = sphi 0, %s1040
      %s1057 = sphi 0, %s1041
    $region4: #{separated_forward.1} parent=1 // loop_header_branch
      %101 = sbr.rel (%p99) target = $region8
    $region5: #{separated_forward.1} parent=1 // loop_body
      %s103 = ssub.s32 %s98, 1
      %s104 = ssub.s32 %s98, 2
      %s105 = sadd.s32 %s98, 1
      %s106 = ssub.s32 %s98, %s105
      %p107 = scmp.eq.s32.totalorder %s106, 0
      %s109 = sadd.s32 %s108, 1
      %s110 = scalar_select %p107, %s108, %s109
      %p113 = pneg %p107
      %p114 = scmp.eq.s32.totalorder %s98, 1
      %p115 = por %p113, %p114
      %p116 = scmp.ne.s32.totalorder %s108, %s111
      %p117 = scmp.eq.s32.totalorder %s98, 0
      %p118 = por %p116, %p117
      %p119 = scmp.ne.s32.totalorder %s108, %s111
      %p120 = scmp.eq.s32.totalorder %s103, 1
      %p121 = por %p119, %p120
      %p122 = scmp.ne.s32.totalorder %s111, %s112
      %p123 = scmp.eq.s32.totalorder %s103, 0
      %p124 = por %p122, %p123
      %p125 = scmp.ne.s32.totalorder %s111, %s112
      %p126 = scmp.eq.s32.totalorder %s104, 1
      %p127 = por %p125, %p126
      %p129 = scmp.ne.s32.totalorder %s112, %s128
      %p130 = scmp.eq.s32.totalorder %s104, 0
      %p131 = por %p129, %p130
      %s133 = sadd.s32 %s132, 1
      %p136 = scmp.eq.s32.totalorder %s98, 1
      %p137 = scmp.ne.s32.totalorder %s132, %s134
      %p138 = scmp.eq.s32.totalorder %s98, 0
      %p139 = por %p137, %p138
      %p140 = scmp.ne.s32.totalorder %s132, %s134
      %p141 = scmp.eq.s32.totalorder %s103, 1
      %p142 = por %p140, %p141
      %p143 = scmp.ne.s32.totalorder %s134, %s135
      %p144 = scmp.eq.s32.totalorder %s103, 0
      %p145 = por %p143, %p144
      %p146 = scmp.ne.s32.totalorder %s134, %s135
      %p147 = scmp.eq.s32.totalorder %s104, 1
      %p148 = por %p146, %p147
      %p150 = scmp.ne.s32.totalorder %s135, %s149
      %p151 = scmp.eq.s32.totalorder %s104, 0
      %p152 = por %p150, %p151
      %s154 = sadd.s32 %s153, 1
      %p157 = scmp.eq.s32.totalorder %s98, 1
      %p158 = scmp.ne.s32.totalorder %s153, %s155
      %p159 = scmp.eq.s32.totalorder %s98, 0
      %p160 = por %p158, %p159
      %p161 = scmp.ne.s32.totalorder %s153, %s155
      %p162 = scmp.eq.s32.totalorder %s103, 1
      %p163 = por %p161, %p162
      %p164 = scmp.ne.s32.totalorder %s155, %s156
      %p165 = scmp.eq.s32.totalorder %s103, 0
      %p166 = por %p164, %p165
      %p167 = scmp.ne.s32.totalorder %s155, %s156
      %p168 = scmp.eq.s32.totalorder %s104, 1
      %p169 = por %p167, %p168
      %p171 = scmp.ne.s32.totalorder %s156, %s170
      %p172 = scmp.eq.s32.totalorder %s104, 0
      %p173 = por %p171, %p172
      %s175 = sadd.s32 %s174, 1
      %p178 = scmp.eq.s32.totalorder %s98, 1
      %p179 = scmp.ne.s32.totalorder %s174, %s176
      %p180 = scmp.eq.s32.totalorder %s98, 0
      %p181 = por %p179, %p180
      %p182 = scmp.ne.s32.totalorder %s174, %s176
      %p183 = scmp.eq.s32.totalorder %s103, 1
      %p184 = por %p182, %p183
      %p185 = scmp.ne.s32.totalorder %s176, %s177
      %p186 = scmp.eq.s32.totalorder %s103, 0
      %p187 = por %p185, %p186
      %p188 = scmp.ne.s32.totalorder %s176, %s177
      %p189 = scmp.eq.s32.totalorder %s104, 1
      %p190 = por %p188, %p189
      %p192 = scmp.ne.s32.totalorder %s177, %s191
      %p193 = scmp.eq.s32.totalorder %s104, 0
      %p194 = por %p192, %p193
      %s196 = sadd.s32 %s195, 1
      %p199 = scmp.eq.s32.totalorder %s98, 1
      %p200 = scmp.ne.s32.totalorder %s195, %s197
      %p201 = scmp.eq.s32.totalorder %s98, 0
      %p202 = por %p200, %p201
      %p203 = scmp.ne.s32.totalorder %s195, %s197
      %p204 = scmp.eq.s32.totalorder %s103, 1
      %p205 = por %p203, %p204
      %p206 = scmp.ne.s32.totalorder %s197, %s198
      %p207 = scmp.eq.s32.totalorder %s103, 0
      %p208 = por %p206, %p207
      %p209 = scmp.ne.s32.totalorder %s197, %s198
      %p210 = scmp.eq.s32.totalorder %s104, 1
      %p211 = por %p209, %p210
      %p213 = scmp.ne.s32.totalorder %s198, %s212
      %p214 = scmp.eq.s32.totalorder %s104, 0
      %p215 = por %p213, %p214
      %s217 = sadd.s32 %s216, 1
      %p220 = scmp.eq.s32.totalorder %s98, 1
      %p221 = scmp.ne.s32.totalorder %s216, %s218
      %p222 = scmp.eq.s32.totalorder %s98, 0
      %p223 = por %p221, %p222
      %p224 = scmp.ne.s32.totalorder %s216, %s218
      %p225 = scmp.eq.s32.totalorder %s103, 1
      %p226 = por %p224, %p225
      %p227 = scmp.ne.s32.totalorder %s218, %s219
      %p228 = scmp.eq.s32.totalorder %s103, 0
      %p229 = por %p227, %p228
      %p230 = scmp.ne.s32.totalorder %s218, %s219
      %p231 = scmp.eq.s32.totalorder %s104, 1
      %p232 = por %p230, %p231
      %p234 = scmp.ne.s32.totalorder %s219, %s233
      %p235 = scmp.eq.s32.totalorder %s104, 0
      %p236 = por %p234, %p235
      %s238 = sadd.s32 %s237, 1
      %p241 = scmp.eq.s32.totalorder %s98, 1
      %p242 = scmp.ne.s32.totalorder %s237, %s239
      %p243 = scmp.eq.s32.totalorder %s98, 0
      %p244 = por %p242, %p243
      %p245 = scmp.ne.s32.totalorder %s237, %s239
      %p246 = scmp.eq.s32.totalorder %s103, 1
      %p247 = por %p245, %p246
      %p248 = scmp.ne.s32.totalorder %s239, %s240
      %p249 = scmp.eq.s32.totalorder %s103, 0
      %p250 = por %p248, %p249
      %p251 = scmp.ne.s32.totalorder %s239, %s240
      %p252 = scmp.eq.s32.totalorder %s104, 1
      %p253 = por %p251, %p252
      %p255 = scmp.ne.s32.totalorder %s240, %s254
      %p256 = scmp.eq.s32.totalorder %s104, 0
      %p257 = por %p255, %p256
      %s259 = sadd.s32 %s258, 1
      %p262 = scmp.eq.s32.totalorder %s98, 1
      %p263 = scmp.ne.s32.totalorder %s258, %s260
      %p264 = scmp.eq.s32.totalorder %s98, 0
      %p265 = por %p263, %p264
      %p266 = scmp.ne.s32.totalorder %s258, %s260
      %p267 = scmp.eq.s32.totalorder %s103, 1
      %p268 = por %p266, %p267
      %p269 = scmp.ne.s32.totalorder %s260, %s261
      %p270 = scmp.eq.s32.totalorder %s103, 0
      %p271 = por %p269, %p270
      %p272 = scmp.ne.s32.totalorder %s260, %s261
      %p273 = scmp.eq.s32.totalorder %s104, 1
      %p274 = por %p272, %p273
      %p276 = scmp.ne.s32.totalorder %s261, %s275
      %p277 = scmp.eq.s32.totalorder %s104, 0
      %p278 = por %p276, %p277
      %s280 = sadd.s32 %s279, 1
      %p283 = scmp.eq.s32.totalorder %s98, 1
      %p284 = scmp.ne.s32.totalorder %s279, %s281
      %p285 = scmp.eq.s32.totalorder %s98, 0
      %p286 = por %p284, %p285
      %p287 = scmp.ne.s32.totalorder %s279, %s281
      %p288 = scmp.eq.s32.totalorder %s103, 1
      %p289 = por %p287, %p288
      %p290 = scmp.ne.s32.totalorder %s281, %s282
      %p291 = scmp.eq.s32.totalorder %s103, 0
      %p292 = por %p290, %p291
      %p293 = scmp.ne.s32.totalorder %s281, %s282
      %p294 = scmp.eq.s32.totalorder %s104, 1
      %p295 = por %p293, %p294
      %p297 = scmp.ne.s32.totalorder %s282, %s296
      %p298 = scmp.eq.s32.totalorder %s104, 0
      %p299 = por %p297, %p298
      %s301 = sadd.s32 %s300, 1
      %p304 = scmp.eq.s32.totalorder %s98, 1
      %p305 = scmp.ne.s32.totalorder %s300, %s302
      %p306 = scmp.eq.s32.totalorder %s98, 0
      %p307 = por %p305, %p306
      %p308 = scmp.ne.s32.totalorder %s300, %s302
      %p309 = scmp.eq.s32.totalorder %s103, 1
      %p310 = por %p308, %p309
      %p311 = scmp.ne.s32.totalorder %s302, %s303
      %p312 = scmp.eq.s32.totalorder %s103, 0
      %p313 = por %p311, %p312
      %p314 = scmp.ne.s32.totalorder %s302, %s303
      %p315 = scmp.eq.s32.totalorder %s104, 1
      %p316 = por %p314, %p315
      %p318 = scmp.ne.s32.totalorder %s303, %s317
      %p319 = scmp.eq.s32.totalorder %s104, 0
      %p320 = por %p318, %p319
      %s322 = sadd.s32 %s321, 1
      %p325 = scmp.eq.s32.totalorder %s98, 1
      %p326 = scmp.ne.s32.totalorder %s321, %s323
      %p327 = scmp.eq.s32.totalorder %s98, 0
      %p328 = por %p326, %p327
      %p329 = scmp.ne.s32.totalorder %s321, %s323
      %p330 = scmp.eq.s32.totalorder %s103, 1
      %p331 = por %p329, %p330
      %p332 = scmp.ne.s32.totalorder %s323, %s324
      %p333 = scmp.eq.s32.totalorder %s103, 0
      %p334 = por %p332, %p333
      %p335 = scmp.ne.s32.totalorder %s323, %s324
      %p336 = scmp.eq.s32.totalorder %s104, 1
      %p337 = por %p335, %p336
      %p339 = scmp.ne.s32.totalorder %s324, %s338
      %p340 = scmp.eq.s32.totalorder %s104, 0
      %p341 = por %p339, %p340
      %s343 = sadd.s32 %s342, 1
      %p346 = scmp.eq.s32.totalorder %s98, 1
      %p347 = scmp.ne.s32.totalorder %s342, %s344
      %p348 = scmp.eq.s32.totalorder %s98, 0
      %p349 = por %p347, %p348
      %p350 = scmp.ne.s32.totalorder %s342, %s344
      %p351 = scmp.eq.s32.totalorder %s103, 1
      %p352 = por %p350, %p351
      %p353 = scmp.ne.s32.totalorder %s344, %s345
      %p354 = scmp.eq.s32.totalorder %s103, 0
      %p355 = por %p353, %p354
      %p356 = scmp.ne.s32.totalorder %s344, %s345
      %p357 = scmp.eq.s32.totalorder %s104, 1
      %p358 = por %p356, %p357
      %p360 = scmp.ne.s32.totalorder %s345, %s359
      %p361 = scmp.eq.s32.totalorder %s104, 0
      %p362 = por %p360, %p361
      %s364 = sadd.s32 %s363, 1
      %p367 = scmp.eq.s32.totalorder %s98, 1
      %p368 = scmp.ne.s32.totalorder %s363, %s365
      %p369 = scmp.eq.s32.totalorder %s98, 0
      %p370 = por %p368, %p369
      %p371 = scmp.ne.s32.totalorder %s363, %s365
      %p372 = scmp.eq.s32.totalorder %s103, 1
      %p373 = por %p371, %p372
      %p374 = scmp.ne.s32.totalorder %s365, %s366
      %p375 = scmp.eq.s32.totalorder %s103, 0
      %p376 = por %p374, %p375
      %p377 = scmp.ne.s32.totalorder %s365, %s366
      %p378 = scmp.eq.s32.totalorder %s104, 1
      %p379 = por %p377, %p378
      %p381 = scmp.ne.s32.totalorder %s366, %s380
      %p382 = scmp.eq.s32.totalorder %s104, 0
      %p383 = por %p381, %p382
      %s385 = sadd.s32 %s384, 1
      %p388 = scmp.eq.s32.totalorder %s98, 1
      %p389 = scmp.ne.s32.totalorder %s384, %s386
      %p390 = scmp.eq.s32.totalorder %s98, 0
      %p391 = por %p389, %p390
      %p392 = scmp.ne.s32.totalorder %s384, %s386
      %p393 = scmp.eq.s32.totalorder %s103, 1
      %p394 = por %p392, %p393
      %p395 = scmp.ne.s32.totalorder %s386, %s387
      %p396 = scmp.eq.s32.totalorder %s103, 0
      %p397 = por %p395, %p396
      %p398 = scmp.ne.s32.totalorder %s386, %s387
      %p399 = scmp.eq.s32.totalorder %s104, 1
      %p400 = por %p398, %p399
      %p402 = scmp.ne.s32.totalorder %s387, %s401
      %p403 = scmp.eq.s32.totalorder %s104, 0
      %p404 = por %p402, %p403
      %s406 = sadd.s32 %s405, 1
      %p409 = scmp.eq.s32.totalorder %s98, 1
      %p410 = scmp.ne.s32.totalorder %s405, %s407
      %p411 = scmp.eq.s32.totalorder %s98, 0
      %p412 = por %p410, %p411
      %p413 = scmp.ne.s32.totalorder %s405, %s407
      %p414 = scmp.eq.s32.totalorder %s103, 1
      %p415 = por %p413, %p414
      %p416 = scmp.ne.s32.totalorder %s407, %s408
      %p417 = scmp.eq.s32.totalorder %s103, 0
      %p418 = por %p416, %p417
      %p419 = scmp.ne.s32.totalorder %s407, %s408
      %p420 = scmp.eq.s32.totalorder %s104, 1
      %p421 = por %p419, %p420
      %p423 = scmp.ne.s32.totalorder %s408, %s422
      %p424 = scmp.eq.s32.totalorder %s104, 0
      %p425 = por %p423, %p424
      %s427 = sadd.s32 %s426, 1
      %p430 = scmp.eq.s32.totalorder %s98, 1
      %p431 = scmp.ne.s32.totalorder %s426, %s428
      %p432 = scmp.eq.s32.totalorder %s98, 0
      %p433 = por %p431, %p432
      %p434 = scmp.ne.s32.totalorder %s426, %s428
      %p435 = scmp.eq.s32.totalorder %s103, 1
      %p436 = por %p434, %p435
      %p437 = scmp.ne.s32.totalorder %s428, %s429
      %p438 = scmp.eq.s32.totalorder %s103, 0
      %p439 = por %p437, %p438
      %p440 = scmp.ne.s32.totalorder %s428, %s429
      %p441 = scmp.eq.s32.totalorder %s104, 1
      %p442 = por %p440, %p441
      %p444 = scmp.ne.s32.totalorder %s429, %s443
      %p445 = scmp.eq.s32.totalorder %s104, 0
      %p446 = por %p444, %p445
      %s448 = sadd.s32 %s447, 1
      %p451 = scmp.eq.s32.totalorder %s98, 1
      %p452 = scmp.ne.s32.totalorder %s447, %s449
      %p453 = scmp.eq.s32.totalorder %s98, 0
      %p454 = por %p452, %p453
      %p455 = scmp.ne.s32.totalorder %s447, %s449
      %p456 = scmp.eq.s32.totalorder %s103, 1
      %p457 = por %p455, %p456
      %p458 = scmp.ne.s32.totalorder %s449, %s450
      %p459 = scmp.eq.s32.totalorder %s103, 0
      %p460 = por %p458, %p459
      %p461 = scmp.ne.s32.totalorder %s449, %s450
      %p462 = scmp.eq.s32.totalorder %s104, 1
      %p463 = por %p461, %p462
      %p465 = scmp.ne.s32.totalorder %s450, %s464
      %p466 = scmp.eq.s32.totalorder %s104, 0
      %p467 = por %p465, %p466
      %s469 = sadd.s32 %s468, 1
      %p472 = scmp.eq.s32.totalorder %s98, 1
      %p473 = scmp.ne.s32.totalorder %s468, %s470
      %p474 = scmp.eq.s32.totalorder %s98, 0
      %p475 = por %p473, %p474
      %p476 = scmp.ne.s32.totalorder %s468, %s470
      %p477 = scmp.eq.s32.totalorder %s103, 1
      %p478 = por %p476, %p477
      %p479 = scmp.ne.s32.totalorder %s470, %s471
      %p480 = scmp.eq.s32.totalorder %s103, 0
      %p481 = por %p479, %p480
      %p482 = scmp.ne.s32.totalorder %s470, %s471
      %p483 = scmp.eq.s32.totalorder %s104, 1
      %p484 = por %p482, %p483
      %p486 = scmp.ne.s32.totalorder %s471, %s485
      %p487 = scmp.eq.s32.totalorder %s104, 0
      %p488 = por %p486, %p487
      %s490 = sadd.s32 %s489, 1
      %p493 = scmp.eq.s32.totalorder %s98, 1
      %p494 = scmp.ne.s32.totalorder %s489, %s491
      %p495 = scmp.eq.s32.totalorder %s98, 0
      %p496 = por %p494, %p495
      %p497 = scmp.ne.s32.totalorder %s489, %s491
      %p498 = scmp.eq.s32.totalorder %s103, 1
      %p499 = por %p497, %p498
      %p500 = scmp.ne.s32.totalorder %s491, %s492
      %p501 = scmp.eq.s32.totalorder %s103, 0
      %p502 = por %p500, %p501
      %p503 = scmp.ne.s32.totalorder %s491, %s492
      %p504 = scmp.eq.s32.totalorder %s104, 1
      %p505 = por %p503, %p504
      %p507 = scmp.ne.s32.totalorder %s492, %s506
      %p508 = scmp.eq.s32.totalorder %s104, 0
      %p509 = por %p507, %p508
      %s511 = sadd.s32 %s510, 1
      %p514 = scmp.eq.s32.totalorder %s98, 1
      %p515 = scmp.ne.s32.totalorder %s510, %s512
      %p516 = scmp.eq.s32.totalorder %s98, 0
      %p517 = por %p515, %p516
      %p518 = scmp.ne.s32.totalorder %s510, %s512
      %p519 = scmp.eq.s32.totalorder %s103, 1
      %p520 = por %p518, %p519
      %p521 = scmp.ne.s32.totalorder %s512, %s513
      %p522 = scmp.eq.s32.totalorder %s103, 0
      %p523 = por %p521, %p522
      %p524 = scmp.ne.s32.totalorder %s512, %s513
      %p525 = scmp.eq.s32.totalorder %s104, 1
      %p526 = por %p524, %p525
      %p528 = scmp.ne.s32.totalorder %s513, %s527
      %p529 = scmp.eq.s32.totalorder %s104, 0
      %p530 = por %p528, %p529
      %s532 = sadd.s32 %s531, 1
      %p535 = scmp.eq.s32.totalorder %s98, 1
      %p536 = scmp.ne.s32.totalorder %s531, %s533
      %p537 = scmp.eq.s32.totalorder %s98, 0
      %p538 = por %p536, %p537
      %p539 = scmp.ne.s32.totalorder %s531, %s533
      %p540 = scmp.eq.s32.totalorder %s103, 1
      %p541 = por %p539, %p540
      %p542 = scmp.ne.s32.totalorder %s533, %s534
      %p543 = scmp.eq.s32.totalorder %s103, 0
      %p544 = por %p542, %p543
      %p545 = scmp.ne.s32.totalorder %s533, %s534
      %p546 = scmp.eq.s32.totalorder %s104, 1
      %p547 = por %p545, %p546
      %p549 = scmp.ne.s32.totalorder %s534, %s548
      %p550 = scmp.eq.s32.totalorder %s104, 0
      %p551 = por %p549, %p550
      %s553 = sadd.s32 %s552, 1
      %p556 = scmp.eq.s32.totalorder %s98, 1
      %p557 = scmp.ne.s32.totalorder %s552, %s554
      %p558 = scmp.eq.s32.totalorder %s98, 0
      %p559 = por %p557, %p558
      %p560 = scmp.ne.s32.totalorder %s552, %s554
      %p561 = scmp.eq.s32.totalorder %s103, 1
      %p562 = por %p560, %p561
      %p563 = scmp.ne.s32.totalorder %s554, %s555
      %p564 = scmp.eq.s32.totalorder %s103, 0
      %p565 = por %p563, %p564
      %p566 = scmp.ne.s32.totalorder %s554, %s555
      %p567 = scmp.eq.s32.totalorder %s104, 1
      %p568 = por %p566, %p567
      %p570 = scmp.ne.s32.totalorder %s555, %s569
      %p571 = scmp.eq.s32.totalorder %s104, 0
      %p572 = por %p570, %p571
      %s574 = sadd.s32 %s573, 1
      %p577 = scmp.eq.s32.totalorder %s98, 1
      %p578 = scmp.ne.s32.totalorder %s573, %s575
      %p579 = scmp.eq.s32.totalorder %s98, 0
      %p580 = por %p578, %p579
      %p581 = scmp.ne.s32.totalorder %s573, %s575
      %p582 = scmp.eq.s32.totalorder %s103, 1
      %p583 = por %p581, %p582
      %p584 = scmp.ne.s32.totalorder %s575, %s576
      %p585 = scmp.eq.s32.totalorder %s103, 0
      %p586 = por %p584, %p585
      %p587 = scmp.ne.s32.totalorder %s575, %s576
      %p588 = scmp.eq.s32.totalorder %s104, 1
      %p589 = por %p587, %p588
      %p591 = scmp.ne.s32.totalorder %s576, %s590
      %p592 = scmp.eq.s32.totalorder %s104, 0
      %p593 = por %p591, %p592
      %s595 = sadd.s32 %s594, 1
      %p598 = scmp.eq.s32.totalorder %s98, 1
      %p599 = scmp.ne.s32.totalorder %s594, %s596
      %p600 = scmp.eq.s32.totalorder %s98, 0
      %p601 = por %p599, %p600
      %p602 = scmp.ne.s32.totalorder %s594, %s596
      %p603 = scmp.eq.s32.totalorder %s103, 1
      %p604 = por %p602, %p603
      %p605 = scmp.ne.s32.totalorder %s596, %s597
      %p606 = scmp.eq.s32.totalorder %s103, 0
      %p607 = por %p605, %p606
      %p608 = scmp.ne.s32.totalorder %s596, %s597
      %p609 = scmp.eq.s32.totalorder %s104, 1
      %p610 = por %p608, %p609
      %p612 = scmp.ne.s32.totalorder %s597, %s611
      %p613 = scmp.eq.s32.totalorder %s104, 0
      %p614 = por %p612, %p613
      %s616 = sadd.s32 %s615, 1
      %p619 = scmp.eq.s32.totalorder %s98, 1
      %p620 = scmp.ne.s32.totalorder %s615, %s617
      %p621 = scmp.eq.s32.totalorder %s98, 0
      %p622 = por %p620, %p621
      %p623 = scmp.ne.s32.totalorder %s615, %s617
      %p624 = scmp.eq.s32.totalorder %s103, 1
      %p625 = por %p623, %p624
      %p626 = scmp.ne.s32.totalorder %s617, %s618
      %p627 = scmp.eq.s32.totalorder %s103, 0
      %p628 = por %p626, %p627
      %p629 = scmp.ne.s32.totalorder %s617, %s618
      %p630 = scmp.eq.s32.totalorder %s104, 1
      %p631 = por %p629, %p630
      %p633 = scmp.ne.s32.totalorder %s618, %s632
      %p634 = scmp.eq.s32.totalorder %s104, 0
      %p635 = por %p633, %p634
      %s637 = sadd.s32 %s636, 1
      %p640 = scmp.eq.s32.totalorder %s98, 1
      %p641 = scmp.ne.s32.totalorder %s636, %s638
      %p642 = scmp.eq.s32.totalorder %s98, 0
      %p643 = por %p641, %p642
      %p644 = scmp.ne.s32.totalorder %s636, %s638
      %p645 = scmp.eq.s32.totalorder %s103, 1
      %p646 = por %p644, %p645
      %p647 = scmp.ne.s32.totalorder %s638, %s639
      %p648 = scmp.eq.s32.totalorder %s103, 0
      %p649 = por %p647, %p648
      %p650 = scmp.ne.s32.totalorder %s638, %s639
      %p651 = scmp.eq.s32.totalorder %s104, 1
      %p652 = por %p650, %p651
      %p654 = scmp.ne.s32.totalorder %s639, %s653
      %p655 = scmp.eq.s32.totalorder %s104, 0
      %p656 = por %p654, %p655
      %s658 = sadd.s32 %s657, 1
      %p661 = scmp.eq.s32.totalorder %s98, 1
      %p662 = scmp.ne.s32.totalorder %s657, %s659
      %p663 = scmp.eq.s32.totalorder %s98, 0
      %p664 = por %p662, %p663
      %p665 = scmp.ne.s32.totalorder %s657, %s659
      %p666 = scmp.eq.s32.totalorder %s103, 1
      %p667 = por %p665, %p666
      %p668 = scmp.ne.s32.totalorder %s659, %s660
      %p669 = scmp.eq.s32.totalorder %s103, 0
      %p670 = por %p668, %p669
      %p671 = scmp.ne.s32.totalorder %s659, %s660
      %p672 = scmp.eq.s32.totalorder %s104, 1
      %p673 = por %p671, %p672
      %p675 = scmp.ne.s32.totalorder %s660, %s674
      %p676 = scmp.eq.s32.totalorder %s104, 0
      %p677 = por %p675, %p676
      %s679 = sadd.s32 %s678, 1
      %p682 = scmp.eq.s32.totalorder %s98, 1
      %p683 = scmp.ne.s32.totalorder %s678, %s680
      %p684 = scmp.eq.s32.totalorder %s98, 0
      %p685 = por %p683, %p684
      %p686 = scmp.ne.s32.totalorder %s678, %s680
      %p687 = scmp.eq.s32.totalorder %s103, 1
      %p688 = por %p686, %p687
      %p689 = scmp.ne.s32.totalorder %s680, %s681
      %p690 = scmp.eq.s32.totalorder %s103, 0
      %p691 = por %p689, %p690
      %p692 = scmp.ne.s32.totalorder %s680, %s681
      %p693 = scmp.eq.s32.totalorder %s104, 1
      %p694 = por %p692, %p693
      %p696 = scmp.ne.s32.totalorder %s681, %s695
      %p697 = scmp.eq.s32.totalorder %s104, 0
      %p698 = por %p696, %p697
      %s700 = sadd.s32 %s699, 1
      %p703 = scmp.eq.s32.totalorder %s98, 1
      %p704 = scmp.ne.s32.totalorder %s699, %s701
      %p705 = scmp.eq.s32.totalorder %s98, 0
      %p706 = por %p704, %p705
      %p707 = scmp.ne.s32.totalorder %s699, %s701
      %p708 = scmp.eq.s32.totalorder %s103, 1
      %p709 = por %p707, %p708
      %p710 = scmp.ne.s32.totalorder %s701, %s702
      %p711 = scmp.eq.s32.totalorder %s103, 0
      %p712 = por %p710, %p711
      %p713 = scmp.ne.s32.totalorder %s701, %s702
      %p714 = scmp.eq.s32.totalorder %s104, 1
      %p715 = por %p713, %p714
      %p717 = scmp.ne.s32.totalorder %s702, %s716
      %p718 = scmp.eq.s32.totalorder %s104, 0
      %p719 = por %p717, %p718
      %s721 = sadd.s32 %s720, 1
      %p724 = scmp.eq.s32.totalorder %s98, 1
      %p725 = scmp.ne.s32.totalorder %s720, %s722
      %p726 = scmp.eq.s32.totalorder %s98, 0
      %p727 = por %p725, %p726
      %p728 = scmp.ne.s32.totalorder %s720, %s722
      %p729 = scmp.eq.s32.totalorder %s103, 1
      %p730 = por %p728, %p729
      %p731 = scmp.ne.s32.totalorder %s722, %s723
      %p732 = scmp.eq.s32.totalorder %s103, 0
      %p733 = por %p731, %p732
      %p734 = scmp.ne.s32.totalorder %s722, %s723
      %p735 = scmp.eq.s32.totalorder %s104, 1
      %p736 = por %p734, %p735
      %p738 = scmp.ne.s32.totalorder %s723, %s737
      %p739 = scmp.eq.s32.totalorder %s104, 0
      %p740 = por %p738, %p739
      %s742 = sadd.s32 %s741, 1
      %p745 = scmp.eq.s32.totalorder %s98, 1
      %p746 = scmp.ne.s32.totalorder %s741, %s743
      %p747 = scmp.eq.s32.totalorder %s98, 0
      %p748 = por %p746, %p747
      %p749 = scmp.ne.s32.totalorder %s741, %s743
      %p750 = scmp.eq.s32.totalorder %s103, 1
      %p751 = por %p749, %p750
      %p752 = scmp.ne.s32.totalorder %s743, %s744
      %p753 = scmp.eq.s32.totalorder %s103, 0
      %p754 = por %p752, %p753
      %p755 = scmp.ne.s32.totalorder %s743, %s744
      %p756 = scmp.eq.s32.totalorder %s104, 1
      %p757 = por %p755, %p756
      %p759 = scmp.ne.s32.totalorder %s744, %s758
      %p760 = scmp.eq.s32.totalorder %s104, 0
      %p761 = por %p759, %p760
      %s763 = sadd.s32 %s762, 1
      %p766 = scmp.eq.s32.totalorder %s98, 1
      %p767 = scmp.ne.s32.totalorder %s762, %s764
      %p768 = scmp.eq.s32.totalorder %s98, 0
      %p769 = por %p767, %p768
      %p770 = scmp.ne.s32.totalorder %s762, %s764
      %p771 = scmp.eq.s32.totalorder %s103, 1
      %p772 = por %p770, %p771
      %p773 = scmp.ne.s32.totalorder %s764, %s765
      %p774 = scmp.eq.s32.totalorder %s103, 0
      %p775 = por %p773, %p774
      %p776 = scmp.ne.s32.totalorder %s764, %s765
      %p777 = scmp.eq.s32.totalorder %s104, 1
      %p778 = por %p776, %p777
      %p780 = scmp.ne.s32.totalorder %s765, %s779
      %p781 = scmp.eq.s32.totalorder %s104, 0
      %p782 = por %p780, %p781
      %s784 = sadd.s32 %s783, 1
      %p787 = scmp.eq.s32.totalorder %s98, 1
      %p788 = scmp.ne.s32.totalorder %s783, %s785
      %p789 = scmp.eq.s32.totalorder %s98, 0
      %p790 = por %p788, %p789
      %p791 = scmp.ne.s32.totalorder %s783, %s785
      %p792 = scmp.eq.s32.totalorder %s103, 1
      %p793 = por %p791, %p792
      %p794 = scmp.ne.s32.totalorder %s785, %s786
      %p795 = scmp.eq.s32.totalorder %s103, 0
      %p796 = por %p794, %p795
      %p797 = scmp.ne.s32.totalorder %s785, %s786
      %p798 = scmp.eq.s32.totalorder %s104, 1
      %p799 = por %p797, %p798
      %p801 = scmp.ne.s32.totalorder %s786, %s800
      %p802 = scmp.eq.s32.totalorder %s104, 0
      %p803 = por %p801, %p802
      %s805 = sadd.s32 %s804, 1
      %p808 = scmp.eq.s32.totalorder %s98, 1
      %p809 = scmp.ne.s32.totalorder %s804, %s806
      %p810 = scmp.eq.s32.totalorder %s98, 0
      %p811 = por %p809, %p810
      %p812 = scmp.ne.s32.totalorder %s804, %s806
      %p813 = scmp.eq.s32.totalorder %s103, 1
      %p814 = por %p812, %p813
      %p815 = scmp.ne.s32.totalorder %s806, %s807
      %p816 = scmp.eq.s32.totalorder %s103, 0
      %p817 = por %p815, %p816
      %p818 = scmp.ne.s32.totalorder %s806, %s807
      %p819 = scmp.eq.s32.totalorder %s104, 1
      %p820 = por %p818, %p819
      %p822 = scmp.ne.s32.totalorder %s807, %s821
      %p823 = scmp.eq.s32.totalorder %s104, 0
      %p824 = por %p822, %p823
      %s826 = sadd.s32 %s825, 1
      %p829 = scmp.eq.s32.totalorder %s98, 1
      %p830 = scmp.ne.s32.totalorder %s825, %s827
      %p831 = scmp.eq.s32.totalorder %s98, 0
      %p832 = por %p830, %p831
      %p833 = scmp.ne.s32.totalorder %s825, %s827
      %p834 = scmp.eq.s32.totalorder %s103, 1
      %p835 = por %p833, %p834
      %p836 = scmp.ne.s32.totalorder %s827, %s828
      %p837 = scmp.eq.s32.totalorder %s103, 0
      %p838 = por %p836, %p837
      %p839 = scmp.ne.s32.totalorder %s827, %s828
      %p840 = scmp.eq.s32.totalorder %s104, 1
      %p841 = por %p839, %p840
      %p843 = scmp.ne.s32.totalorder %s828, %s842
      %p844 = scmp.eq.s32.totalorder %s104, 0
      %p845 = por %p843, %p844
      %s847 = sadd.s32 %s846, 1
      %p850 = scmp.eq.s32.totalorder %s98, 1
      %p851 = scmp.ne.s32.totalorder %s846, %s848
      %p852 = scmp.eq.s32.totalorder %s98, 0
      %p853 = por %p851, %p852
      %p854 = scmp.ne.s32.totalorder %s846, %s848
      %p855 = scmp.eq.s32.totalorder %s103, 1
      %p856 = por %p854, %p855
      %p857 = scmp.ne.s32.totalorder %s848, %s849
      %p858 = scmp.eq.s32.totalorder %s103, 0
      %p859 = por %p857, %p858
      %p860 = scmp.ne.s32.totalorder %s848, %s849
      %p861 = scmp.eq.s32.totalorder %s104, 1
      %p862 = por %p860, %p861
      %p864 = scmp.ne.s32.totalorder %s849, %s863
      %p865 = scmp.eq.s32.totalorder %s104, 0
      %p866 = por %p864, %p865
      %s868 = sadd.s32 %s867, 1
      %p871 = scmp.eq.s32.totalorder %s98, 1
      %p872 = scmp.ne.s32.totalorder %s867, %s869
      %p873 = scmp.eq.s32.totalorder %s98, 0
      %p874 = por %p872, %p873
      %p875 = scmp.ne.s32.totalorder %s867, %s869
      %p876 = scmp.eq.s32.totalorder %s103, 1
      %p877 = por %p875, %p876
      %p878 = scmp.ne.s32.totalorder %s869, %s870
      %p879 = scmp.eq.s32.totalorder %s103, 0
      %p880 = por %p878, %p879
      %p881 = scmp.ne.s32.totalorder %s869, %s870
      %p882 = scmp.eq.s32.totalorder %s104, 1
      %p883 = por %p881, %p882
      %p885 = scmp.ne.s32.totalorder %s870, %s884
      %p886 = scmp.eq.s32.totalorder %s104, 0
      %p887 = por %p885, %p886
      %s889 = sadd.s32 %s888, 1
      %p892 = scmp.eq.s32.totalorder %s98, 1
      %p893 = scmp.ne.s32.totalorder %s888, %s890
      %p894 = scmp.eq.s32.totalorder %s98, 0
      %p895 = por %p893, %p894
      %p896 = scmp.ne.s32.totalorder %s888, %s890
      %p897 = scmp.eq.s32.totalorder %s103, 1
      %p898 = por %p896, %p897
      %p899 = scmp.ne.s32.totalorder %s890, %s891
      %p900 = scmp.eq.s32.totalorder %s103, 0
      %p901 = por %p899, %p900
      %p902 = scmp.ne.s32.totalorder %s890, %s891
      %p903 = scmp.eq.s32.totalorder %s104, 1
      %p904 = por %p902, %p903
      %p906 = scmp.ne.s32.totalorder %s891, %s905
      %p907 = scmp.eq.s32.totalorder %s104, 0
      %p908 = por %p906, %p907
      %s910 = sadd.s32 %s909, 1
      %p913 = scmp.eq.s32.totalorder %s98, 1
      %p914 = scmp.ne.s32.totalorder %s909, %s911
      %p915 = scmp.eq.s32.totalorder %s98, 0
      %p916 = por %p914, %p915
      %p917 = scmp.ne.s32.totalorder %s909, %s911
      %p918 = scmp.eq.s32.totalorder %s103, 1
      %p919 = por %p917, %p918
      %p920 = scmp.ne.s32.totalorder %s911, %s912
      %p921 = scmp.eq.s32.totalorder %s103, 0
      %p922 = por %p920, %p921
      %p923 = scmp.ne.s32.totalorder %s911, %s912
      %p924 = scmp.eq.s32.totalorder %s104, 1
      %p925 = por %p923, %p924
      %p927 = scmp.ne.s32.totalorder %s912, %s926
      %p928 = scmp.eq.s32.totalorder %s104, 0
      %p929 = por %p927, %p928
      %s931 = sadd.s32 %s930, 1
      %p934 = scmp.eq.s32.totalorder %s98, 1
      %p935 = scmp.ne.s32.totalorder %s930, %s932
      %p936 = scmp.eq.s32.totalorder %s98, 0
      %p937 = por %p935, %p936
      %p938 = scmp.ne.s32.totalorder %s930, %s932
      %p939 = scmp.eq.s32.totalorder %s103, 1
      %p940 = por %p938, %p939
      %p941 = scmp.ne.s32.totalorder %s932, %s933
      %p942 = scmp.eq.s32.totalorder %s103, 0
      %p943 = por %p941, %p942
      %p944 = scmp.ne.s32.totalorder %s932, %s933
      %p945 = scmp.eq.s32.totalorder %s104, 1
      %p946 = por %p944, %p945
      %p948 = scmp.ne.s32.totalorder %s933, %s947
      %p949 = scmp.eq.s32.totalorder %s104, 0
      %p950 = por %p948, %p949
      %s952 = sadd.s32 %s951, 1
      %p955 = scmp.eq.s32.totalorder %s98, 1
      %p956 = scmp.ne.s32.totalorder %s951, %s953
      %p957 = scmp.eq.s32.totalorder %s98, 0
      %p958 = por %p956, %p957
      %p959 = scmp.ne.s32.totalorder %s951, %s953
      %p960 = scmp.eq.s32.totalorder %s103, 1
      %p961 = por %p959, %p960
      %p962 = scmp.ne.s32.totalorder %s953, %s954
      %p963 = scmp.eq.s32.totalorder %s103, 0
      %p964 = por %p962, %p963
      %p965 = scmp.ne.s32.totalorder %s953, %s954
      %p966 = scmp.eq.s32.totalorder %s104, 1
      %p967 = por %p965, %p966
      %p969 = scmp.ne.s32.totalorder %s954, %s968
      %p970 = scmp.eq.s32.totalorder %s104, 0
      %p971 = por %p969, %p970
      %s973 = sadd.s32 %s972, 1
      %p976 = scmp.eq.s32.totalorder %s98, 1
      %p977 = scmp.ne.s32.totalorder %s972, %s974
      %p978 = scmp.eq.s32.totalorder %s98, 0
      %p979 = por %p977, %p978
      %p980 = scmp.ne.s32.totalorder %s972, %s974
      %p981 = scmp.eq.s32.totalorder %s103, 1
      %p982 = por %p980, %p981
      %p983 = scmp.ne.s32.totalorder %s974, %s975
      %p984 = scmp.eq.s32.totalorder %s103, 0
      %p985 = por %p983, %p984
      %p986 = scmp.ne.s32.totalorder %s974, %s975
      %p987 = scmp.eq.s32.totalorder %s104, 1
      %p988 = por %p986, %p987
      %p990 = scmp.ne.s32.totalorder %s975, %s989
      %p991 = scmp.eq.s32.totalorder %s104, 0
      %p992 = por %p990, %p991
      %s994 = sadd.s32 %s993, 1
      %p997 = scmp.eq.s32.totalorder %s98, 1
      %p998 = scmp.ne.s32.totalorder %s993, %s995
      %p999 = scmp.eq.s32.totalorder %s98, 0
      %p1000 = por %p998, %p999
      %p1001 = scmp.ne.s32.totalorder %s993, %s995
      %p1002 = scmp.eq.s32.totalorder %s103, 1
      %p1003 = por %p1001, %p1002
      %p1004 = scmp.ne.s32.totalorder %s995, %s996
      %p1005 = scmp.eq.s32.totalorder %s103, 0
      %p1006 = por %p1004, %p1005
      %p1007 = scmp.ne.s32.totalorder %s995, %s996
      %p1008 = scmp.eq.s32.totalorder %s104, 1
      %p1009 = por %p1007, %p1008
      %p1011 = scmp.ne.s32.totalorder %s996, %s1010
      %p1012 = scmp.eq.s32.totalorder %s104, 0
      %p1013 = por %p1011, %p1012
      %s1015 = sadd.s32 %s1014, 1
      %p1018 = scmp.eq.s32.totalorder %s98, 1
      %p1019 = scmp.ne.s32.totalorder %s1014, %s1016
      %p1020 = scmp.eq.s32.totalorder %s98, 0
      %p1021 = por %p1019, %p1020
      %p1022 = scmp.ne.s32.totalorder %s1014, %s1016
      %p1023 = scmp.eq.s32.totalorder %s103, 1
      %p1024 = por %p1022, %p1023
      %p1025 = scmp.ne.s32.totalorder %s1016, %s1017
      %p1026 = scmp.eq.s32.totalorder %s103, 0
      %p1027 = por %p1025, %p1026
      %p1028 = scmp.ne.s32.totalorder %s1016, %s1017
      %p1029 = scmp.eq.s32.totalorder %s104, 1
      %p1030 = por %p1028, %p1029
      %p1032 = scmp.ne.s32.totalorder %s1017, %s1031
      %p1033 = scmp.eq.s32.totalorder %s104, 0
      %p1034 = por %p1032, %p1033
      %s1035 = ssub.s32 %s98, %s105
      %p1036 = scmp.eq.s32.totalorder %s1035, 0
      %s1038 = sadd.s32 %s1037, 1
      %s1039 = scalar_select %p1036, %s1037, %s1038
      %p1042 = pneg %p1036
      %p1043 = scmp.eq.s32.totalorder %s98, 1
      %p1044 = por %p1042, %p1043
      %p1045 = scmp.ne.s32.totalorder %s1037, %s1040
      %p1046 = scmp.eq.s32.totalorder %s98, 0
      %p1047 = por %p1045, %p1046
      %p1048 = scmp.ne.s32.totalorder %s1037, %s1040
      %p1049 = scmp.eq.s32.totalorder %s103, 1
      %p1050 = por %p1048, %p1049
      %p1051 = scmp.ne.s32.totalorder %s1040, %s1041
      %p1052 = scmp.eq.s32.totalorder %s103, 0
      %p1053 = por %p1051, %p1052
      %p1054 = scmp.ne.s32.totalorder %s1040, %s1041
      %p1055 = scmp.eq.s32.totalorder %s104, 1
      %p1056 = por %p1054, %p1055
      %p1058 = scmp.ne.s32.totalorder %s1041, %s1057
      %p1059 = scmp.eq.s32.totalorder %s104, 0
      %p1060 = por %p1058, %p1059
      %p1061 = scmp.le.s32.totalorder 1, %s98
      %p1062 = scmp.lt.s32.totalorder %s98, 3
      %p1063 = pnand %p1061, %p1062
      %p1064 = pneg %p1063
      // Predicated region
      $region9: #{separated_forward.1} parent=5 // pred_check
        _
      $region10: #{separated_forward.1} parent=5 // pred_check_branch
        %1066 = sbr.rel (%p1063) target = $region12
      $region11: #{separated_forward.1} parent=5 // pred_region
        %s1067 = ssub.s32 %s98, 1
        // Predicated region
        $region13: #{separated_forward.1} parent=11 // pred_check
          %p1068 = pneg %p145
        $region14: #{separated_forward.1} parent=11 // pred_check_branch
          %1070 = sbr.rel (%p1068) target = $region16
        $region15: #{separated_forward.1} parent=11 // pred_region
          _
        $region16: #{separated_forward.1} parent=11 // pred_fallthru
          _
        // Predicated region
        $region17: #{separated_forward.1} parent=11 // pred_check
          %p1071 = pneg %p166
        $region18: #{separated_forward.1} parent=11 // pred_check_branch
          %1073 = sbr.rel (%p1071) target = $region20
        $region19: #{separated_forward.1} parent=11 // pred_region
          _
        $region20: #{separated_forward.1} parent=11 // pred_fallthru
          _
        // Predicated region
        $region21: #{separated_forward.1} parent=11 // pred_check
          %p1074 = pneg %p187
        $region22: #{separated_forward.1} parent=11 // pred_check_branch
          %1076 = sbr.rel (%p1074) target = $region24
        $region23: #{separated_forward.1} parent=11 // pred_region
          _
        $region24: #{separated_forward.1} parent=11 // pred_fallthru
          _
        // Predicated region
        $region25: #{separated_forward.1} parent=11 // pred_check
          %p1077 = pneg %p208
        $region26: #{separated_forward.1} parent=11 // pred_check_branch
          %1079 = sbr.rel (%p1077) target = $region28
        $region27: #{separated_forward.1} parent=11 // pred_region
          _
        $region28: #{separated_forward.1} parent=11 // pred_fallthru
          _
        // Predicated region
        $region29: #{separated_forward.1} parent=11 // pred_check
          %p1080 = pneg %p229
        $region30: #{separated_forward.1} parent=11 // pred_check_branch
          %1082 = sbr.rel (%p1080) target = $region32
        $region31: #{separated_forward.1} parent=11 // pred_region
          _
        $region32: #{separated_forward.1} parent=11 // pred_fallthru
          _
        // Predicated region
        $region33: #{separated_forward.1} parent=11 // pred_check
          %p1083 = pneg %p250
        $region34: #{separated_forward.1} parent=11 // pred_check_branch
          %1085 = sbr.rel (%p1083) target = $region36
        $region35: #{separated_forward.1} parent=11 // pred_region
          _
        $region36: #{separated_forward.1} parent=11 // pred_fallthru
          _
        // Predicated region
        $region37: #{separated_forward.1} parent=11 // pred_check
          %p1086 = pneg %p271
        $region38: #{separated_forward.1} parent=11 // pred_check_branch
          %1088 = sbr.rel (%p1086) target = $region40
        $region39: #{separated_forward.1} parent=11 // pred_region
          _
        $region40: #{separated_forward.1} parent=11 // pred_fallthru
          _
        // Predicated region
        $region41: #{separated_forward.1} parent=11 // pred_check
          %p1089 = pneg %p292
        $region42: #{separated_forward.1} parent=11 // pred_check_branch
          %1091 = sbr.rel (%p1089) target = $region44
        $region43: #{separated_forward.1} parent=11 // pred_region
          _
        $region44: #{separated_forward.1} parent=11 // pred_fallthru
          _
        // Predicated region
        $region45: #{separated_forward.1} parent=11 // pred_check
          %p1092 = pneg %p313
        $region46: #{separated_forward.1} parent=11 // pred_check_branch
          %1094 = sbr.rel (%p1092) target = $region48
        $region47: #{separated_forward.1} parent=11 // pred_region
          _
        $region48: #{separated_forward.1} parent=11 // pred_fallthru
          _
        // Predicated region
        $region49: #{separated_forward.1} parent=11 // pred_check
          %p1095 = pneg %p334
        $region50: #{separated_forward.1} parent=11 // pred_check_branch
          %1097 = sbr.rel (%p1095) target = $region52
        $region51: #{separated_forward.1} parent=11 // pred_region
          _
        $region52: #{separated_forward.1} parent=11 // pred_fallthru
          _
        // Predicated region
        $region53: #{separated_forward.1} parent=11 // pred_check
          %p1098 = pneg %p355
        $region54: #{separated_forward.1} parent=11 // pred_check_branch
          %1100 = sbr.rel (%p1098) target = $region56
        $region55: #{separated_forward.1} parent=11 // pred_region
          _
        $region56: #{separated_forward.1} parent=11 // pred_fallthru
          _
        // Predicated region
        $region57: #{separated_forward.1} parent=11 // pred_check
          %p1101 = pneg %p376
        $region58: #{separated_forward.1} parent=11 // pred_check_branch
          %1103 = sbr.rel (%p1101) target = $region60
        $region59: #{separated_forward.1} parent=11 // pred_region
          _
        $region60: #{separated_forward.1} parent=11 // pred_fallthru
          _
        // Predicated region
        $region61: #{separated_forward.1} parent=11 // pred_check
          %p1104 = pneg %p397
        $region62: #{separated_forward.1} parent=11 // pred_check_branch
          %1106 = sbr.rel (%p1104) target = $region64
        $region63: #{separated_forward.1} parent=11 // pred_region
          _
        $region64: #{separated_forward.1} parent=11 // pred_fallthru
          _
        // Predicated region
        $region65: #{separated_forward.1} parent=11 // pred_check
          %p1107 = pneg %p418
        $region66: #{separated_forward.1} parent=11 // pred_check_branch
          %1109 = sbr.rel (%p1107) target = $region68
        $region67: #{separated_forward.1} parent=11 // pred_region
          _
        $region68: #{separated_forward.1} parent=11 // pred_fallthru
          _
        // Predicated region
        $region69: #{separated_forward.1} parent=11 // pred_check
          %p1110 = pneg %p439
        $region70: #{separated_forward.1} parent=11 // pred_check_branch
          %1112 = sbr.rel (%p1110) target = $region72
        $region71: #{separated_forward.1} parent=11 // pred_region
          _
        $region72: #{separated_forward.1} parent=11 // pred_fallthru
          _
        // Predicated region
        $region73: #{separated_forward.1} parent=11 // pred_check
          %p1113 = pneg %p460
        $region74: #{separated_forward.1} parent=11 // pred_check_branch
          %1115 = sbr.rel (%p1113) target = $region76
        $region75: #{separated_forward.1} parent=11 // pred_region
          _
        $region76: #{separated_forward.1} parent=11 // pred_fallthru
          _
        // Predicated region
        $region77: #{separated_forward.1} parent=11 // pred_check
          %p1116 = pneg %p481
        $region78: #{separated_forward.1} parent=11 // pred_check_branch
          %1118 = sbr.rel (%p1116) target = $region80
        $region79: #{separated_forward.1} parent=11 // pred_region
          _
        $region80: #{separated_forward.1} parent=11 // pred_fallthru
          _
        // Predicated region
        $region81: #{separated_forward.1} parent=11 // pred_check
          %p1119 = pneg %p502
        $region82: #{separated_forward.1} parent=11 // pred_check_branch
          %1121 = sbr.rel (%p1119) target = $region84
        $region83: #{separated_forward.1} parent=11 // pred_region
          _
        $region84: #{separated_forward.1} parent=11 // pred_fallthru
          _
        // Predicated region
        $region85: #{separated_forward.1} parent=11 // pred_check
          %p1122 = pneg %p523
        $region86: #{separated_forward.1} parent=11 // pred_check_branch
          %1124 = sbr.rel (%p1122) target = $region88
        $region87: #{separated_forward.1} parent=11 // pred_region
          _
        $region88: #{separated_forward.1} parent=11 // pred_fallthru
          _
        // Predicated region
        $region89: #{separated_forward.1} parent=11 // pred_check
          %p1125 = pneg %p544
        $region90: #{separated_forward.1} parent=11 // pred_check_branch
          %1127 = sbr.rel (%p1125) target = $region92
        $region91: #{separated_forward.1} parent=11 // pred_region
          _
        $region92: #{separated_forward.1} parent=11 // pred_fallthru
          _
        // Predicated region
        $region93: #{separated_forward.1} parent=11 // pred_check
          %p1128 = pneg %p565
        $region94: #{separated_forward.1} parent=11 // pred_check_branch
          %1130 = sbr.rel (%p1128) target = $region96
        $region95: #{separated_forward.1} parent=11 // pred_region
          _
        $region96: #{separated_forward.1} parent=11 // pred_fallthru
          _
        // Predicated region
        $region97: #{separated_forward.1} parent=11 // pred_check
          %p1131 = pneg %p586
        $region98: #{separated_forward.1} parent=11 // pred_check_branch
          %1133 = sbr.rel (%p1131) target = $region100
        $region99: #{separated_forward.1} parent=11 // pred_region
          _
        $region100: #{separated_forward.1} parent=11 // pred_fallthru
          _
        // Predicated region
        $region101: #{separated_forward.1} parent=11 // pred_check
          %p1134 = pneg %p607
        $region102: #{separated_forward.1} parent=11 // pred_check_branch
          %1136 = sbr.rel (%p1134) target = $region104
        $region103: #{separated_forward.1} parent=11 // pred_region
          _
        $region104: #{separated_forward.1} parent=11 // pred_fallthru
          _
        // Predicated region
        $region105: #{separated_forward.1} parent=11 // pred_check
          %p1137 = pneg %p628
        $region106: #{separated_forward.1} parent=11 // pred_check_branch
          %1139 = sbr.rel (%p1137) target = $region108
        $region107: #{separated_forward.1} parent=11 // pred_region
          _
        $region108: #{separated_forward.1} parent=11 // pred_fallthru
          _
        // Predicated region
        $region109: #{separated_forward.1} parent=11 // pred_check
          %p1140 = pneg %p649
        $region110: #{separated_forward.1} parent=11 // pred_check_branch
          %1142 = sbr.rel (%p1140) target = $region112
        $region111: #{separated_forward.1} parent=11 // pred_region
          _
        $region112: #{separated_forward.1} parent=11 // pred_fallthru
          _
        // Predicated region
        $region113: #{separated_forward.1} parent=11 // pred_check
          %p1143 = pneg %p670
        $region114: #{separated_forward.1} parent=11 // pred_check_branch
          %1145 = sbr.rel (%p1143) target = $region116
        $region115: #{separated_forward.1} parent=11 // pred_region
          _
        $region116: #{separated_forward.1} parent=11 // pred_fallthru
          _
        // Predicated region
        $region117: #{separated_forward.1} parent=11 // pred_check
          %p1146 = pneg %p691
        $region118: #{separated_forward.1} parent=11 // pred_check_branch
          %1148 = sbr.rel (%p1146) target = $region120
        $region119: #{separated_forward.1} parent=11 // pred_region
          _
        $region120: #{separated_forward.1} parent=11 // pred_fallthru
          _
        // Predicated region
        $region121: #{separated_forward.1} parent=11 // pred_check
          %p1149 = pneg %p712
        $region122: #{separated_forward.1} parent=11 // pred_check_branch
          %1151 = sbr.rel (%p1149) target = $region124
        $region123: #{separated_forward.1} parent=11 // pred_region
          _
        $region124: #{separated_forward.1} parent=11 // pred_fallthru
          _
        // Predicated region
        $region125: #{separated_forward.1} parent=11 // pred_check
          %p1152 = pneg %p733
        $region126: #{separated_forward.1} parent=11 // pred_check_branch
          %1154 = sbr.rel (%p1152) target = $region128
        $region127: #{separated_forward.1} parent=11 // pred_region
          _
        $region128: #{separated_forward.1} parent=11 // pred_fallthru
          _
        // Predicated region
        $region129: #{separated_forward.1} parent=11 // pred_check
          %p1155 = pneg %p754
        $region130: #{separated_forward.1} parent=11 // pred_check_branch
          %1157 = sbr.rel (%p1155) target = $region132
        $region131: #{separated_forward.1} parent=11 // pred_region
          _
        $region132: #{separated_forward.1} parent=11 // pred_fallthru
          _
        // Predicated region
        $region133: #{separated_forward.1} parent=11 // pred_check
          %p1158 = pneg %p775
        $region134: #{separated_forward.1} parent=11 // pred_check_branch
          %1160 = sbr.rel (%p1158) target = $region136
        $region135: #{separated_forward.1} parent=11 // pred_region
          _
        $region136: #{separated_forward.1} parent=11 // pred_fallthru
          _
        // Predicated region
        $region137: #{separated_forward.1} parent=11 // pred_check
          %p1161 = pneg %p796
        $region138: #{separated_forward.1} parent=11 // pred_check_branch
          %1163 = sbr.rel (%p1161) target = $region140
        $region139: #{separated_forward.1} parent=11 // pred_region
          _
        $region140: #{separated_forward.1} parent=11 // pred_fallthru
          _
        // Predicated region
        $region141: #{separated_forward.1} parent=11 // pred_check
          %p1164 = pneg %p817
        $region142: #{separated_forward.1} parent=11 // pred_check_branch
          %1166 = sbr.rel (%p1164) target = $region144
        $region143: #{separated_forward.1} parent=11 // pred_region
          _
        $region144: #{separated_forward.1} parent=11 // pred_fallthru
          _
        // Predicated region
        $region145: #{separated_forward.1} parent=11 // pred_check
          %p1167 = pneg %p838
        $region146: #{separated_forward.1} parent=11 // pred_check_branch
          %1169 = sbr.rel (%p1167) target = $region148
        $region147: #{separated_forward.1} parent=11 // pred_region
          _
        $region148: #{separated_forward.1} parent=11 // pred_fallthru
          _
        // Predicated region
        $region149: #{separated_forward.1} parent=11 // pred_check
          %p1170 = pneg %p859
        $region150: #{separated_forward.1} parent=11 // pred_check_branch
          %1172 = sbr.rel (%p1170) target = $region152
        $region151: #{separated_forward.1} parent=11 // pred_region
          _
        $region152: #{separated_forward.1} parent=11 // pred_fallthru
          _
        // Predicated region
        $region153: #{separated_forward.1} parent=11 // pred_check
          %p1173 = pneg %p880
        $region154: #{separated_forward.1} parent=11 // pred_check_branch
          %1175 = sbr.rel (%p1173) target = $region156
        $region155: #{separated_forward.1} parent=11 // pred_region
          _
        $region156: #{separated_forward.1} parent=11 // pred_fallthru
          _
        // Predicated region
        $region157: #{separated_forward.1} parent=11 // pred_check
          %p1176 = pneg %p901
        $region158: #{separated_forward.1} parent=11 // pred_check_branch
          %1178 = sbr.rel (%p1176) target = $region160
        $region159: #{separated_forward.1} parent=11 // pred_region
          _
        $region160: #{separated_forward.1} parent=11 // pred_fallthru
          _
        // Predicated region
        $region161: #{separated_forward.1} parent=11 // pred_check
          %p1179 = pneg %p922
        $region162: #{separated_forward.1} parent=11 // pred_check_branch
          %1181 = sbr.rel (%p1179) target = $region164
        $region163: #{separated_forward.1} parent=11 // pred_region
          _
        $region164: #{separated_forward.1} parent=11 // pred_fallthru
          _
        // Predicated region
        $region165: #{separated_forward.1} parent=11 // pred_check
          %p1182 = pneg %p943
        $region166: #{separated_forward.1} parent=11 // pred_check_branch
          %1184 = sbr.rel (%p1182) target = $region168
        $region167: #{separated_forward.1} parent=11 // pred_region
          _
        $region168: #{separated_forward.1} parent=11 // pred_fallthru
          _
        // Predicated region
        $region169: #{separated_forward.1} parent=11 // pred_check
          %p1185 = pneg %p964
        $region170: #{separated_forward.1} parent=11 // pred_check_branch
          %1187 = sbr.rel (%p1185) target = $region172
        $region171: #{separated_forward.1} parent=11 // pred_region
          _
        $region172: #{separated_forward.1} parent=11 // pred_fallthru
          _
        // Predicated region
        $region173: #{separated_forward.1} parent=11 // pred_check
          %p1188 = pneg %p985
        $region174: #{separated_forward.1} parent=11 // pred_check_branch
          %1190 = sbr.rel (%p1188) target = $region176
        $region175: #{separated_forward.1} parent=11 // pred_region
          _
        $region176: #{separated_forward.1} parent=11 // pred_fallthru
          _
        // Predicated region
        $region177: #{separated_forward.1} parent=11 // pred_check
          %p1191 = pneg %p1006
        $region178: #{separated_forward.1} parent=11 // pred_check_branch
          %1193 = sbr.rel (%p1191) target = $region180
        $region179: #{separated_forward.1} parent=11 // pred_region
          _
        $region180: #{separated_forward.1} parent=11 // pred_fallthru
          _
        // Predicated region
        $region181: #{separated_forward.1} parent=11 // pred_check
          %p1194 = pneg %p1027
        $region182: #{separated_forward.1} parent=11 // pred_check_branch
          %1196 = sbr.rel (%p1194) target = $region184
        $region183: #{separated_forward.1} parent=11 // pred_region
          _
        $region184: #{separated_forward.1} parent=11 // pred_fallthru
          _
      $region12: #{separated_forward.1} parent=5 // pred_fallthru
        _
      %p1197 = scmp.lt.s32.totalorder %s98, 2
      // Predicated region
      $region185: #{separated_forward.1} parent=5 // pred_check
        %p1198 = pneg %p1197
      $region186: #{separated_forward.1} parent=5 // pred_check_branch
        %1200 = sbr.rel (%p1198) target = $region188
      $region187: #{separated_forward.1} parent=5 // pred_region
        // Predicated region
        $region189: #{separated_forward.1} parent=187 // pred_check
          %p1201 = pneg %p118
        $region190: #{separated_forward.1} parent=187 // pred_check_branch
          %1203 = sbr.rel (%p1201) target = $region192
        $region191: #{separated_forward.1} parent=187 // pred_region
          %p1204 = scmp.lt.s32.totalorder %s98, 1
          %s1205 = scalar_select %p1204, %s98, 1
          %s1206 = smul.addr %s1205, 4
          %s1207 = smul.addr %s1206, 8
          %s1208 = scalar_lea.vmem %s1, %s1207
        $region192: #{separated_forward.1} parent=187 // pred_fallthru
          _
      $region188: #{separated_forward.1} parent=5 // pred_fallthru
        _
      %p1209 = scmp.le.s32.totalorder 1, %s98
      %p1210 = scmp.lt.s32.totalorder %s98, 3
      %p1211 = pnand %p1209, %p1210
      %p1212 = pneg %p1211
      // Predicated region
      $region193: #{separated_forward.1} parent=5 // pred_check
        _
      $region194: #{separated_forward.1} parent=5 // pred_check_branch
        %1214 = sbr.rel (%p1211) target = $region196
      $region195: #{separated_forward.1} parent=5 // pred_region
        %s1215 = ssub.s32 %s98, 1
        %p1216 = scmp.lt.s32.totalorder %s103, 1
        %s1217 = scalar_select %p1216, %s103, 1
        %s1218 = smul.addr %s1217, 4
        %s1219 = smul.addr %s1218, 8
        %s1220 = scalar_lea.vmem %s1, %s1219
        %p1221 = pneg %p124
        %p1222 = pneg %p121
        %p1223 = pneg %p145
        %p1224 = pneg %p142
        %p1225 = pneg %p166
        %p1226 = pneg %p163
        %p1227 = pneg %p187
        %p1228 = pneg %p184
        %p1229 = pneg %p208
        %p1230 = pneg %p205
        %p1231 = pneg %p229
        %p1232 = pneg %p226
        %p1233 = pneg %p250
        %p1234 = pneg %p247
        %p1235 = pneg %p271
        %p1236 = pneg %p268
        %p1237 = pneg %p292
        %p1238 = pneg %p289
        %p1239 = pneg %p313
        %p1240 = pneg %p310
        %p1241 = pneg %p334
        %p1242 = pneg %p331
        %p1243 = pneg %p355
        %p1244 = pneg %p352
        %p1245 = pneg %p376
        %p1246 = pneg %p373
        %p1247 = pneg %p397
        %p1248 = pneg %p394
        %p1249 = pneg %p418
        %p1250 = pneg %p415
        %p1251 = pneg %p439
        %p1252 = pneg %p436
        %p1253 = pneg %p460
        %p1254 = pneg %p457
        %p1255 = pneg %p481
        %p1256 = pneg %p478
        %p1257 = pneg %p502
        %p1258 = pneg %p499
        %p1259 = pneg %p523
        %p1260 = pneg %p520
        %p1261 = pneg %p544
        %p1262 = pneg %p541
        %p1263 = pneg %p565
        %p1264 = pneg %p562
        %p1265 = pneg %p586
        %p1266 = pneg %p583
        %p1267 = pneg %p607
        %p1268 = pneg %p604
        %p1269 = pneg %p628
        %p1270 = pneg %p625
        %p1271 = pneg %p649
        %p1272 = pneg %p646
        %p1273 = pneg %p670
        %p1274 = pneg %p667
        %p1275 = pneg %p691
        %p1276 = pneg %p688
        %p1277 = pneg %p712
        %p1278 = pneg %p709
        %p1279 = pneg %p733
        %p1280 = pneg %p730
        %p1281 = pneg %p754
        %p1282 = pneg %p751
        %p1283 = pneg %p775
        %p1284 = pneg %p772
        %p1285 = pneg %p796
        %p1286 = pneg %p793
        %p1287 = pneg %p817
        %p1288 = pneg %p814
        %p1289 = pneg %p838
        %p1290 = pneg %p835
        %p1291 = pneg %p859
        %p1292 = pneg %p856
        %p1293 = pneg %p880
        %p1294 = pneg %p877
        %p1295 = pneg %p901
        %p1296 = pneg %p898
        %p1297 = pneg %p922
        %p1298 = pneg %p919
        %p1299 = pneg %p943
        %p1300 = pneg %p940
        %p1301 = pneg %p964
        %p1302 = pneg %p961
        %p1303 = pneg %p985
        %p1304 = pneg %p982
        %p1305 = pneg %p1006
        %p1306 = pneg %p1003
        %p1307 = pneg %p1027
        %p1308 = pneg %p1024
        %p1309 = pneg %p1053
        %p1310 = pneg %p1050
        %s1311 = sand.u32 %s1040, 1
        %s1312 = scalar_lea.sflag [#allocation3], %s1311
        %s1313 = sand.u32 %s1040, 1
        %s1314 = scalar_lea.vmem [#allocation2], %s1313
        %p1315 = scmp.lt.s32.totalorder %s103, 1
        %s1316 = scalar_select %p1315, %s103, 1
        %s1317 = smul.addr %s1316, 4
        %s1318 = smul.addr %s1317, 8
        %s1319 = scalar_lea.vmem %s1, %s1318
        %v1321 = vld [vmem:[%s1319] sm:$0xff]
        %v1322 = vld [vmem:[%s1319 + $0x8] sm:$0xf]
        %v1323 = vld [vmem:[%s3] sm:$0xff]
        %v1324 = vld [vmem:[%s3 + $0x8] sm:$0xf]
        %vm1325 = vcmask 97280
        %v1327 = vsel %vm1325, %v1323, 0
        %v1330 = vsel %vm1325, %v1324, 0
        %vm1332 = vcmask 1043456
        %v1334 = vsel %vm1332, %v1322, 0
        %1336 = vmatprep.subr.mxu0 0.0
        %1337 = vmatpush1.msra.mxu0 %v1321
        %1338 = vmatprep.subr.mxu0 0.0
        %1339 = vmatpush1.msra.mxu0 %v1334
        %1340 = vmatprep.subr.mxu0 0.0
        %1341 = vmatpush1.msra.mxu0 0.0
        %1342 = vmatprep.subr.mxu0 0.0
        %1343 = vmatpush1.msra.mxu0 0.0
        %1344 = vmatprep.subr.mxu0 0.0
        %1345 = vmatpush1.msra.mxu0 0.0
        %1346 = vmatprep.subr.mxu0 0.0
        %1347 = vmatpush1.msra.mxu0 0.0
        %1348 = vmatprep.subr.mxu0 0.0
        %1349 = vmatpush1.msra.mxu0 0.0
        %1350 = vmatprep.subr.mxu0 0.0
        %1351 = vmatpush1.msra.mxu0 0.0
        %1352 = vmatprep.subr.mxu0 0.0
        %1353 = vmatpush1.msra.mxu0 0.0
        %1354 = vmatprep.subr.mxu0 0.0
        %1355 = vmatpush1.msra.mxu0 0.0
        %1356 = vmatprep.subr.mxu0 0.0
        %1357 = vmatpush1.msra.mxu0 0.0
        %1358 = vmatprep.subr.mxu0 0.0
        %1359 = vmatpush1.msra.mxu0 0.0
        %1360 = vmatprep.subr.mxu0 0.0
        %1361 = vmatpush1.msra.mxu0 0.0
        %1362 = vmatprep.subr.mxu0 0.0
        %1363 = vmatpush1.msra.mxu0 0.0
        %1364 = vmatprep.subr.mxu0 0.0
        %1365 = vmatpush1.msra.mxu0 0.0
        %1366 = vmatprep.subr.mxu0 0.0
        %1367 = vmatpush1.msra.mxu0 0.0
        %1368 = vmatprep.subr.mxu0 0.0
        %1369 = vmatpush1.msra.mxu0 0.0
        %1370 = vmatprep.subr.mxu0 0.0
        %1371 = vmatpush1.msra.mxu0 0.0
        %1372 = vmatprep.subr.mxu0 0.0
        %1373 = vmatpush1.msra.mxu0 0.0
        %1374 = vmatprep.subr.mxu0 0.0
        %1375 = vmatpush1.msra.mxu0 0.0
        %1376 = vmatprep.subr.mxu0 0.0
        %1377 = vmatpush1.msra.mxu0 0.0
        %1378 = vmatprep.subr.mxu0 0.0
        %1379 = vmatpush1.msra.mxu0 0.0
        %1380 = vmatprep.subr.mxu0 0.0
        %1381 = vmatpush1.msra.mxu0 0.0
        %1382 = vmatprep.subr.mxu0 0.0
        %1383 = vmatpush1.msra.mxu0 0.0
        %1384 = vmatprep.subr.mxu0 0.0
        %1385 = vmatpush1.msra.mxu0 0.0
        %1386 = vmatprep.subr.mxu0 0.0
        %1387 = vmatpush1.msra.mxu0 0.0
        %1388 = vmatprep.subr.mxu0 0.0
        %1389 = vmatpush1.msra.mxu0 0.0
        %1390 = vmatprep.subr.mxu0 0.0
        %1391 = vmatpush1.msra.mxu0 0.0
        %1392 = vmatprep.subr.mxu0 0.0
        %1393 = vmatpush1.msra.mxu0 0.0
        %1394 = vmatprep.subr.mxu0 0.0
        %1395 = vmatpush1.msra.mxu0 0.0
        %1396 = vmatprep.subr.mxu0 0.0
        %1397 = vmatpush1.msra.mxu0 0.0
        %1398 = vmatprep.subr.mxu0 0.0
        %1399 = vmatpush1.msra.mxu0 0.0
        %1400 = vmatprep.mubr.f32.mxu0 0.0
        %1401 = vmatmul.mubr.f32.gmra.mrb[0].mxu0 %v1327
        %v1402 = vpop.f32.mrb[0].mxu0
        %v1403 = vadd.f32 0.0, %v1402
        %v1404 = vpop.f32.mrb[0].mxu0
        %1405 = vmatprep.mubr.f32.mxu0 0.0
        %1406 = vmatmul.mubr.f32.gmra.mrb[0].mxu0 %v1330
        %v1407 = vpop.f32.mrb[0].mxu0
        %v1408 = vadd.f32 0.0, %v1407
        %v1409 = vpop.f32.mrb[0].mxu0
        %1410 = vdwg.mxu0
        %v1411 = vld [vmem:[%s5] sm:$0xff]
        %v1412 = vld [vmem:[%s5 + $0x8] sm:$0xff]
        %v1413 = vld [vmem:[%s5 + $0x10] sm:$0xff]
        %s1414 = scalar_lea.vmem %s3, 16
        %v1415 = vld [vmem:[%s1414] sm:$0xff]
        %v1416 = vld [vmem:[%s1414 + $0x8] sm:$0xf]
        %v1418 = vsel %vm1325, %v1415, 0
        %v1421 = vsel %vm1325, %v1416, 0
        %1423 = vmatprep.subr.mxu0 0.0
        %1424 = vmatpush1.msra.mxu0 %v1321
        %1425 = vmatprep.subr.mxu0 0.0
        %1426 = vmatpush1.msra.mxu0 %v1334
        %1427 = vmatprep.subr.mxu0 0.0
        %1428 = vmatpush1.msra.mxu0 0.0
        %1429 = vmatprep.subr.mxu0 0.0
        %1430 = vmatpush1.msra.mxu0 0.0
        %1431 = vmatprep.subr.mxu0 0.0
        %1432 = vmatpush1.msra.mxu0 0.0
        %1433 = vmatprep.subr.mxu0 0.0
        %1434 = vmatpush1.msra.mxu0 0.0
        %1435 = vmatprep.subr.mxu0 0.0
        %1436 = vmatpush1.msra.mxu0 0.0
        %1437 = vmatprep.subr.mxu0 0.0
        %1438 = vmatpush1.msra.mxu0 0.0
        %1439 = vmatprep.subr.mxu0 0.0
        %1440 = vmatpush1.msra.mxu0 0.0
        %1441 = vmatprep.subr.mxu0 0.0
        %1442 = vmatpush1.msra.mxu0 0.0
        %1443 = vmatprep.subr.mxu0 0.0
        %1444 = vmatpush1.msra.mxu0 0.0
        %1445 = vmatprep.subr.mxu0 0.0
        %1446 = vmatpush1.msra.mxu0 0.0
        %1447 = vmatprep.subr.mxu0 0.0
        %1448 = vmatpush1.msra.mxu0 0.0
        %1449 = vmatprep.subr.mxu0 0.0
        %1450 = vmatpush1.msra.mxu0 0.0
        %1451 = vmatprep.subr.mxu0 0.0
        %1452 = vmatpush1.msra.mxu0 0.0
        %1453 = vmatprep.subr.mxu0 0.0
        %1454 = vmatpush1.msra.mxu0 0.0
        %1455 = vmatprep.subr.mxu0 0.0
        %1456 = vmatpush1.msra.mxu0 0.0
        %1457 = vmatprep.subr.mxu0 0.0
        %1458 = vmatpush1.msra.mxu0 0.0
        %1459 = vmatprep.subr.mxu0 0.0
        %1460 = vmatpush1.msra.mxu0 0.0
        %1461 = vmatprep.subr.mxu0 0.0
        %1462 = vmatpush1.msra.mxu0 0.0
        %1463 = vmatprep.subr.mxu0 0.0
        %1464 = vmatpush1.msra.mxu0 0.0
        %1465 = vmatprep.subr.mxu0 0.0
        %1466 = vmatpush1.msra.mxu0 0.0
        %1467 = vmatprep.subr.mxu0 0.0
        %1468 = vmatpush1.msra.mxu0 0.0
        %1469 = vmatprep.subr.mxu0 0.0
        %1470 = vmatpush1.msra.mxu0 0.0
        %1471 = vmatprep.subr.mxu0 0.0
        %1472 = vmatpush1.msra.mxu0 0.0
        %1473 = vmatprep.subr.mxu0 0.0
        %1474 = vmatpush1.msra.mxu0 0.0
        %1475 = vmatprep.subr.mxu0 0.0
        %1476 = vmatpush1.msra.mxu0 0.0
        %1477 = vmatprep.subr.mxu0 0.0
        %1478 = vmatpush1.msra.mxu0 0.0
        %1479 = vmatprep.subr.mxu0 0.0
        %1480 = vmatpush1.msra.mxu0 0.0
        %1481 = vmatprep.subr.mxu0 0.0
        %1482 = vmatpush1.msra.mxu0 0.0
        %1483 = vmatprep.subr.mxu0 0.0
        %1484 = vmatpush1.msra.mxu0 0.0
        %1485 = vmatprep.subr.mxu0 0.0
        %1486 = vmatpush1.msra.mxu0 0.0
        %1487 = vmatprep.mubr.f32.mxu0 0.0
        %1488 = vmatmul.mubr.f32.gmra.mrb[0].mxu0 %v1418
        %v1489 = vpop.f32.mrb[0].mxu0
        %v1490 = vadd.f32 0.0, %v1489
        %v1491 = vpop.f32.mrb[0].mxu0
        %1492 = vmatprep.mubr.f32.mxu0 0.0
        %1493 = vmatmul.mubr.f32.gmra.mrb[0].mxu0 %v1421
        %v1494 = vpop.f32.mrb[0].mxu0
        %v1495 = vadd.f32 0.0, %v1494
        %v1496 = vpop.f32.mrb[0].mxu0
        %1497 = vdwg.mxu0
        %s1498 = scalar_lea.vmem %s5, 24
        %v1499 = vld [vmem:[%s1498] sm:$0xff]
        %v1500 = vld [vmem:[%s1498 + $0x8] sm:$0xff]
        %v1501 = vld [vmem:[%s1498 + $0x10] sm:$0xff]
        %vm1502 = vcmask 195584
        %v1504 = vsel %vm1502, %v1490, 0
        %v1507 = vsel %vm1502, %v1495, 0
        %1509 = vmatprep.subr.mxu0 0.0
        %1510 = vmatpush1.msra.mxu0 %v1499
        %1511 = vmatprep.subr.mxu0 0.0
        %1512 = vmatpush1.msra.mxu0 %v1500
        %1513 = vmatprep.subr.mxu0 0.0
        %1514 = vmatpush1.msra.mxu0 %v1501
        %1515 = vmatprep.subr.mxu0 0.0
        %1516 = vmatpush1.msra.mxu0 0.0
        %1517 = vmatprep.subr.mxu0 0.0
        %1518 = vmatpush1.msra.mxu0 0.0
        %1519 = vmatprep.subr.mxu0 0.0
        %1520 = vmatpush1.msra.mxu0 0.0
        %1521 = vmatprep.subr.mxu0 0.0
        %1522 = vmatpush1.msra.mxu0 0.0
        %1523 = vmatprep.subr.mxu0 0.0
        %1524 = vmatpush1.msra.mxu0 0.0
        %1525 = vmatprep.subr.mxu0 0.0
        %1526 = vmatpush1.msra.mxu0 0.0
        %1527 = vmatprep.subr.mxu0 0.0
        %1528 = vmatpush1.msra.mxu0 0.0
        %1529 = vmatprep.subr.mxu0 0.0
        %1530 = vmatpush1.msra.mxu0 0.0
        %1531 = vmatprep.subr.mxu0 0.0
        %1532 = vmatpush1.msra.mxu0 0.0
        %1533 = vmatprep.subr.mxu0 0.0
        %1534 = vmatpush1.msra.mxu0 0.0
        %1535 = vmatprep.subr.mxu0 0.0
        %1536 = vmatpush1.msra.mxu0 0.0
        %1537 = vmatprep.subr.mxu0 0.0
        %1538 = vmatpush1.msra.mxu0 0.0
        %1539 = vmatprep.subr.mxu0 0.0
        %1540 = vmatpush1.msra.mxu0 0.0
        %1541 = vmatprep.subr.mxu0 0.0
        %1542 = vmatpush1.msra.mxu0 0.0
        %1543 = vmatprep.subr.mxu0 0.0
        %1544 = vmatpush1.msra.mxu0 0.0
        %1545 = vmatprep.subr.mxu0 0.0
        %1546 = vmatpush1.msra.mxu0 0.0
        %1547 = vmatprep.subr.mxu0 0.0
        %1548 = vmatpush1.msra.mxu0 0.0
        %1549 = vmatprep.subr.mxu0 0.0
        %1550 = vmatpush1.msra.mxu0 0.0
        %1551 = vmatprep.subr.mxu0 0.0
        %1552 = vmatpush1.msra.mxu0 0.0
        %1553 = vmatprep.subr.mxu0 0.0
        %1554 = vmatpush1.msra.mxu0 0.0
        %1555 = vmatprep.subr.mxu0 0.0
        %1556 = vmatpush1.msra.mxu0 0.0
        %1557 = vmatprep.subr.mxu0 0.0
        %1558 = vmatpush1.msra.mxu0 0.0
        %1559 = vmatprep.subr.mxu0 0.0
        %1560 = vmatpush1.msra.mxu0 0.0
        %1561 = vmatprep.subr.mxu0 0.0
        %1562 = vmatpush1.msra.mxu0 0.0
        %1563 = vmatprep.subr.mxu0 0.0
        %1564 = vmatpush1.msra.mxu0 0.0
        %1565 = vmatprep.subr.mxu0 0.0
        %1566 = vmatpush1.msra.mxu0 0.0
        %1567 = vmatprep.subr.mxu0 0.0
        %1568 = vmatpush1.msra.mxu0 0.0
        %1569 = vmatprep.subr.mxu0 0.0
        %1570 = vmatpush1.msra.mxu0 0.0
        %1571 = vmatprep.subr.mxu0 0.0
        %1572 = vmatpush1.msra.mxu0 0.0
        %1573 = vmatprep.mubr.f32.mxu0 0.0
        %1574 = vmatmul.mubr.f32.gmra.mrb[0].mxu0 %v1504
        %v1575 = vpop.f32.mrb[0].mxu0
        %v1576 = vadd.f32 0.0, %v1575
        %v1577 = vpop.f32.mrb[0].mxu0
        %1578 = vmatprep.mubr.f32.mxu0 0.0
        %1579 = vmatmul.mubr.f32.gmra.mrb[0].mxu0 %v1507
        %v1580 = vpop.f32.mrb[0].mxu0
        %v1581 = vadd.f32 0.0, %v1580
        %v1582 = vpop.f32.mrb[0].mxu0
        %1583 = vdwg.mxu0
        %v1585 = vsel %vm1502, %v1403, 0
        %v1588 = vsel %vm1502, %v1408, 0
        %1590 = vmatprep.subr.mxu0 0.0
        %1591 = vmatpush1.msra.mxu0 %v1411
        %1592 = vmatprep.subr.mxu0 0.0
        %1593 = vmatpush1.msra.mxu0 %v1412
        %1594 = vmatprep.subr.mxu0 0.0
        %1595 = vmatpush1.msra.mxu0 %v1413
        %1596 = vmatprep.subr.mxu0 0.0
        %1597 = vmatpush1.msra.mxu0 0.0
        %1598 = vmatprep.subr.mxu0 0.0
        %1599 = vmatpush1.msra.mxu0 0.0
        %1600 = vmatprep.subr.mxu0 0.0
        %1601 = vmatpush1.msra.mxu0 0.0
        %1602 = vmatprep.subr.mxu0 0.0
        %1603 = vmatpush1.msra.mxu0 0.0
        %1604 = vmatprep.subr.mxu0 0.0
        %1605 = vmatpush1.msra.mxu0 0.0
        %1606 = vmatprep.subr.mxu0 0.0
        %1607 = vmatpush1.msra.mxu0 0.0
        %1608 = vmatprep.subr.mxu0 0.0
        %1609 = vmatpush1.msra.mxu0 0.0
        %1610 = vmatprep.subr.mxu0 0.0
        %1611 = vmatpush1.msra.mxu0 0.0
        %1612 = vmatprep.subr.mxu0 0.0
        %1613 = vmatpush1.msra.mxu0 0.0
        %1614 = vmatprep.subr.mxu0 0.0
        %1615 = vmatpush1.msra.mxu0 0.0
        %1616 = vmatprep.subr.mxu0 0.0
        %1617 = vmatpush1.msra.mxu0 0.0
        %1618 = vmatprep.subr.mxu0 0.0
        %1619 = vmatpush1.msra.mxu0 0.0
        %1620 = vmatprep.subr.mxu0 0.0
        %1621 = vmatpush1.msra.mxu0 0.0
        %1622 = vmatprep.subr.mxu0 0.0
        %1623 = vmatpush1.msra.mxu0 0.0
        %1624 = vmatprep.subr.mxu0 0.0
        %1625 = vmatpush1.msra.mxu0 0.0
        %1626 = vmatprep.subr.mxu0 0.0
        %1627 = vmatpush1.msra.mxu0 0.0
        %1628 = vmatprep.subr.mxu0 0.0
        %1629 = vmatpush1.msra.mxu0 0.0
        %1630 = vmatprep.subr.mxu0 0.0
        %1631 = vmatpush1.msra.mxu0 0.0
        %1632 = vmatprep.subr.mxu0 0.0
        %1633 = vmatpush1.msra.mxu0 0.0
        %1634 = vmatprep.subr.mxu0 0.0
        %1635 = vmatpush1.msra.mxu0 0.0
        %1636 = vmatprep.subr.mxu0 0.0
        %1637 = vmatpush1.msra.mxu0 0.0
        %1638 = vmatprep.subr.mxu0 0.0
        %1639 = vmatpush1.msra.mxu0 0.0
        %1640 = vmatprep.subr.mxu0 0.0
        %1641 = vmatpush1.msra.mxu0 0.0
        %1642 = vmatprep.subr.mxu0 0.0
        %1643 = vmatpush1.msra.mxu0 0.0
        %1644 = vmatprep.subr.mxu0 0.0
        %1645 = vmatpush1.msra.mxu0 0.0
        %1646 = vmatprep.subr.mxu0 0.0
        %1647 = vmatpush1.msra.mxu0 0.0
        %1648 = vmatprep.subr.mxu0 0.0
        %1649 = vmatpush1.msra.mxu0 0.0
        %1650 = vmatprep.subr.mxu0 0.0
        %1651 = vmatpush1.msra.mxu0 0.0
        %1652 = vmatprep.subr.mxu0 0.0
        %1653 = vmatpush1.msra.mxu0 0.0
        %1654 = vmatprep.mubr.f32.mxu0 0.0
        %1655 = vmatmul.mubr.f32.gmra.mrb[0].mxu0 %v1585
        %v1656 = vpop.f32.mrb[0].mxu0
        %v1657 = vadd.f32 %v1576, %v1656
        %v1658 = vpop.f32.mrb[0].mxu0
        %1659 = vmatprep.mubr.f32.mxu0 0.0
        %1660 = vmatmul.mubr.f32.gmra.mrb[0].mxu0 %v1588
        %v1661 = vpop.f32.mrb[0].mxu0
        %v1662 = vadd.f32 %v1581, %v1661
        %v1663 = vpop.f32.mrb[0].mxu0
        %1664 = vdwg.mxu0
        %s1665 = scalar_lea.vmem %s3, 32
        %v1666 = vld [vmem:[%s1665] sm:$0xff]
        %v1667 = vld [vmem:[%s1665 + $0x8] sm:$0xf]
        %v1669 = vsel %vm1325, %v1666, 0
        %v1672 = vsel %vm1325, %v1667, 0
        %1674 = vmatprep.subr.mxu0 0.0
        %1675 = vmatpush1.msra.mxu0 %v1321
        %1676 = vmatprep.subr.mxu0 0.0
        %1677 = vmatpush1.msra.mxu0 %v1334
        %1678 = vmatprep.subr.mxu0 0.0
        %1679 = vmatpush1.msra.mxu0 0.0
        %1680 = vmatprep.subr.mxu0 0.0
        %1681 = vmatpush1.msra.mxu0 0.0
        %1682 = vmatprep.subr.mxu0 0.0
        %1683 = vmatpush1.msra.mxu0 0.0
        %1684 = vmatprep.subr.mxu0 0.0
        %1685 = vmatpush1.msra.mxu0 0.0
        %1686 = vmatprep.subr.mxu0 0.0
        %1687 = vmatpush1.msra.mxu0 0.0
        %1688 = vmatprep.subr.mxu0 0.0
        %1689 = vmatpush1.msra.mxu0 0.0
        %1690 = vmatprep.subr.mxu0 0.0
        %1691 = vmatpush1.msra.mxu0 0.0
        %1692 = vmatprep.subr.mxu0 0.0
        %1693 = vmatpush1.msra.mxu0 0.0
        %1694 = vmatprep.subr.mxu0 0.0
        %1695 = vmatpush1.msra.mxu0 0.0
        %1696 = vmatprep.subr.mxu0 0.0
        %1697 = vmatpush1.msra.mxu0 0.0
        %1698 = vmatprep.subr.mxu0 0.0
        %1699 = vmatpush1.msra.mxu0 0.0
        %1700 = vmatprep.subr.mxu0 0.0
        %1701 = vmatpush1.msra.mxu0 0.0
        %1702 = vmatprep.subr.mxu0 0.0
        %1703 = vmatpush1.msra.mxu0 0.0
        %1704 = vmatprep.subr.mxu0 0.0
        %1705 = vmatpush1.msra.mxu0 0.0
        %1706 = vmatprep.subr.mxu0 0.0
        %1707 = vmatpush1.msra.mxu0 0.0
        %1708 = vmatprep.subr.mxu0 0.0
        %1709 = vmatpush1.msra.mxu0 0.0
        %1710 = vmatprep.subr.mxu0 0.0
        %1711 = vmatpush1.msra.mxu0 0.0
        %1712 = vmatprep.subr.mxu0 0.0
        %1713 = vmatpush1.msra.mxu0 0.0
        %1714 = vmatprep.subr.mxu0 0.0
        %1715 = vmatpush1.msra.mxu0 0.0
        %1716 = vmatprep.subr.mxu0 0.0
        %1717 = vmatpush1.msra.mxu0 0.0
        %1718 = vmatprep.subr.mxu0 0.0
        %1719 = vmatpush1.msra.mxu0 0.0
        %1720 = vmatprep.subr.mxu0 0.0
        %1721 = vmatpush1.msra.mxu0 0.0
        %1722 = vmatprep.subr.mxu0 0.0
        %1723 = vmatpush1.msra.mxu0 0.0
        %1724 = vmatprep.subr.mxu0 0.0
        %1725 = vmatpush1.msra.mxu0 0.0
        %1726 = vmatprep.subr.mxu0 0.0
        %1727 = vmatpush1.msra.mxu0 0.0
        %1728 = vmatprep.subr.mxu0 0.0
        %1729 = vmatpush1.msra.mxu0 0.0
        %1730 = vmatprep.subr.mxu0 0.0
        %1731 = vmatpush1.msra.mxu0 0.0
        %1732 = vmatprep.subr.mxu0 0.0
        %1733 = vmatpush1.msra.mxu0 0.0
        %1734 = vmatprep.subr.mxu0 0.0
        %1735 = vmatpush1.msra.mxu0 0.0
        %1736 = vmatprep.subr.mxu0 0.0
        %1737 = vmatpush1.msra.mxu0 0.0
        %1738 = vmatprep.mubr.f32.mxu0 0.0
        %1739 = vmatmul.mubr.f32.gmra.mrb[0].mxu0 %v1669
        %v1740 = vpop.f32.mrb[0].mxu0
        %v1741 = vadd.f32 0.0, %v1740
        %v1742 = vpop.f32.mrb[0].mxu0
        %1743 = vmatprep.mubr.f32.mxu0 0.0
        %1744 = vmatmul.mubr.f32.gmra.mrb[0].mxu0 %v1672
        %v1745 = vpop.f32.mrb[0].mxu0
        %v1746 = vadd.f32 0.0, %v1745
        %v1747 = vpop.f32.mrb[0].mxu0
        %1748 = vdwg.mxu0
        %s1749 = scalar_lea.vmem %s5, 48
        %v1750 = vld [vmem:[%s1749] sm:$0xff]
        %v1751 = vld [vmem:[%s1749 + $0x8] sm:$0xff]
        %v1752 = vld [vmem:[%s1749 + $0x10] sm:$0xff]
        %v1754 = vsel %vm1502, %v1741, 0
        %v1757 = vsel %vm1502, %v1746, 0
        %1759 = vmatprep.subr.mxu0 0.0
        %1760 = vmatpush1.msra.mxu0 %v1750
        %1761 = vmatprep.subr.mxu0 0.0
        %1762 = vmatpush1.msra.mxu0 %v1751
        %1763 = vmatprep.subr.mxu0 0.0
        %1764 = vmatpush1.msra.mxu0 %v1752
        %1765 = vmatprep.subr.mxu0 0.0
        %1766 = vmatpush1.msra.mxu0 0.0
        %1767 = vmatprep.subr.mxu0 0.0
        %1768 = vmatpush1.msra.mxu0 0.0
        %1769 = vmatprep.subr.mxu0 0.0
        %1770 = vmatpush1.msra.mxu0 0.0
        %1771 = vmatprep.subr.mxu0 0.0
        %1772 = vmatpush1.msra.mxu0 0.0
        %1773 = vmatprep.subr.mxu0 0.0
        %1774 = vmatpush1.msra.mxu0 0.0
        %1775 = vmatprep.subr.mxu0 0.0
        %1776 = vmatpush1.msra.mxu0 0.0
        %1777 = vmatprep.subr.mxu0 0.0
        %1778 = vmatpush1.msra.mxu0 0.0
        %1779 = vmatprep.subr.mxu0 0.0
        %1780 = vmatpush1.msra.mxu0 0.0
        %1781 = vmatprep.subr.mxu0 0.0
        %1782 = vmatpush1.msra.mxu0 0.0
        %1783 = vmatprep.subr.mxu0 0.0
        %1784 = vmatpush1.msra.mxu0 0.0
        %1785 = vmatprep.subr.mxu0 0.0
        %1786 = vmatpush1.msra.mxu0 0.0
        %1787 = vmatprep.subr.mxu0 0.0
        %1788 = vmatpush1.msra.mxu0 0.0
        %1789 = vmatprep.subr.mxu0 0.0
        %1790 = vmatpush1.msra.mxu0 0.0
        %1791 = vmatprep.subr.mxu0 0.0
        %1792 = vmatpush1.msra.mxu0 0.0
        %1793 = vmatprep.subr.mxu0 0.0
        %1794 = vmatpush1.msra.mxu0 0.0
        %1795 = vmatprep.subr.mxu0 0.0
        %1796 = vmatpush1.msra.mxu0 0.0
        %1797 = vmatprep.subr.mxu0 0.0
        %1798 = vmatpush1.msra.mxu0 0.0
        %1799 = vmatprep.subr.mxu0 0.0
        %1800 = vmatpush1.msra.mxu0 0.0
        %1801 = vmatprep.subr.mxu0 0.0
        %1802 = vmatpush1.msra.mxu0 0.0
        %1803 = vmatprep.subr.mxu0 0.0
        %1804 = vmatpush1.msra.mxu0 0.0
        %1805 = vmatprep.subr.mxu0 0.0
        %1806 = vmatpush1.msra.mxu0 0.0
        %1807 = vmatprep.subr.mxu0 0.0
        %1808 = vmatpush1.msra.mxu0 0.0
        %1809 = vmatprep.subr.mxu0 0.0
        %1810 = vmatpush1.msra.mxu0 0.0
        %1811 = vmatprep.subr.mxu0 0.0
        %1812 = vmatpush1.msra.mxu0 0.0
        %1813 = vmatprep.subr.mxu0 0.0
        %1814 = vmatpush1.msra.mxu0 0.0
        %1815 = vmatprep.subr.mxu0 0.0
        %1816 = vmatpush1.msra.mxu0 0.0
        %1817 = vmatprep.subr.mxu0 0.0
        %1818 = vmatpush1.msra.mxu0 0.0
        %1819 = vmatprep.subr.mxu0 0.0
        %1820 = vmatpush1.msra.mxu0 0.0
        %1821 = vmatprep.subr.mxu0 0.0
        %1822 = vmatpush1.msra.mxu0 0.0
        %1823 = vmatprep.mubr.f32.mxu0 0.0
        %1824 = vmatmul.mubr.f32.gmra.mrb[0].mxu0 %v1754
        %v1825 = vpop.f32.mrb[0].mxu0
        %v1826 = vadd.f32 0.0, %v1825
        %v1827 = vpop.f32.mrb[0].mxu0
        %1828 = vmatprep.mubr.f32.mxu0 0.0
        %1829 = vmatmul.mubr.f32.gmra.mrb[0].mxu0 %v1757
        %v1830 = vpop.f32.mrb[0].mxu0
        %v1831 = vadd.f32 0.0, %v1830
        %v1832 = vpop.f32.mrb[0].mxu0
        %1833 = vdwg.mxu0
        %v1834 = vadd.f32 %v1657, %v1826
        %v1835 = vadd.f32 %v1662, %v1831
        %s1836 = scalar_lea.vmem %s1319, 16
        %v1837 = vld [vmem:[%s1836] sm:$0xff]
        %v1838 = vld [vmem:[%s1836 + $0x8] sm:$0xf]
        %v1840 = vsel %vm1332, %v1838, 0
        %1842 = vmatprep.subr.mxu0 0.0
        %1843 = vmatpush1.msra.mxu0 %v1837
        %1844 = vmatprep.subr.mxu0 0.0
        %1845 = vmatpush1.msra.mxu0 %v1840
        %1846 = vmatprep.subr.mxu0 0.0
        %1847 = vmatpush1.msra.mxu0 0.0
        %1848 = vmatprep.subr.mxu0 0.0
        %1849 = vmatpush1.msra.mxu0 0.0
        %1850 = vmatprep.subr.mxu0 0.0
        %1851 = vmatpush1.msra.mxu0 0.0
        %1852 = vmatprep.subr.mxu0 0.0
        %1853 = vmatpush1.msra.mxu0 0.0
        %1854 = vmatprep.subr.mxu0 0.0
        %1855 = vmatpush1.msra.mxu0 0.0
        %1856 = vmatprep.subr.mxu0 0.0
        %1857 = vmatpush1.msra.mxu0 0.0
        %1858 = vmatprep.subr.mxu0 0.0
        %1859 = vmatpush1.msra.mxu0 0.0
        %1860 = vmatprep.subr.mxu0 0.0
        %1861 = vmatpush1.msra.mxu0 0.0
        %1862 = vmatprep.subr.mxu0 0.0
        %1863 = vmatpush1.msra.mxu0 0.0
        %1864 = vmatprep.subr.mxu0 0.0
        %1865 = vmatpush1.msra.mxu0 0.0
        %1866 = vmatprep.subr.mxu0 0.0
        %1867 = vmatpush1.msra.mxu0 0.0
        %1868 = vmatprep.subr.mxu0 0.0
        %1869 = vmatpush1.msra.mxu0 0.0
        %1870 = vmatprep.subr.mxu0 0.0
        %1871 = vmatpush1.msra.mxu0 0.0
        %1872 = vmatprep.subr.mxu0 0.0
        %1873 = vmatpush1.msra.mxu0 0.0
        %1874 = vmatprep.subr.mxu0 0.0
        %1875 = vmatpush1.msra.mxu0 0.0
        %1876 = vmatprep.subr.mxu0 0.0
        %1877 = vmatpush1.msra.mxu0 0.0
        %1878 = vmatprep.subr.mxu0 0.0
        %1879 = vmatpush1.msra.mxu0 0.0
        %1880 = vmatprep.subr.mxu0 0.0
        %1881 = vmatpush1.msra.mxu0 0.0
        %1882 = vmatprep.subr.mxu0 0.0
        %1883 = vmatpush1.msra.mxu0 0.0
        %1884 = vmatprep.subr.mxu0 0.0
        %1885 = vmatpush1.msra.mxu0 0.0
        %1886 = vmatprep.subr.mxu0 0.0
        %1887 = vmatpush1.msra.mxu0 0.0
        %1888 = vmatprep.subr.mxu0 0.0
        %1889 = vmatpush1.msra.mxu0 0.0
        %1890 = vmatprep.subr.mxu0 0.0
        %1891 = vmatpush1.msra.mxu0 0.0
        %1892 = vmatprep.subr.mxu0 0.0
        %1893 = vmatpush1.msra.mxu0 0.0
        %1894 = vmatprep.subr.mxu0 0.0
        %1895 = vmatpush1.msra.mxu0 0.0
        %1896 = vmatprep.subr.mxu0 0.0
        %1897 = vmatpush1.msra.mxu0 0.0
        %1898 = vmatprep.subr.mxu0 0.0
        %1899 = vmatpush1.msra.mxu0 0.0
        %1900 = vmatprep.subr.mxu0 0.0
        %1901 = vmatpush1.msra.mxu0 0.0
        %1902 = vmatprep.subr.mxu0 0.0
        %1903 = vmatpush1.msra.mxu0 0.0
        %1904 = vmatprep.subr.mxu0 0.0
        %1905 = vmatpush1.msra.mxu0 0.0
        %1906 = vmatprep.mubr.f32.mxu0 0.0
        %1907 = vmatmul.mubr.f32.gmra.mrb[0].mxu0 %v1327
        %v1908 = vpop.f32.mrb[0].mxu0
        %v1909 = vadd.f32 0.0, %v1908
        %v1910 = vpop.f32.mrb[0].mxu0
        %1911 = vmatprep.mubr.f32.mxu0 0.0
        %1912 = vmatmul.mubr.f32.gmra.mrb[0].mxu0 %v1330
        %v1913 = vpop.f32.mrb[0].mxu0
        %v1914 = vadd.f32 0.0, %v1913
        %v1915 = vpop.f32.mrb[0].mxu0
        %1916 = vdwg.mxu0
        %s1917 = scalar_lea.vmem %s5, 72
        %v1918 = vld [vmem:[%s1917] sm:$0xff]
        %v1919 = vld [vmem:[%s1917 + $0x8] sm:$0xff]
        %v1920 = vld [vmem:[%s1917 + $0x10] sm:$0xff]
        %v1922 = vsel %vm1502, %v1909, 0
        %v1925 = vsel %vm1502, %v1914, 0
        %1927 = vmatprep.subr.mxu0 0.0
        %1928 = vmatpush1.msra.mxu0 %v1918
        %1929 = vmatprep.subr.mxu0 0.0
        %1930 = vmatpush1.msra.mxu0 %v1919
        %1931 = vmatprep.subr.mxu0 0.0
        %1932 = vmatpush1.msra.mxu0 %v1920
        %1933 = vmatprep.subr.mxu0 0.0
        %1934 = vmatpush1.msra.mxu0 0.0
        %1935 = vmatprep.subr.mxu0 0.0
        %1936 = vmatpush1.msra.mxu0 0.0
        %1937 = vmatprep.subr.mxu0 0.0
        %1938 = vmatpush1.msra.mxu0 0.0
        %1939 = vmatprep.subr.mxu0 0.0
        %1940 = vmatpush1.msra.mxu0 0.0
        %1941 = vmatprep.subr.mxu0 0.0
        %1942 = vmatpush1.msra.mxu0 0.0
        %1943 = vmatprep.subr.mxu0 0.0
        %1944 = vmatpush1.msra.mxu0 0.0
        %1945 = vmatprep.subr.mxu0 0.0
        %1946 = vmatpush1.msra.mxu0 0.0
        %1947 = vmatprep.subr.mxu0 0.0
        %1948 = vmatpush1.msra.mxu0 0.0
        %1949 = vmatprep.subr.mxu0 0.0
        %1950 = vmatpush1.msra.mxu0 0.0
        %1951 = vmatprep.subr.mxu0 0.0
        %1952 = vmatpush1.msra.mxu0 0.0
        %1953 = vmatprep.subr.mxu0 0.0
        %1954 = vmatpush1.msra.mxu0 0.0
        %1955 = vmatprep.subr.mxu0 0.0
        %1956 = vmatpush1.msra.mxu0 0.0
        %1957 = vmatprep.subr.mxu0 0.0
        %1958 = vmatpush1.msra.mxu0 0.0
        %1959 = vmatprep.subr.mxu0 0.0
        %1960 = vmatpush1.msra.mxu0 0.0
        %1961 = vmatprep.subr.mxu0 0.0
        %1962 = vmatpush1.msra.mxu0 0.0
        %1963 = vmatprep.subr.mxu0 0.0
        %1964 = vmatpush1.msra.mxu0 0.0
        %1965 = vmatprep.subr.mxu0 0.0
        %1966 = vmatpush1.msra.mxu0 0.0
        %1967 = vmatprep.subr.mxu0 0.0
        %1968 = vmatpush1.msra.mxu0 0.0
        %1969 = vmatprep.subr.mxu0 0.0
        %1970 = vmatpush1.msra.mxu0 0.0
        %1971 = vmatprep.subr.mxu0 0.0
        %1972 = vmatpush1.msra.mxu0 0.0
        %1973 = vmatprep.subr.mxu0 0.0
        %1974 = vmatpush1.msra.mxu0 0.0
        %1975 = vmatprep.subr.mxu0 0.0
        %1976 = vmatpush1.msra.mxu0 0.0
        %1977 = vmatprep.subr.mxu0 0.0
        %1978 = vmatpush1.msra.mxu0 0.0
        %1979 = vmatprep.subr.mxu0 0.0
        %1980 = vmatpush1.msra.mxu0 0.0
        %1981 = vmatprep.subr.mxu0 0.0
        %1982 = vmatpush1.msra.mxu0 0.0
        %1983 = vmatprep.subr.mxu0 0.0
        %1984 = vmatpush1.msra.mxu0 0.0
        %1985 = vmatprep.subr.mxu0 0.0
        %1986 = vmatpush1.msra.mxu0 0.0
        %1987 = vmatprep.subr.mxu0 0.0
        %1988 = vmatpush1.msra.mxu0 0.0
        %1989 = vmatprep.subr.mxu0 0.0
        %1990 = vmatpush1.msra.mxu0 0.0
        %1991 = vmatprep.mubr.f32.mxu0 0.0
        %1992 = vmatmul.mubr.f32.gmra.mrb[0].mxu0 %v1922
        %v1993 = vpop.f32.mrb[0].mxu0
        %v1994 = vadd.f32 0.0, %v1993
        %v1995 = vpop.f32.mrb[0].mxu0
        %1996 = vmatprep.mubr.f32.mxu0 0.0
        %1997 = vmatmul.mubr.f32.gmra.mrb[0].mxu0 %v1925
        %v1998 = vpop.f32.mrb[0].mxu0
        %v1999 = vadd.f32 0.0, %v1998
        %v2000 = vpop.f32.mrb[0].mxu0
        %2001 = vdwg.mxu0
        %v2002 = vadd.f32 %v1834, %v1994
        %v2003 = vadd.f32 %v1835, %v1999
        %2004 = vmatprep.subr.mxu0 0.0
        %2005 = vmatpush1.msra.mxu0 %v1837
        %2006 = vmatprep.subr.mxu0 0.0
        %2007 = vmatpush1.msra.mxu0 %v1840
        %2008 = vmatprep.subr.mxu0 0.0
        %2009 = vmatpush1.msra.mxu0 0.0
        %2010 = vmatprep.subr.mxu0 0.0
        %2011 = vmatpush1.msra.mxu0 0.0
        %2012 = vmatprep.subr.mxu0 0.0
        %2013 = vmatpush1.msra.mxu0 0.0
        %2014 = vmatprep.subr.mxu0 0.0
        %2015 = vmatpush1.msra.mxu0 0.0
        %2016 = vmatprep.subr.mxu0 0.0
        %2017 = vmatpush1.msra.mxu0 0.0
        %2018 = vmatprep.subr.mxu0 0.0
        %2019 = vmatpush1.msra.mxu0 0.0
        %2020 = vmatprep.subr.mxu0 0.0
        %2021 = vmatpush1.msra.mxu0 0.0
        %2022 = vmatprep.subr.mxu0 0.0
        %2023 = vmatpush1.msra.mxu0 0.0
        %2024 = vmatprep.subr.mxu0 0.0
        %2025 = vmatpush1.msra.mxu0 0.0
        %2026 = vmatprep.subr.mxu0 0.0
        %2027 = vmatpush1.msra.mxu0 0.0
        %2028 = vmatprep.subr.mxu0 0.0
        %2029 = vmatpush1.msra.mxu0 0.0
        %2030 = vmatprep.subr.mxu0 0.0
        %2031 = vmatpush1.msra.mxu0 0.0
        %2032 = vmatprep.subr.mxu0 0.0
        %2033 = vmatpush1.msra.mxu0 0.0
        %2034 = vmatprep.subr.mxu0 0.0
        %2035 = vmatpush1.msra.mxu0 0.0
        %2036 = vmatprep.subr.mxu0 0.0
        %2037 = vmatpush1.msra.mxu0 0.0
        %2038 = vmatprep.subr.mxu0 0.0
        %2039 = vmatpush1.msra.mxu0 0.0
        %2040 = vmatprep.subr.mxu0 0.0
        %2041 = vmatpush1.msra.mxu0 0.0
        %2042 = vmatprep.subr.mxu0 0.0
        %2043 = vmatpush1.msra.mxu0 0.0
        %2044 = vmatprep.subr.mxu0 0.0
        %2045 = vmatpush1.msra.mxu0 0.0
        %2046 = vmatprep.subr.mxu0 0.0
        %2047 = vmatpush1.msra.mxu0 0.0
        %2048 = vmatprep.subr.mxu0 0.0
        %2049 = vmatpush1.msra.mxu0 0.0
        %2050 = vmatprep.subr.mxu0 0.0
        %2051 = vmatpush1.msra.mxu0 0.0
        %2052 = vmatprep.subr.mxu0 0.0
        %2053 = vmatpush1.msra.mxu0 0.0
        %2054 = vmatprep.subr.mxu0 0.0
        %2055 = vmatpush1.msra.mxu0 0.0
        %2056 = vmatprep.subr.mxu0 0.0
        %2057 = vmatpush1.msra.mxu0 0.0
        %2058 = vmatprep.subr.mxu0 0.0
        %2059 = vmatpush1.msra.mxu0 0.0
        %2060 = vmatprep.subr.mxu0 0.0
        %2061 = vmatpush1.msra.mxu0 0.0
        %2062 = vmatprep.subr.mxu0 0.0
        %2063 = vmatpush1.msra.mxu0 0.0
        %2064 = vmatprep.subr.mxu0 0.0
        %2065 = vmatpush1.msra.mxu0 0.0
        %2066 = vmatprep.subr.mxu0 0.0
        %2067 = vmatpush1.msra.mxu0 0.0
        %2068 = vmatprep.mubr.f32.mxu0 0.0
        %2069 = vmatmul.mubr.f32.gmra.mrb[0].mxu0 %v1418
        %v2070 = vpop.f32.mrb[0].mxu0
        %v2071 = vadd.f32 0.0, %v2070
        %v2072 = vpop.f32.mrb[0].mxu0
        %2073 = vmatprep.mubr.f32.mxu0 0.0
        %2074 = vmatmul.mubr.f32.gmra.mrb[0].mxu0 %v1421
        %v2075 = vpop.f32.mrb[0].mxu0
        %v2076 = vadd.f32 0.0, %v2075
        %v2077 = vpop.f32.mrb[0].mxu0
        %2078 = vdwg.mxu0
        %s2079 = scalar_lea.vmem %s5, 96
        %v2080 = vld [vmem:[%s2079] sm:$0xff]
        %v2081 = vld [vmem:[%s2079 + $0x8] sm:$0xff]
        %v2082 = vld [vmem:[%s2079 + $0x10] sm:$0xff]
        %v2084 = vsel %vm1502, %v2071, 0
        %v2087 = vsel %vm1502, %v2076, 0
        %2089 = vmatprep.subr.mxu0 0.0
        %2090 = vmatpush1.msra.mxu0 %v2080
        %2091 = vmatprep.subr.mxu0 0.0
        %2092 = vmatpush1.msra.mxu0 %v2081
        %2093 = vmatprep.subr.mxu0 0.0
        %2094 = vmatpush1.msra.mxu0 %v2082
        %2095 = vmatprep.subr.mxu0 0.0
        %2096 = vmatpush1.msra.mxu0 0.0
        %2097 = vmatprep.subr.mxu0 0.0
        %2098 = vmatpush1.msra.mxu0 0.0
        %2099 = vmatprep.subr.mxu0 0.0
        %2100 = vmatpush1.msra.mxu0 0.0
        %2101 = vmatprep.subr.mxu0 0.0
        %2102 = vmatpush1.msra.mxu0 0.0
        %2103 = vmatprep.subr.mxu0 0.0
        %2104 = vmatpush1.msra.mxu0 0.0
        %2105 = vmatprep.subr.mxu0 0.0
        %2106 = vmatpush1.msra.mxu0 0.0
        %2107 = vmatprep.subr.mxu0 0.0
        %2108 = vmatpush1.msra.mxu0 0.0
        %2109 = vmatprep.subr.mxu0 0.0
        %2110 = vmatpush1.msra.mxu0 0.0
        %2111 = vmatprep.subr.mxu0 0.0
        %2112 = vmatpush1.msra.mxu0 0.0
        %2113 = vmatprep.subr.mxu0 0.0
        %2114 = vmatpush1.msra.mxu0 0.0
        %2115 = vmatprep.subr.mxu0 0.0
        %2116 = vmatpush1.msra.mxu0 0.0
        %2117 = vmatprep.subr.mxu0 0.0
        %2118 = vmatpush1.msra.mxu0 0.0
        %2119 = vmatprep.subr.mxu0 0.0
        %2120 = vmatpush1.msra.mxu0 0.0
        %2121 = vmatprep.subr.mxu0 0.0
        %2122 = vmatpush1.msra.mxu0 0.0
        %2123 = vmatprep.subr.mxu0 0.0
        %2124 = vmatpush1.msra.mxu0 0.0
        %2125 = vmatprep.subr.mxu0 0.0
        %2126 = vmatpush1.msra.mxu0 0.0
        %2127 = vmatprep.subr.mxu0 0.0
        %2128 = vmatpush1.msra.mxu0 0.0
        %2129 = vmatprep.subr.mxu0 0.0
        %2130 = vmatpush1.msra.mxu0 0.0
        %2131 = vmatprep.subr.mxu0 0.0
        %2132 = vmatpush1.msra.mxu0 0.0
        %2133 = vmatprep.subr.mxu0 0.0
        %2134 = vmatpush1.msra.mxu0 0.0
        %2135 = vmatprep.subr.mxu0 0.0
        %2136 = vmatpush1.msra.mxu0 0.0
        %2137 = vmatprep.subr.mxu0 0.0
        %2138 = vmatpush1.msra.mxu0 0.0
        %2139 = vmatprep.subr.mxu0 0.0
        %2140 = vmatpush1.msra.mxu0 0.0
        %2141 = vmatprep.subr.mxu0 0.0
        %2142 = vmatpush1.msra.mxu0 0.0
        %2143 = vmatprep.subr.mxu0 0.0
        %2144 = vmatpush1.msra.mxu0 0.0
        %2145 = vmatprep.subr.mxu0 0.0
        %2146 = vmatpush1.msra.mxu0 0.0
        %2147 = vmatprep.subr.mxu0 0.0
        %2148 = vmatpush1.msra.mxu0 0.0
        %2149 = vmatprep.subr.mxu0 0.0
        %2150 = vmatpush1.msra.mxu0 0.0
        %2151 = vmatprep.subr.mxu0 0.0
        %2152 = vmatpush1.msra.mxu0 0.0
        %2153 = vmatprep.mubr.f32.mxu0 0.0
        %2154 = vmatmul.mubr.f32.gmra.mrb[0].mxu0 %v2084
        %v2155 = vpop.f32.mrb[0].mxu0
        %v2156 = vadd.f32 0.0, %v2155
        %v2157 = vpop.f32.mrb[0].mxu0
        %2158 = vmatprep.mubr.f32.mxu0 0.0
        %2159 = vmatmul.mubr.f32.gmra.mrb[0].mxu0 %v2087
        %v2160 = vpop.f32.mrb[0].mxu0
        %v2161 = vadd.f32 0.0, %v2160
        %v2162 = vpop.f32.mrb[0].mxu0
        %2163 = vdwg.mxu0
        %v2164 = vadd.f32 %v2002, %v2156
        %v2165 = vadd.f32 %v2003, %v2161
        %2166 = vmatprep.subr.mxu0 0.0
        %2167 = vmatpush1.msra.mxu0 %v1837
        %2168 = vmatprep.subr.mxu0 0.0
        %2169 = vmatpush1.msra.mxu0 %v1840
        %2170 = vmatprep.subr.mxu0 0.0
        %2171 = vmatpush1.msra.mxu0 0.0
        %2172 = vmatprep.subr.mxu0 0.0
        %2173 = vmatpush1.msra.mxu0 0.0
        %2174 = vmatprep.subr.mxu0 0.0
        %2175 = vmatpush1.msra.mxu0 0.0
        %2176 = vmatprep.subr.mxu0 0.0
        %2177 = vmatpush1.msra.mxu0 0.0
        %2178 = vmatprep.subr.mxu0 0.0
        %2179 = vmatpush1.msra.mxu0 0.0
        %2180 = vmatprep.subr.mxu0 0.0
        %2181 = vmatpush1.msra.mxu0 0.0
        %2182 = vmatprep.subr.mxu0 0.0
        %2183 = vmatpush1.msra.mxu0 0.0
        %2184 = vmatprep.subr.mxu0 0.0
        %2185 = vmatpush1.msra.mxu0 0.0
        %2186 = vmatprep.subr.mxu0 0.0
        %2187 = vmatpush1.msra.mxu0 0.0
        %2188 = vmatprep.subr.mxu0 0.0
        %2189 = vmatpush1.msra.mxu0 0.0
        %2190 = vmatprep.subr.mxu0 0.0
        %2191 = vmatpush1.msra.mxu0 0.0
        %2192 = vmatprep.subr.mxu0 0.0
        %2193 = vmatpush1.msra.mxu0 0.0
        %2194 = vmatprep.subr.mxu0 0.0
        %2195 = vmatpush1.msra.mxu0 0.0
        %2196 = vmatprep.subr.mxu0 0.0
        %2197 = vmatpush1.msra.mxu0 0.0
        %2198 = vmatprep.subr.mxu0 0.0
        %2199 = vmatpush1.msra.mxu0 0.0
        %2200 = vmatprep.subr.mxu0 0.0
        %2201 = vmatpush1.msra.mxu0 0.0
        %2202 = vmatprep.subr.mxu0 0.0
        %2203 = vmatpush1.msra.mxu0 0.0
        %2204 = vmatprep.subr.mxu0 0.0
        %2205 = vmatpush1.msra.mxu0 0.0
        %2206 = vmatprep.subr.mxu0 0.0
        %2207 = vmatpush1.msra.mxu0 0.0
        %2208 = vmatprep.subr.mxu0 0.0
        %2209 = vmatpush1.msra.mxu0 0.0
        %2210 = vmatprep.subr.mxu0 0.0
        %2211 = vmatpush1.msra.mxu0 0.0
        %2212 = vmatprep.subr.mxu0 0.0
        %2213 = vmatpush1.msra.mxu0 0.0
        %2214 = vmatprep.subr.mxu0 0.0
        %2215 = vmatpush1.msra.mxu0 0.0
        %2216 = vmatprep.subr.mxu0 0.0
        %2217 = vmatpush1.msra.mxu0 0.0
        %2218 = vmatprep.subr.mxu0 0.0
        %2219 = vmatpush1.msra.mxu0 0.0
        %2220 = vmatprep.subr.mxu0 0.0
        %2221 = vmatpush1.msra.mxu0 0.0
        %2222 = vmatprep.subr.mxu0 0.0
        %2223 = vmatpush1.msra.mxu0 0.0
        %2224 = vmatprep.subr.mxu0 0.0
        %2225 = vmatpush1.msra.mxu0 0.0
        %2226 = vmatprep.subr.mxu0 0.0
        %2227 = vmatpush1.msra.mxu0 0.0
        %2228 = vmatprep.subr.mxu0 0.0
        %2229 = vmatpush1.msra.mxu0 0.0
        %2230 = vmatprep.mubr.f32.mxu0 0.0
        %2231 = vmatmul.mubr.f32.gmra.mrb[0].mxu0 %v1669
        %v2232 = vpop.f32.mrb[0].mxu0
        %v2233 = vadd.f32 0.0, %v2232
        %v2234 = vpop.f32.mrb[0].mxu0
        %2235 = vmatprep.mubr.f32.mxu0 0.0
        %2236 = vmatmul.mubr.f32.gmra.mrb[0].mxu0 %v1672
        %v2237 = vpop.f32.mrb[0].mxu0
        %v2238 = vadd.f32 0.0, %v2237
        %v2239 = vpop.f32.mrb[0].mxu0
        %2240 = vdwg.mxu0
        %s2241 = scalar_lea.vmem %s5, 120
        %v2242 = vld [vmem:[%s2241] sm:$0xff]
        %v2243 = vld [vmem:[%s2241 + $0x8] sm:$0xff]
        %v2244 = vld [vmem:[%s2241 + $0x10] sm:$0xff]
        %v2246 = vsel %vm1502, %v2233, 0
        %v2249 = vsel %vm1502, %v2238, 0
        %2251 = vmatprep.subr.mxu0 0.0
        %2252 = vmatpush1.msra.mxu0 %v2242
        %2253 = vmatprep.subr.mxu0 0.0
        %2254 = vmatpush1.msra.mxu0 %v2243
        %2255 = vmatprep.subr.mxu0 0.0
        %2256 = vmatpush1.msra.mxu0 %v2244
        %2257 = vmatprep.subr.mxu0 0.0
        %2258 = vmatpush1.msra.mxu0 0.0
        %2259 = vmatprep.subr.mxu0 0.0
        %2260 = vmatpush1.msra.mxu0 0.0
        %2261 = vmatprep.subr.mxu0 0.0
        %2262 = vmatpush1.msra.mxu0 0.0
        %2263 = vmatprep.subr.mxu0 0.0
        %2264 = vmatpush1.msra.mxu0 0.0
        %2265 = vmatprep.subr.mxu0 0.0
        %2266 = vmatpush1.msra.mxu0 0.0
        %2267 = vmatprep.subr.mxu0 0.0
        %2268 = vmatpush1.msra.mxu0 0.0
        %2269 = vmatprep.subr.mxu0 0.0
        %2270 = vmatpush1.msra.mxu0 0.0
        %2271 = vmatprep.subr.mxu0 0.0
        %2272 = vmatpush1.msra.mxu0 0.0
        %2273 = vmatprep.subr.mxu0 0.0
        %2274 = vmatpush1.msra.mxu0 0.0
        %2275 = vmatprep.subr.mxu0 0.0
        %2276 = vmatpush1.msra.mxu0 0.0
        %2277 = vmatprep.subr.mxu0 0.0
        %2278 = vmatpush1.msra.mxu0 0.0
        %2279 = vmatprep.subr.mxu0 0.0
        %2280 = vmatpush1.msra.mxu0 0.0
        %2281 = vmatprep.subr.mxu0 0.0
        %2282 = vmatpush1.msra.mxu0 0.0
        %2283 = vmatprep.subr.mxu0 0.0
        %2284 = vmatpush1.msra.mxu0 0.0
        %2285 = vmatprep.subr.mxu0 0.0
        %2286 = vmatpush1.msra.mxu0 0.0
        %2287 = vmatprep.subr.mxu0 0.0
        %2288 = vmatpush1.msra.mxu0 0.0
        %2289 = vmatprep.subr.mxu0 0.0
        %2290 = vmatpush1.msra.mxu0 0.0
        %2291 = vmatprep.subr.mxu0 0.0
        %2292 = vmatpush1.msra.mxu0 0.0
        %2293 = vmatprep.subr.mxu0 0.0
        %2294 = vmatpush1.msra.mxu0 0.0
        %2295 = vmatprep.subr.mxu0 0.0
        %2296 = vmatpush1.msra.mxu0 0.0
        %2297 = vmatprep.subr.mxu0 0.0
        %2298 = vmatpush1.msra.mxu0 0.0
        %2299 = vmatprep.subr.mxu0 0.0
        %2300 = vmatpush1.msra.mxu0 0.0
        %2301 = vmatprep.subr.mxu0 0.0
        %2302 = vmatpush1.msra.mxu0 0.0
        %2303 = vmatprep.subr.mxu0 0.0
        %2304 = vmatpush1.msra.mxu0 0.0
        %2305 = vmatprep.subr.mxu0 0.0
        %2306 = vmatpush1.msra.mxu0 0.0
        %2307 = vmatprep.subr.mxu0 0.0
        %2308 = vmatpush1.msra.mxu0 0.0
        %2309 = vmatprep.subr.mxu0 0.0
        %2310 = vmatpush1.msra.mxu0 0.0
        %2311 = vmatprep.subr.mxu0 0.0
        %2312 = vmatpush1.msra.mxu0 0.0
        %2313 = vmatprep.subr.mxu0 0.0
        %2314 = vmatpush1.msra.mxu0 0.0
        %2315 = vmatprep.mubr.f32.mxu0 0.0
        %2316 = vmatmul.mubr.f32.gmra.mrb[0].mxu0 %v2246
        %v2317 = vpop.f32.mrb[0].mxu0
        %v2318 = vadd.f32 0.0, %v2317
        %v2319 = vpop.f32.mrb[0].mxu0
        %2320 = vmatprep.mubr.f32.mxu0 0.0
        %2321 = vmatmul.mubr.f32.gmra.mrb[0].mxu0 %v2249
        %v2322 = vpop.f32.mrb[0].mxu0
        %v2323 = vadd.f32 0.0, %v2322
        %v2324 = vpop.f32.mrb[0].mxu0
        %2325 = vdwg.mxu0
        %v2326 = vadd.f32 %v2164, %v2318
        %v2327 = vadd.f32 %v2165, %v2323
        %v2328 = vld [vmem:[%s7] sm:$0x1]
        %v2330 = vlaneseq
        %v2331 = vshrl.u32 %v2330, 7
        %v2332 = vsub.s32 0, %v2331
        %v2333 = vrot.slane %v2328, %v2332
        %v2335 = vadd.f32 %v2326, %v2333
        %v2336 = vadd.f32 %v2327, %v2333
        %v2338 = vsel %vm1332, %v2336, 0
        %2340 = vmatprep.subr.mxu0 0.0
        %2341 = vmatpush1.msra.mxu0 %v2335
        %2342 = vmatprep.subr.mxu0 0.0
        %2343 = vmatpush1.msra.mxu0 %v2338
        %2344 = vmatprep.subr.mxu0 0.0
        %2345 = vmatpush1.msra.mxu0 0.0
        %2346 = vmatprep.subr.mxu0 0.0
        %2347 = vmatpush1.msra.mxu0 0.0
        %2348 = vmatprep.subr.mxu0 0.0
        %2349 = vmatpush1.msra.mxu0 0.0
        %2350 = vmatprep.subr.mxu0 0.0
        %2351 = vmatpush1.msra.mxu0 0.0
        %2352 = vmatprep.subr.mxu0 0.0
        %2353 = vmatpush1.msra.mxu0 0.0
        %2354 = vmatprep.subr.mxu0 0.0
        %2355 = vmatpush1.msra.mxu0 0.0
        %2356 = vmatprep.subr.mxu0 0.0
        %2357 = vmatpush1.msra.mxu0 0.0
        %2358 = vmatprep.subr.mxu0 0.0
        %2359 = vmatpush1.msra.mxu0 0.0
        %2360 = vmatprep.subr.mxu0 0.0
        %2361 = vmatpush1.msra.mxu0 0.0
        %2362 = vmatprep.subr.mxu0 0.0
        %2363 = vmatpush1.msra.mxu0 0.0
        %2364 = vmatprep.subr.mxu0 0.0
        %2365 = vmatpush1.msra.mxu0 0.0
        %2366 = vmatprep.subr.mxu0 0.0
        %2367 = vmatpush1.msra.mxu0 0.0
        %2368 = vmatprep.subr.mxu0 0.0
        %2369 = vmatpush1.msra.mxu0 0.0
        %2370 = vmatprep.subr.mxu0 0.0
        %2371 = vmatpush1.msra.mxu0 0.0
        %2372 = vmatprep.subr.mxu0 0.0
        %2373 = vmatpush1.msra.mxu0 0.0
        %2374 = vmatprep.subr.mxu0 0.0
        %2375 = vmatpush1.msra.mxu0 0.0
        %2376 = vmatprep.subr.mxu0 0.0
        %2377 = vmatpush1.msra.mxu0 0.0
        %2378 = vmatprep.subr.mxu0 0.0
        %2379 = vmatpush1.msra.mxu0 0.0
        %2380 = vmatprep.subr.mxu0 0.0
        %2381 = vmatpush1.msra.mxu0 0.0
        %2382 = vmatprep.subr.mxu0 0.0
        %2383 = vmatpush1.msra.mxu0 0.0
        %2384 = vmatprep.subr.mxu0 0.0
        %2385 = vmatpush1.msra.mxu0 0.0
        %2386 = vmatprep.subr.mxu0 0.0
        %2387 = vmatpush1.msra.mxu0 0.0
        %2388 = vmatprep.subr.mxu0 0.0
        %2389 = vmatpush1.msra.mxu0 0.0
        %2390 = vmatprep.subr.mxu0 0.0
        %2391 = vmatpush1.msra.mxu0 0.0
        %2392 = vmatprep.subr.mxu0 0.0
        %2393 = vmatpush1.msra.mxu0 0.0
        %2394 = vmatprep.subr.mxu0 0.0
        %2395 = vmatpush1.msra.mxu0 0.0
        %2396 = vmatprep.subr.mxu0 0.0
        %2397 = vmatpush1.msra.mxu0 0.0
        %2398 = vmatprep.subr.mxu0 0.0
        %2399 = vmatpush1.msra.mxu0 0.0
        %2400 = vmatprep.subr.mxu0 0.0
        %2401 = vmatpush1.msra.mxu0 0.0
        %2402 = vmatprep.subr.mxu0 0.0
        %2403 = vmatpush1.msra.mxu0 0.0
        %2404 = vmatprep.mubr.f32.mxu0 0.0
        %2405 = vmatmul.mubr.f32.gmra.mrb[0].mxu0 %v1327
        %v2406 = vpop.f32.mrb[0].mxu0
        %v2407 = vadd.f32 0.0, %v2406
        %v2408 = vpop.f32.mrb[0].mxu0
        %2409 = vmatprep.mubr.f32.mxu0 0.0
        %2410 = vmatmul.mubr.f32.gmra.mrb[0].mxu0 %v1330
        %v2411 = vpop.f32.mrb[0].mxu0
        %v2412 = vadd.f32 0.0, %v2411
        %v2413 = vpop.f32.mrb[0].mxu0
        %2414 = vdwg.mxu0
        %v2415 = vld [vmem:[%s9] sm:$0xff]
        %v2416 = vld [vmem:[%s9 + $0x8] sm:$0xff]
        %v2417 = vld [vmem:[%s9 + $0x10] sm:$0xff]
        %v2418 = vld [vmem:[%s9 + $0x18] sm:$0xff]
        %v2419 = vld [vmem:[%s9 + $0x20] sm:$0xff]
        %v2420 = vld [vmem:[%s9 + $0x28] sm:$0xff]
        %v2421 = vld [vmem:[%s9 + $0x30] sm:$0xff]
        %v2422 = vld [vmem:[%s9 + $0x38] sm:$0xff]
        %v2423 = vld [vmem:[%s9 + $0x40] sm:$0xff]
        %v2424 = vld [vmem:[%s9 + $0x48] sm:$0xff]
        %v2425 = vld [vmem:[%s9 + $0x50] sm:$0xff]
        %v2426 = vld [vmem:[%s9 + $0x58] sm:$0xff]
        %2427 = vmatprep.subr.mxu0 0.0
        %2428 = vmatpush1.msra.mxu0 %v2335
        %2429 = vmatprep.subr.mxu0 0.0
        %2430 = vmatpush1.msra.mxu0 %v2338
        %2431 = vmatprep.subr.mxu0 0.0
        %2432 = vmatpush1.msra.mxu0 0.0
        %2433 = vmatprep.subr.mxu0 0.0
        %2434 = vmatpush1.msra.mxu0 0.0
        %2435 = vmatprep.subr.mxu0 0.0
        %2436 = vmatpush1.msra.mxu0 0.0
        %2437 = vmatprep.subr.mxu0 0.0
        %2438 = vmatpush1.msra.mxu0 0.0
        %2439 = vmatprep.subr.mxu0 0.0
        %2440 = vmatpush1.msra.mxu0 0.0
        %2441 = vmatprep.subr.mxu0 0.0
        %2442 = vmatpush1.msra.mxu0 0.0
        %2443 = vmatprep.subr.mxu0 0.0
        %2444 = vmatpush1.msra.mxu0 0.0
        %2445 = vmatprep.subr.mxu0 0.0
        %2446 = vmatpush1.msra.mxu0 0.0
        %2447 = vmatprep.subr.mxu0 0.0
        %2448 = vmatpush1.msra.mxu0 0.0
        %2449 = vmatprep.subr.mxu0 0.0
        %2450 = vmatpush1.msra.mxu0 0.0
        %2451 = vmatprep.subr.mxu0 0.0
        %2452 = vmatpush1.msra.mxu0 0.0
        %2453 = vmatprep.subr.mxu0 0.0
        %2454 = vmatpush1.msra.mxu0 0.0
        %2455 = vmatprep.subr.mxu0 0.0
        %2456 = vmatpush1.msra.mxu0 0.0
        %2457 = vmatprep.subr.mxu0 0.0
        %2458 = vmatpush1.msra.mxu0 0.0
        %2459 = vmatprep.subr.mxu0 0.0
        %2460 = vmatpush1.msra.mxu0 0.0
        %2461 = vmatprep.subr.mxu0 0.0
        %2462 = vmatpush1.msra.mxu0 0.0
        %2463 = vmatprep.subr.mxu0 0.0
        %2464 = vmatpush1.msra.mxu0 0.0
        %2465 = vmatprep.subr.mxu0 0.0
        %2466 = vmatpush1.msra.mxu0 0.0
        %2467 = vmatprep.subr.mxu0 0.0
        %2468 = vmatpush1.msra.mxu0 0.0
        %2469 = vmatprep.subr.mxu0 0.0
        %2470 = vmatpush1.msra.mxu0 0.0
        %2471 = vmatprep.subr.mxu0 0.0
        %2472 = vmatpush1.msra.mxu0 0.0
        %2473 = vmatprep.subr.mxu0 0.0
        %2474 = vmatpush1.msra.mxu0 0.0
        %2475 = vmatprep.subr.mxu0 0.0
        %2476 = vmatpush1.msra.mxu0 0.0
        %2477 = vmatprep.subr.mxu0 0.0
        %2478 = vmatpush1.msra.mxu0 0.0
        %2479 = vmatprep.subr.mxu0 0.0
        %2480 = vmatpush1.msra.mxu0 0.0
        %2481 = vmatprep.subr.mxu0 0.0
        %2482 = vmatpush1.msra.mxu0 0.0
        %2483 = vmatprep.subr.mxu0 0.0
        %2484 = vmatpush1.msra.mxu0 0.0
        %2485 = vmatprep.subr.mxu0 0.0
        %2486 = vmatpush1.msra.mxu0 0.0
        %2487 = vmatprep.subr.mxu0 0.0
        %2488 = vmatpush1.msra.mxu0 0.0
        %2489 = vmatprep.subr.mxu0 0.0
        %2490 = vmatpush1.msra.mxu0 0.0
        %2491 = vmatprep.mubr.f32.mxu0 0.0
        %2492 = vmatmul.mubr.f32.gmra.mrb[0].mxu0 %v1418
        %v2493 = vpop.f32.mrb[0].mxu0
        %v2494 = vadd.f32 0.0, %v2493
        %v2495 = vpop.f32.mrb[0].mxu0
        %2496 = vmatprep.mubr.f32.mxu0 0.0
        %2497 = vmatmul.mubr.f32.gmra.mrb[0].mxu0 %v1421
        %v2498 = vpop.f32.mrb[0].mxu0
        %v2499 = vadd.f32 0.0, %v2498
        %v2500 = vpop.f32.mrb[0].mxu0
        %2501 = vdwg.mxu0
        %s2502 = scalar_lea.vmem %s9, 96
        %v2503 = vld [vmem:[%s2502] sm:$0xff]
        %v2504 = vld [vmem:[%s2502 + $0x8] sm:$0xff]
        %v2505 = vld [vmem:[%s2502 + $0x10] sm:$0xff]
        %v2506 = vld [vmem:[%s2502 + $0x18] sm:$0xff]
        %v2507 = vld [vmem:[%s2502 + $0x20] sm:$0xff]
        %v2508 = vld [vmem:[%s2502 + $0x28] sm:$0xff]
        %v2509 = vld [vmem:[%s2502 + $0x30] sm:$0xff]
        %v2510 = vld [vmem:[%s2502 + $0x38] sm:$0xff]
        %v2511 = vld [vmem:[%s2502 + $0x40] sm:$0xff]
        %v2512 = vld [vmem:[%s2502 + $0x48] sm:$0xff]
        %v2513 = vld [vmem:[%s2502 + $0x50] sm:$0xff]
        %v2514 = vld [vmem:[%s2502 + $0x58] sm:$0xff]
        %vm2515 = vcmask 392192
        %v2517 = vsel %vm2515, %v2494, 0
        %v2520 = vsel %vm2515, %v2499, 0
        %2522 = vmatprep.subr.mxu0 %v2504
        %2523 = vmatpush1.msra.mxu0 %v2503
        %2524 = vmatprep.subr.mxu0 %v2506
        %2525 = vmatpush1.msra.mxu0 %v2505
        %2526 = vmatprep.subr.mxu0 %v2508
        %2527 = vmatpush1.msra.mxu0 %v2507
        %2528 = vmatprep.subr.mxu0 %v2510
        %2529 = vmatpush1.msra.mxu0 %v2509
        %2530 = vmatprep.subr.mxu0 %v2512
        %2531 = vmatpush1.msra.mxu0 %v2511
        %2532 = vmatprep.subr.mxu0 %v2514
        %2533 = vmatpush1.msra.mxu0 %v2513
        %2534 = vmatprep.subr.mxu0 0.0
        %2535 = vmatpush1.msra.mxu0 0.0
        %2536 = vmatprep.subr.mxu0 0.0
        %2537 = vmatpush1.msra.mxu0 0.0
        %2538 = vmatprep.subr.mxu0 0.0
        %2539 = vmatpush1.msra.mxu0 0.0
        %2540 = vmatprep.subr.mxu0 0.0
        %2541 = vmatpush1.msra.mxu0 0.0
        %2542 = vmatprep.subr.mxu0 0.0
        %2543 = vmatpush1.msra.mxu0 0.0
        %2544 = vmatprep.subr.mxu0 0.0
        %2545 = vmatpush1.msra.mxu0 0.0
        %2546 = vmatprep.subr.mxu0 0.0
        %2547 = vmatpush1.msra.mxu0 0.0
        %2548 = vmatprep.subr.mxu0 0.0
        %2549 = vmatpush1.msra.mxu0 0.0
        %2550 = vmatprep.subr.mxu0 0.0
        %2551 = vmatpush1.msra.mxu0 0.0
        %2552 = vmatprep.subr.mxu0 0.0
        %2553 = vmatpush1.msra.mxu0 0.0
        %2554 = vmatprep.subr.mxu0 0.0
        %2555 = vmatpush1.msra.mxu0 0.0
        %2556 = vmatprep.subr.mxu0 0.0
        %2557 = vmatpush1.msra.mxu0 0.0
        %2558 = vmatprep.subr.mxu0 0.0
        %2559 = vmatpush1.msra.mxu0 0.0
        %2560 = vmatprep.subr.mxu0 0.0
        %2561 = vmatpush1.msra.mxu0 0.0
        %2562 = vmatprep.subr.mxu0 0.0
        %2563 = vmatpush1.msra.mxu0 0.0
        %2564 = vmatprep.subr.mxu0 0.0
        %2565 = vmatpush1.msra.mxu0 0.0
        %2566 = vmatprep.subr.mxu0 0.0
        %2567 = vmatpush1.msra.mxu0 0.0
        %2568 = vmatprep.subr.mxu0 0.0
        %2569 = vmatpush1.msra.mxu0 0.0
        %2570 = vmatprep.subr.mxu0 0.0
        %2571 = vmatpush1.msra.mxu0 0.0
        %2572 = vmatprep.subr.mxu0 0.0
        %2573 = vmatpush1.msra.mxu0 0.0
        %2574 = vmatprep.subr.mxu0 0.0
        %2575 = vmatpush1.msra.mxu0 0.0
        %2576 = vmatprep.subr.mxu0 0.0
        %2577 = vmatpush1.msra.mxu0 0.0
        %2578 = vmatprep.subr.mxu0 0.0
        %2579 = vmatpush1.msra.mxu0 0.0
        %2580 = vmatprep.subr.mxu0 0.0
        %2581 = vmatpush1.msra.mxu0 0.0
        %2582 = vmatprep.subr.mxu0 0.0
        %2583 = vmatpush1.msra.mxu0 0.0
        %2584 = vmatprep.subr.mxu0 0.0
        %2585 = vmatpush1.msra.mxu0 0.0
        %2586 = vmatprep.mubr.f32.mxu0 0.0
        %2587 = vmatmul.mubr.f32.gmra.mrb[0].mxu0 %v2517
        %v2588 = vpop.f32.mrb[0].mxu0
        %v2589 = vadd.f32 0.0, %v2588
        %v2590 = vpop.f32.mrb[0].mxu0
        %v2591 = vadd.f32 0.0, %v2590
        %2592 = vmatprep.mubr.f32.mxu0 0.0
        %2593 = vmatmul.mubr.f32.gmra.mrb[0].mxu0 %v2520
        %v2594 = vpop.f32.mrb[0].mxu0
        %v2595 = vadd.f32 0.0, %v2594
        %v2596 = vpop.f32.mrb[0].mxu0
        %v2597 = vadd.f32 0.0, %v2596
        %2598 = vdwg.mxu0
        %v2600 = vsel %vm2515, %v2407, 0
        %v2603 = vsel %vm2515, %v2412, 0
        %2605 = vmatprep.subr.mxu0 %v2416
        %2606 = vmatpush1.msra.mxu0 %v2415
        %2607 = vmatprep.subr.mxu0 %v2418
        %2608 = vmatpush1.msra.mxu0 %v2417
        %2609 = vmatprep.subr.mxu0 %v2420
        %2610 = vmatpush1.msra.mxu0 %v2419
        %2611 = vmatprep.subr.mxu0 %v2422
        %2612 = vmatpush1.msra.mxu0 %v2421
        %2613 = vmatprep.subr.mxu0 %v2424
        %2614 = vmatpush1.msra.mxu0 %v2423
        %2615 = vmatprep.subr.mxu0 %v2426
        %2616 = vmatpush1.msra.mxu0 %v2425
        %2617 = vmatprep.subr.mxu0 0.0
        %2618 = vmatpush1.msra.mxu0 0.0
        %2619 = vmatprep.subr.mxu0 0.0
        %2620 = vmatpush1.msra.mxu0 0.0
        %2621 = vmatprep.subr.mxu0 0.0
        %2622 = vmatpush1.msra.mxu0 0.0
        %2623 = vmatprep.subr.mxu0 0.0
        %2624 = vmatpush1.msra.mxu0 0.0
        %2625 = vmatprep.subr.mxu0 0.0
        %2626 = vmatpush1.msra.mxu0 0.0
        %2627 = vmatprep.subr.mxu0 0.0
        %2628 = vmatpush1.msra.mxu0 0.0
        %2629 = vmatprep.subr.mxu0 0.0
        %2630 = vmatpush1.msra.mxu0 0.0
        %2631 = vmatprep.subr.mxu0 0.0
        %2632 = vmatpush1.msra.mxu0 0.0
        %2633 = vmatprep.subr.mxu0 0.0
        %2634 = vmatpush1.msra.mxu0 0.0
        %2635 = vmatprep.subr.mxu0 0.0
        %2636 = vmatpush1.msra.mxu0 0.0
        %2637 = vmatprep.subr.mxu0 0.0
        %2638 = vmatpush1.msra.mxu0 0.0
        %2639 = vmatprep.subr.mxu0 0.0
        %2640 = vmatpush1.msra.mxu0 0.0
        %2641 = vmatprep.subr.mxu0 0.0
        %2642 = vmatpush1.msra.mxu0 0.0
        %2643 = vmatprep.subr.mxu0 0.0
        %2644 = vmatpush1.msra.mxu0 0.0
        %2645 = vmatprep.subr.mxu0 0.0
        %2646 = vmatpush1.msra.mxu0 0.0
        %2647 = vmatprep.subr.mxu0 0.0
        %2648 = vmatpush1.msra.mxu0 0.0
        %2649 = vmatprep.subr.mxu0 0.0
        %2650 = vmatpush1.msra.mxu0 0.0
        %2651 = vmatprep.subr.mxu0 0.0
        %2652 = vmatpush1.msra.mxu0 0.0
        %2653 = vmatprep.subr.mxu0 0.0
        %2654 = vmatpush1.msra.mxu0 0.0
        %2655 = vmatprep.subr.mxu0 0.0
        %2656 = vmatpush1.msra.mxu0 0.0
        %2657 = vmatprep.subr.mxu0 0.0
        %2658 = vmatpush1.msra.mxu0 0.0
        %2659 = vmatprep.subr.mxu0 0.0
        %2660 = vmatpush1.msra.mxu0 0.0
        %2661 = vmatprep.subr.mxu0 0.0
        %2662 = vmatpush1.msra.mxu0 0.0
        %2663 = vmatprep.subr.mxu0 0.0
        %2664 = vmatpush1.msra.mxu0 0.0
        %2665 = vmatprep.subr.mxu0 0.0
        %2666 = vmatpush1.msra.mxu0 0.0
        %2667 = vmatprep.subr.mxu0 0.0
        %2668 = vmatpush1.msra.mxu0 0.0
        %2669 = vmatprep.mubr.f32.mxu0 0.0
        %2670 = vmatmul.mubr.f32.gmra.mrb[0].mxu0 %v2600
        %v2671 = vpop.f32.mrb[0].mxu0
        %v2672 = vadd.f32 %v2589, %v2671
        %v2673 = vpop.f32.mrb[0].mxu0
        %v2674 = vadd.f32 %v2591, %v2673
        %2675 = vmatprep.mubr.f32.mxu0 0.0
        %2676 = vmatmul.mubr.f32.gmra.mrb[0].mxu0 %v2603
        %v2677 = vpop.f32.mrb[0].mxu0
        %v2678 = vadd.f32 %v2595, %v2677
        %v2679 = vpop.f32.mrb[0].mxu0
        %v2680 = vadd.f32 %v2597, %v2679
        %2681 = vdwg.mxu0
        %2682 = vmatprep.subr.mxu0 0.0
        %2683 = vmatpush1.msra.mxu0 %v2335
        %2684 = vmatprep.subr.mxu0 0.0
        %2685 = vmatpush1.msra.mxu0 %v2338
        %2686 = vmatprep.subr.mxu0 0.0
        %2687 = vmatpush1.msra.mxu0 0.0
        %2688 = vmatprep.subr.mxu0 0.0
        %2689 = vmatpush1.msra.mxu0 0.0
        %2690 = vmatprep.subr.mxu0 0.0
        %2691 = vmatpush1.msra.mxu0 0.0
        %2692 = vmatprep.subr.mxu0 0.0
        %2693 = vmatpush1.msra.mxu0 0.0
        %2694 = vmatprep.subr.mxu0 0.0
        %2695 = vmatpush1.msra.mxu0 0.0
        %2696 = vmatprep.subr.mxu0 0.0
        %2697 = vmatpush1.msra.mxu0 0.0
        %2698 = vmatprep.subr.mxu0 0.0
        %2699 = vmatpush1.msra.mxu0 0.0
        %2700 = vmatprep.subr.mxu0 0.0
        %2701 = vmatpush1.msra.mxu0 0.0
        %2702 = vmatprep.subr.mxu0 0.0
        %2703 = vmatpush1.msra.mxu0 0.0
        %2704 = vmatprep.subr.mxu0 0.0
        %2705 = vmatpush1.msra.mxu0 0.0
        %2706 = vmatprep.subr.mxu0 0.0
        %2707 = vmatpush1.msra.mxu0 0.0
        %2708 = vmatprep.subr.mxu0 0.0
        %2709 = vmatpush1.msra.mxu0 0.0
        %2710 = vmatprep.subr.mxu0 0.0
        %2711 = vmatpush1.msra.mxu0 0.0
        %2712 = vmatprep.subr.mxu0 0.0
        %2713 = vmatpush1.msra.mxu0 0.0
        %2714 = vmatprep.subr.mxu0 0.0
        %2715 = vmatpush1.msra.mxu0 0.0
        %2716 = vmatprep.subr.mxu0 0.0
        %2717 = vmatpush1.msra.mxu0 0.0
        %2718 = vmatprep.subr.mxu0 0.0
        %2719 = vmatpush1.msra.mxu0 0.0
        %2720 = vmatprep.subr.mxu0 0.0
        %2721 = vmatpush1.msra.mxu0 0.0
        %2722 = vmatprep.subr.mxu0 0.0
        %2723 = vmatpush1.msra.mxu0 0.0
        %2724 = vmatprep.subr.mxu0 0.0
        %2725 = vmatpush1.msra.mxu0 0.0
        %2726 = vmatprep.subr.mxu0 0.0
        %2727 = vmatpush1.msra.mxu0 0.0
        %2728 = vmatprep.subr.mxu0 0.0
        %2729 = vmatpush1.msra.mxu0 0.0
        %2730 = vmatprep.subr.mxu0 0.0
        %2731 = vmatpush1.msra.mxu0 0.0
        %2732 = vmatprep.subr.mxu0 0.0
        %2733 = vmatpush1.msra.mxu0 0.0
        %2734 = vmatprep.subr.mxu0 0.0
        %2735 = vmatpush1.msra.mxu0 0.0
        %2736 = vmatprep.subr.mxu0 0.0
        %2737 = vmatpush1.msra.mxu0 0.0
        %2738 = vmatprep.subr.mxu0 0.0
        %2739 = vmatpush1.msra.mxu0 0.0
        %2740 = vmatprep.subr.mxu0 0.0
        %2741 = vmatpush1.msra.mxu0 0.0
        %2742 = vmatprep.subr.mxu0 0.0
        %2743 = vmatpush1.msra.mxu0 0.0
        %2744 = vmatprep.subr.mxu0 0.0
        %2745 = vmatpush1.msra.mxu0 0.0
        %2746 = vmatprep.mubr.f32.mxu0 0.0
        %2747 = vmatmul.mubr.f32.gmra.mrb[0].mxu0 %v1669
        %v2748 = vpop.f32.mrb[0].mxu0
        %v2749 = vadd.f32 0.0, %v2748
        %v2750 = vpop.f32.mrb[0].mxu0
        %2751 = vmatprep.mubr.f32.mxu0 0.0
        %2752 = vmatmul.mubr.f32.gmra.mrb[0].mxu0 %v1672
        %v2753 = vpop.f32.mrb[0].mxu0
        %v2754 = vadd.f32 0.0, %v2753
        %v2755 = vpop.f32.mrb[0].mxu0
        %2756 = vdwg.mxu0
        %s2757 = scalar_lea.vmem %s9, 192
        %v2758 = vld [vmem:[%s2757] sm:$0xff]
        %v2759 = vld [vmem:[%s2757 + $0x8] sm:$0xff]
        %v2760 = vld [vmem:[%s2757 + $0x10] sm:$0xff]
        %v2761 = vld [vmem:[%s2757 + $0x18] sm:$0xff]
        %v2762 = vld [vmem:[%s2757 + $0x20] sm:$0xff]
        %v2763 = vld [vmem:[%s2757 + $0x28] sm:$0xff]
        %v2764 = vld [vmem:[%s2757 + $0x30] sm:$0xff]
        %v2765 = vld [vmem:[%s2757 + $0x38] sm:$0xff]
        %v2766 = vld [vmem:[%s2757 + $0x40] sm:$0xff]
        %v2767 = vld [vmem:[%s2757 + $0x48] sm:$0xff]
        %v2768 = vld [vmem:[%s2757 + $0x50] sm:$0xff]
        %v2769 = vld [vmem:[%s2757 + $0x58] sm:$0xff]
        %v2771 = vsel %vm2515, %v2749, 0
        %v2774 = vsel %vm2515, %v2754, 0
        %2776 = vmatprep.subr.mxu0 %v2759
        %2777 = vmatpush1.msra.mxu0 %v2758
        %2778 = vmatprep.subr.mxu0 %v2761
        %2779 = vmatpush1.msra.mxu0 %v2760
        %2780 = vmatprep.subr.mxu0 %v2763
        %2781 = vmatpush1.msra.mxu0 %v2762
        %2782 = vmatprep.subr.mxu0 %v2765
        %2783 = vmatpush1.msra.mxu0 %v2764
        %2784 = vmatprep.subr.mxu0 %v2767
        %2785 = vmatpush1.msra.mxu0 %v2766
        %2786 = vmatprep.subr.mxu0 %v2769
        %2787 = vmatpush1.msra.mxu0 %v2768
        %2788 = vmatprep.subr.mxu0 0.0
        %2789 = vmatpush1.msra.mxu0 0.0
        %2790 = vmatprep.subr.mxu0 0.0
        %2791 = vmatpush1.msra.mxu0 0.0
        %2792 = vmatprep.subr.mxu0 0.0
        %2793 = vmatpush1.msra.mxu0 0.0
        %2794 = vmatprep.subr.mxu0 0.0
        %2795 = vmatpush1.msra.mxu0 0.0
        %2796 = vmatprep.subr.mxu0 0.0
        %2797 = vmatpush1.msra.mxu0 0.0
        %2798 = vmatprep.subr.mxu0 0.0
        %2799 = vmatpush1.msra.mxu0 0.0
        %2800 = vmatprep.subr.mxu0 0.0
        %2801 = vmatpush1.msra.mxu0 0.0
        %2802 = vmatprep.subr.mxu0 0.0
        %2803 = vmatpush1.msra.mxu0 0.0
        %2804 = vmatprep.subr.mxu0 0.0
        %2805 = vmatpush1.msra.mxu0 0.0
        %2806 = vmatprep.subr.mxu0 0.0
        %2807 = vmatpush1.msra.mxu0 0.0
        %2808 = vmatprep.subr.mxu0 0.0
        %2809 = vmatpush1.msra.mxu0 0.0
        %2810 = vmatprep.subr.mxu0 0.0
        %2811 = vmatpush1.msra.mxu0 0.0
        %2812 = vmatprep.subr.mxu0 0.0
        %2813 = vmatpush1.msra.mxu0 0.0
        %2814 = vmatprep.subr.mxu0 0.0
        %2815 = vmatpush1.msra.mxu0 0.0
        %2816 = vmatprep.subr.mxu0 0.0
        %2817 = vmatpush1.msra.mxu0 0.0
        %2818 = vmatprep.subr.mxu0 0.0
        %2819 = vmatpush1.msra.mxu0 0.0
        %2820 = vmatprep.subr.mxu0 0.0
        %2821 = vmatpush1.msra.mxu0 0.0
        %2822 = vmatprep.subr.mxu0 0.0
        %2823 = vmatpush1.msra.mxu0 0.0
        %2824 = vmatprep.subr.mxu0 0.0
        %2825 = vmatpush1.msra.mxu0 0.0
        %2826 = vmatprep.subr.mxu0 0.0
        %2827 = vmatpush1.msra.mxu0 0.0
        %2828 = vmatprep.subr.mxu0 0.0
        %2829 = vmatpush1.msra.mxu0 0.0
        %2830 = vmatprep.subr.mxu0 0.0
        %2831 = vmatpush1.msra.mxu0 0.0
        %2832 = vmatprep.subr.mxu0 0.0
        %2833 = vmatpush1.msra.mxu0 0.0
        %2834 = vmatprep.subr.mxu0 0.0
        %2835 = vmatpush1.msra.mxu0 0.0
        %2836 = vmatprep.subr.mxu0 0.0
        %2837 = vmatpush1.msra.mxu0 0.0
        %2838 = vmatprep.subr.mxu0 0.0
        %2839 = vmatpush1.msra.mxu0 0.0
        %2840 = vmatprep.mubr.f32.mxu0 0.0
        %2841 = vmatmul.mubr.f32.gmra.mrb[0].mxu0 %v2771
        %v2842 = vpop.f32.mrb[0].mxu0
        %v2843 = vadd.f32 0.0, %v2842
        %v2844 = vpop.f32.mrb[0].mxu0
        %v2845 = vadd.f32 0.0, %v2844
        %2846 = vmatprep.mubr.f32.mxu0 0.0
        %2847 = vmatmul.mubr.f32.gmra.mrb[0].mxu0 %v2774
        %v2848 = vpop.f32.mrb[0].mxu0
        %v2849 = vadd.f32 0.0, %v2848
        %v2850 = vpop.f32.mrb[0].mxu0
        %v2851 = vadd.f32 0.0, %v2850
        %2852 = vdwg.mxu0
        %v2853 = vadd.f32 %v2672, %v2843
        %v2854 = vadd.f32 %v2674, %v2845
        %v2855 = vadd.f32 %v2678, %v2849
        %v2856 = vadd.f32 %v2680, %v2851
        %v2857 = vld [vmem:[%s11] sm:$0x3]
        %v2859 = vlaneseq
        %v2860 = vshrl.u32 %v2859, 7
        %v2861 = vsub.s32 0, %v2860
        %v2862 = vrot.slane %v2857, %v2861
        %v2863 = vlaneseq
        %v2864 = vshrl.u32 %v2863, 7
        %v2865 = vsub.s32 1, %v2864
        %v2866 = vrot.slane %v2857, %v2865
        %v2869 = vadd.f32 %v2853, %v2862
        %v2870 = vadd.f32 %v2854, %v2866
        %v2871 = vadd.f32 %v2855, %v2862
        %v2872 = vadd.f32 %v2856, %v2866
        %v2873 = vmul.f32 %v2869, 0.5
        %v2874 = vmul.f32 %v2870, 0.5
        %v2875 = vmul.f32 %v2871, 0.5
        %v2876 = vmul.f32 %v2872, 0.5
        %v2877 = vmul.f32 %v2869, 0.044715
        %v2878 = vmul.f32 %v2870, 0.044715
        %v2879 = vmul.f32 %v2871, 0.044715
        %v2880 = vmul.f32 %v2872, 0.044715
        %v2881 = vmul.f32 %v2877, %v2869
        %v2882 = vmul.f32 %v2878, %v2870
        %v2883 = vmul.f32 %v2879, %v2871
        %v2884 = vmul.f32 %v2880, %v2872
        %v2885 = vmul.f32 %v2881, %v2869
        %v2886 = vmul.f32 %v2882, %v2870
        %v2887 = vmul.f32 %v2883, %v2871
        %v2888 = vmul.f32 %v2884, %v2872
        %v2889 = vadd.f32 %v2869, %v2885
        %v2890 = vadd.f32 %v2870, %v2886
        %v2891 = vadd.f32 %v2871, %v2887
        %v2892 = vadd.f32 %v2872, %v2888
        %v2893 = vmul.f32 %v2889, 0.7978846
        %v2894 = vmul.f32 %v2890, 0.7978846
        %v2895 = vmul.f32 %v2891, 0.7978846
        %v2896 = vmul.f32 %v2892, 0.7978846
        %v2897 = vtanh.pop %v2893
        %v2898 = vtanh.pop %v2894
        %v2899 = vtanh.pop %v2895
        %v2900 = vtanh.pop %v2896
        %v2901 = vadd.f32 %v2897, 1.0
        %v2902 = vadd.f32 %v2898, 1.0
        %v2903 = vadd.f32 %v2899, 1.0
        %v2904 = vadd.f32 %v2900, 1.0
        %v2905 = vmul.f32 %v2873, %v2901
        %v2906 = vmul.f32 %v2874, %v2902
        %v2907 = vmul.f32 %v2875, %v2903
        %v2908 = vmul.f32 %v2876, %v2904
        %v2909 = vld [vmem:[%s13] sm:$0xff]
        %v2910 = vld [vmem:[%s13 + $0x8] sm:$0xff]
        %v2911 = vld [vmem:[%s13 + $0x10] sm:$0xff]
        %v2912 = vld [vmem:[%s13 + $0x18] sm:$0xff]
        %v2913 = vld [vmem:[%s13 + $0x20] sm:$0xff]
        %v2914 = vld [vmem:[%s13 + $0x28] sm:$0xff]
        %v2915 = vld [vmem:[%s13 + $0x30] sm:$0xff]
        %v2916 = vld [vmem:[%s13 + $0x38] sm:$0xff]
        %v2917 = vld [vmem:[%s13 + $0x40] sm:$0xff]
        %v2918 = vld [vmem:[%s13 + $0x48] sm:$0xff]
        %v2919 = vld [vmem:[%s13 + $0x50] sm:$0xff]
        %v2920 = vld [vmem:[%s13 + $0x58] sm:$0xff]
        %v2921 = vld [vmem:[%s13 + $0x60] sm:$0xff]
        %v2922 = vld [vmem:[%s13 + $0x68] sm:$0xff]
        %v2923 = vld [vmem:[%s13 + $0x70] sm:$0xff]
        %v2924 = vld [vmem:[%s13 + $0x78] sm:$0xff]
        %v2925 = vld [vmem:[%s13 + $0x80] sm:$0xff]
        %v2926 = vld [vmem:[%s13 + $0x88] sm:$0xff]
        %v2927 = vld [vmem:[%s13 + $0x90] sm:$0xff]
        %v2928 = vld [vmem:[%s13 + $0x98] sm:$0xff]
        %v2929 = vld [vmem:[%s13 + $0xa0] sm:$0xff]
        %v2930 = vld [vmem:[%s13 + $0xa8] sm:$0xff]
        %v2931 = vld [vmem:[%s13 + $0xb0] sm:$0xff]
        %v2932 = vld [vmem:[%s13 + $0xb8] sm:$0xff]
        %v2933 = vld [vmem:[%s15] sm:$0x1]
        %v2935 = vlaneseq
        %v2936 = vshrl.u32 %v2935, 7
        %v2937 = vsub.s32 0, %v2936
        %v2938 = vrot.slane %v2933, %v2937
        %vm2940 = vcmask 523264
        %v2942 = vsel %vm2940, %v2906, 0
        %v2945 = vsel %vm2940, %v2908, 0
        %2947 = vmatprep.subr.mxu0 0.0
        %2948 = vmatpush1.msra.mxu0 %v2909
        %2949 = vmatprep.subr.mxu0 0.0
        %2950 = vmatpush1.msra.mxu0 %v2910
        %2951 = vmatprep.subr.mxu0 0.0
        %2952 = vmatpush1.msra.mxu0 %v2911
        %2953 = vmatprep.subr.mxu0 0.0
        %2954 = vmatpush1.msra.mxu0 %v2912
        %2955 = vmatprep.subr.mxu0 0.0
        %2956 = vmatpush1.msra.mxu0 %v2913
        %2957 = vmatprep.subr.mxu0 0.0
        %2958 = vmatpush1.msra.mxu0 %v2914
        %2959 = vmatprep.subr.mxu0 0.0
        %2960 = vmatpush1.msra.mxu0 %v2915
        %2961 = vmatprep.subr.mxu0 0.0
        %2962 = vmatpush1.msra.mxu0 %v2916
        %2963 = vmatprep.subr.mxu0 0.0
        %2964 = vmatpush1.msra.mxu0 %v2917
        %2965 = vmatprep.subr.mxu0 0.0
        %2966 = vmatpush1.msra.mxu0 %v2918
        %2967 = vmatprep.subr.mxu0 0.0
        %2968 = vmatpush1.msra.mxu0 %v2919
        %2969 = vmatprep.subr.mxu0 0.0
        %2970 = vmatpush1.msra.mxu0 %v2920
        %2971 = vmatprep.subr.mxu0 0.0
        %2972 = vmatpush1.msra.mxu0 %v2921
        %2973 = vmatprep.subr.mxu0 0.0
        %2974 = vmatpush1.msra.mxu0 %v2922
        %2975 = vmatprep.subr.mxu0 0.0
        %2976 = vmatpush1.msra.mxu0 %v2923
        %2977 = vmatprep.subr.mxu0 0.0
        %2978 = vmatpush1.msra.mxu0 %v2924
        %2979 = vmatprep.subr.mxu0 0.0
        %2980 = vmatpush1.msra.mxu0 %v2925
        %2981 = vmatprep.subr.mxu0 0.0
        %2982 = vmatpush1.msra.mxu0 %v2926
        %2983 = vmatprep.subr.mxu0 0.0
        %2984 = vmatpush1.msra.mxu0 %v2927
        %2985 = vmatprep.subr.mxu0 0.0
        %2986 = vmatpush1.msra.mxu0 %v2928
        %2987 = vmatprep.subr.mxu0 0.0
        %2988 = vmatpush1.msra.mxu0 %v2929
        %2989 = vmatprep.subr.mxu0 0.0
        %2990 = vmatpush1.msra.mxu0 %v2930
        %2991 = vmatprep.subr.mxu0 0.0
        %2992 = vmatpush1.msra.mxu0 %v2931
        %2993 = vmatprep.subr.mxu0 0.0
        %2994 = vmatpush1.msra.mxu0 %v2932
        %2995 = vmatprep.subr.mxu0 0.0
        %2996 = vmatpush1.msra.mxu0 0.0
        %2997 = vmatprep.subr.mxu0 0.0
        %2998 = vmatpush1.msra.mxu0 0.0
        %2999 = vmatprep.subr.mxu0 0.0
        %3000 = vmatpush1.msra.mxu0 0.0
        %3001 = vmatprep.subr.mxu0 0.0
        %3002 = vmatpush1.msra.mxu0 0.0
        %3003 = vmatprep.subr.mxu0 0.0
        %3004 = vmatpush1.msra.mxu0 0.0
        %3005 = vmatprep.subr.mxu0 0.0
        %3006 = vmatpush1.msra.mxu0 0.0
        %3007 = vmatprep.subr.mxu0 0.0
        %3008 = vmatpush1.msra.mxu0 0.0
        %3009 = vmatprep.subr.mxu0 0.0
        %3010 = vmatpush1.msra.mxu0 0.0
        %3011 = vmatprep.mubr.f32.mxu0 %v2942
        %3012 = vmatmul.mubr.f32.gmra.mrb[0].mxu0 %v2905
        %v3013 = vpop.f32.mrb[0].mxu0
        %v3014 = vadd.f32 %v2938, %v3013
        %v3015 = vpop.f32.mrb[0].mxu0
        %3016 = vmatprep.mubr.f32.mxu0 %v2945
        %3017 = vmatmul.mubr.f32.gmra.mrb[0].mxu0 %v2907
        %v3018 = vpop.f32.mrb[0].mxu0
        %v3019 = vadd.f32 %v2938, %v3018
        %v3020 = vpop.f32.mrb[0].mxu0
        %3021 = vdwg.mxu0
        %v3022 = vld [vmem:[%s17] sm:$0xff]
        %v3023 = vld [vmem:[%s17 + $0x8] sm:$0xff]
        %v3025 = vsel %vm1325, %v3022, 0
        %v3028 = vsel %vm1325, %v3023, 0
        %v3031 = vsel %vm1332, %v3019, 0
        %3033 = vmatprep.subr.mxu0 0.0
        %3034 = vmatpush1.msra.mxu0 %v3014
        %3035 = vmatprep.subr.mxu0 0.0
        %3036 = vmatpush1.msra.mxu0 %v3031
        %3037 = vmatprep.subr.mxu0 0.0
        %3038 = vmatpush1.msra.mxu0 0.0
        %3039 = vmatprep.subr.mxu0 0.0
        %3040 = vmatpush1.msra.mxu0 0.0
        %3041 = vmatprep.subr.mxu0 0.0
        %3042 = vmatpush1.msra.mxu0 0.0
        %3043 = vmatprep.subr.mxu0 0.0
        %3044 = vmatpush1.msra.mxu0 0.0
        %3045 = vmatprep.subr.mxu0 0.0
        %3046 = vmatpush1.msra.mxu0 0.0
        %3047 = vmatprep.subr.mxu0 0.0
        %3048 = vmatpush1.msra.mxu0 0.0
        %3049 = vmatprep.subr.mxu0 0.0
        %3050 = vmatpush1.msra.mxu0 0.0
        %3051 = vmatprep.subr.mxu0 0.0
        %3052 = vmatpush1.msra.mxu0 0.0
        %3053 = vmatprep.subr.mxu0 0.0
        %3054 = vmatpush1.msra.mxu0 0.0
        %3055 = vmatprep.subr.mxu0 0.0
        %3056 = vmatpush1.msra.mxu0 0.0
        %3057 = vmatprep.subr.mxu0 0.0
        %3058 = vmatpush1.msra.mxu0 0.0
        %3059 = vmatprep.subr.mxu0 0.0
        %3060 = vmatpush1.msra.mxu0 0.0
        %3061 = vmatprep.subr.mxu0 0.0
        %3062 = vmatpush1.msra.mxu0 0.0
        %3063 = vmatprep.subr.mxu0 0.0
        %3064 = vmatpush1.msra.mxu0 0.0
        %3065 = vmatprep.subr.mxu0 0.0
        %3066 = vmatpush1.msra.mxu0 0.0
        %3067 = vmatprep.subr.mxu0 0.0
        %3068 = vmatpush1.msra.mxu0 0.0
        %3069 = vmatprep.subr.mxu0 0.0
        %3070 = vmatpush1.msra.mxu0 0.0
        %3071 = vmatprep.subr.mxu0 0.0
        %3072 = vmatpush1.msra.mxu0 0.0
        %3073 = vmatprep.subr.mxu0 0.0
        %3074 = vmatpush1.msra.mxu0 0.0
        %3075 = vmatprep.subr.mxu0 0.0
        %3076 = vmatpush1.msra.mxu0 0.0
        %3077 = vmatprep.subr.mxu0 0.0
        %3078 = vmatpush1.msra.mxu0 0.0
        %3079 = vmatprep.subr.mxu0 0.0
        %3080 = vmatpush1.msra.mxu0 0.0
        %3081 = vmatprep.subr.mxu0 0.0
        %3082 = vmatpush1.msra.mxu0 0.0
        %3083 = vmatprep.subr.mxu0 0.0
        %3084 = vmatpush1.msra.mxu0 0.0
        %3085 = vmatprep.subr.mxu0 0.0
        %3086 = vmatpush1.msra.mxu0 0.0
        %3087 = vmatprep.subr.mxu0 0.0
        %3088 = vmatpush1.msra.mxu0 0.0
        %3089 = vmatprep.subr.mxu0 0.0
        %3090 = vmatpush1.msra.mxu0 0.0
        %3091 = vmatprep.subr.mxu0 0.0
        %3092 = vmatpush1.msra.mxu0 0.0
        %3093 = vmatprep.subr.mxu0 0.0
        %3094 = vmatpush1.msra.mxu0 0.0
        %3095 = vmatprep.subr.mxu0 0.0
        %3096 = vmatpush1.msra.mxu0 0.0
        %3097 = vmatprep.mubr.f32.mxu0 0.0
        %3098 = vmatmul.mubr.f32.gmra.mrb[0].mxu0 %v3025
        %v3099 = vpop.f32.mrb[0].mxu0
        %v3100 = vadd.f32 0.0, %v3099
        %v3101 = vpop.f32.mrb[0].mxu0
        %3102 = vmatprep.mubr.f32.mxu0 0.0
        %3103 = vmatmul.mubr.f32.gmra.mrb[0].mxu0 %v3028
        %v3104 = vpop.f32.mrb[0].mxu0
        %v3105 = vadd.f32 0.0, %v3104
        %v3106 = vpop.f32.mrb[0].mxu0
        %3107 = vdwg.mxu0
        %v3108 = vld [vmem:[%s19] sm:$0xff]
        %v3109 = vld [vmem:[%s19 + $0x8] sm:$0xff]
        %v3110 = vld [vmem:[%s19 + $0x10] sm:$0xff]
        %s3111 = scalar_lea.vmem %s17, 16
        %v3112 = vld [vmem:[%s3111] sm:$0xff]
        %v3113 = vld [vmem:[%s3111 + $0x8] sm:$0xff]
        %v3115 = vsel %vm1325, %v3112, 0
        %v3118 = vsel %vm1325, %v3113, 0
        %3120 = vmatprep.subr.mxu0 0.0
        %3121 = vmatpush1.msra.mxu0 %v3014
        %3122 = vmatprep.subr.mxu0 0.0
        %3123 = vmatpush1.msra.mxu0 %v3031
        %3124 = vmatprep.subr.mxu0 0.0
        %3125 = vmatpush1.msra.mxu0 0.0
        %3126 = vmatprep.subr.mxu0 0.0
        %3127 = vmatpush1.msra.mxu0 0.0
        %3128 = vmatprep.subr.mxu0 0.0
        %3129 = vmatpush1.msra.mxu0 0.0
        %3130 = vmatprep.subr.mxu0 0.0
        %3131 = vmatpush1.msra.mxu0 0.0
        %3132 = vmatprep.subr.mxu0 0.0
        %3133 = vmatpush1.msra.mxu0 0.0
        %3134 = vmatprep.subr.mxu0 0.0
        %3135 = vmatpush1.msra.mxu0 0.0
        %3136 = vmatprep.subr.mxu0 0.0
        %3137 = vmatpush1.msra.mxu0 0.0
        %3138 = vmatprep.subr.mxu0 0.0
        %3139 = vmatpush1.msra.mxu0 0.0
        %3140 = vmatprep.subr.mxu0 0.0
        %3141 = vmatpush1.msra.mxu0 0.0
        %3142 = vmatprep.subr.mxu0 0.0
        %3143 = vmatpush1.msra.mxu0 0.0
        %3144 = vmatprep.subr.mxu0 0.0
        %3145 = vmatpush1.msra.mxu0 0.0
        %3146 = vmatprep.subr.mxu0 0.0
        %3147 = vmatpush1.msra.mxu0 0.0
        %3148 = vmatprep.subr.mxu0 0.0
        %3149 = vmatpush1.msra.mxu0 0.0
        %3150 = vmatprep.subr.mxu0 0.0
        %3151 = vmatpush1.msra.mxu0 0.0
        %3152 = vmatprep.subr.mxu0 0.0
        %3153 = vmatpush1.msra.mxu0 0.0
        %3154 = vmatprep.subr.mxu0 0.0
        %3155 = vmatpush1.msra.mxu0 0.0
        %3156 = vmatprep.subr.mxu0 0.0
        %3157 = vmatpush1.msra.mxu0 0.0
        %3158 = vmatprep.subr.mxu0 0.0
        %3159 = vmatpush1.msra.mxu0 0.0
        %3160 = vmatprep.subr.mxu0 0.0
        %3161 = vmatpush1.msra.mxu0 0.0
        %3162 = vmatprep.subr.mxu0 0.0
        %3163 = vmatpush1.msra.mxu0 0.0
        %3164 = vmatprep.subr.mxu0 0.0
        %3165 = vmatpush1.msra.mxu0 0.0
        %3166 = vmatprep.subr.mxu0 0.0
        %3167 = vmatpush1.msra.mxu0 0.0
        %3168 = vmatprep.subr.mxu0 0.0
        %3169 = vmatpush1.msra.mxu0 0.0
        %3170 = vmatprep.subr.mxu0 0.0
        %3171 = vmatpush1.msra.mxu0 0.0
        %3172 = vmatprep.subr.mxu0 0.0
        %3173 = vmatpush1.msra.mxu0 0.0
        %3174 = vmatprep.subr.mxu0 0.0
        %3175 = vmatpush1.msra.mxu0 0.0
        %3176 = vmatprep.subr.mxu0 0.0
        %3177 = vmatpush1.msra.mxu0 0.0
        %3178 = vmatprep.subr.mxu0 0.0
        %3179 = vmatpush1.msra.mxu0 0.0
        %3180 = vmatprep.subr.mxu0 0.0
        %3181 = vmatpush1.msra.mxu0 0.0
        %3182 = vmatprep.subr.mxu0 0.0
        %3183 = vmatpush1.msra.mxu0 0.0
        %3184 = vmatprep.mubr.f32.mxu0 0.0
        %3185 = vmatmul.mubr.f32.gmra.mrb[0].mxu0 %v3115
        %v3186 = vpop.f32.mrb[0].mxu0
        %v3187 = vadd.f32 0.0, %v3186
        %v3188 = vpop.f32.mrb[0].mxu0
        %3189 = vmatprep.mubr.f32.mxu0 0.0
        %3190 = vmatmul.mubr.f32.gmra.mrb[0].mxu0 %v3118
        %v3191 = vpop.f32.mrb[0].mxu0
        %v3192 = vadd.f32 0.0, %v3191
        %v3193 = vpop.f32.mrb[0].mxu0
        %3194 = vdwg.mxu0
        %s3195 = scalar_lea.vmem %s19, 24
        %v3196 = vld [vmem:[%s3195] sm:$0xff]
        %v3197 = vld [vmem:[%s3195 + $0x8] sm:$0xff]
        %v3198 = vld [vmem:[%s3195 + $0x10] sm:$0xff]
        %v3200 = vsel %vm1502, %v3187, 0
        %v3203 = vsel %vm1502, %v3192, 0
        %3205 = vmatprep.subr.mxu0 0.0
        %3206 = vmatpush1.msra.mxu0 %v3196
        %3207 = vmatprep.subr.mxu0 0.0
        %3208 = vmatpush1.msra.mxu0 %v3197
        %3209 = vmatprep.subr.mxu0 0.0
        %3210 = vmatpush1.msra.mxu0 %v3198
        %3211 = vmatprep.subr.mxu0 0.0
        %3212 = vmatpush1.msra.mxu0 0.0
        %3213 = vmatprep.subr.mxu0 0.0
        %3214 = vmatpush1.msra.mxu0 0.0
        %3215 = vmatprep.subr.mxu0 0.0
        %3216 = vmatpush1.msra.mxu0 0.0
        %3217 = vmatprep.subr.mxu0 0.0
        %3218 = vmatpush1.msra.mxu0 0.0
        %3219 = vmatprep.subr.mxu0 0.0
        %3220 = vmatpush1.msra.mxu0 0.0
        %3221 = vmatprep.subr.mxu0 0.0
        %3222 = vmatpush1.msra.mxu0 0.0
        %3223 = vmatprep.subr.mxu0 0.0
        %3224 = vmatpush1.msra.mxu0 0.0
        %3225 = vmatprep.subr.mxu0 0.0
        %3226 = vmatpush1.msra.mxu0 0.0
        %3227 = vmatprep.subr.mxu0 0.0
        %3228 = vmatpush1.msra.mxu0 0.0
        %3229 = vmatprep.subr.mxu0 0.0
        %3230 = vmatpush1.msra.mxu0 0.0
        %3231 = vmatprep.subr.mxu0 0.0
        %3232 = vmatpush1.msra.mxu0 0.0
        %3233 = vmatprep.subr.mxu0 0.0
        %3234 = vmatpush1.msra.mxu0 0.0
        %3235 = vmatprep.subr.mxu0 0.0
        %3236 = vmatpush1.msra.mxu0 0.0
        %3237 = vmatprep.subr.mxu0 0.0
        %3238 = vmatpush1.msra.mxu0 0.0
        %3239 = vmatprep.subr.mxu0 0.0
        %3240 = vmatpush1.msra.mxu0 0.0
        %3241 = vmatprep.subr.mxu0 0.0
        %3242 = vmatpush1.msra.mxu0 0.0
        %3243 = vmatprep.subr.mxu0 0.0
        %3244 = vmatpush1.msra.mxu0 0.0
        %3245 = vmatprep.subr.mxu0 0.0
        %3246 = vmatpush1.msra.mxu0 0.0
        %3247 = vmatprep.subr.mxu0 0.0
        %3248 = vmatpush1.msra.mxu0 0.0
        %3249 = vmatprep.subr.mxu0 0.0
        %3250 = vmatpush1.msra.mxu0 0.0
        %3251 = vmatprep.subr.mxu0 0.0
        %3252 = vmatpush1.msra.mxu0 0.0
        %3253 = vmatprep.subr.mxu0 0.0
        %3254 = vmatpush1.msra.mxu0 0.0
        %3255 = vmatprep.subr.mxu0 0.0
        %3256 = vmatpush1.msra.mxu0 0.0
        %3257 = vmatprep.subr.mxu0 0.0
        %3258 = vmatpush1.msra.mxu0 0.0
        %3259 = vmatprep.subr.mxu0 0.0
        %3260 = vmatpush1.msra.mxu0 0.0
        %3261 = vmatprep.subr.mxu0 0.0
        %3262 = vmatpush1.msra.mxu0 0.0
        %3263 = vmatprep.subr.mxu0 0.0
        %3264 = vmatpush1.msra.mxu0 0.0
        %3265 = vmatprep.subr.mxu0 0.0
        %3266 = vmatpush1.msra.mxu0 0.0
        %3267 = vmatprep.subr.mxu0 0.0
        %3268 = vmatpush1.msra.mxu0 0.0
        %3269 = vmatprep.mubr.f32.mxu0 0.0
        %3270 = vmatmul.mubr.f32.gmra.mrb[0].mxu0 %v3200
        %v3271 = vpop.f32.mrb[0].mxu0
        %v3272 = vadd.f32 0.0, %v3271
        %v3273 = vpop.f32.mrb[0].mxu0
        %3274 = vmatprep.mubr.f32.mxu0 0.0
        %3275 = vmatmul.mubr.f32.gmra.mrb[0].mxu0 %v3203
        %v3276 = vpop.f32.mrb[0].mxu0
        %v3277 = vadd.f32 0.0, %v3276
        %v3278 = vpop.f32.mrb[0].mxu0
        %3279 = vdwg.mxu0
        %v3281 = vsel %vm1502, %v3100, 0
        %v3284 = vsel %vm1502, %v3105, 0
        %3286 = vmatprep.subr.mxu0 0.0
        %3287 = vmatpush1.msra.mxu0 %v3108
        %3288 = vmatprep.subr.mxu0 0.0
        %3289 = vmatpush1.msra.mxu0 %v3109
        %3290 = vmatprep.subr.mxu0 0.0
        %3291 = vmatpush1.msra.mxu0 %v3110
        %3292 = vmatprep.subr.mxu0 0.0
        %3293 = vmatpush1.msra.mxu0 0.0
        %3294 = vmatprep.subr.mxu0 0.0
        %3295 = vmatpush1.msra.mxu0 0.0
        %3296 = vmatprep.subr.mxu0 0.0
        %3297 = vmatpush1.msra.mxu0 0.0
        %3298 = vmatprep.subr.mxu0 0.0
        %3299 = vmatpush1.msra.mxu0 0.0
        %3300 = vmatprep.subr.mxu0 0.0
        %3301 = vmatpush1.msra.mxu0 0.0
        %3302 = vmatprep.subr.mxu0 0.0
        %3303 = vmatpush1.msra.mxu0 0.0
        %3304 = vmatprep.subr.mxu0 0.0
        %3305 = vmatpush1.msra.mxu0 0.0
        %3306 = vmatprep.subr.mxu0 0.0
        %3307 = vmatpush1.msra.mxu0 0.0
        %3308 = vmatprep.subr.mxu0 0.0
        %3309 = vmatpush1.msra.mxu0 0.0
        %3310 = vmatprep.subr.mxu0 0.0
        %3311 = vmatpush1.msra.mxu0 0.0
        %3312 = vmatprep.subr.mxu0 0.0
        %3313 = vmatpush1.msra.mxu0 0.0
        %3314 = vmatprep.subr.mxu0 0.0
        %3315 = vmatpush1.msra.mxu0 0.0
        %3316 = vmatprep.subr.mxu0 0.0
        %3317 = vmatpush1.msra.mxu0 0.0
        %3318 = vmatprep.subr.mxu0 0.0
        %3319 = vmatpush1.msra.mxu0 0.0
        %3320 = vmatprep.subr.mxu0 0.0
        %3321 = vmatpush1.msra.mxu0 0.0
        %3322 = vmatprep.subr.mxu0 0.0
        %3323 = vmatpush1.msra.mxu0 0.0
        %3324 = vmatprep.subr.mxu0 0.0
        %3325 = vmatpush1.msra.mxu0 0.0
        %3326 = vmatprep.subr.mxu0 0.0
        %3327 = vmatpush1.msra.mxu0 0.0
        %3328 = vmatprep.subr.mxu0 0.0
        %3329 = vmatpush1.msra.mxu0 0.0
        %3330 = vmatprep.subr.mxu0 0.0
        %3331 = vmatpush1.msra.mxu0 0.0
        %3332 = vmatprep.subr.mxu0 0.0
        %3333 = vmatpush1.msra.mxu0 0.0
        %3334 = vmatprep.subr.mxu0 0.0
        %3335 = vmatpush1.msra.mxu0 0.0
        %3336 = vmatprep.subr.mxu0 0.0
        %3337 = vmatpush1.msra.mxu0 0.0
        %3338 = vmatprep.subr.mxu0 0.0
        %3339 = vmatpush1.msra.mxu0 0.0
        %3340 = vmatprep.subr.mxu0 0.0
        %3341 = vmatpush1.msra.mxu0 0.0
        %3342 = vmatprep.subr.mxu0 0.0
        %3343 = vmatpush1.msra.mxu0 0.0
        %3344 = vmatprep.subr.mxu0 0.0
        %3345 = vmatpush1.msra.mxu0 0.0
        %3346 = vmatprep.subr.mxu0 0.0
        %3347 = vmatpush1.msra.mxu0 0.0
        %3348 = vmatprep.subr.mxu0 0.0
        %3349 = vmatpush1.msra.mxu0 0.0
        %3350 = vmatprep.mubr.f32.mxu0 0.0
        %3351 = vmatmul.mubr.f32.gmra.mrb[0].mxu0 %v3281
        %v3352 = vpop.f32.mrb[0].mxu0
        %v3353 = vadd.f32 %v3272, %v3352
        %v3354 = vpop.f32.mrb[0].mxu0
        %3355 = vmatprep.mubr.f32.mxu0 0.0
        %3356 = vmatmul.mubr.f32.gmra.mrb[0].mxu0 %v3284
        %v3357 = vpop.f32.mrb[0].mxu0
        %v3358 = vadd.f32 %v3277, %v3357
        %v3359 = vpop.f32.mrb[0].mxu0
        %3360 = vdwg.mxu0
        %s3361 = scalar_lea.vmem %s17, 32
        %v3362 = vld [vmem:[%s3361] sm:$0xff]
        %v3363 = vld [vmem:[%s3361 + $0x8] sm:$0xff]
        %v3365 = vsel %vm1325, %v3362, 0
        %v3368 = vsel %vm1325, %v3363, 0
        %3370 = vmatprep.subr.mxu0 0.0
        %3371 = vmatpush1.msra.mxu0 %v3014
        %3372 = vmatprep.subr.mxu0 0.0
        %3373 = vmatpush1.msra.mxu0 %v3031
        %3374 = vmatprep.subr.mxu0 0.0
        %3375 = vmatpush1.msra.mxu0 0.0
        %3376 = vmatprep.subr.mxu0 0.0
        %3377 = vmatpush1.msra.mxu0 0.0
        %3378 = vmatprep.subr.mxu0 0.0
        %3379 = vmatpush1.msra.mxu0 0.0
        %3380 = vmatprep.subr.mxu0 0.0
        %3381 = vmatpush1.msra.mxu0 0.0
        %3382 = vmatprep.subr.mxu0 0.0
        %3383 = vmatpush1.msra.mxu0 0.0
        %3384 = vmatprep.subr.mxu0 0.0
        %3385 = vmatpush1.msra.mxu0 0.0
        %3386 = vmatprep.subr.mxu0 0.0
        %3387 = vmatpush1.msra.mxu0 0.0
        %3388 = vmatprep.subr.mxu0 0.0
        %3389 = vmatpush1.msra.mxu0 0.0
        %3390 = vmatprep.subr.mxu0 0.0
        %3391 = vmatpush1.msra.mxu0 0.0
        %3392 = vmatprep.subr.mxu0 0.0
        %3393 = vmatpush1.msra.mxu0 0.0
        %3394 = vmatprep.subr.mxu0 0.0
        %3395 = vmatpush1.msra.mxu0 0.0
        %3396 = vmatprep.subr.mxu0 0.0
        %3397 = vmatpush1.msra.mxu0 0.0
        %3398 = vmatprep.subr.mxu0 0.0
        %3399 = vmatpush1.msra.mxu0 0.0
        %3400 = vmatprep.subr.mxu0 0.0
        %3401 = vmatpush1.msra.mxu0 0.0
        %3402 = vmatprep.subr.mxu0 0.0
        %3403 = vmatpush1.msra.mxu0 0.0
        %3404 = vmatprep.subr.mxu0 0.0
        %3405 = vmatpush1.msra.mxu0 0.0
        %3406 = vmatprep.subr.mxu0 0.0
        %3407 = vmatpush1.msra.mxu0 0.0
        %3408 = vmatprep.subr.mxu0 0.0
        %3409 = vmatpush1.msra.mxu0 0.0
        %3410 = vmatprep.subr.mxu0 0.0
        %3411 = vmatpush1.msra.mxu0 0.0
        %3412 = vmatprep.subr.mxu0 0.0
        %3413 = vmatpush1.msra.mxu0 0.0
        %3414 = vmatprep.subr.mxu0 0.0
        %3415 = vmatpush1.msra.mxu0 0.0
        %3416 = vmatprep.subr.mxu0 0.0
        %3417 = vmatpush1.msra.mxu0 0.0
        %3418 = vmatprep.subr.mxu0 0.0
        %3419 = vmatpush1.msra.mxu0 0.0
        %3420 = vmatprep.subr.mxu0 0.0
        %3421 = vmatpush1.msra.mxu0 0.0
        %3422 = vmatprep.subr.mxu0 0.0
        %3423 = vmatpush1.msra.mxu0 0.0
        %3424 = vmatprep.subr.mxu0 0.0
        %3425 = vmatpush1.msra.mxu0 0.0
        %3426 = vmatprep.subr.mxu0 0.0
        %3427 = vmatpush1.msra.mxu0 0.0
        %3428 = vmatprep.subr.mxu0 0.0
        %3429 = vmatpush1.msra.mxu0 0.0
        %3430 = vmatprep.subr.mxu0 0.0
        %3431 = vmatpush1.msra.mxu0 0.0
        %3432 = vmatprep.subr.mxu0 0.0
        %3433 = vmatpush1.msra.mxu0 0.0
        %3434 = vmatprep.mubr.f32.mxu0 0.0
        %3435 = vmatmul.mubr.f32.gmra.mrb[0].mxu0 %v3365
        %v3436 = vpop.f32.mrb[0].mxu0
        %v3437 = vadd.f32 0.0, %v3436
        %v3438 = vpop.f32.mrb[0].mxu0
        %3439 = vmatprep.mubr.f32.mxu0 0.0
        %3440 = vmatmul.mubr.f32.gmra.mrb[0].mxu0 %v3368
        %v3441 = vpop.f32.mrb[0].mxu0
        %v3442 = vadd.f32 0.0, %v3441
        %v3443 = vpop.f32.mrb[0].mxu0
        %3444 = vdwg.mxu0
        %s3445 = scalar_lea.vmem %s19, 48
        %v3446 = vld [vmem:[%s3445] sm:$0xff]
        %v3447 = vld [vmem:[%s3445 + $0x8] sm:$0xff]
        %v3448 = vld [vmem:[%s3445 + $0x10] sm:$0xff]
        %v3450 = vsel %vm1502, %v3437, 0
        %v3453 = vsel %vm1502, %v3442, 0
        %3455 = vmatprep.subr.mxu0 0.0
        %3456 = vmatpush1.msra.mxu0 %v3446
        %3457 = vmatprep.subr.mxu0 0.0
        %3458 = vmatpush1.msra.mxu0 %v3447
        %3459 = vmatprep.subr.mxu0 0.0
        %3460 = vmatpush1.msra.mxu0 %v3448
        %3461 = vmatprep.subr.mxu0 0.0
        %3462 = vmatpush1.msra.mxu0 0.0
        %3463 = vmatprep.subr.mxu0 0.0
        %3464 = vmatpush1.msra.mxu0 0.0
        %3465 = vmatprep.subr.mxu0 0.0
        %3466 = vmatpush1.msra.mxu0 0.0
        %3467 = vmatprep.subr.mxu0 0.0
        %3468 = vmatpush1.msra.mxu0 0.0
        %3469 = vmatprep.subr.mxu0 0.0
        %3470 = vmatpush1.msra.mxu0 0.0
        %3471 = vmatprep.subr.mxu0 0.0
        %3472 = vmatpush1.msra.mxu0 0.0
        %3473 = vmatprep.subr.mxu0 0.0
        %3474 = vmatpush1.msra.mxu0 0.0
        %3475 = vmatprep.subr.mxu0 0.0
        %3476 = vmatpush1.msra.mxu0 0.0
        %3477 = vmatprep.subr.mxu0 0.0
        %3478 = vmatpush1.msra.mxu0 0.0
        %3479 = vmatprep.subr.mxu0 0.0
        %3480 = vmatpush1.msra.mxu0 0.0
        %3481 = vmatprep.subr.mxu0 0.0
        %3482 = vmatpush1.msra.mxu0 0.0
        %3483 = vmatprep.subr.mxu0 0.0
        %3484 = vmatpush1.msra.mxu0 0.0
        %3485 = vmatprep.subr.mxu0 0.0
        %3486 = vmatpush1.msra.mxu0 0.0
        %3487 = vmatprep.subr.mxu0 0.0
        %3488 = vmatpush1.msra.mxu0 0.0
        %3489 = vmatprep.subr.mxu0 0.0
        %3490 = vmatpush1.msra.mxu0 0.0
        %3491 = vmatprep.subr.mxu0 0.0
        %3492 = vmatpush1.msra.mxu0 0.0
        %3493 = vmatprep.subr.mxu0 0.0
        %3494 = vmatpush1.msra.mxu0 0.0
        %3495 = vmatprep.subr.mxu0 0.0
        %3496 = vmatpush1.msra.mxu0 0.0
        %3497 = vmatprep.subr.mxu0 0.0
        %3498 = vmatpush1.msra.mxu0 0.0
        %3499 = vmatprep.subr.mxu0 0.0
        %3500 = vmatpush1.msra.mxu0 0.0
        %3501 = vmatprep.subr.mxu0 0.0
        %3502 = vmatpush1.msra.mxu0 0.0
        %3503 = vmatprep.subr.mxu0 0.0
        %3504 = vmatpush1.msra.mxu0 0.0
        %3505 = vmatprep.subr.mxu0 0.0
        %3506 = vmatpush1.msra.mxu0 0.0
        %3507 = vmatprep.subr.mxu0 0.0
        %3508 = vmatpush1.msra.mxu0 0.0
        %3509 = vmatprep.subr.mxu0 0.0
        %3510 = vmatpush1.msra.mxu0 0.0
        %3511 = vmatprep.subr.mxu0 0.0
        %3512 = vmatpush1.msra.mxu0 0.0
        %3513 = vmatprep.subr.mxu0 0.0
        %3514 = vmatpush1.msra.mxu0 0.0
        %3515 = vmatprep.subr.mxu0 0.0
        %3516 = vmatpush1.msra.mxu0 0.0
        %3517 = vmatprep.subr.mxu0 0.0
        %3518 = vmatpush1.msra.mxu0 0.0
        %3519 = vmatprep.mubr.f32.mxu0 0.0
        %3520 = vmatmul.mubr.f32.gmra.mrb[0].mxu0 %v3450
        %v3521 = vpop.f32.mrb[0].mxu0
        %v3522 = vadd.f32 0.0, %v3521
        %v3523 = vpop.f32.mrb[0].mxu0
        %3524 = vmatprep.mubr.f32.mxu0 0.0
        %3525 = vmatmul.mubr.f32.gmra.mrb[0].mxu0 %v3453
        %v3526 = vpop.f32.mrb[0].mxu0
        %v3527 = vadd.f32 0.0, %v3526
        %v3528 = vpop.f32.mrb[0].mxu0
        %3529 = vdwg.mxu0
        %v3530 = vadd.f32 %v3353, %v3522
        %v3531 = vadd.f32 %v3358, %v3527
        %s3532 = scalar_lea.vmem %s17, 48
        %v3533 = vld [vmem:[%s3532] sm:$0xff]
        %v3534 = vld [vmem:[%s3532 + $0x8] sm:$0xff]
        %v3536 = vsel %vm1325, %v3533, 0
        %v3539 = vsel %vm1325, %v3534, 0
        %3541 = vmatprep.subr.mxu0 0.0
        %3542 = vmatpush1.msra.mxu0 %v3014
        %3543 = vmatprep.subr.mxu0 0.0
        %3544 = vmatpush1.msra.mxu0 %v3031
        %3545 = vmatprep.subr.mxu0 0.0
        %3546 = vmatpush1.msra.mxu0 0.0
        %3547 = vmatprep.subr.mxu0 0.0
        %3548 = vmatpush1.msra.mxu0 0.0
        %3549 = vmatprep.subr.mxu0 0.0
        %3550 = vmatpush1.msra.mxu0 0.0
        %3551 = vmatprep.subr.mxu0 0.0
        %3552 = vmatpush1.msra.mxu0 0.0
        %3553 = vmatprep.subr.mxu0 0.0
        %3554 = vmatpush1.msra.mxu0 0.0
        %3555 = vmatprep.subr.mxu0 0.0
        %3556 = vmatpush1.msra.mxu0 0.0
        %3557 = vmatprep.subr.mxu0 0.0
        %3558 = vmatpush1.msra.mxu0 0.0
        %3559 = vmatprep.subr.mxu0 0.0
        %3560 = vmatpush1.msra.mxu0 0.0
        %3561 = vmatprep.subr.mxu0 0.0
        %3562 = vmatpush1.msra.mxu0 0.0
        %3563 = vmatprep.subr.mxu0 0.0
        %3564 = vmatpush1.msra.mxu0 0.0
        %3565 = vmatprep.subr.mxu0 0.0
        %3566 = vmatpush1.msra.mxu0 0.0
        %3567 = vmatprep.subr.mxu0 0.0
        %3568 = vmatpush1.msra.mxu0 0.0
        %3569 = vmatprep.subr.mxu0 0.0
        %3570 = vmatpush1.msra.mxu0 0.0
        %3571 = vmatprep.subr.mxu0 0.0
        %3572 = vmatpush1.msra.mxu0 0.0
        %3573 = vmatprep.subr.mxu0 0.0
        %3574 = vmatpush1.msra.mxu0 0.0
        %3575 = vmatprep.subr.mxu0 0.0
        %3576 = vmatpush1.msra.mxu0 0.0
        %3577 = vmatprep.subr.mxu0 0.0
        %3578 = vmatpush1.msra.mxu0 0.0
        %3579 = vmatprep.subr.mxu0 0.0
        %3580 = vmatpush1.msra.mxu0 0.0
        %3581 = vmatprep.subr.mxu0 0.0
        %3582 = vmatpush1.msra.mxu0 0.0
        %3583 = vmatprep.subr.mxu0 0.0
        %3584 = vmatpush1.msra.mxu0 0.0
        %3585 = vmatprep.subr.mxu0 0.0
        %3586 = vmatpush1.msra.mxu0 0.0
        %3587 = vmatprep.subr.mxu0 0.0
        %3588 = vmatpush1.msra.mxu0 0.0
        %3589 = vmatprep.subr.mxu0 0.0
        %3590 = vmatpush1.msra.mxu0 0.0
        %3591 = vmatprep.subr.mxu0 0.0
        %3592 = vmatpush1.msra.mxu0 0.0
        %3593 = vmatprep.subr.mxu0 0.0
        %3594 = vmatpush1.msra.mxu0 0.0
        %3595 = vmatprep.subr.mxu0 0.0
        %3596 = vmatpush1.msra.mxu0 0.0
        %3597 = vmatprep.subr.mxu0 0.0
        %3598 = vmatpush1.msra.mxu0 0.0
        %3599 = vmatprep.subr.mxu0 0.0
        %3600 = vmatpush1.msra.mxu0 0.0
        %3601 = vmatprep.subr.mxu0 0.0
        %3602 = vmatpush1.msra.mxu0 0.0
        %3603 = vmatprep.subr.mxu0 0.0
        %3604 = vmatpush1.msra.mxu0 0.0
        %3605 = vmatprep.mubr.f32.mxu0 0.0
        %3606 = vmatmul.mubr.f32.gmra.mrb[0].mxu0 %v3536
        %v3607 = vpop.f32.mrb[0].mxu0
        %v3608 = vadd.f32 0.0, %v3607
        %v3609 = vpop.f32.mrb[0].mxu0
        %3610 = vmatprep.mubr.f32.mxu0 0.0
        %3611 = vmatmul.mubr.f32.gmra.mrb[0].mxu0 %v3539
        %v3612 = vpop.f32.mrb[0].mxu0
        %v3613 = vadd.f32 0.0, %v3612
        %v3614 = vpop.f32.mrb[0].mxu0
        %3615 = vdwg.mxu0
        %s3616 = scalar_lea.vmem %s19, 72
        %v3617 = vld [vmem:[%s3616] sm:$0xff]
        %v3618 = vld [vmem:[%s3616 + $0x8] sm:$0xff]
        %v3619 = vld [vmem:[%s3616 + $0x10] sm:$0xff]
        %v3621 = vsel %vm1502, %v3608, 0
        %v3624 = vsel %vm1502, %v3613, 0
        %3626 = vmatprep.subr.mxu0 0.0
        %3627 = vmatpush1.msra.mxu0 %v3617
        %3628 = vmatprep.subr.mxu0 0.0
        %3629 = vmatpush1.msra.mxu0 %v3618
        %3630 = vmatprep.subr.mxu0 0.0
        %3631 = vmatpush1.msra.mxu0 %v3619
        %3632 = vmatprep.subr.mxu0 0.0
        %3633 = vmatpush1.msra.mxu0 0.0
        %3634 = vmatprep.subr.mxu0 0.0
        %3635 = vmatpush1.msra.mxu0 0.0
        %3636 = vmatprep.subr.mxu0 0.0
        %3637 = vmatpush1.msra.mxu0 0.0
        %3638 = vmatprep.subr.mxu0 0.0
        %3639 = vmatpush1.msra.mxu0 0.0
        %3640 = vmatprep.subr.mxu0 0.0
        %3641 = vmatpush1.msra.mxu0 0.0
        %3642 = vmatprep.subr.mxu0 0.0
        %3643 = vmatpush1.msra.mxu0 0.0
        %3644 = vmatprep.subr.mxu0 0.0
        %3645 = vmatpush1.msra.mxu0 0.0
        %3646 = vmatprep.subr.mxu0 0.0
        %3647 = vmatpush1.msra.mxu0 0.0
        %3648 = vmatprep.subr.mxu0 0.0
        %3649 = vmatpush1.msra.mxu0 0.0
        %3650 = vmatprep.subr.mxu0 0.0
        %3651 = vmatpush1.msra.mxu0 0.0
        %3652 = vmatprep.subr.mxu0 0.0
        %3653 = vmatpush1.msra.mxu0 0.0
        %3654 = vmatprep.subr.mxu0 0.0
        %3655 = vmatpush1.msra.mxu0 0.0
        %3656 = vmatprep.subr.mxu0 0.0
        %3657 = vmatpush1.msra.mxu0 0.0
        %3658 = vmatprep.subr.mxu0 0.0
        %3659 = vmatpush1.msra.mxu0 0.0
        %3660 = vmatprep.subr.mxu0 0.0
        %3661 = vmatpush1.msra.mxu0 0.0
        %3662 = vmatprep.subr.mxu0 0.0
        %3663 = vmatpush1.msra.mxu0 0.0
        %3664 = vmatprep.subr.mxu0 0.0
        %3665 = vmatpush1.msra.mxu0 0.0
        %3666 = vmatprep.subr.mxu0 0.0
        %3667 = vmatpush1.msra.mxu0 0.0
        %3668 = vmatprep.subr.mxu0 0.0
        %3669 = vmatpush1.msra.mxu0 0.0
        %3670 = vmatprep.subr.mxu0 0.0
        %3671 = vmatpush1.msra.mxu0 0.0
        %3672 = vmatprep.subr.mxu0 0.0
        %3673 = vmatpush1.msra.mxu0 0.0
        %3674 = vmatprep.subr.mxu0 0.0
        %3675 = vmatpush1.msra.mxu0 0.0
        %3676 = vmatprep.subr.mxu0 0.0
        %3677 = vmatpush1.msra.mxu0 0.0
        %3678 = vmatprep.subr.mxu0 0.0
        %3679 = vmatpush1.msra.mxu0 0.0
        %3680 = vmatprep.subr.mxu0 0.0
        %3681 = vmatpush1.msra.mxu0 0.0
        %3682 = vmatprep.subr.mxu0 0.0
        %3683 = vmatpush1.msra.mxu0 0.0
        %3684 = vmatprep.subr.mxu0 0.0
        %3685 = vmatpush1.msra.mxu0 0.0
        %3686 = vmatprep.subr.mxu0 0.0
        %3687 = vmatpush1.msra.mxu0 0.0
        %3688 = vmatprep.subr.mxu0 0.0
        %3689 = vmatpush1.msra.mxu0 0.0
        %3690 = vmatprep.mubr.f32.mxu0 0.0
        %3691 = vmatmul.mubr.f32.gmra.mrb[0].mxu0 %v3621
        %v3692 = vpop.f32.mrb[0].mxu0
        %v3693 = vadd.f32 0.0, %v3692
        %v3694 = vpop.f32.mrb[0].mxu0
        %3695 = vmatprep.mubr.f32.mxu0 0.0
        %3696 = vmatmul.mubr.f32.gmra.mrb[0].mxu0 %v3624
        %v3697 = vpop.f32.mrb[0].mxu0
        %v3698 = vadd.f32 0.0, %v3697
        %v3699 = vpop.f32.mrb[0].mxu0
        %3700 = vdwg.mxu0
        %v3701 = vadd.f32 %v3530, %v3693
        %v3702 = vadd.f32 %v3531, %v3698
        %s3703 = scalar_lea.vmem %s17, 64
        %v3704 = vld [vmem:[%s3703] sm:$0xff]
        %v3705 = vld [vmem:[%s3703 + $0x8] sm:$0xff]
        %v3707 = vsel %vm1325, %v3704, 0
        %v3710 = vsel %vm1325, %v3705, 0
        %3712 = vmatprep.subr.mxu0 0.0
        %3713 = vmatpush1.msra.mxu0 %v3014
        %3714 = vmatprep.subr.mxu0 0.0
        %3715 = vmatpush1.msra.mxu0 %v3031
        %3716 = vmatprep.subr.mxu0 0.0
        %3717 = vmatpush1.msra.mxu0 0.0
        %3718 = vmatprep.subr.mxu0 0.0
        %3719 = vmatpush1.msra.mxu0 0.0
        %3720 = vmatprep.subr.mxu0 0.0
        %3721 = vmatpush1.msra.mxu0 0.0
        %3722 = vmatprep.subr.mxu0 0.0
        %3723 = vmatpush1.msra.mxu0 0.0
        %3724 = vmatprep.subr.mxu0 0.0
        %3725 = vmatpush1.msra.mxu0 0.0
        %3726 = vmatprep.subr.mxu0 0.0
        %3727 = vmatpush1.msra.mxu0 0.0
        %3728 = vmatprep.subr.mxu0 0.0
        %3729 = vmatpush1.msra.mxu0 0.0
        %3730 = vmatprep.subr.mxu0 0.0
        %3731 = vmatpush1.msra.mxu0 0.0
        %3732 = vmatprep.subr.mxu0 0.0
        %3733 = vmatpush1.msra.mxu0 0.0
        %3734 = vmatprep.subr.mxu0 0.0
        %3735 = vmatpush1.msra.mxu0 0.0
        %3736 = vmatprep.subr.mxu0 0.0
        %3737 = vmatpush1.msra.mxu0 0.0
        %3738 = vmatprep.subr.mxu0 0.0
        %3739 = vmatpush1.msra.mxu0 0.0
        %3740 = vmatprep.subr.mxu0 0.0
        %3741 = vmatpush1.msra.mxu0 0.0
        %3742 = vmatprep.subr.mxu0 0.0
        %3743 = vmatpush1.msra.mxu0 0.0
        %3744 = vmatprep.subr.mxu0 0.0
        %3745 = vmatpush1.msra.mxu0 0.0
        %3746 = vmatprep.subr.mxu0 0.0
        %3747 = vmatpush1.msra.mxu0 0.0
        %3748 = vmatprep.subr.mxu0 0.0
        %3749 = vmatpush1.msra.mxu0 0.0
        %3750 = vmatprep.subr.mxu0 0.0
        %3751 = vmatpush1.msra.mxu0 0.0
        %3752 = vmatprep.subr.mxu0 0.0
        %3753 = vmatpush1.msra.mxu0 0.0
        %3754 = vmatprep.subr.mxu0 0.0
        %3755 = vmatpush1.msra.mxu0 0.0
        %3756 = vmatprep.subr.mxu0 0.0
        %3757 = vmatpush1.msra.mxu0 0.0
        %3758 = vmatprep.subr.mxu0 0.0
        %3759 = vmatpush1.msra.mxu0 0.0
        %3760 = vmatprep.subr.mxu0 0.0
        %3761 = vmatpush1.msra.mxu0 0.0
        %3762 = vmatprep.subr.mxu0 0.0
        %3763 = vmatpush1.msra.mxu0 0.0
        %3764 = vmatprep.subr.mxu0 0.0
        %3765 = vmatpush1.msra.mxu0 0.0
        %3766 = vmatprep.subr.mxu0 0.0
        %3767 = vmatpush1.msra.mxu0 0.0
        %3768 = vmatprep.subr.mxu0 0.0
        %3769 = vmatpush1.msra.mxu0 0.0
        %3770 = vmatprep.subr.mxu0 0.0
        %3771 = vmatpush1.msra.mxu0 0.0
        %3772 = vmatprep.subr.mxu0 0.0
        %3773 = vmatpush1.msra.mxu0 0.0
        %3774 = vmatprep.subr.mxu0 0.0
        %3775 = vmatpush1.msra.mxu0 0.0
        %3776 = vmatprep.mubr.f32.mxu0 0.0
        %3777 = vmatmul.mubr.f32.gmra.mrb[0].mxu0 %v3707
        %v3778 = vpop.f32.mrb[0].mxu0
        %v3779 = vadd.f32 0.0, %v3778
        %v3780 = vpop.f32.mrb[0].mxu0
        %3781 = vmatprep.mubr.f32.mxu0 0.0
        %3782 = vmatmul.mubr.f32.gmra.mrb[0].mxu0 %v3710
        %v3783 = vpop.f32.mrb[0].mxu0
        %v3784 = vadd.f32 0.0, %v3783
        %v3785 = vpop.f32.mrb[0].mxu0
        %3786 = vdwg.mxu0
        %s3787 = scalar_lea.vmem %s19, 96
        %v3788 = vld [vmem:[%s3787] sm:$0xff]
        %v3789 = vld [vmem:[%s3787 + $0x8] sm:$0xff]
        %v3790 = vld [vmem:[%s3787 + $0x10] sm:$0xff]
        %v3792 = vsel %vm1502, %v3779, 0
        %v3795 = vsel %vm1502, %v3784, 0
        %3797 = vmatprep.subr.mxu0 0.0
        %3798 = vmatpush1.msra.mxu0 %v3788
        %3799 = vmatprep.subr.mxu0 0.0
        %3800 = vmatpush1.msra.mxu0 %v3789
        %3801 = vmatprep.subr.mxu0 0.0
        %3802 = vmatpush1.msra.mxu0 %v3790
        %3803 = vmatprep.subr.mxu0 0.0
        %3804 = vmatpush1.msra.mxu0 0.0
        %3805 = vmatprep.subr.mxu0 0.0
        %3806 = vmatpush1.msra.mxu0 0.0
        %3807 = vmatprep.subr.mxu0 0.0
        %3808 = vmatpush1.msra.mxu0 0.0
        %3809 = vmatprep.subr.mxu0 0.0
        %3810 = vmatpush1.msra.mxu0 0.0
        %3811 = vmatprep.subr.mxu0 0.0
        %3812 = vmatpush1.msra.mxu0 0.0
        %3813 = vmatprep.subr.mxu0 0.0
        %3814 = vmatpush1.msra.mxu0 0.0
        %3815 = vmatprep.subr.mxu0 0.0
        %3816 = vmatpush1.msra.mxu0 0.0
        %3817 = vmatprep.subr.mxu0 0.0
        %3818 = vmatpush1.msra.mxu0 0.0
        %3819 = vmatprep.subr.mxu0 0.0
        %3820 = vmatpush1.msra.mxu0 0.0
        %3821 = vmatprep.subr.mxu0 0.0
        %3822 = vmatpush1.msra.mxu0 0.0
        %3823 = vmatprep.subr.mxu0 0.0
        %3824 = vmatpush1.msra.mxu0 0.0
        %3825 = vmatprep.subr.mxu0 0.0
        %3826 = vmatpush1.msra.mxu0 0.0
        %3827 = vmatprep.subr.mxu0 0.0
        %3828 = vmatpush1.msra.mxu0 0.0
        %3829 = vmatprep.subr.mxu0 0.0
        %3830 = vmatpush1.msra.mxu0 0.0
        %3831 = vmatprep.subr.mxu0 0.0
        %3832 = vmatpush1.msra.mxu0 0.0
        %3833 = vmatprep.subr.mxu0 0.0
        %3834 = vmatpush1.msra.mxu0 0.0
        %3835 = vmatprep.subr.mxu0 0.0
        %3836 = vmatpush1.msra.mxu0 0.0
        %3837 = vmatprep.subr.mxu0 0.0
        %3838 = vmatpush1.msra.mxu0 0.0
        %3839 = vmatprep.subr.mxu0 0.0
        %3840 = vmatpush1.msra.mxu0 0.0
        %3841 = vmatprep.subr.mxu0 0.0
        %3842 = vmatpush1.msra.mxu0 0.0
        %3843 = vmatprep.subr.mxu0 0.0
        %3844 = vmatpush1.msra.mxu0 0.0
        %3845 = vmatprep.subr.mxu0 0.0
        %3846 = vmatpush1.msra.mxu0 0.0
        %3847 = vmatprep.subr.mxu0 0.0
        %3848 = vmatpush1.msra.mxu0 0.0
        %3849 = vmatprep.subr.mxu0 0.0
        %3850 = vmatpush1.msra.mxu0 0.0
        %3851 = vmatprep.subr.mxu0 0.0
        %3852 = vmatpush1.msra.mxu0 0.0
        %3853 = vmatprep.subr.mxu0 0.0
        %3854 = vmatpush1.msra.mxu0 0.0
        %3855 = vmatprep.subr.mxu0 0.0
        %3856 = vmatpush1.msra.mxu0 0.0
        %3857 = vmatprep.subr.mxu0 0.0
        %3858 = vmatpush1.msra.mxu0 0.0
        %3859 = vmatprep.subr.mxu0 0.0
        %3860 = vmatpush1.msra.mxu0 0.0
        %3861 = vmatprep.mubr.f32.mxu0 0.0
        %3862 = vmatmul.mubr.f32.gmra.mrb[0].mxu0 %v3792
        %v3863 = vpop.f32.mrb[0].mxu0
        %v3864 = vadd.f32 0.0, %v3863
        %v3865 = vpop.f32.mrb[0].mxu0
        %3866 = vmatprep.mubr.f32.mxu0 0.0
        %3867 = vmatmul.mubr.f32.gmra.mrb[0].mxu0 %v3795
        %v3868 = vpop.f32.mrb[0].mxu0
        %v3869 = vadd.f32 0.0, %v3868
        %v3870 = vpop.f32.mrb[0].mxu0
        %3871 = vdwg.mxu0
        %v3872 = vadd.f32 %v3701, %v3864
        %v3873 = vadd.f32 %v3702, %v3869
        %s3874 = scalar_lea.vmem %s17, 80
        %v3875 = vld [vmem:[%s3874] sm:$0xff]
        %v3876 = vld [vmem:[%s3874 + $0x8] sm:$0xff]
        %v3878 = vsel %vm1325, %v3875, 0
        %v3881 = vsel %vm1325, %v3876, 0
        %3883 = vmatprep.subr.mxu0 0.0
        %3884 = vmatpush1.msra.mxu0 %v3014
        %3885 = vmatprep.subr.mxu0 0.0
        %3886 = vmatpush1.msra.mxu0 %v3031
        %3887 = vmatprep.subr.mxu0 0.0
        %3888 = vmatpush1.msra.mxu0 0.0
        %3889 = vmatprep.subr.mxu0 0.0
        %3890 = vmatpush1.msra.mxu0 0.0
        %3891 = vmatprep.subr.mxu0 0.0
        %3892 = vmatpush1.msra.mxu0 0.0
        %3893 = vmatprep.subr.mxu0 0.0
        %3894 = vmatpush1.msra.mxu0 0.0
        %3895 = vmatprep.subr.mxu0 0.0
        %3896 = vmatpush1.msra.mxu0 0.0
        %3897 = vmatprep.subr.mxu0 0.0
        %3898 = vmatpush1.msra.mxu0 0.0
        %3899 = vmatprep.subr.mxu0 0.0
        %3900 = vmatpush1.msra.mxu0 0.0
        %3901 = vmatprep.subr.mxu0 0.0
        %3902 = vmatpush1.msra.mxu0 0.0
        %3903 = vmatprep.subr.mxu0 0.0
        %3904 = vmatpush1.msra.mxu0 0.0
        %3905 = vmatprep.subr.mxu0 0.0
        %3906 = vmatpush1.msra.mxu0 0.0
        %3907 = vmatprep.subr.mxu0 0.0
        %3908 = vmatpush1.msra.mxu0 0.0
        %3909 = vmatprep.subr.mxu0 0.0
        %3910 = vmatpush1.msra.mxu0 0.0
        %3911 = vmatprep.subr.mxu0 0.0
        %3912 = vmatpush1.msra.mxu0 0.0
        %3913 = vmatprep.subr.mxu0 0.0
        %3914 = vmatpush1.msra.mxu0 0.0
        %3915 = vmatprep.subr.mxu0 0.0
        %3916 = vmatpush1.msra.mxu0 0.0
        %3917 = vmatprep.subr.mxu0 0.0
        %3918 = vmatpush1.msra.mxu0 0.0
        %3919 = vmatprep.subr.mxu0 0.0
        %3920 = vmatpush1.msra.mxu0 0.0
        %3921 = vmatprep.subr.mxu0 0.0
        %3922 = vmatpush1.msra.mxu0 0.0
        %3923 = vmatprep.subr.mxu0 0.0
        %3924 = vmatpush1.msra.mxu0 0.0
        %3925 = vmatprep.subr.mxu0 0.0
        %3926 = vmatpush1.msra.mxu0 0.0
        %3927 = vmatprep.subr.mxu0 0.0
        %3928 = vmatpush1.msra.mxu0 0.0
        %3929 = vmatprep.subr.mxu0 0.0
        %3930 = vmatpush1.msra.mxu0 0.0
        %3931 = vmatprep.subr.mxu0 0.0
        %3932 = vmatpush1.msra.mxu0 0.0
        %3933 = vmatprep.subr.mxu0 0.0
        %3934 = vmatpush1.msra.mxu0 0.0
        %3935 = vmatprep.subr.mxu0 0.0
        %3936 = vmatpush1.msra.mxu0 0.0
        %3937 = vmatprep.subr.mxu0 0.0
        %3938 = vmatpush1.msra.mxu0 0.0
        %3939 = vmatprep.subr.mxu0 0.0
        %3940 = vmatpush1.msra.mxu0 0.0
        %3941 = vmatprep.subr.mxu0 0.0
        %3942 = vmatpush1.msra.mxu0 0.0
        %3943 = vmatprep.subr.mxu0 0.0
        %3944 = vmatpush1.msra.mxu0 0.0
        %3945 = vmatprep.subr.mxu0 0.0
        %3946 = vmatpush1.msra.mxu0 0.0
        %3947 = vmatprep.mubr.f32.mxu0 0.0
        %3948 = vmatmul.mubr.f32.gmra.mrb[0].mxu0 %v3878
        %v3949 = vpop.f32.mrb[0].mxu0
        %v3950 = vadd.f32 0.0, %v3949
        %v3951 = vpop.f32.mrb[0].mxu0
        %3952 = vmatprep.mubr.f32.mxu0 0.0
        %3953 = vmatmul.mubr.f32.gmra.mrb[0].mxu0 %v3881
        %v3954 = vpop.f32.mrb[0].mxu0
        %v3955 = vadd.f32 0.0, %v3954
        %v3956 = vpop.f32.mrb[0].mxu0
        %3957 = vdwg.mxu0
        %s3958 = scalar_lea.vmem %s19, 120
        %v3959 = vld [vmem:[%s3958] sm:$0xff]
        %v3960 = vld [vmem:[%s3958 + $0x8] sm:$0xff]
        %v3961 = vld [vmem:[%s3958 + $0x10] sm:$0xff]
        %v3963 = vsel %vm1502, %v3950, 0
        %v3966 = vsel %vm1502, %v3955, 0
        %3968 = vmatprep.subr.mxu0 0.0
        %3969 = vmatpush1.msra.mxu0 %v3959
        %3970 = vmatprep.subr.mxu0 0.0
        %3971 = vmatpush1.msra.mxu0 %v3960
        %3972 = vmatprep.subr.mxu0 0.0
        %3973 = vmatpush1.msra.mxu0 %v3961
        %3974 = vmatprep.subr.mxu0 0.0
        %3975 = vmatpush1.msra.mxu0 0.0
        %3976 = vmatprep.subr.mxu0 0.0
        %3977 = vmatpush1.msra.mxu0 0.0
        %3978 = vmatprep.subr.mxu0 0.0
        %3979 = vmatpush1.msra.mxu0 0.0
        %3980 = vmatprep.subr.mxu0 0.0
        %3981 = vmatpush1.msra.mxu0 0.0
        %3982 = vmatprep.subr.mxu0 0.0
        %3983 = vmatpush1.msra.mxu0 0.0
        %3984 = vmatprep.subr.mxu0 0.0
        %3985 = vmatpush1.msra.mxu0 0.0
        %3986 = vmatprep.subr.mxu0 0.0
        %3987 = vmatpush1.msra.mxu0 0.0
        %3988 = vmatprep.subr.mxu0 0.0
        %3989 = vmatpush1.msra.mxu0 0.0
        %3990 = vmatprep.subr.mxu0 0.0
        %3991 = vmatpush1.msra.mxu0 0.0
        %3992 = vmatprep.subr.mxu0 0.0
        %3993 = vmatpush1.msra.mxu0 0.0
        %3994 = vmatprep.subr.mxu0 0.0
        %3995 = vmatpush1.msra.mxu0 0.0
        %3996 = vmatprep.subr.mxu0 0.0
        %3997 = vmatpush1.msra.mxu0 0.0
        %3998 = vmatprep.subr.mxu0 0.0
        %3999 = vmatpush1.msra.mxu0 0.0
        %4000 = vmatprep.subr.mxu0 0.0
        %4001 = vmatpush1.msra.mxu0 0.0
        %4002 = vmatprep.subr.mxu0 0.0
        %4003 = vmatpush1.msra.mxu0 0.0
        %4004 = vmatprep.subr.mxu0 0.0
        %4005 = vmatpush1.msra.mxu0 0.0
        %4006 = vmatprep.subr.mxu0 0.0
        %4007 = vmatpush1.msra.mxu0 0.0
        %4008 = vmatprep.subr.mxu0 0.0
        %4009 = vmatpush1.msra.mxu0 0.0
        %4010 = vmatprep.subr.mxu0 0.0
        %4011 = vmatpush1.msra.mxu0 0.0
        %4012 = vmatprep.subr.mxu0 0.0
        %4013 = vmatpush1.msra.mxu0 0.0
        %4014 = vmatprep.subr.mxu0 0.0
        %4015 = vmatpush1.msra.mxu0 0.0
        %4016 = vmatprep.subr.mxu0 0.0
        %4017 = vmatpush1.msra.mxu0 0.0
        %4018 = vmatprep.subr.mxu0 0.0
        %4019 = vmatpush1.msra.mxu0 0.0
        %4020 = vmatprep.subr.mxu0 0.0
        %4021 = vmatpush1.msra.mxu0 0.0
        %4022 = vmatprep.subr.mxu0 0.0
        %4023 = vmatpush1.msra.mxu0 0.0
        %4024 = vmatprep.subr.mxu0 0.0
        %4025 = vmatpush1.msra.mxu0 0.0
        %4026 = vmatprep.subr.mxu0 0.0
        %4027 = vmatpush1.msra.mxu0 0.0
        %4028 = vmatprep.subr.mxu0 0.0
        %4029 = vmatpush1.msra.mxu0 0.0
        %4030 = vmatprep.subr.mxu0 0.0
        %4031 = vmatpush1.msra.mxu0 0.0
        %4032 = vmatprep.mubr.f32.mxu0 0.0
        %4033 = vmatmul.mubr.f32.gmra.mrb[0].mxu0 %v3963
        %v4034 = vpop.f32.mrb[0].mxu0
        %v4035 = vadd.f32 0.0, %v4034
        %v4036 = vpop.f32.mrb[0].mxu0
        %4037 = vmatprep.mubr.f32.mxu0 0.0
        %4038 = vmatmul.mubr.f32.gmra.mrb[0].mxu0 %v3966
        %v4039 = vpop.f32.mrb[0].mxu0
        %v4040 = vadd.f32 0.0, %v4039
        %v4041 = vpop.f32.mrb[0].mxu0
        %4042 = vdwg.mxu0
        %v4043 = vadd.f32 %v3872, %v4035
        %v4044 = vadd.f32 %v3873, %v4040
        %s4045 = scalar_lea.vmem %s17, 96
        %v4046 = vld [vmem:[%s4045] sm:$0xff]
        %v4047 = vld [vmem:[%s4045 + $0x8] sm:$0xff]
        %v4049 = vsel %vm1325, %v4046, 0
        %v4052 = vsel %vm1325, %v4047, 0
        %4054 = vmatprep.subr.mxu0 0.0
        %4055 = vmatpush1.msra.mxu0 %v3014
        %4056 = vmatprep.subr.mxu0 0.0
        %4057 = vmatpush1.msra.mxu0 %v3031
        %4058 = vmatprep.subr.mxu0 0.0
        %4059 = vmatpush1.msra.mxu0 0.0
        %4060 = vmatprep.subr.mxu0 0.0
        %4061 = vmatpush1.msra.mxu0 0.0
        %4062 = vmatprep.subr.mxu0 0.0
        %4063 = vmatpush1.msra.mxu0 0.0
        %4064 = vmatprep.subr.mxu0 0.0
        %4065 = vmatpush1.msra.mxu0 0.0
        %4066 = vmatprep.subr.mxu0 0.0
        %4067 = vmatpush1.msra.mxu0 0.0
        %4068 = vmatprep.subr.mxu0 0.0
        %4069 = vmatpush1.msra.mxu0 0.0
        %4070 = vmatprep.subr.mxu0 0.0
        %4071 = vmatpush1.msra.mxu0 0.0
        %4072 = vmatprep.subr.mxu0 0.0
        %4073 = vmatpush1.msra.mxu0 0.0
        %4074 = vmatprep.subr.mxu0 0.0
        %4075 = vmatpush1.msra.mxu0 0.0
        %4076 = vmatprep.subr.mxu0 0.0
        %4077 = vmatpush1.msra.mxu0 0.0
        %4078 = vmatprep.subr.mxu0 0.0
        %4079 = vmatpush1.msra.mxu0 0.0
        %4080 = vmatprep.subr.mxu0 0.0
        %4081 = vmatpush1.msra.mxu0 0.0
        %4082 = vmatprep.subr.mxu0 0.0
        %4083 = vmatpush1.msra.mxu0 0.0
        %4084 = vmatprep.subr.mxu0 0.0
        %4085 = vmatpush1.msra.mxu0 0.0
        %4086 = vmatprep.subr.mxu0 0.0
        %4087 = vmatpush1.msra.mxu0 0.0
        %4088 = vmatprep.subr.mxu0 0.0
        %4089 = vmatpush1.msra.mxu0 0.0
        %4090 = vmatprep.subr.mxu0 0.0
        %4091 = vmatpush1.msra.mxu0 0.0
        %4092 = vmatprep.subr.mxu0 0.0
        %4093 = vmatpush1.msra.mxu0 0.0
        %4094 = vmatprep.subr.mxu0 0.0
        %4095 = vmatpush1.msra.mxu0 0.0
        %4096 = vmatprep.subr.mxu0 0.0
        %4097 = vmatpush1.msra.mxu0 0.0
        %4098 = vmatprep.subr.mxu0 0.0
        %4099 = vmatpush1.msra.mxu0 0.0
        %4100 = vmatprep.subr.mxu0 0.0
        %4101 = vmatpush1.msra.mxu0 0.0
        %4102 = vmatprep.subr.mxu0 0.0
        %4103 = vmatpush1.msra.mxu0 0.0
        %4104 = vmatprep.subr.mxu0 0.0
        %4105 = vmatpush1.msra.mxu0 0.0
        %4106 = vmatprep.subr.mxu0 0.0
        %4107 = vmatpush1.msra.mxu0 0.0
        %4108 = vmatprep.subr.mxu0 0.0
        %4109 = vmatpush1.msra.mxu0 0.0
        %4110 = vmatprep.subr.mxu0 0.0
        %4111 = vmatpush1.msra.mxu0 0.0
        %4112 = vmatprep.subr.mxu0 0.0
        %4113 = vmatpush1.msra.mxu0 0.0
        %4114 = vmatprep.subr.mxu0 0.0
        %4115 = vmatpush1.msra.mxu0 0.0
        %4116 = vmatprep.subr.mxu0 0.0
        %4117 = vmatpush1.msra.mxu0 0.0
        %4118 = vmatprep.mubr.f32.mxu0 0.0
        %4119 = vmatmul.mubr.f32.gmra.mrb[0].mxu0 %v4049
        %v4120 = vpop.f32.mrb[0].mxu0
        %v4121 = vadd.f32 0.0, %v4120
        %v4122 = vpop.f32.mrb[0].mxu0
        %4123 = vmatprep.mubr.f32.mxu0 0.0
        %4124 = vmatmul.mubr.f32.gmra.mrb[0].mxu0 %v4052
        %v4125 = vpop.f32.mrb[0].mxu0
        %v4126 = vadd.f32 0.0, %v4125
        %v4127 = vpop.f32.mrb[0].mxu0
        %4128 = vdwg.mxu0
        %s4129 = scalar_lea.vmem %s19, 144
        %v4130 = vld [vmem:[%s4129] sm:$0xff]
        %v4131 = vld [vmem:[%s4129 + $0x8] sm:$0xff]
        %v4132 = vld [vmem:[%s4129 + $0x10] sm:$0xff]
        %v4134 = vsel %vm1502, %v4121, 0
        %v4137 = vsel %vm1502, %v4126, 0
        %4139 = vmatprep.subr.mxu0 0.0
        %4140 = vmatpush1.msra.mxu0 %v4130
        %4141 = vmatprep.subr.mxu0 0.0
        %4142 = vmatpush1.msra.mxu0 %v4131
        %4143 = vmatprep.subr.mxu0 0.0
        %4144 = vmatpush1.msra.mxu0 %v4132
        %4145 = vmatprep.subr.mxu0 0.0
        %4146 = vmatpush1.msra.mxu0 0.0
        %4147 = vmatprep.subr.mxu0 0.0
        %4148 = vmatpush1.msra.mxu0 0.0
        %4149 = vmatprep.subr.mxu0 0.0
        %4150 = vmatpush1.msra.mxu0 0.0
        %4151 = vmatprep.subr.mxu0 0.0
        %4152 = vmatpush1.msra.mxu0 0.0
        %4153 = vmatprep.subr.mxu0 0.0
        %4154 = vmatpush1.msra.mxu0 0.0
        %4155 = vmatprep.subr.mxu0 0.0
        %4156 = vmatpush1.msra.mxu0 0.0
        %4157 = vmatprep.subr.mxu0 0.0
        %4158 = vmatpush1.msra.mxu0 0.0
        %4159 = vmatprep.subr.mxu0 0.0
        %4160 = vmatpush1.msra.mxu0 0.0
        %4161 = vmatprep.subr.mxu0 0.0
        %4162 = vmatpush1.msra.mxu0 0.0
        %4163 = vmatprep.subr.mxu0 0.0
        %4164 = vmatpush1.msra.mxu0 0.0
        %4165 = vmatprep.subr.mxu0 0.0
        %4166 = vmatpush1.msra.mxu0 0.0
        %4167 = vmatprep.subr.mxu0 0.0
        %4168 = vmatpush1.msra.mxu0 0.0
        %4169 = vmatprep.subr.mxu0 0.0
        %4170 = vmatpush1.msra.mxu0 0.0
        %4171 = vmatprep.subr.mxu0 0.0
        %4172 = vmatpush1.msra.mxu0 0.0
        %4173 = vmatprep.subr.mxu0 0.0
        %4174 = vmatpush1.msra.mxu0 0.0
        %4175 = vmatprep.subr.mxu0 0.0
        %4176 = vmatpush1.msra.mxu0 0.0
        %4177 = vmatprep.subr.mxu0 0.0
        %4178 = vmatpush1.msra.mxu0 0.0
        %4179 = vmatprep.subr.mxu0 0.0
        %4180 = vmatpush1.msra.mxu0 0.0
        %4181 = vmatprep.subr.mxu0 0.0
        %4182 = vmatpush1.msra.mxu0 0.0
        %4183 = vmatprep.subr.mxu0 0.0
        %4184 = vmatpush1.msra.mxu0 0.0
        %4185 = vmatprep.subr.mxu0 0.0
        %4186 = vmatpush1.msra.mxu0 0.0
        %4187 = vmatprep.subr.mxu0 0.0
        %4188 = vmatpush1.msra.mxu0 0.0
        %4189 = vmatprep.subr.mxu0 0.0
        %4190 = vmatpush1.msra.mxu0 0.0
        %4191 = vmatprep.subr.mxu0 0.0
        %4192 = vmatpush1.msra.mxu0 0.0
        %4193 = vmatprep.subr.mxu0 0.0
        %4194 = vmatpush1.msra.mxu0 0.0
        %4195 = vmatprep.subr.mxu0 0.0
        %4196 = vmatpush1.msra.mxu0 0.0
        %4197 = vmatprep.subr.mxu0 0.0
        %4198 = vmatpush1.msra.mxu0 0.0
        %4199 = vmatprep.subr.mxu0 0.0
        %4200 = vmatpush1.msra.mxu0 0.0
        %4201 = vmatprep.subr.mxu0 0.0
        %4202 = vmatpush1.msra.mxu0 0.0
        %4203 = vmatprep.mubr.f32.mxu0 0.0
        %4204 = vmatmul.mubr.f32.gmra.mrb[0].mxu0 %v4134
        %v4205 = vpop.f32.mrb[0].mxu0
        %v4206 = vadd.f32 0.0, %v4205
        %v4207 = vpop.f32.mrb[0].mxu0
        %4208 = vmatprep.mubr.f32.mxu0 0.0
        %4209 = vmatmul.mubr.f32.gmra.mrb[0].mxu0 %v4137
        %v4210 = vpop.f32.mrb[0].mxu0
        %v4211 = vadd.f32 0.0, %v4210
        %v4212 = vpop.f32.mrb[0].mxu0
        %4213 = vdwg.mxu0
        %v4214 = vadd.f32 %v4043, %v4206
        %v4215 = vadd.f32 %v4044, %v4211
        %s4216 = scalar_lea.vmem %s17, 112
        %v4217 = vld [vmem:[%s4216] sm:$0xff]
        %v4218 = vld [vmem:[%s4216 + $0x8] sm:$0xff]
        %v4220 = vsel %vm1325, %v4217, 0
        %v4223 = vsel %vm1325, %v4218, 0
        %4225 = vmatprep.subr.mxu0 0.0
        %4226 = vmatpush1.msra.mxu0 %v3014
        %4227 = vmatprep.subr.mxu0 0.0
        %4228 = vmatpush1.msra.mxu0 %v3031
        %4229 = vmatprep.subr.mxu0 0.0
        %4230 = vmatpush1.msra.mxu0 0.0
        %4231 = vmatprep.subr.mxu0 0.0
        %4232 = vmatpush1.msra.mxu0 0.0
        %4233 = vmatprep.subr.mxu0 0.0
        %4234 = vmatpush1.msra.mxu0 0.0
        %4235 = vmatprep.subr.mxu0 0.0
        %4236 = vmatpush1.msra.mxu0 0.0
        %4237 = vmatprep.subr.mxu0 0.0
        %4238 = vmatpush1.msra.mxu0 0.0
        %4239 = vmatprep.subr.mxu0 0.0
        %4240 = vmatpush1.msra.mxu0 0.0
        %4241 = vmatprep.subr.mxu0 0.0
        %4242 = vmatpush1.msra.mxu0 0.0
        %4243 = vmatprep.subr.mxu0 0.0
        %4244 = vmatpush1.msra.mxu0 0.0
        %4245 = vmatprep.subr.mxu0 0.0
        %4246 = vmatpush1.msra.mxu0 0.0
        %4247 = vmatprep.subr.mxu0 0.0
        %4248 = vmatpush1.msra.mxu0 0.0
        %4249 = vmatprep.subr.mxu0 0.0
        %4250 = vmatpush1.msra.mxu0 0.0
        %4251 = vmatprep.subr.mxu0 0.0
        %4252 = vmatpush1.msra.mxu0 0.0
        %4253 = vmatprep.subr.mxu0 0.0
        %4254 = vmatpush1.msra.mxu0 0.0
        %4255 = vmatprep.subr.mxu0 0.0
        %4256 = vmatpush1.msra.mxu0 0.0
        %4257 = vmatprep.subr.mxu0 0.0
        %4258 = vmatpush1.msra.mxu0 0.0
        %4259 = vmatprep.subr.mxu0 0.0
        %4260 = vmatpush1.msra.mxu0 0.0
        %4261 = vmatprep.subr.mxu0 0.0
        %4262 = vmatpush1.msra.mxu0 0.0
        %4263 = vmatprep.subr.mxu0 0.0
        %4264 = vmatpush1.msra.mxu0 0.0
        %4265 = vmatprep.subr.mxu0 0.0
        %4266 = vmatpush1.msra.mxu0 0.0
        %4267 = vmatprep.subr.mxu0 0.0
        %4268 = vmatpush1.msra.mxu0 0.0
        %4269 = vmatprep.subr.mxu0 0.0
        %4270 = vmatpush1.msra.mxu0 0.0
        %4271 = vmatprep.subr.mxu0 0.0
        %4272 = vmatpush1.msra.mxu0 0.0
        %4273 = vmatprep.subr.mxu0 0.0
        %4274 = vmatpush1.msra.mxu0 0.0
        %4275 = vmatprep.subr.mxu0 0.0
        %4276 = vmatpush1.msra.mxu0 0.0
        %4277 = vmatprep.subr.mxu0 0.0
        %4278 = vmatpush1.msra.mxu0 0.0
        %4279 = vmatprep.subr.mxu0 0.0
        %4280 = vmatpush1.msra.mxu0 0.0
        %4281 = vmatprep.subr.mxu0 0.0
        %4282 = vmatpush1.msra.mxu0 0.0
        %4283 = vmatprep.subr.mxu0 0.0
        %4284 = vmatpush1.msra.mxu0 0.0
        %4285 = vmatprep.subr.mxu0 0.0
        %4286 = vmatpush1.msra.mxu0 0.0
        %4287 = vmatprep.subr.mxu0 0.0
        %4288 = vmatpush1.msra.mxu0 0.0
        %4289 = vmatprep.mubr.f32.mxu0 0.0
        %4290 = vmatmul.mubr.f32.gmra.mrb[0].mxu0 %v4220
        %v4291 = vpop.f32.mrb[0].mxu0
        %v4292 = vadd.f32 0.0, %v4291
        %v4293 = vpop.f32.mrb[0].mxu0
        %4294 = vmatprep.mubr.f32.mxu0 0.0
        %4295 = vmatmul.mubr.f32.gmra.mrb[0].mxu0 %v4223
        %v4296 = vpop.f32.mrb[0].mxu0
        %v4297 = vadd.f32 0.0, %v4296
        %v4298 = vpop.f32.mrb[0].mxu0
        %4299 = vdwg.mxu0
        %s4300 = scalar_lea.vmem %s19, 168
        %v4301 = vld [vmem:[%s4300] sm:$0xff]
        %v4302 = vld [vmem:[%s4300 + $0x8] sm:$0xff]
        %v4303 = vld [vmem:[%s4300 + $0x10] sm:$0xff]
        %v4305 = vsel %vm1502, %v4292, 0
        %v4308 = vsel %vm1502, %v4297, 0
        %4310 = vmatprep.subr.mxu0 0.0
        %4311 = vmatpush1.msra.mxu0 %v4301
        %4312 = vmatprep.subr.mxu0 0.0
        %4313 = vmatpush1.msra.mxu0 %v4302
        %4314 = vmatprep.subr.mxu0 0.0
        %4315 = vmatpush1.msra.mxu0 %v4303
        %4316 = vmatprep.subr.mxu0 0.0
        %4317 = vmatpush1.msra.mxu0 0.0
        %4318 = vmatprep.subr.mxu0 0.0
        %4319 = vmatpush1.msra.mxu0 0.0
        %4320 = vmatprep.subr.mxu0 0.0
        %4321 = vmatpush1.msra.mxu0 0.0
        %4322 = vmatprep.subr.mxu0 0.0
        %4323 = vmatpush1.msra.mxu0 0.0
        %4324 = vmatprep.subr.mxu0 0.0
        %4325 = vmatpush1.msra.mxu0 0.0
        %4326 = vmatprep.subr.mxu0 0.0
        %4327 = vmatpush1.msra.mxu0 0.0
        %4328 = vmatprep.subr.mxu0 0.0
        %4329 = vmatpush1.msra.mxu0 0.0
        %4330 = vmatprep.subr.mxu0 0.0
        %4331 = vmatpush1.msra.mxu0 0.0
        %4332 = vmatprep.subr.mxu0 0.0
        %4333 = vmatpush1.msra.mxu0 0.0
        %4334 = vmatprep.subr.mxu0 0.0
        %4335 = vmatpush1.msra.mxu0 0.0
        %4336 = vmatprep.subr.mxu0 0.0
        %4337 = vmatpush1.msra.mxu0 0.0
        %4338 = vmatprep.subr.mxu0 0.0
        %4339 = vmatpush1.msra.mxu0 0.0
        %4340 = vmatprep.subr.mxu0 0.0
        %4341 = vmatpush1.msra.mxu0 0.0
        %4342 = vmatprep.subr.mxu0 0.0
        %4343 = vmatpush1.msra.mxu0 0.0
        %4344 = vmatprep.subr.mxu0 0.0
        %4345 = vmatpush1.msra.mxu0 0.0
        %4346 = vmatprep.subr.mxu0 0.0
        %4347 = vmatpush1.msra.mxu0 0.0
        %4348 = vmatprep.subr.mxu0 0.0
        %4349 = vmatpush1.msra.mxu0 0.0
        %4350 = vmatprep.subr.mxu0 0.0
        %4351 = vmatpush1.msra.mxu0 0.0
        %4352 = vmatprep.subr.mxu0 0.0
        %4353 = vmatpush1.msra.mxu0 0.0
        %4354 = vmatprep.subr.mxu0 0.0
        %4355 = vmatpush1.msra.mxu0 0.0
        %4356 = vmatprep.subr.mxu0 0.0
        %4357 = vmatpush1.msra.mxu0 0.0
        %4358 = vmatprep.subr.mxu0 0.0
        %4359 = vmatpush1.msra.mxu0 0.0
        %4360 = vmatprep.subr.mxu0 0.0
        %4361 = vmatpush1.msra.mxu0 0.0
        %4362 = vmatprep.subr.mxu0 0.0
        %4363 = vmatpush1.msra.mxu0 0.0
        %4364 = vmatprep.subr.mxu0 0.0
        %4365 = vmatpush1.msra.mxu0 0.0
        %4366 = vmatprep.subr.mxu0 0.0
        %4367 = vmatpush1.msra.mxu0 0.0
        %4368 = vmatprep.subr.mxu0 0.0
        %4369 = vmatpush1.msra.mxu0 0.0
        %4370 = vmatprep.subr.mxu0 0.0
        %4371 = vmatpush1.msra.mxu0 0.0
        %4372 = vmatprep.subr.mxu0 0.0
        %4373 = vmatpush1.msra.mxu0 0.0
        %4374 = vmatprep.mubr.f32.mxu0 0.0
        %4375 = vmatmul.mubr.f32.gmra.mrb[0].mxu0 %v4305
        %v4376 = vpop.f32.mrb[0].mxu0
        %v4377 = vadd.f32 0.0, %v4376
        %v4378 = vpop.f32.mrb[0].mxu0
        %4379 = vmatprep.mubr.f32.mxu0 0.0
        %4380 = vmatmul.mubr.f32.gmra.mrb[0].mxu0 %v4308
        %v4381 = vpop.f32.mrb[0].mxu0
        %v4382 = vadd.f32 0.0, %v4381
        %v4383 = vpop.f32.mrb[0].mxu0
        %4384 = vdwg.mxu0
        %v4385 = vadd.f32 %v4214, %v4377
        %v4386 = vadd.f32 %v4215, %v4382
        %vm4387 = vcmask 48128
        %v4388 = vsel %vm4387, %v4385, 0.0
        %4389 = vadd.xlane.f32.xlu0 %v4388
        %v4390 = vpop.xlane.xlu0 %4389
        %v4391 = vsel %vm4387, %v4386, 0.0
        %4392 = vadd.xlane.f32.xlu0 %v4391
        %v4393 = vpop.xlane.xlu0 %4392
        %v4394 = vrcp.pop 6.0
        %v4395 = vmul.f32 %v4390, %v4394
        %v4396 = vmul.f32 %v4393, %v4394
        %v4397 = vsub.f32 %v4385, %v4395
        %v4398 = vsub.f32 %v4386, %v4396
        %v4399 = vmul.f32 %v4397, %v4397
        %v4400 = vmul.f32 %v4398, %v4398
        %v4401 = vsel %vm4387, %v4399, 0.0
        %4402 = vadd.xlane.f32.xlu0 %v4401
        %v4403 = vpop.xlane.xlu0 %4402
        %v4404 = vsel %vm4387, %v4400, 0.0
        %4405 = vadd.xlane.f32.xlu0 %v4404
        %v4406 = vpop.xlane.xlu0 %4405
        %v4407 = vmul.f32 %v4403, %v4394
        %v4408 = vmul.f32 %v4406, %v4394
        %v4409 = vadd.f32 %v4407, 1e-05
        %v4410 = vadd.f32 %v4408, 1e-05
        %v4411 = vrsqrt.pop %v4409
        %v4412 = vrsqrt.pop %v4410
        %v4413 = vmul.f32 %v4397, %v4411
        %v4414 = vmul.f32 %v4398, %v4412
        %v4415 = vld [vmem:[%s25] sm:$0x1]
        %v4417 = vlaneseq
        %v4418 = vshrl.u32 %v4417, 7
        %v4419 = vsub.s32 0, %v4418
        %v4420 = vrot.slane %v4415, %v4419
        %v4422 = vmul.f32 %v4413, %v4420
        %v4423 = vmul.f32 %v4414, %v4420
        %v4424 = vld [vmem:[%s27] sm:$0x1]
        %v4426 = vlaneseq
        %v4427 = vshrl.u32 %v4426, 7
        %v4428 = vsub.s32 0, %v4427
        %v4429 = vrot.slane %v4424, %v4428
        %v4431 = vadd.f32 %v4422, %v4429
        %v4432 = vadd.f32 %v4423, %v4429
        %v4433 = vld [vmem:[%s29] sm:$0x7]
        %v4434 = vpack.c.bf16 %v4432, %v4431
        %v4435 = vld [vmem:[%s31] sm:$0x1]
        %v4437 = vlaneseq
        %v4438 = vshrl.u32 %v4437, 7
        %v4439 = vsub.s32 0, %v4438
        %v4440 = vrot.slane %v4435, %v4439
        %v4443 = vsel %vm4387, %v4434, 0
        %vm4445 = vcmask 1042432
        %v4447 = vsel %vm4445, %v4433, 0
        %4449 = vmatprep.subr.bf16.mxu0 0
        %4450 = vmatpush1.bf16.msra.mxu0 %v4447
        %4451 = vmatprep.subr.bf16.mxu0 0
        %4452 = vmatpush1.bf16.msra.mxu0 0
        %4453 = vmatprep.subr.bf16.mxu0 0
        %4454 = vmatpush1.bf16.msra.mxu0 0
        %4455 = vmatprep.subr.bf16.mxu0 0
        %4456 = vmatpush1.bf16.msra.mxu0 0
        %4457 = vmatprep.subr.bf16.mxu0 0
        %4458 = vmatpush1.bf16.msra.mxu0 0
        %4459 = vmatprep.subr.bf16.mxu0 0
        %4460 = vmatpush1.bf16.msra.mxu0 0
        %4461 = vmatprep.subr.bf16.mxu0 0
        %4462 = vmatpush1.bf16.msra.mxu0 0
        %4463 = vmatprep.subr.bf16.mxu0 0
        %4464 = vmatpush1.bf16.msra.mxu0 0
        %4465 = vmatprep.subr.bf16.mxu0 0
        %4466 = vmatpush1.bf16.msra.mxu0 0
        %4467 = vmatprep.subr.bf16.mxu0 0
        %4468 = vmatpush1.bf16.msra.mxu0 0
        %4469 = vmatprep.subr.bf16.mxu0 0
        %4470 = vmatpush1.bf16.msra.mxu0 0
        %4471 = vmatprep.subr.bf16.mxu0 0
        %4472 = vmatpush1.bf16.msra.mxu0 0
        %4473 = vmatprep.subr.bf16.mxu0 0
        %4474 = vmatpush1.bf16.msra.mxu0 0
        %4475 = vmatprep.subr.bf16.mxu0 0
        %4476 = vmatpush1.bf16.msra.mxu0 0
        %4477 = vmatprep.subr.bf16.mxu0 0
        %4478 = vmatpush1.bf16.msra.mxu0 0
        %4479 = vmatprep.subr.bf16.mxu0 0
        %4480 = vmatpush1.bf16.msra.mxu0 0
        %4481 = vmatprep.mubr.bf16.mxu0 0
        %4482 = vmatmul.mubr.bf16.gmra.mrb[0].mxu0 %v4443
        %v4483 = vpop.f32.mrb[0].mxu0
        %v4484 = vadd.f32 %v4440, %v4483
        %v4485 = vpop.f32.mrb[0].mxu0
        %v4486 = vpop.f32.mrb[0].mxu0
        %v4487 = vadd.f32 %v4440, %v4486
        %v4488 = vpop.f32.mrb[0].mxu0
        %4489 = vdwg.mxu0
        %vm4490 = vcmask 261120
        %v4491 = vsel %vm4490, %v4484, 0.0
        %4492 = vadd.xlane.f32.xlu0 %v4491
        %v4493 = vpop.xlane.xlu0 %4492
        %v4494 = vsel %vm4490, %v4487, 0.0
        %4495 = vadd.xlane.f32.xlu0 %v4494
        %v4496 = vpop.xlane.xlu0 %4495
        %v4497 = vrcp.pop 32.0
        %v4498 = vmul.f32 %v4493, %v4497
        %v4499 = vmul.f32 %v4496, %v4497
        %v4500 = vsub.f32 %v4484, %v4498
        %v4501 = vsub.f32 %v4487, %v4499
        %v4502 = vmul.f32 %v4500, %v4500
        %v4503 = vmul.f32 %v4501, %v4501
        %v4504 = vsel %vm4490, %v4502, 0.0
        %4505 = vadd.xlane.f32.xlu0 %v4504
        %v4506 = vpop.xlane.xlu0 %4505
        %v4507 = vsel %vm4490, %v4503, 0.0
        %4508 = vadd.xlane.f32.xlu0 %v4507
        %v4509 = vpop.xlane.xlu0 %4508
        %v4510 = vmul.f32 %v4506, %v4497
        %v4511 = vmul.f32 %v4509, %v4497
        %v4512 = vadd.f32 %v4510, 1e-05
        %v4513 = vadd.f32 %v4511, 1e-05
        %v4514 = vrsqrt.pop %v4512
        %v4515 = vrsqrt.pop %v4513
        %v4516 = vmul.f32 %v4500, %v4514
        %v4517 = vmul.f32 %v4501, %v4515
        %v4518 = vld [vmem:[%s33] sm:$0x1]
        %v4520 = vlaneseq
        %v4521 = vshrl.u32 %v4520, 7
        %v4522 = vsub.s32 0, %v4521
        %v4523 = vrot.slane %v4518, %v4522
        %v4525 = vmul.f32 %v4516, %v4523
        %v4526 = vmul.f32 %v4517, %v4523
        %v4527 = vld [vmem:[%s35] sm:$0x1]
        %v4529 = vlaneseq
        %v4530 = vshrl.u32 %v4529, 7
        %v4531 = vsub.s32 0, %v4530
        %v4532 = vrot.slane %v4527, %v4531
        %v4534 = vadd.f32 %v4525, %v4532
        %v4535 = vadd.f32 %v4526, %v4532
        %v4536 = vld [vmem:[%s23] sm:$0xff]
        %v4537 = vld [vmem:[%s23 + $0x8] sm:$0xff]
        %v4538 = vadd.f32 %v4534, %v4536
        %v4539 = vadd.f32 %v4535, %v4537
        %v4540 = vld [vmem:[%s21] sm:$0x1]
        %v4541 = vsel %vm4490, %v4538, 0.0
        %4542 = vadd.xlane.f32.xlu0 %v4541
        %v4543 = vpop.xlane.xlu0 %4542
        %v4544 = vsel %vm4490, %v4539, 0.0
        %4545 = vadd.xlane.f32.xlu0 %v4544
        %v4546 = vpop.xlane.xlu0 %4545
        %v4547 = vmul.f32 %v4543, %v4497
        %v4548 = vmul.f32 %v4546, %v4497
        %v4549 = vsub.f32 %v4538, %v4547
        %v4550 = vsub.f32 %v4539, %v4548
        %v4551 = vmul.f32 %v4549, %v4549
        %v4552 = vmul.f32 %v4550, %v4550
        %v4553 = vsel %vm4490, %v4551, 0.0
        %4554 = vadd.xlane.f32.xlu0 %v4553
        %v4555 = vpop.xlane.xlu0 %4554
        %v4556 = vsel %vm4490, %v4552, 0.0
        %4557 = vadd.xlane.f32.xlu0 %v4556
        %v4558 = vpop.xlane.xlu0 %4557
        %v4559 = vmul.f32 %v4555, %v4497
        %v4560 = vmul.f32 %v4558, %v4497
        %v4561 = vadd.f32 %v4559, 1e-05
        %v4562 = vadd.f32 %v4560, 1e-05
        %v4563 = vrsqrt.pop %v4561
        %v4564 = vrsqrt.pop %v4562
        %v4565 = vmul.f32 %v4549, %v4563
        %v4566 = vmul.f32 %v4550, %v4564
        %v4567 = vld [vmem:[%s37] sm:$0x1]
        %v4569 = vlaneseq
        %v4570 = vshrl.u32 %v4569, 7
        %v4571 = vsub.s32 0, %v4570
        %v4572 = vrot.slane %v4567, %v4571
        %v4574 = vmul.f32 %v4565, %v4572
        %v4575 = vmul.f32 %v4566, %v4572
        %v4576 = vld [vmem:[%s39] sm:$0x1]
        %v4578 = vlaneseq
        %v4579 = vshrl.u32 %v4578, 7
        %v4580 = vsub.s32 0, %v4579
        %v4581 = vrot.slane %v4576, %v4580
        %v4583 = vadd.f32 %v4574, %v4581
        %v4584 = vadd.f32 %v4575, %v4581
        %vm4585 = vcmask 253952
        %v4586 = vsel %vm4585, %v4540, 0.0
        %4587 = vadd.xlane.f32.xlu0 %v4586
        %v4588 = vpop.xlane.xlu0 %4587
        %v4589 = vmul.f32 %v4588, %v4497
        %v4590 = vsub.f32 %v4540, %v4589
        %v4591 = vmul.f32 %v4590, %v4590
        %v4592 = vsel %vm4585, %v4591, 0.0
        %4593 = vadd.xlane.f32.xlu0 %v4592
        %v4594 = vpop.xlane.xlu0 %4593
        %v4595 = vmul.f32 %v4594, %v4497
        %v4596 = vadd.f32 %v4595, 1e-05
        %v4597 = vrsqrt.pop %v4596
        %v4598 = vmul.f32 %v4590, %v4597
        %v4599 = vmul.f32 %v4598, %v4567
        %v4600 = vadd.f32 %v4599, %v4576
        %v4601 = vld [vmem:[%s41] sm:$0xf]
        %v4602 = vld [vmem:[%s41 + $0x4] sm:$0xf]
        %v4603 = vld [vmem:[%s41 + $0x8] sm:$0xf]
        %v4604 = vld [vmem:[%s41 + $0xc] sm:$0xf]
        %s4605 = scalar_lea.vmem %s41, 32
        %v4606 = vld [vmem:[%s4605] sm:$0xf]
        %v4607 = vld [vmem:[%s4605 + $0x4] sm:$0xf]
        %v4608 = vld [vmem:[%s4605 + $0x8] sm:$0xf]
        %v4609 = vld [vmem:[%s4605 + $0xc] sm:$0xf]
        %s4610 = scalar_lea.vmem %s41, 64
        %v4611 = vld [vmem:[%s4610] sm:$0xf]
        %v4612 = vld [vmem:[%s4610 + $0x4] sm:$0xf]
        %v4613 = vld [vmem:[%s4610 + $0x8] sm:$0xf]
        %v4614 = vld [vmem:[%s4610 + $0xc] sm:$0xf]
        %v4615 = vpack.c.bf16 %v4584, %v4583
        %v4620 = vunpack.c.l.b16 %v4601
        %v4621 = vunpack.c.l.b16 %v4602
        %v4622 = vunpack.c.l.b16 %v4603
        %v4623 = vunpack.c.l.b16 %v4604
        %v4624 = vpack.c.b16 %v4621, %v4620
        %v4625 = vpack.c.b16 %v4623, %v4622
        %v4629 = vsel %vm4490, %v4615, 0
        %4631 = vmatprep.subr.bf16.mxu0 0
        %4632 = vmatpush1.bf16.msra.mxu0 %v4624
        %4633 = vmatprep.subr.bf16.mxu0 0
        %4634 = vmatpush1.bf16.msra.mxu0 %v4625
        %4635 = vmatprep.subr.bf16.mxu0 0
        %4636 = vmatpush1.bf16.msra.mxu0 0
        %4637 = vmatprep.subr.bf16.mxu0 0
        %4638 = vmatpush1.bf16.msra.mxu0 0
        %4639 = vmatprep.subr.bf16.mxu0 0
        %4640 = vmatpush1.bf16.msra.mxu0 0
        %4641 = vmatprep.subr.bf16.mxu0 0
        %4642 = vmatpush1.bf16.msra.mxu0 0
        %4643 = vmatprep.subr.bf16.mxu0 0
        %4644 = vmatpush1.bf16.msra.mxu0 0
        %4645 = vmatprep.subr.bf16.mxu0 0
        %4646 = vmatpush1.bf16.msra.mxu0 0
        %4647 = vmatprep.subr.bf16.mxu0 0
        %4648 = vmatpush1.bf16.msra.mxu0 0
        %4649 = vmatprep.subr.bf16.mxu0 0
        %4650 = vmatpush1.bf16.msra.mxu0 0
        %4651 = vmatprep.subr.bf16.mxu0 0
        %4652 = vmatpush1.bf16.msra.mxu0 0
        %4653 = vmatprep.subr.bf16.mxu0 0
        %4654 = vmatpush1.bf16.msra.mxu0 0
        %4655 = vmatprep.subr.bf16.mxu0 0
        %4656 = vmatpush1.bf16.msra.mxu0 0
        %4657 = vmatprep.subr.bf16.mxu0 0
        %4658 = vmatpush1.bf16.msra.mxu0 0
        %4659 = vmatprep.subr.bf16.mxu0 0
        %4660 = vmatpush1.bf16.msra.mxu0 0
        %4661 = vmatprep.subr.bf16.mxu0 0
        %4662 = vmatpush1.bf16.msra.mxu0 0
        %4663 = vmatprep.mubr.bf16.mxu0 0
        %4664 = vmatmul.mubr.bf16.gmra.mrb[0].mxu0 %v4629
        %v4665 = vpop.f32.mrb[0].mxu0
        %v4666 = vadd.f32 0.0, %v4665
        %v4667 = vpop.f32.mrb[0].mxu0
        %v4668 = vpop.f32.mrb[0].mxu0
        %v4669 = vadd.f32 0.0, %v4668
        %v4670 = vpop.f32.mrb[0].mxu0
        %4671 = vdwg.mxu0
        %v4676 = vunpack.c.l.b16 %v4606
        %v4677 = vunpack.c.l.b16 %v4607
        %v4678 = vunpack.c.l.b16 %v4608
        %v4679 = vunpack.c.l.b16 %v4609
        %v4680 = vpack.c.b16 %v4677, %v4676
        %v4681 = vpack.c.b16 %v4679, %v4678
        %4684 = vmatprep.subr.bf16.mxu0 0
        %4685 = vmatpush1.bf16.msra.mxu0 %v4680
        %4686 = vmatprep.subr.bf16.mxu0 0
        %4687 = vmatpush1.bf16.msra.mxu0 %v4681
        %4688 = vmatprep.subr.bf16.mxu0 0
        %4689 = vmatpush1.bf16.msra.mxu0 0
        %4690 = vmatprep.subr.bf16.mxu0 0
        %4691 = vmatpush1.bf16.msra.mxu0 0
        %4692 = vmatprep.subr.bf16.mxu0 0
        %4693 = vmatpush1.bf16.msra.mxu0 0
        %4694 = vmatprep.subr.bf16.mxu0 0
        %4695 = vmatpush1.bf16.msra.mxu0 0
        %4696 = vmatprep.subr.bf16.mxu0 0
        %4697 = vmatpush1.bf16.msra.mxu0 0
        %4698 = vmatprep.subr.bf16.mxu0 0
        %4699 = vmatpush1.bf16.msra.mxu0 0
        %4700 = vmatprep.subr.bf16.mxu0 0
        %4701 = vmatpush1.bf16.msra.mxu0 0
        %4702 = vmatprep.subr.bf16.mxu0 0
        %4703 = vmatpush1.bf16.msra.mxu0 0
        %4704 = vmatprep.subr.bf16.mxu0 0
        %4705 = vmatpush1.bf16.msra.mxu0 0
        %4706 = vmatprep.subr.bf16.mxu0 0
        %4707 = vmatpush1.bf16.msra.mxu0 0
        %4708 = vmatprep.subr.bf16.mxu0 0
        %4709 = vmatpush1.bf16.msra.mxu0 0
        %4710 = vmatprep.subr.bf16.mxu0 0
        %4711 = vmatpush1.bf16.msra.mxu0 0
        %4712 = vmatprep.subr.bf16.mxu0 0
        %4713 = vmatpush1.bf16.msra.mxu0 0
        %4714 = vmatprep.subr.bf16.mxu0 0
        %4715 = vmatpush1.bf16.msra.mxu0 0
        %4716 = vmatprep.mubr.bf16.mxu0 0
        %4717 = vmatmul.mubr.bf16.gmra.mrb[0].mxu0 %v4629
        %v4718 = vpop.f32.mrb[0].mxu0
        %v4719 = vadd.f32 0.0, %v4718
        %v4720 = vpop.f32.mrb[0].mxu0
        %v4721 = vpop.f32.mrb[0].mxu0
        %v4722 = vadd.f32 0.0, %v4721
        %v4723 = vpop.f32.mrb[0].mxu0
        %4724 = vdwg.mxu0
        %v4729 = vunpack.c.l.b16 %v4611
        %v4730 = vunpack.c.l.b16 %v4612
        %v4731 = vunpack.c.l.b16 %v4613
        %v4732 = vunpack.c.l.b16 %v4614
        %v4733 = vpack.c.b16 %v4730, %v4729
        %v4734 = vpack.c.b16 %v4732, %v4731
        %4737 = vmatprep.subr.bf16.mxu0 0
        %4738 = vmatpush1.bf16.msra.mxu0 %v4733
        %4739 = vmatprep.subr.bf16.mxu0 0
        %4740 = vmatpush1.bf16.msra.mxu0 %v4734
        %4741 = vmatprep.subr.bf16.mxu0 0
        %4742 = vmatpush1.bf16.msra.mxu0 0
        %4743 = vmatprep.subr.bf16.mxu0 0
        %4744 = vmatpush1.bf16.msra.mxu0 0
        %4745 = vmatprep.subr.bf16.mxu0 0
        %4746 = vmatpush1.bf16.msra.mxu0 0
        %4747 = vmatprep.subr.bf16.mxu0 0
        %4748 = vmatpush1.bf16.msra.mxu0 0
        %4749 = vmatprep.subr.bf16.mxu0 0
        %4750 = vmatpush1.bf16.msra.mxu0 0
        %4751 = vmatprep.subr.bf16.mxu0 0
        %4752 = vmatpush1.bf16.msra.mxu0 0
        %4753 = vmatprep.subr.bf16.mxu0 0
        %4754 = vmatpush1.bf16.msra.mxu0 0
        %4755 = vmatprep.subr.bf16.mxu0 0
        %4756 = vmatpush1.bf16.msra.mxu0 0
        %4757 = vmatprep.subr.bf16.mxu0 0
        %4758 = vmatpush1.bf16.msra.mxu0 0
        %4759 = vmatprep.subr.bf16.mxu0 0
        %4760 = vmatpush1.bf16.msra.mxu0 0
        %4761 = vmatprep.subr.bf16.mxu0 0
        %4762 = vmatpush1.bf16.msra.mxu0 0
        %4763 = vmatprep.subr.bf16.mxu0 0
        %4764 = vmatpush1.bf16.msra.mxu0 0
        %4765 = vmatprep.subr.bf16.mxu0 0
        %4766 = vmatpush1.bf16.msra.mxu0 0
        %4767 = vmatprep.subr.bf16.mxu0 0
        %4768 = vmatpush1.bf16.msra.mxu0 0
        %4769 = vmatprep.mubr.bf16.mxu0 0
        %4770 = vmatmul.mubr.bf16.gmra.mrb[0].mxu0 %v4629
        %v4771 = vpop.f32.mrb[0].mxu0
        %v4772 = vadd.f32 0.0, %v4771
        %v4773 = vpop.f32.mrb[0].mxu0
        %v4774 = vpop.f32.mrb[0].mxu0
        %v4775 = vadd.f32 0.0, %v4774
        %v4776 = vpop.f32.mrb[0].mxu0
        %4777 = vdwg.mxu0
        %v4778 = vpack.c.bf16 %v4600, %v4600
        %v4780 = vsel %vm4490, %v4778, 0
        %4782 = vmatprep.subr.bf16.mxu0 0
        %4783 = vmatpush1.bf16.msra.mxu0 %v4624
        %4784 = vmatprep.subr.bf16.mxu0 0
        %4785 = vmatpush1.bf16.msra.mxu0 %v4625
        %4786 = vmatprep.subr.bf16.mxu0 0
        %4787 = vmatpush1.bf16.msra.mxu0 0
        %4788 = vmatprep.subr.bf16.mxu0 0
        %4789 = vmatpush1.bf16.msra.mxu0 0
        %4790 = vmatprep.subr.bf16.mxu0 0
        %4791 = vmatpush1.bf16.msra.mxu0 0
        %4792 = vmatprep.subr.bf16.mxu0 0
        %4793 = vmatpush1.bf16.msra.mxu0 0
        %4794 = vmatprep.subr.bf16.mxu0 0
        %4795 = vmatpush1.bf16.msra.mxu0 0
        %4796 = vmatprep.subr.bf16.mxu0 0
        %4797 = vmatpush1.bf16.msra.mxu0 0
        %4798 = vmatprep.subr.bf16.mxu0 0
        %4799 = vmatpush1.bf16.msra.mxu0 0
        %4800 = vmatprep.subr.bf16.mxu0 0
        %4801 = vmatpush1.bf16.msra.mxu0 0
        %4802 = vmatprep.subr.bf16.mxu0 0
        %4803 = vmatpush1.bf16.msra.mxu0 0
        %4804 = vmatprep.subr.bf16.mxu0 0
        %4805 = vmatpush1.bf16.msra.mxu0 0
        %4806 = vmatprep.subr.bf16.mxu0 0
        %4807 = vmatpush1.bf16.msra.mxu0 0
        %4808 = vmatprep.subr.bf16.mxu0 0
        %4809 = vmatpush1.bf16.msra.mxu0 0
        %4810 = vmatprep.subr.bf16.mxu0 0
        %4811 = vmatpush1.bf16.msra.mxu0 0
        %4812 = vmatprep.subr.bf16.mxu0 0
        %4813 = vmatpush1.bf16.msra.mxu0 0
        %4814 = vmatprep.mubr.bf16.mxu0 0
        %4815 = vmatmul.mubr.bf16.gmra.mrb[0].mxu0 %v4780
        %v4816 = vpop.f32.mrb[0].mxu0
        %v4817 = vadd.f32 0.0, %v4816
        %v4818 = vpop.f32.mrb[0].mxu0
        %v4819 = vpop.f32.mrb[0].mxu0
        %v4820 = vpop.f32.mrb[0].mxu0
        %4821 = vdwg.mxu0
        %4822 = vmatprep.subr.bf16.mxu0 0
        %4823 = vmatpush1.bf16.msra.mxu0 %v4680
        %4824 = vmatprep.subr.bf16.mxu0 0
        %4825 = vmatpush1.bf16.msra.mxu0 %v4681
        %4826 = vmatprep.subr.bf16.mxu0 0
        %4827 = vmatpush1.bf16.msra.mxu0 0
        %4828 = vmatprep.subr.bf16.mxu0 0
        %4829 = vmatpush1.bf16.msra.mxu0 0
        %4830 = vmatprep.subr.bf16.mxu0 0
        %4831 = vmatpush1.bf16.msra.mxu0 0
        %4832 = vmatprep.subr.bf16.mxu0 0
        %4833 = vmatpush1.bf16.msra.mxu0 0
        %4834 = vmatprep.subr.bf16.mxu0 0
        %4835 = vmatpush1.bf16.msra.mxu0 0
        %4836 = vmatprep.subr.bf16.mxu0 0
        %4837 = vmatpush1.bf16.msra.mxu0 0
        %4838 = vmatprep.subr.bf16.mxu0 0
        %4839 = vmatpush1.bf16.msra.mxu0 0
        %4840 = vmatprep.subr.bf16.mxu0 0
        %4841 = vmatpush1.bf16.msra.mxu0 0
        %4842 = vmatprep.subr.bf16.mxu0 0
        %4843 = vmatpush1.bf16.msra.mxu0 0
        %4844 = vmatprep.subr.bf16.mxu0 0
        %4845 = vmatpush1.bf16.msra.mxu0 0
        %4846 = vmatprep.subr.bf16.mxu0 0
        %4847 = vmatpush1.bf16.msra.mxu0 0
        %4848 = vmatprep.subr.bf16.mxu0 0
        %4849 = vmatpush1.bf16.msra.mxu0 0
        %4850 = vmatprep.subr.bf16.mxu0 0
        %4851 = vmatpush1.bf16.msra.mxu0 0
        %4852 = vmatprep.subr.bf16.mxu0 0
        %4853 = vmatpush1.bf16.msra.mxu0 0
        %4854 = vmatprep.mubr.bf16.mxu0 0
        %4855 = vmatmul.mubr.bf16.gmra.mrb[0].mxu0 %v4780
        %v4856 = vpop.f32.mrb[0].mxu0
        %v4857 = vadd.f32 0.0, %v4856
        %v4858 = vpop.f32.mrb[0].mxu0
        %v4859 = vpop.f32.mrb[0].mxu0
        %v4860 = vpop.f32.mrb[0].mxu0
        %4861 = vdwg.mxu0
        %4862 = vmatprep.subr.bf16.mxu0 0
        %4863 = vmatpush1.bf16.msra.mxu0 %v4733
        %4864 = vmatprep.subr.bf16.mxu0 0
        %4865 = vmatpush1.bf16.msra.mxu0 %v4734
        %4866 = vmatprep.subr.bf16.mxu0 0
        %4867 = vmatpush1.bf16.msra.mxu0 0
        %4868 = vmatprep.subr.bf16.mxu0 0
        %4869 = vmatpush1.bf16.msra.mxu0 0
        %4870 = vmatprep.subr.bf16.mxu0 0
        %4871 = vmatpush1.bf16.msra.mxu0 0
        %4872 = vmatprep.subr.bf16.mxu0 0
        %4873 = vmatpush1.bf16.msra.mxu0 0
        %4874 = vmatprep.subr.bf16.mxu0 0
        %4875 = vmatpush1.bf16.msra.mxu0 0
        %4876 = vmatprep.subr.bf16.mxu0 0
        %4877 = vmatpush1.bf16.msra.mxu0 0
        %4878 = vmatprep.subr.bf16.mxu0 0
        %4879 = vmatpush1.bf16.msra.mxu0 0
        %4880 = vmatprep.subr.bf16.mxu0 0
        %4881 = vmatpush1.bf16.msra.mxu0 0
        %4882 = vmatprep.subr.bf16.mxu0 0
        %4883 = vmatpush1.bf16.msra.mxu0 0
        %4884 = vmatprep.subr.bf16.mxu0 0
        %4885 = vmatpush1.bf16.msra.mxu0 0
        %4886 = vmatprep.subr.bf16.mxu0 0
        %4887 = vmatpush1.bf16.msra.mxu0 0
        %4888 = vmatprep.subr.bf16.mxu0 0
        %4889 = vmatpush1.bf16.msra.mxu0 0
        %4890 = vmatprep.subr.bf16.mxu0 0
        %4891 = vmatpush1.bf16.msra.mxu0 0
        %4892 = vmatprep.subr.bf16.mxu0 0
        %4893 = vmatpush1.bf16.msra.mxu0 0
        %4894 = vmatprep.mubr.bf16.mxu0 0
        %4895 = vmatmul.mubr.bf16.gmra.mrb[0].mxu0 %v4780
        %v4896 = vpop.f32.mrb[0].mxu0
        %v4897 = vadd.f32 0.0, %v4896
        %v4898 = vpop.f32.mrb[0].mxu0
        %v4899 = vpop.f32.mrb[0].mxu0
        %v4900 = vpop.f32.mrb[0].mxu0
        %4901 = vdwg.mxu0
        %v4902 = vld [vmem:[%s43] sm:$0xf]
        %v4903 = vld [vmem:[%s43 + $0x4] sm:$0xf]
        %v4904 = vpack.c.bf16 %v4669, %v4666
        %v4905 = vpack.c.bf16 %v4722, %v4719
        %vm4906 = vcmask 130048
        %v4908 = vsel %vm4906, %v4904, 0
        %v4911 = vsel %vm4906, %v4905, 0
        %4913 = vmatprep.subr.bf16.mxu0 0
        %4914 = vmatpush1.bf16.xpose.msra.mxu0 %v4911
        %4915 = vmatprep.subr.bf16.mxu0 0
        %4916 = vmatpush1.bf16.xpose.msra.mxu0 0
        %4917 = vmatprep.subr.bf16.mxu0 0
        %4918 = vmatpush1.bf16.xpose.msra.mxu0 0
        %4919 = vmatprep.subr.bf16.mxu0 0
        %4920 = vmatpush1.bf16.xpose.msra.mxu0 0
        %4921 = vmatprep.subr.bf16.mxu0 0
        %4922 = vmatpush1.bf16.xpose.msra.mxu0 0
        %4923 = vmatprep.subr.bf16.mxu0 0
        %4924 = vmatpush1.bf16.xpose.msra.mxu0 0
        %4925 = vmatprep.subr.bf16.mxu0 0
        %4926 = vmatpush1.bf16.xpose.msra.mxu0 0
        %4927 = vmatprep.subr.bf16.mxu0 0
        %4928 = vmatpush1.bf16.xpose.msra.mxu0 0
        %4929 = vmatprep.subr.bf16.mxu0 0
        %4930 = vmatpush1.bf16.xpose.msra.mxu0 0
        %4931 = vmatprep.subr.bf16.mxu0 0
        %4932 = vmatpush1.bf16.xpose.msra.mxu0 0
        %4933 = vmatprep.subr.bf16.mxu0 0
        %4934 = vmatpush1.bf16.xpose.msra.mxu0 0
        %4935 = vmatprep.subr.bf16.mxu0 0
        %4936 = vmatpush1.bf16.xpose.msra.mxu0 0
        %4937 = vmatprep.subr.bf16.mxu0 0
        %4938 = vmatpush1.bf16.xpose.msra.mxu0 0
        %4939 = vmatprep.subr.bf16.mxu0 0
        %4940 = vmatpush1.bf16.xpose.msra.mxu0 0
        %4941 = vmatprep.subr.bf16.mxu0 0
        %4942 = vmatpush1.bf16.xpose.msra.mxu0 0
        %4943 = vmatprep.subr.bf16.mxu0 0
        %4944 = vmatpush1.bf16.xpose.msra.mxu0 0
        %4945 = vmatprep.mubr.bf16.mxu0 0
        %4946 = vmatmul.mubr.bf16.gmra.mrb[0].mxu0 %v4908
        %v4947 = vpop.f32.mrb[0].mxu0
        %v4948 = vadd.f32 0.0, %v4947
        %v4949 = vpop.f32.mrb[0].mxu0
        %v4950 = vpop.f32.mrb[0].mxu0
        %v4951 = vadd.f32 0.0, %v4950
        %v4952 = vpop.f32.mrb[0].mxu0
        %4953 = vdwg.mxu0
        %v4954 = vmul.f32 %v4948, 0.25
        %v4955 = vmul.f32 %v4951, 0.25
        %v4956 = vlaneseq
        %v4957 = vshrl.u32 %v4956, 7
        %v4958 = vsub.s32 0, %v4957
        %v4959 = vrot.slane %v4857, %v4958
        %v4960 = vmul.f32 %v4666, %v4959
        %v4961 = vmul.f32 %v4669, %v4959
        %v4962 = vsel %vm4906, %v4960, 0.0
        %4963 = vadd.xlane.f32.xlu0 %v4962
        %v4964 = vpop.xlane.xlu0 %4963
        %v4965 = vsel %vm4906, %v4961, 0.0
        %4966 = vadd.xlane.f32.xlu0 %v4965
        %v4967 = vpop.xlane.xlu0 %4966
        %v4968 = vmul.f32 %v4964, 0.25
        %v4969 = vmul.f32 %v4967, 0.25
        %v4970 = vsel %vm4906, %v4954, -inf
        %4971 = vmax.xlane.f32.xlu0 %v4970
        %v4972 = vpop.xlane.xlu0 %4971
        %v4973 = vsel %vm4906, %v4955, -inf
        %4974 = vmax.xlane.f32.xlu0 %v4973
        %v4975 = vpop.xlane.xlu0 %4974
        %v4976 = vmax.f32 %v4972, %v4968
        %v4977 = vmax.f32 %v4975, %v4969
        %v4978 = vsub.f32 %v4954, %v4976
        %v4979 = vsub.f32 %v4955, %v4977
        %v4980 = vmul.f32 %v4978, 1.442695
        %v4981 = vpow.pop %v4980
        %v4982 = vmul.f32 %v4979, 1.442695
        %v4983 = vpow.pop %v4982
        %v4984 = vsub.f32 %v4968, %v4976
        %v4985 = vsub.f32 %v4969, %v4977
        %v4986 = vmul.f32 %v4984, 1.442695
        %v4987 = vpow.pop %v4986
        %v4988 = vmul.f32 %v4985, 1.442695
        %v4989 = vpow.pop %v4988
        %v4990 = vsel %vm4906, %v4981, 0.0
        %4991 = vadd.xlane.f32.xlu0 %v4990
        %v4992 = vpop.xlane.xlu0 %4991
        %v4993 = vsel %vm4906, %v4983, 0.0
        %4994 = vadd.xlane.f32.xlu0 %v4993
        %v4995 = vpop.xlane.xlu0 %4994
        %v4996 = vadd.f32 %v4992, %v4987
        %v4997 = vadd.f32 %v4995, %v4989
        %v4998 = vrcp.pop %v4996
        %v4999 = vrcp.pop %v4997
        %v5000 = vmul.f32 %v4981, %v4998
        %v5001 = vmul.f32 %v4983, %v4999
        %v5002 = vpack.c.bf16 %v5001, %v5000
        %v5003 = vpack.c.bf16 %v4775, %v4772
        %v5004 = vmul.f32 %v4987, %v4998
        %v5005 = vmul.f32 %v4989, %v4999
        %v5006 = vlaneseq
        %v5007 = vshrl.u32 %v5006, 7
        %v5008 = vsub.s32 0, %v5007
        %v5009 = vrot.slane %v4897, %v5008
        %v5010 = vmul.f32 %v5004, %v5009
        %v5011 = vmul.f32 %v5005, %v5009
        %v5013 = vsel %vm4906, %v5002, 0
        %5015 = vmatprep.subr.bf16.mxu0 0
        %5016 = vmatpush1.bf16.msra.mxu0 %v5003
        %5017 = vmatprep.subr.bf16.mxu0 0
        %5018 = vmatpush1.bf16.msra.mxu0 0
        %5019 = vmatprep.subr.bf16.mxu0 0
        %5020 = vmatpush1.bf16.msra.mxu0 0
        %5021 = vmatprep.subr.bf16.mxu0 0
        %5022 = vmatpush1.bf16.msra.mxu0 0
        %5023 = vmatprep.subr.bf16.mxu0 0
        %5024 = vmatpush1.bf16.msra.mxu0 0
        %5025 = vmatprep.subr.bf16.mxu0 0
        %5026 = vmatpush1.bf16.msra.mxu0 0
        %5027 = vmatprep.subr.bf16.mxu0 0
        %5028 = vmatpush1.bf16.msra.mxu0 0
        %5029 = vmatprep.subr.bf16.mxu0 0
        %5030 = vmatpush1.bf16.msra.mxu0 0
        %5031 = vmatprep.subr.bf16.mxu0 0
        %5032 = vmatpush1.bf16.msra.mxu0 0
        %5033 = vmatprep.subr.bf16.mxu0 0
        %5034 = vmatpush1.bf16.msra.mxu0 0
        %5035 = vmatprep.subr.bf16.mxu0 0
        %5036 = vmatpush1.bf16.msra.mxu0 0
        %5037 = vmatprep.subr.bf16.mxu0 0
        %5038 = vmatpush1.bf16.msra.mxu0 0
        %5039 = vmatprep.subr.bf16.mxu0 0
        %5040 = vmatpush1.bf16.msra.mxu0 0
        %5041 = vmatprep.subr.bf16.mxu0 0
        %5042 = vmatpush1.bf16.msra.mxu0 0
        %5043 = vmatprep.subr.bf16.mxu0 0
        %5044 = vmatpush1.bf16.msra.mxu0 0
        %5045 = vmatprep.subr.bf16.mxu0 0
        %5046 = vmatpush1.bf16.msra.mxu0 0
        %5047 = vmatprep.mubr.bf16.mxu0 0
        %5048 = vmatmul.mubr.bf16.gmra.mrb[0].mxu0 %v5013
        %v5049 = vpop.f32.mrb[0].mxu0
        %v5050 = vadd.f32 %v5010, %v5049
        %v5051 = vpop.f32.mrb[0].mxu0
        %v5052 = vpop.f32.mrb[0].mxu0
        %v5053 = vadd.f32 %v5011, %v5052
        %v5054 = vpop.f32.mrb[0].mxu0
        %5055 = vdwg.mxu0
        %v5056 = vpack.c.bf16 %v5053, %v5050
        %v5057 = vpack.c.bf16 %v4817, %v4817
        %v5059 = vsel %vm4906, %v5057, 0
        %5061 = vmatprep.subr.bf16.mxu0 0
        %5062 = vmatpush1.bf16.xpose.msra.mxu0 %v4911
        %5063 = vmatprep.subr.bf16.mxu0 0
        %5064 = vmatpush1.bf16.xpose.msra.mxu0 0
        %5065 = vmatprep.subr.bf16.mxu0 0
        %5066 = vmatpush1.bf16.xpose.msra.mxu0 0
        %5067 = vmatprep.subr.bf16.mxu0 0
        %5068 = vmatpush1.bf16.xpose.msra.mxu0 0
        %5069 = vmatprep.subr.bf16.mxu0 0
        %5070 = vmatpush1.bf16.xpose.msra.mxu0 0
        %5071 = vmatprep.subr.bf16.mxu0 0
        %5072 = vmatpush1.bf16.xpose.msra.mxu0 0
        %5073 = vmatprep.subr.bf16.mxu0 0
        %5074 = vmatpush1.bf16.xpose.msra.mxu0 0
        %5075 = vmatprep.subr.bf16.mxu0 0
        %5076 = vmatpush1.bf16.xpose.msra.mxu0 0
        %5077 = vmatprep.subr.bf16.mxu0 0
        %5078 = vmatpush1.bf16.xpose.msra.mxu0 0
        %5079 = vmatprep.subr.bf16.mxu0 0
        %5080 = vmatpush1.bf16.xpose.msra.mxu0 0
        %5081 = vmatprep.subr.bf16.mxu0 0
        %5082 = vmatpush1.bf16.xpose.msra.mxu0 0
        %5083 = vmatprep.subr.bf16.mxu0 0
        %5084 = vmatpush1.bf16.xpose.msra.mxu0 0
        %5085 = vmatprep.subr.bf16.mxu0 0
        %5086 = vmatpush1.bf16.xpose.msra.mxu0 0
        %5087 = vmatprep.subr.bf16.mxu0 0
        %5088 = vmatpush1.bf16.xpose.msra.mxu0 0
        %5089 = vmatprep.subr.bf16.mxu0 0
        %5090 = vmatpush1.bf16.xpose.msra.mxu0 0
        %5091 = vmatprep.subr.bf16.mxu0 0
        %5092 = vmatpush1.bf16.xpose.msra.mxu0 0
        %5093 = vmatprep.mubr.bf16.mxu0 0
        %5094 = vmatmul.mubr.bf16.gmra.mrb[0].mxu0 %v5059
        %v5095 = vpop.f32.mrb[0].mxu0
        %v5096 = vadd.f32 0.0, %v5095
        %v5097 = vpop.f32.mrb[0].mxu0
        %v5098 = vpop.f32.mrb[0].mxu0
        %v5099 = vpop.f32.mrb[0].mxu0
        %5100 = vdwg.mxu0
        %v5101 = vmul.f32 %v5096, 0.25
        %v5102 = vmul.f32 %v4817, %v4857
        %vm5103 = vcmask 122880
        %v5104 = vsel %vm5103, %v5102, 0.0
        %5105 = vadd.xlane.f32.xlu0 %v5104
        %v5106 = vpop.xlane.xlu0 %5105
        %v5107 = vmul.f32 %v5106, 0.25
        %v5108 = vsel %vm5103, %v5101, -inf
        %5109 = vmax.xlane.f32.xlu0 %v5108
        %v5110 = vpop.xlane.xlu0 %5109
        %v5111 = vmax.f32 %v5110, %v5107
        %v5112 = vsub.f32 %v5101, %v5111
        %v5113 = vmul.f32 %v5112, 1.442695
        %v5114 = vpow.pop %v5113
        %v5115 = vsub.f32 %v5107, %v5111
        %v5116 = vmul.f32 %v5115, 1.442695
        %v5117 = vpow.pop %v5116
        %v5118 = vsel %vm5103, %v5114, 0.0
        %5119 = vadd.xlane.f32.xlu0 %v5118
        %v5120 = vpop.xlane.xlu0 %5119
        %v5121 = vadd.f32 %v5120, %v5117
        %v5122 = vrcp.pop %v5121
        %v5123 = vmul.f32 %v5114, %v5122
        %v5124 = vpack.c.bf16 %v5123, %v5123
        %v5125 = vmul.f32 %v5117, %v5122
        %v5126 = vmul.f32 %v5125, %v4897
        %v5128 = vsel %vm4906, %v5124, 0
        %5130 = vmatprep.subr.bf16.mxu0 0
        %5131 = vmatpush1.bf16.msra.mxu0 %v5003
        %5132 = vmatprep.subr.bf16.mxu0 0
        %5133 = vmatpush1.bf16.msra.mxu0 0
        %5134 = vmatprep.subr.bf16.mxu0 0
        %5135 = vmatpush1.bf16.msra.mxu0 0
        %5136 = vmatprep.subr.bf16.mxu0 0
        %5137 = vmatpush1.bf16.msra.mxu0 0
        %5138 = vmatprep.subr.bf16.mxu0 0
        %5139 = vmatpush1.bf16.msra.mxu0 0
        %5140 = vmatprep.subr.bf16.mxu0 0
        %5141 = vmatpush1.bf16.msra.mxu0 0
        %5142 = vmatprep.subr.bf16.mxu0 0
        %5143 = vmatpush1.bf16.msra.mxu0 0
        %5144 = vmatprep.subr.bf16.mxu0 0
        %5145 = vmatpush1.bf16.msra.mxu0 0
        %5146 = vmatprep.subr.bf16.mxu0 0
        %5147 = vmatpush1.bf16.msra.mxu0 0
        %5148 = vmatprep.subr.bf16.mxu0 0
        %5149 = vmatpush1.bf16.msra.mxu0 0
        %5150 = vmatprep.subr.bf16.mxu0 0
        %5151 = vmatpush1.bf16.msra.mxu0 0
        %5152 = vmatprep.subr.bf16.mxu0 0
        %5153 = vmatpush1.bf16.msra.mxu0 0
        %5154 = vmatprep.subr.bf16.mxu0 0
        %5155 = vmatpush1.bf16.msra.mxu0 0
        %5156 = vmatprep.subr.bf16.mxu0 0
        %5157 = vmatpush1.bf16.msra.mxu0 0
        %5158 = vmatprep.subr.bf16.mxu0 0
        %5159 = vmatpush1.bf16.msra.mxu0 0
        %5160 = vmatprep.subr.bf16.mxu0 0
        %5161 = vmatpush1.bf16.msra.mxu0 0
        %5162 = vmatprep.mubr.bf16.mxu0 0
        %5163 = vmatmul.mubr.bf16.gmra.mrb[0].mxu0 %v5128
        %v5164 = vpop.f32.mrb[0].mxu0
        %v5165 = vadd.f32 %v5126, %v5164
        %v5166 = vpop.f32.mrb[0].mxu0
        %v5167 = vpop.f32.mrb[0].mxu0
        %v5168 = vpop.f32.mrb[0].mxu0
        %5169 = vdwg.mxu0
        %v5170 = vpack.c.bf16 %v5165, %v5165
        %s5171 = scalar_lea.vmem %s41, 16
        %v5172 = vld [vmem:[%s5171] sm:$0xf]
        %v5173 = vld [vmem:[%s5171 + $0x4] sm:$0xf]
        %v5174 = vld [vmem:[%s5171 + $0x8] sm:$0xf]
        %v5175 = vld [vmem:[%s5171 + $0xc] sm:$0xf]
        %s5176 = scalar_lea.vmem %s41, 48
        %v5177 = vld [vmem:[%s5176] sm:$0xf]
        %v5178 = vld [vmem:[%s5176 + $0x4] sm:$0xf]
        %v5179 = vld [vmem:[%s5176 + $0x8] sm:$0xf]
        %v5180 = vld [vmem:[%s5176 + $0xc] sm:$0xf]
        %s5181 = scalar_lea.vmem %s41, 80
        %v5182 = vld [vmem:[%s5181] sm:$0xf]
        %v5183 = vld [vmem:[%s5181 + $0x4] sm:$0xf]
        %v5184 = vld [vmem:[%s5181 + $0x8] sm:$0xf]
        %v5185 = vld [vmem:[%s5181 + $0xc] sm:$0xf]
        %v5190 = vunpack.c.l.b16 %v5172
        %v5191 = vunpack.c.l.b16 %v5173
        %v5192 = vunpack.c.l.b16 %v5174
        %v5193 = vunpack.c.l.b16 %v5175
        %v5194 = vpack.c.b16 %v5191, %v5190
        %v5195 = vpack.c.b16 %v5193, %v5192
        %5198 = vmatprep.subr.bf16.mxu0 0
        %5199 = vmatpush1.bf16.msra.mxu0 %v5194
        %5200 = vmatprep.subr.bf16.mxu0 0
        %5201 = vmatpush1.bf16.msra.mxu0 %v5195
        %5202 = vmatprep.subr.bf16.mxu0 0
        %5203 = vmatpush1.bf16.msra.mxu0 0
        %5204 = vmatprep.subr.bf16.mxu0 0
        %5205 = vmatpush1.bf16.msra.mxu0 0
        %5206 = vmatprep.subr.bf16.mxu0 0
        %5207 = vmatpush1.bf16.msra.mxu0 0
        %5208 = vmatprep.subr.bf16.mxu0 0
        %5209 = vmatpush1.bf16.msra.mxu0 0
        %5210 = vmatprep.subr.bf16.mxu0 0
        %5211 = vmatpush1.bf16.msra.mxu0 0
        %5212 = vmatprep.subr.bf16.mxu0 0
        %5213 = vmatpush1.bf16.msra.mxu0 0
        %5214 = vmatprep.subr.bf16.mxu0 0
        %5215 = vmatpush1.bf16.msra.mxu0 0
        %5216 = vmatprep.subr.bf16.mxu0 0
        %5217 = vmatpush1.bf16.msra.mxu0 0
        %5218 = vmatprep.subr.bf16.mxu0 0
        %5219 = vmatpush1.bf16.msra.mxu0 0
        %5220 = vmatprep.subr.bf16.mxu0 0
        %5221 = vmatpush1.bf16.msra.mxu0 0
        %5222 = vmatprep.subr.bf16.mxu0 0
        %5223 = vmatpush1.bf16.msra.mxu0 0
        %5224 = vmatprep.subr.bf16.mxu0 0
        %5225 = vmatpush1.bf16.msra.mxu0 0
        %5226 = vmatprep.subr.bf16.mxu0 0
        %5227 = vmatpush1.bf16.msra.mxu0 0
        %5228 = vmatprep.subr.bf16.mxu0 0
        %5229 = vmatpush1.bf16.msra.mxu0 0
        %5230 = vmatprep.mubr.bf16.mxu0 0
        %5231 = vmatmul.mubr.bf16.gmra.mrb[0].mxu0 %v4629
        %v5232 = vpop.f32.mrb[0].mxu0
        %v5233 = vadd.f32 0.0, %v5232
        %v5234 = vpop.f32.mrb[0].mxu0
        %v5235 = vpop.f32.mrb[0].mxu0
        %v5236 = vadd.f32 0.0, %v5235
        %v5237 = vpop.f32.mrb[0].mxu0
        %5238 = vdwg.mxu0
        %v5243 = vunpack.c.l.b16 %v5177
        %v5244 = vunpack.c.l.b16 %v5178
        %v5245 = vunpack.c.l.b16 %v5179
        %v5246 = vunpack.c.l.b16 %v5180
        %v5247 = vpack.c.b16 %v5244, %v5243
        %v5248 = vpack.c.b16 %v5246, %v5245
        %5251 = vmatprep.subr.bf16.mxu0 0
        %5252 = vmatpush1.bf16.msra.mxu0 %v5247
        %5253 = vmatprep.subr.bf16.mxu0 0
        %5254 = vmatpush1.bf16.msra.mxu0 %v5248
        %5255 = vmatprep.subr.bf16.mxu0 0
        %5256 = vmatpush1.bf16.msra.mxu0 0
        %5257 = vmatprep.subr.bf16.mxu0 0
        %5258 = vmatpush1.bf16.msra.mxu0 0
        %5259 = vmatprep.subr.bf16.mxu0 0
        %5260 = vmatpush1.bf16.msra.mxu0 0
        %5261 = vmatprep.subr.bf16.mxu0 0
        %5262 = vmatpush1.bf16.msra.mxu0 0
        %5263 = vmatprep.subr.bf16.mxu0 0
        %5264 = vmatpush1.bf16.msra.mxu0 0
        %5265 = vmatprep.subr.bf16.mxu0 0
        %5266 = vmatpush1.bf16.msra.mxu0 0
        %5267 = vmatprep.subr.bf16.mxu0 0
        %5268 = vmatpush1.bf16.msra.mxu0 0
        %5269 = vmatprep.subr.bf16.mxu0 0
        %5270 = vmatpush1.bf16.msra.mxu0 0
        %5271 = vmatprep.subr.bf16.mxu0 0
        %5272 = vmatpush1.bf16.msra.mxu0 0
        %5273 = vmatprep.subr.bf16.mxu0 0
        %5274 = vmatpush1.bf16.msra.mxu0 0
        %5275 = vmatprep.subr.bf16.mxu0 0
        %5276 = vmatpush1.bf16.msra.mxu0 0
        %5277 = vmatprep.subr.bf16.mxu0 0
        %5278 = vmatpush1.bf16.msra.mxu0 0
        %5279 = vmatprep.subr.bf16.mxu0 0
        %5280 = vmatpush1.bf16.msra.mxu0 0
        %5281 = vmatprep.subr.bf16.mxu0 0
        %5282 = vmatpush1.bf16.msra.mxu0 0
        %5283 = vmatprep.mubr.bf16.mxu0 0
        %5284 = vmatmul.mubr.bf16.gmra.mrb[0].mxu0 %v4629
        %v5285 = vpop.f32.mrb[0].mxu0
        %v5286 = vadd.f32 0.0, %v5285
        %v5287 = vpop.f32.mrb[0].mxu0
        %v5288 = vpop.f32.mrb[0].mxu0
        %v5289 = vadd.f32 0.0, %v5288
        %v5290 = vpop.f32.mrb[0].mxu0
        %5291 = vdwg.mxu0
        %v5296 = vunpack.c.l.b16 %v5182
        %v5297 = vunpack.c.l.b16 %v5183
        %v5298 = vunpack.c.l.b16 %v5184
        %v5299 = vunpack.c.l.b16 %v5185
        %v5300 = vpack.c.b16 %v5297, %v5296
        %v5301 = vpack.c.b16 %v5299, %v5298
        %5304 = vmatprep.subr.bf16.mxu0 0
        %5305 = vmatpush1.bf16.msra.mxu0 %v5300
        %5306 = vmatprep.subr.bf16.mxu0 0
        %5307 = vmatpush1.bf16.msra.mxu0 %v5301
        %5308 = vmatprep.subr.bf16.mxu0 0
        %5309 = vmatpush1.bf16.msra.mxu0 0
        %5310 = vmatprep.subr.bf16.mxu0 0
        %5311 = vmatpush1.bf16.msra.mxu0 0
        %5312 = vmatprep.subr.bf16.mxu0 0
        %5313 = vmatpush1.bf16.msra.mxu0 0
        %5314 = vmatprep.subr.bf16.mxu0 0
        %5315 = vmatpush1.bf16.msra.mxu0 0
        %5316 = vmatprep.subr.bf16.mxu0 0
        %5317 = vmatpush1.bf16.msra.mxu0 0
        %5318 = vmatprep.subr.bf16.mxu0 0
        %5319 = vmatpush1.bf16.msra.mxu0 0
        %5320 = vmatprep.subr.bf16.mxu0 0
        %5321 = vmatpush1.bf16.msra.mxu0 0
        %5322 = vmatprep.subr.bf16.mxu0 0
        %5323 = vmatpush1.bf16.msra.mxu0 0
        %5324 = vmatprep.subr.bf16.mxu0 0
        %5325 = vmatpush1.bf16.msra.mxu0 0
        %5326 = vmatprep.subr.bf16.mxu0 0
        %5327 = vmatpush1.bf16.msra.mxu0 0
        %5328 = vmatprep.subr.bf16.mxu0 0
        %5329 = vmatpush1.bf16.msra.mxu0 0
        %5330 = vmatprep.subr.bf16.mxu0 0
        %5331 = vmatpush1.bf16.msra.mxu0 0
        %5332 = vmatprep.subr.bf16.mxu0 0
        %5333 = vmatpush1.bf16.msra.mxu0 0
        %5334 = vmatprep.subr.bf16.mxu0 0
        %5335 = vmatpush1.bf16.msra.mxu0 0
        %5336 = vmatprep.mubr.bf16.mxu0 0
        %5337 = vmatmul.mubr.bf16.gmra.mrb[0].mxu0 %v4629
        %v5338 = vpop.f32.mrb[0].mxu0
        %v5339 = vadd.f32 0.0, %v5338
        %v5340 = vpop.f32.mrb[0].mxu0
        %v5341 = vpop.f32.mrb[0].mxu0
        %v5342 = vadd.f32 0.0, %v5341
        %v5343 = vpop.f32.mrb[0].mxu0
        %5344 = vdwg.mxu0
        %5345 = vmatprep.subr.bf16.mxu0 0
        %5346 = vmatpush1.bf16.msra.mxu0 %v5194
        %5347 = vmatprep.subr.bf16.mxu0 0
        %5348 = vmatpush1.bf16.msra.mxu0 %v5195
        %5349 = vmatprep.subr.bf16.mxu0 0
        %5350 = vmatpush1.bf16.msra.mxu0 0
        %5351 = vmatprep.subr.bf16.mxu0 0
        %5352 = vmatpush1.bf16.msra.mxu0 0
        %5353 = vmatprep.subr.bf16.mxu0 0
        %5354 = vmatpush1.bf16.msra.mxu0 0
        %5355 = vmatprep.subr.bf16.mxu0 0
        %5356 = vmatpush1.bf16.msra.mxu0 0
        %5357 = vmatprep.subr.bf16.mxu0 0
        %5358 = vmatpush1.bf16.msra.mxu0 0
        %5359 = vmatprep.subr.bf16.mxu0 0
        %5360 = vmatpush1.bf16.msra.mxu0 0
        %5361 = vmatprep.subr.bf16.mxu0 0
        %5362 = vmatpush1.bf16.msra.mxu0 0
        %5363 = vmatprep.subr.bf16.mxu0 0
        %5364 = vmatpush1.bf16.msra.mxu0 0
        %5365 = vmatprep.subr.bf16.mxu0 0
        %5366 = vmatpush1.bf16.msra.mxu0 0
        %5367 = vmatprep.subr.bf16.mxu0 0
        %5368 = vmatpush1.bf16.msra.mxu0 0
        %5369 = vmatprep.subr.bf16.mxu0 0
        %5370 = vmatpush1.bf16.msra.mxu0 0
        %5371 = vmatprep.subr.bf16.mxu0 0
        %5372 = vmatpush1.bf16.msra.mxu0 0
        %5373 = vmatprep.subr.bf16.mxu0 0
        %5374 = vmatpush1.bf16.msra.mxu0 0
        %5375 = vmatprep.subr.bf16.mxu0 0
        %5376 = vmatpush1.bf16.msra.mxu0 0
        %5377 = vmatprep.mubr.bf16.mxu0 0
        %5378 = vmatmul.mubr.bf16.gmra.mrb[0].mxu0 %v4780
        %v5379 = vpop.f32.mrb[0].mxu0
        %v5380 = vadd.f32 0.0, %v5379
        %v5381 = vpop.f32.mrb[0].mxu0
        %v5382 = vpop.f32.mrb[0].mxu0
        %v5383 = vpop.f32.mrb[0].mxu0
        %5384 = vdwg.mxu0
        %5385 = vmatprep.subr.bf16.mxu0 0
        %5386 = vmatpush1.bf16.msra.mxu0 %v5247
        %5387 = vmatprep.subr.bf16.mxu0 0
        %5388 = vmatpush1.bf16.msra.mxu0 %v5248
        %5389 = vmatprep.subr.bf16.mxu0 0
        %5390 = vmatpush1.bf16.msra.mxu0 0
        %5391 = vmatprep.subr.bf16.mxu0 0
        %5392 = vmatpush1.bf16.msra.mxu0 0
        %5393 = vmatprep.subr.bf16.mxu0 0
        %5394 = vmatpush1.bf16.msra.mxu0 0
        %5395 = vmatprep.subr.bf16.mxu0 0
        %5396 = vmatpush1.bf16.msra.mxu0 0
        %5397 = vmatprep.subr.bf16.mxu0 0
        %5398 = vmatpush1.bf16.msra.mxu0 0
        %5399 = vmatprep.subr.bf16.mxu0 0
        %5400 = vmatpush1.bf16.msra.mxu0 0
        %5401 = vmatprep.subr.bf16.mxu0 0
        %5402 = vmatpush1.bf16.msra.mxu0 0
        %5403 = vmatprep.subr.bf16.mxu0 0
        %5404 = vmatpush1.bf16.msra.mxu0 0
        %5405 = vmatprep.subr.bf16.mxu0 0
        %5406 = vmatpush1.bf16.msra.mxu0 0
        %5407 = vmatprep.subr.bf16.mxu0 0
        %5408 = vmatpush1.bf16.msra.mxu0 0
        %5409 = vmatprep.subr.bf16.mxu0 0
        %5410 = vmatpush1.bf16.msra.mxu0 0
        %5411 = vmatprep.subr.bf16.mxu0 0
        %5412 = vmatpush1.bf16.msra.mxu0 0
        %5413 = vmatprep.subr.bf16.mxu0 0
        %5414 = vmatpush1.bf16.msra.mxu0 0
        %5415 = vmatprep.subr.bf16.mxu0 0
        %5416 = vmatpush1.bf16.msra.mxu0 0
        %5417 = vmatprep.mubr.bf16.mxu0 0
        %5418 = vmatmul.mubr.bf16.gmra.mrb[0].mxu0 %v4780
        %v5419 = vpop.f32.mrb[0].mxu0
        %v5420 = vadd.f32 0.0, %v5419
        %v5421 = vpop.f32.mrb[0].mxu0
        %v5422 = vpop.f32.mrb[0].mxu0
        %v5423 = vpop.f32.mrb[0].mxu0
        %5424 = vdwg.mxu0
        %5425 = vmatprep.subr.bf16.mxu0 0
        %5426 = vmatpush1.bf16.msra.mxu0 %v5300
        %5427 = vmatprep.subr.bf16.mxu0 0
        %5428 = vmatpush1.bf16.msra.mxu0 %v5301
        %5429 = vmatprep.subr.bf16.mxu0 0
        %5430 = vmatpush1.bf16.msra.mxu0 0
        %5431 = vmatprep.subr.bf16.mxu0 0
        %5432 = vmatpush1.bf16.msra.mxu0 0
        %5433 = vmatprep.subr.bf16.mxu0 0
        %5434 = vmatpush1.bf16.msra.mxu0 0
        %5435 = vmatprep.subr.bf16.mxu0 0
        %5436 = vmatpush1.bf16.msra.mxu0 0
        %5437 = vmatprep.subr.bf16.mxu0 0
        %5438 = vmatpush1.bf16.msra.mxu0 0
        %5439 = vmatprep.subr.bf16.mxu0 0
        %5440 = vmatpush1.bf16.msra.mxu0 0
        %5441 = vmatprep.subr.bf16.mxu0 0
        %5442 = vmatpush1.bf16.msra.mxu0 0
        %5443 = vmatprep.subr.bf16.mxu0 0
        %5444 = vmatpush1.bf16.msra.mxu0 0
        %5445 = vmatprep.subr.bf16.mxu0 0
        %5446 = vmatpush1.bf16.msra.mxu0 0
        %5447 = vmatprep.subr.bf16.mxu0 0
        %5448 = vmatpush1.bf16.msra.mxu0 0
        %5449 = vmatprep.subr.bf16.mxu0 0
        %5450 = vmatpush1.bf16.msra.mxu0 0
        %5451 = vmatprep.subr.bf16.mxu0 0
        %5452 = vmatpush1.bf16.msra.mxu0 0
        %5453 = vmatprep.subr.bf16.mxu0 0
        %5454 = vmatpush1.bf16.msra.mxu0 0
        %5455 = vmatprep.subr.bf16.mxu0 0
        %5456 = vmatpush1.bf16.msra.mxu0 0
        %5457 = vmatprep.mubr.bf16.mxu0 0
        %5458 = vmatmul.mubr.bf16.gmra.mrb[0].mxu0 %v4780
        %v5459 = vpop.f32.mrb[0].mxu0
        %v5460 = vadd.f32 0.0, %v5459
        %v5461 = vpop.f32.mrb[0].mxu0
        %v5462 = vpop.f32.mrb[0].mxu0
        %v5463 = vpop.f32.mrb[0].mxu0
        %5464 = vdwg.mxu0
        %s5465 = scalar_lea.vmem %s43, 8
        %v5466 = vld [vmem:[%s5465] sm:$0xf]
        %v5467 = vld [vmem:[%s5465 + $0x4] sm:$0xf]
        %v5468 = vpack.c.bf16 %v5236, %v5233
        %v5469 = vpack.c.bf16 %v5289, %v5286
        %v5471 = vsel %vm4906, %v5468, 0
        %v5474 = vsel %vm4906, %v5469, 0
        %5476 = vmatprep.subr.bf16.mxu0 0
        %5477 = vmatpush1.bf16.xpose.msra.mxu0 %v5474
        %5478 = vmatprep.subr.bf16.mxu0 0
        %5479 = vmatpush1.bf16.xpose.msra.mxu0 0
        %5480 = vmatprep.subr.bf16.mxu0 0
        %5481 = vmatpush1.bf16.xpose.msra.mxu0 0
        %5482 = vmatprep.subr.bf16.mxu0 0
        %5483 = vmatpush1.bf16.xpose.msra.mxu0 0
        %5484 = vmatprep.subr.bf16.mxu0 0
        %5485 = vmatpush1.bf16.xpose.msra.mxu0 0
        %5486 = vmatprep.subr.bf16.mxu0 0
        %5487 = vmatpush1.bf16.xpose.msra.mxu0 0
        %5488 = vmatprep.subr.bf16.mxu0 0
        %5489 = vmatpush1.bf16.xpose.msra.mxu0 0
        %5490 = vmatprep.subr.bf16.mxu0 0
        %5491 = vmatpush1.bf16.xpose.msra.mxu0 0
        %5492 = vmatprep.subr.bf16.mxu0 0
        %5493 = vmatpush1.bf16.xpose.msra.mxu0 0
        %5494 = vmatprep.subr.bf16.mxu0 0
        %5495 = vmatpush1.bf16.xpose.msra.mxu0 0
        %5496 = vmatprep.subr.bf16.mxu0 0
        %5497 = vmatpush1.bf16.xpose.msra.mxu0 0
        %5498 = vmatprep.subr.bf16.mxu0 0
        %5499 = vmatpush1.bf16.xpose.msra.mxu0 0
        %5500 = vmatprep.subr.bf16.mxu0 0
        %5501 = vmatpush1.bf16.xpose.msra.mxu0 0
        %5502 = vmatprep.subr.bf16.mxu0 0
        %5503 = vmatpush1.bf16.xpose.msra.mxu0 0
        %5504 = vmatprep.subr.bf16.mxu0 0
        %5505 = vmatpush1.bf16.xpose.msra.mxu0 0
        %5506 = vmatprep.subr.bf16.mxu0 0
        %5507 = vmatpush1.bf16.xpose.msra.mxu0 0
        %5508 = vmatprep.mubr.bf16.mxu0 0
        %5509 = vmatmul.mubr.bf16.gmra.mrb[0].mxu0 %v5471
        %v5510 = vpop.f32.mrb[0].mxu0
        %v5511 = vadd.f32 0.0, %v5510
        %v5512 = vpop.f32.mrb[0].mxu0
        %v5513 = vpop.f32.mrb[0].mxu0
        %v5514 = vadd.f32 0.0, %v5513
        %v5515 = vpop.f32.mrb[0].mxu0
        %5516 = vdwg.mxu0
        %v5517 = vmul.f32 %v5511, 0.25
        %v5518 = vmul.f32 %v5514, 0.25
        %v5519 = vlaneseq
        %v5520 = vshrl.u32 %v5519, 7
        %v5521 = vsub.s32 0, %v5520
        %v5522 = vrot.slane %v5420, %v5521
        %v5523 = vmul.f32 %v5233, %v5522
        %v5524 = vmul.f32 %v5236, %v5522
        %v5525 = vsel %vm4906, %v5523, 0.0
        %5526 = vadd.xlane.f32.xlu0 %v5525
        %v5527 = vpop.xlane.xlu0 %5526
        %v5528 = vsel %vm4906, %v5524, 0.0
        %5529 = vadd.xlane.f32.xlu0 %v5528
        %v5530 = vpop.xlane.xlu0 %5529
        %v5531 = vmul.f32 %v5527, 0.25
        %v5532 = vmul.f32 %v5530, 0.25
        %v5533 = vsel %vm4906, %v5517, -inf
        %5534 = vmax.xlane.f32.xlu0 %v5533
        %v5535 = vpop.xlane.xlu0 %5534
        %v5536 = vsel %vm4906, %v5518, -inf
        %5537 = vmax.xlane.f32.xlu0 %v5536
        %v5538 = vpop.xlane.xlu0 %5537
        %v5539 = vmax.f32 %v5535, %v5531
        %v5540 = vmax.f32 %v5538, %v5532
        %v5541 = vsub.f32 %v5517, %v5539
        %v5542 = vsub.f32 %v5518, %v5540
        %v5543 = vmul.f32 %v5541, 1.442695
        %v5544 = vpow.pop %v5543
        %v5545 = vmul.f32 %v5542, 1.442695
        %v5546 = vpow.pop %v5545
        %v5547 = vsub.f32 %v5531, %v5539
        %v5548 = vsub.f32 %v5532, %v5540
        %v5549 = vmul.f32 %v5547, 1.442695
        %v5550 = vpow.pop %v5549
        %v5551 = vmul.f32 %v5548, 1.442695
        %v5552 = vpow.pop %v5551
        %v5553 = vsel %vm4906, %v5544, 0.0
        %5554 = vadd.xlane.f32.xlu0 %v5553
        %v5555 = vpop.xlane.xlu0 %5554
        %v5556 = vsel %vm4906, %v5546, 0.0
        %5557 = vadd.xlane.f32.xlu0 %v5556
        %v5558 = vpop.xlane.xlu0 %5557
        %v5559 = vadd.f32 %v5555, %v5550
        %v5560 = vadd.f32 %v5558, %v5552
        %v5561 = vrcp.pop %v5559
        %v5562 = vrcp.pop %v5560
        %v5563 = vmul.f32 %v5544, %v5561
        %v5564 = vmul.f32 %v5546, %v5562
        %v5565 = vpack.c.bf16 %v5564, %v5563
        %v5566 = vpack.c.bf16 %v5342, %v5339
        %v5567 = vmul.f32 %v5550, %v5561
        %v5568 = vmul.f32 %v5552, %v5562
        %v5569 = vlaneseq
        %v5570 = vshrl.u32 %v5569, 7
        %v5571 = vsub.s32 0, %v5570
        %v5572 = vrot.slane %v5460, %v5571
        %v5573 = vmul.f32 %v5567, %v5572
        %v5574 = vmul.f32 %v5568, %v5572
        %v5576 = vsel %vm4906, %v5565, 0
        %5578 = vmatprep.subr.bf16.mxu0 0
        %5579 = vmatpush1.bf16.msra.mxu0 %v5566
        %5580 = vmatprep.subr.bf16.mxu0 0
        %5581 = vmatpush1.bf16.msra.mxu0 0
        %5582 = vmatprep.subr.bf16.mxu0 0
        %5583 = vmatpush1.bf16.msra.mxu0 0
        %5584 = vmatprep.subr.bf16.mxu0 0
        %5585 = vmatpush1.bf16.msra.mxu0 0
        %5586 = vmatprep.subr.bf16.mxu0 0
        %5587 = vmatpush1.bf16.msra.mxu0 0
        %5588 = vmatprep.subr.bf16.mxu0 0
        %5589 = vmatpush1.bf16.msra.mxu0 0
        %5590 = vmatprep.subr.bf16.mxu0 0
        %5591 = vmatpush1.bf16.msra.mxu0 0
        %5592 = vmatprep.subr.bf16.mxu0 0
        %5593 = vmatpush1.bf16.msra.mxu0 0
        %5594 = vmatprep.subr.bf16.mxu0 0
        %5595 = vmatpush1.bf16.msra.mxu0 0
        %5596 = vmatprep.subr.bf16.mxu0 0
        %5597 = vmatpush1.bf16.msra.mxu0 0
        %5598 = vmatprep.subr.bf16.mxu0 0
        %5599 = vmatpush1.bf16.msra.mxu0 0
        %5600 = vmatprep.subr.bf16.mxu0 0
        %5601 = vmatpush1.bf16.msra.mxu0 0
        %5602 = vmatprep.subr.bf16.mxu0 0
        %5603 = vmatpush1.bf16.msra.mxu0 0
        %5604 = vmatprep.subr.bf16.mxu0 0
        %5605 = vmatpush1.bf16.msra.mxu0 0
        %5606 = vmatprep.subr.bf16.mxu0 0
        %5607 = vmatpush1.bf16.msra.mxu0 0
        %5608 = vmatprep.subr.bf16.mxu0 0
        %5609 = vmatpush1.bf16.msra.mxu0 0
        %5610 = vmatprep.mubr.bf16.mxu0 0
        %5611 = vmatmul.mubr.bf16.gmra.mrb[0].mxu0 %v5576
        %v5612 = vpop.f32.mrb[0].mxu0
        %v5613 = vadd.f32 %v5573, %v5612
        %v5614 = vpop.f32.mrb[0].mxu0
        %v5615 = vpop.f32.mrb[0].mxu0
        %v5616 = vadd.f32 %v5574, %v5615
        %v5617 = vpop.f32.mrb[0].mxu0
        %5618 = vdwg.mxu0
        %v5619 = vpack.c.bf16 %v5616, %v5613
        %v5622 = vunpack.c.l.b16 %v5466
        %v5623 = vunpack.c.l.b16 %v5467
        %v5624 = vpack.c.b16 %v5623, %v5622
        %v5627 = vsel %vm4906, %v5619, 0
        %5629 = vmatprep.subr.bf16.mxu0 0
        %5630 = vmatpush1.bf16.msra.mxu0 %v5624
        %5631 = vmatprep.subr.bf16.mxu0 0
        %5632 = vmatpush1.bf16.msra.mxu0 0
        %5633 = vmatprep.subr.bf16.mxu0 0
        %5634 = vmatpush1.bf16.msra.mxu0 0
        %5635 = vmatprep.subr.bf16.mxu0 0
        %5636 = vmatpush1.bf16.msra.mxu0 0
        %5637 = vmatprep.subr.bf16.mxu0 0
        %5638 = vmatpush1.bf16.msra.mxu0 0
        %5639 = vmatprep.subr.bf16.mxu0 0
        %5640 = vmatpush1.bf16.msra.mxu0 0
        %5641 = vmatprep.subr.bf16.mxu0 0
        %5642 = vmatpush1.bf16.msra.mxu0 0
        %5643 = vmatprep.subr.bf16.mxu0 0
        %5644 = vmatpush1.bf16.msra.mxu0 0
        %5645 = vmatprep.subr.bf16.mxu0 0
        %5646 = vmatpush1.bf16.msra.mxu0 0
        %5647 = vmatprep.subr.bf16.mxu0 0
        %5648 = vmatpush1.bf16.msra.mxu0 0
        %5649 = vmatprep.subr.bf16.mxu0 0
        %5650 = vmatpush1.bf16.msra.mxu0 0
        %5651 = vmatprep.subr.bf16.mxu0 0
        %5652 = vmatpush1.bf16.msra.mxu0 0
        %5653 = vmatprep.subr.bf16.mxu0 0
        %5654 = vmatpush1.bf16.msra.mxu0 0
        %5655 = vmatprep.subr.bf16.mxu0 0
        %5656 = vmatpush1.bf16.msra.mxu0 0
        %5657 = vmatprep.subr.bf16.mxu0 0
        %5658 = vmatpush1.bf16.msra.mxu0 0
        %5659 = vmatprep.subr.bf16.mxu0 0
        %5660 = vmatpush1.bf16.msra.mxu0 0
        %5661 = vmatprep.mubr.bf16.mxu0 0
        %5662 = vmatmul.mubr.bf16.gmra.mrb[0].mxu0 %v5627
        %v5663 = vpop.f32.mrb[0].mxu0
        %v5664 = vadd.f32 0.0, %v5663
        %v5665 = vpop.f32.mrb[0].mxu0
        %v5666 = vpop.f32.mrb[0].mxu0
        %v5667 = vadd.f32 0.0, %v5666
        %v5668 = vpop.f32.mrb[0].mxu0
        %5669 = vdwg.mxu0
        %v5672 = vunpack.c.l.b16 %v4902
        %v5673 = vunpack.c.l.b16 %v4903
        %v5674 = vpack.c.b16 %v5673, %v5672
        %v5677 = vsel %vm4906, %v5056, 0
        %5679 = vmatprep.subr.bf16.mxu0 0
        %5680 = vmatpush1.bf16.msra.mxu0 %v5674
        %5681 = vmatprep.subr.bf16.mxu0 0
        %5682 = vmatpush1.bf16.msra.mxu0 0
        %5683 = vmatprep.subr.bf16.mxu0 0
        %5684 = vmatpush1.bf16.msra.mxu0 0
        %5685 = vmatprep.subr.bf16.mxu0 0
        %5686 = vmatpush1.bf16.msra.mxu0 0
        %5687 = vmatprep.subr.bf16.mxu0 0
        %5688 = vmatpush1.bf16.msra.mxu0 0
        %5689 = vmatprep.subr.bf16.mxu0 0
        %5690 = vmatpush1.bf16.msra.mxu0 0
        %5691 = vmatprep.subr.bf16.mxu0 0
        %5692 = vmatpush1.bf16.msra.mxu0 0
        %5693 = vmatprep.subr.bf16.mxu0 0
        %5694 = vmatpush1.bf16.msra.mxu0 0
        %5695 = vmatprep.subr.bf16.mxu0 0
        %5696 = vmatpush1.bf16.msra.mxu0 0
        %5697 = vmatprep.subr.bf16.mxu0 0
        %5698 = vmatpush1.bf16.msra.mxu0 0
        %5699 = vmatprep.subr.bf16.mxu0 0
        %5700 = vmatpush1.bf16.msra.mxu0 0
        %5701 = vmatprep.subr.bf16.mxu0 0
        %5702 = vmatpush1.bf16.msra.mxu0 0
        %5703 = vmatprep.subr.bf16.mxu0 0
        %5704 = vmatpush1.bf16.msra.mxu0 0
        %5705 = vmatprep.subr.bf16.mxu0 0
        %5706 = vmatpush1.bf16.msra.mxu0 0
        %5707 = vmatprep.subr.bf16.mxu0 0
        %5708 = vmatpush1.bf16.msra.mxu0 0
        %5709 = vmatprep.subr.bf16.mxu0 0
        %5710 = vmatpush1.bf16.msra.mxu0 0
        %5711 = vmatprep.mubr.bf16.mxu0 0
        %5712 = vmatmul.mubr.bf16.gmra.mrb[0].mxu0 %v5677
        %v5713 = vpop.f32.mrb[0].mxu0
        %v5714 = vadd.f32 %v5664, %v5713
        %v5715 = vpop.f32.mrb[0].mxu0
        %v5716 = vpop.f32.mrb[0].mxu0
        %v5717 = vadd.f32 %v5667, %v5716
        %v5718 = vpop.f32.mrb[0].mxu0
        %5719 = vdwg.mxu0
        %v5720 = vpack.c.bf16 %v5380, %v5380
        %v5722 = vsel %vm4906, %v5720, 0
        %5724 = vmatprep.subr.bf16.mxu0 0
        %5725 = vmatpush1.bf16.xpose.msra.mxu0 %v5474
        %5726 = vmatprep.subr.bf16.mxu0 0
        %5727 = vmatpush1.bf16.xpose.msra.mxu0 0
        %5728 = vmatprep.subr.bf16.mxu0 0
        %5729 = vmatpush1.bf16.xpose.msra.mxu0 0
        %5730 = vmatprep.subr.bf16.mxu0 0
        %5731 = vmatpush1.bf16.xpose.msra.mxu0 0
        %5732 = vmatprep.subr.bf16.mxu0 0
        %5733 = vmatpush1.bf16.xpose.msra.mxu0 0
        %5734 = vmatprep.subr.bf16.mxu0 0
        %5735 = vmatpush1.bf16.xpose.msra.mxu0 0
        %5736 = vmatprep.subr.bf16.mxu0 0
        %5737 = vmatpush1.bf16.xpose.msra.mxu0 0
        %5738 = vmatprep.subr.bf16.mxu0 0
        %5739 = vmatpush1.bf16.xpose.msra.mxu0 0
        %5740 = vmatprep.subr.bf16.mxu0 0
        %5741 = vmatpush1.bf16.xpose.msra.mxu0 0
        %5742 = vmatprep.subr.bf16.mxu0 0
        %5743 = vmatpush1.bf16.xpose.msra.mxu0 0
        %5744 = vmatprep.subr.bf16.mxu0 0
        %5745 = vmatpush1.bf16.xpose.msra.mxu0 0
        %5746 = vmatprep.subr.bf16.mxu0 0
        %5747 = vmatpush1.bf16.xpose.msra.mxu0 0
        %5748 = vmatprep.subr.bf16.mxu0 0
        %5749 = vmatpush1.bf16.xpose.msra.mxu0 0
        %5750 = vmatprep.subr.bf16.mxu0 0
        %5751 = vmatpush1.bf16.xpose.msra.mxu0 0
        %5752 = vmatprep.subr.bf16.mxu0 0
        %5753 = vmatpush1.bf16.xpose.msra.mxu0 0
        %5754 = vmatprep.subr.bf16.mxu0 0
        %5755 = vmatpush1.bf16.xpose.msra.mxu0 0
        %5756 = vmatprep.mubr.bf16.mxu0 0
        %5757 = vmatmul.mubr.bf16.gmra.mrb[0].mxu0 %v5722
        %v5758 = vpop.f32.mrb[0].mxu0
        %v5759 = vadd.f32 0.0, %v5758
        %v5760 = vpop.f32.mrb[0].mxu0
        %v5761 = vpop.f32.mrb[0].mxu0
        %v5762 = vpop.f32.mrb[0].mxu0
        %5763 = vdwg.mxu0
        %v5764 = vmul.f32 %v5759, 0.25
        %v5765 = vmul.f32 %v5380, %v5420
        %v5766 = vsel %vm5103, %v5765, 0.0
        %5767 = vadd.xlane.f32.xlu0 %v5766
        %v5768 = vpop.xlane.xlu0 %5767
        %v5769 = vmul.f32 %v5768, 0.25
        %v5770 = vsel %vm5103, %v5764, -inf
        %5771 = vmax.xlane.f32.xlu0 %v5770
        %v5772 = vpop.xlane.xlu0 %5771
        %v5773 = vmax.f32 %v5772, %v5769
        %v5774 = vsub.f32 %v5764, %v5773
        %v5775 = vmul.f32 %v5774, 1.442695
        %v5776 = vpow.pop %v5775
        %v5777 = vsub.f32 %v5769, %v5773
        %v5778 = vmul.f32 %v5777, 1.442695
        %v5779 = vpow.pop %v5778
        %v5780 = vsel %vm5103, %v5776, 0.0
        %5781 = vadd.xlane.f32.xlu0 %v5780
        %v5782 = vpop.xlane.xlu0 %5781
        %v5783 = vadd.f32 %v5782, %v5779
        %v5784 = vrcp.pop %v5783
        %v5785 = vmul.f32 %v5776, %v5784
        %v5786 = vpack.c.bf16 %v5785, %v5785
        %v5787 = vmul.f32 %v5779, %v5784
        %v5788 = vmul.f32 %v5787, %v5460
        %v5790 = vsel %vm4906, %v5786, 0
        %5792 = vmatprep.subr.bf16.mxu0 0
        %5793 = vmatpush1.bf16.msra.mxu0 %v5566
        %5794 = vmatprep.subr.bf16.mxu0 0
        %5795 = vmatpush1.bf16.msra.mxu0 0
        %5796 = vmatprep.subr.bf16.mxu0 0
        %5797 = vmatpush1.bf16.msra.mxu0 0
        %5798 = vmatprep.subr.bf16.mxu0 0
        %5799 = vmatpush1.bf16.msra.mxu0 0
        %5800 = vmatprep.subr.bf16.mxu0 0
        %5801 = vmatpush1.bf16.msra.mxu0 0
        %5802 = vmatprep.subr.bf16.mxu0 0
        %5803 = vmatpush1.bf16.msra.mxu0 0
        %5804 = vmatprep.subr.bf16.mxu0 0
        %5805 = vmatpush1.bf16.msra.mxu0 0
        %5806 = vmatprep.subr.bf16.mxu0 0
        %5807 = vmatpush1.bf16.msra.mxu0 0
        %5808 = vmatprep.subr.bf16.mxu0 0
        %5809 = vmatpush1.bf16.msra.mxu0 0
        %5810 = vmatprep.subr.bf16.mxu0 0
        %5811 = vmatpush1.bf16.msra.mxu0 0
        %5812 = vmatprep.subr.bf16.mxu0 0
        %5813 = vmatpush1.bf16.msra.mxu0 0
        %5814 = vmatprep.subr.bf16.mxu0 0
        %5815 = vmatpush1.bf16.msra.mxu0 0
        %5816 = vmatprep.subr.bf16.mxu0 0
        %5817 = vmatpush1.bf16.msra.mxu0 0
        %5818 = vmatprep.subr.bf16.mxu0 0
        %5819 = vmatpush1.bf16.msra.mxu0 0
        %5820 = vmatprep.subr.bf16.mxu0 0
        %5821 = vmatpush1.bf16.msra.mxu0 0
        %5822 = vmatprep.subr.bf16.mxu0 0
        %5823 = vmatpush1.bf16.msra.mxu0 0
        %5824 = vmatprep.mubr.bf16.mxu0 0
        %5825 = vmatmul.mubr.bf16.gmra.mrb[0].mxu0 %v5790
        %v5826 = vpop.f32.mrb[0].mxu0
        %v5827 = vadd.f32 %v5788, %v5826
        %v5828 = vpop.f32.mrb[0].mxu0
        %v5829 = vpop.f32.mrb[0].mxu0
        %v5830 = vpop.f32.mrb[0].mxu0
        %5831 = vdwg.mxu0
        %v5832 = vpack.c.bf16 %v5827, %v5827
        %v5834 = vsel %vm4906, %v5832, 0
        %5836 = vmatprep.subr.bf16.mxu0 0
        %5837 = vmatpush1.bf16.msra.mxu0 %v5624
        %5838 = vmatprep.subr.bf16.mxu0 0
        %5839 = vmatpush1.bf16.msra.mxu0 0
        %5840 = vmatprep.subr.bf16.mxu0 0
        %5841 = vmatpush1.bf16.msra.mxu0 0
        %5842 = vmatprep.subr.bf16.mxu0 0
        %5843 = vmatpush1.bf16.msra.mxu0 0
        %5844 = vmatprep.subr.bf16.mxu0 0
        %5845 = vmatpush1.bf16.msra.mxu0 0
        %5846 = vmatprep.subr.bf16.mxu0 0
        %5847 = vmatpush1.bf16.msra.mxu0 0
        %5848 = vmatprep.subr.bf16.mxu0 0
        %5849 = vmatpush1.bf16.msra.mxu0 0
        %5850 = vmatprep.subr.bf16.mxu0 0
        %5851 = vmatpush1.bf16.msra.mxu0 0
        %5852 = vmatprep.subr.bf16.mxu0 0
        %5853 = vmatpush1.bf16.msra.mxu0 0
        %5854 = vmatprep.subr.bf16.mxu0 0
        %5855 = vmatpush1.bf16.msra.mxu0 0
        %5856 = vmatprep.subr.bf16.mxu0 0
        %5857 = vmatpush1.bf16.msra.mxu0 0
        %5858 = vmatprep.subr.bf16.mxu0 0
        %5859 = vmatpush1.bf16.msra.mxu0 0
        %5860 = vmatprep.subr.bf16.mxu0 0
        %5861 = vmatpush1.bf16.msra.mxu0 0
        %5862 = vmatprep.subr.bf16.mxu0 0
        %5863 = vmatpush1.bf16.msra.mxu0 0
        %5864 = vmatprep.subr.bf16.mxu0 0
        %5865 = vmatpush1.bf16.msra.mxu0 0
        %5866 = vmatprep.subr.bf16.mxu0 0
        %5867 = vmatpush1.bf16.msra.mxu0 0
        %5868 = vmatprep.mubr.bf16.mxu0 0
        %5869 = vmatmul.mubr.bf16.gmra.mrb[0].mxu0 %v5834
        %v5870 = vpop.f32.mrb[0].mxu0
        %v5871 = vadd.f32 0.0, %v5870
        %v5872 = vpop.f32.mrb[0].mxu0
        %v5873 = vpop.f32.mrb[0].mxu0
        %v5874 = vpop.f32.mrb[0].mxu0
        %5875 = vdwg.mxu0
        %v5877 = vsel %vm4906, %v5170, 0
        %5879 = vmatprep.subr.bf16.mxu0 0
        %5880 = vmatpush1.bf16.msra.mxu0 %v5674
        %5881 = vmatprep.subr.bf16.mxu0 0
        %5882 = vmatpush1.bf16.msra.mxu0 0
        %5883 = vmatprep.subr.bf16.mxu0 0
        %5884 = vmatpush1.bf16.msra.mxu0 0
        %5885 = vmatprep.subr.bf16.mxu0 0
        %5886 = vmatpush1.bf16.msra.mxu0 0
        %5887 = vmatprep.subr.bf16.mxu0 0
        %5888 = vmatpush1.bf16.msra.mxu0 0
        %5889 = vmatprep.subr.bf16.mxu0 0
        %5890 = vmatpush1.bf16.msra.mxu0 0
        %5891 = vmatprep.subr.bf16.mxu0 0
        %5892 = vmatpush1.bf16.msra.mxu0 0
        %5893 = vmatprep.subr.bf16.mxu0 0
        %5894 = vmatpush1.bf16.msra.mxu0 0
        %5895 = vmatprep.subr.bf16.mxu0 0
        %5896 = vmatpush1.bf16.msra.mxu0 0
        %5897 = vmatprep.subr.bf16.mxu0 0
        %5898 = vmatpush1.bf16.msra.mxu0 0
        %5899 = vmatprep.subr.bf16.mxu0 0
        %5900 = vmatpush1.bf16.msra.mxu0 0
        %5901 = vmatprep.subr.bf16.mxu0 0
        %5902 = vmatpush1.bf16.msra.mxu0 0
        %5903 = vmatprep.subr.bf16.mxu0 0
        %5904 = vmatpush1.bf16.msra.mxu0 0
        %5905 = vmatprep.subr.bf16.mxu0 0
        %5906 = vmatpush1.bf16.msra.mxu0 0
        %5907 = vmatprep.subr.bf16.mxu0 0
        %5908 = vmatpush1.bf16.msra.mxu0 0
        %5909 = vmatprep.subr.bf16.mxu0 0
        %5910 = vmatpush1.bf16.msra.mxu0 0
        %5911 = vmatprep.mubr.bf16.mxu0 0
        %5912 = vmatmul.mubr.bf16.gmra.mrb[0].mxu0 %v5877
        %v5913 = vpop.f32.mrb[0].mxu0
        %v5914 = vadd.f32 %v5871, %v5913
        %v5915 = vpop.f32.mrb[0].mxu0
        %v5916 = vpop.f32.mrb[0].mxu0
        %v5917 = vpop.f32.mrb[0].mxu0
        %5918 = vdwg.mxu0
        %v5919 = vadd.f32 %v4538, %v5714
        %v5920 = vadd.f32 %v4539, %v5717
        %v5921 = vld [vmem:[%s45] sm:$0x1]
        %v5923 = vlaneseq
        %v5924 = vshrl.u32 %v5923, 7
        %v5925 = vsub.s32 0, %v5924
        %v5926 = vrot.slane %v5921, %v5925
        %v5928 = vadd.f32 %v5919, %v5926
        %v5929 = vadd.f32 %v5920, %v5926
        %v5930 = vadd.f32 %v4540, %v5914
        %v5931 = vadd.f32 %v5930, %v5921
        %v5932 = vsel %vm4490, %v5928, 0.0
        %5933 = vadd.xlane.f32.xlu0 %v5932
        %v5934 = vpop.xlane.xlu0 %5933
        %v5935 = vsel %vm4490, %v5929, 0.0
        %5936 = vadd.xlane.f32.xlu0 %v5935
        %v5937 = vpop.xlane.xlu0 %5936
        %v5938 = vmul.f32 %v5934, %v4497
        %v5939 = vmul.f32 %v5937, %v4497
        %v5940 = vsub.f32 %v5928, %v5938
        %v5941 = vsub.f32 %v5929, %v5939
        %v5942 = vmul.f32 %v5940, %v5940
        %v5943 = vmul.f32 %v5941, %v5941
        %v5944 = vsel %vm4490, %v5942, 0.0
        %5945 = vadd.xlane.f32.xlu0 %v5944
        %v5946 = vpop.xlane.xlu0 %5945
        %v5947 = vsel %vm4490, %v5943, 0.0
        %5948 = vadd.xlane.f32.xlu0 %v5947
        %v5949 = vpop.xlane.xlu0 %5948
        %v5950 = vmul.f32 %v5946, %v4497
        %v5951 = vmul.f32 %v5949, %v4497
        %v5952 = vadd.f32 %v5950, 1e-05
        %v5953 = vadd.f32 %v5951, 1e-05
        %v5954 = vrsqrt.pop %v5952
        %v5955 = vrsqrt.pop %v5953
        %v5956 = vmul.f32 %v5940, %v5954
        %v5957 = vmul.f32 %v5941, %v5955
        %v5958 = vld [vmem:[%s47] sm:$0x1]
        %v5960 = vlaneseq
        %v5961 = vshrl.u32 %v5960, 7
        %v5962 = vsub.s32 0, %v5961
        %v5963 = vrot.slane %v5958, %v5962
        %v5965 = vmul.f32 %v5956, %v5963
        %v5966 = vmul.f32 %v5957, %v5963
        %v5967 = vld [vmem:[%s49] sm:$0x1]
        %v5969 = vlaneseq
        %v5970 = vshrl.u32 %v5969, 7
        %v5971 = vsub.s32 0, %v5970
        %v5972 = vrot.slane %v5967, %v5971
        %v5974 = vadd.f32 %v5965, %v5972
        %v5975 = vadd.f32 %v5966, %v5972
        %v5976 = vsel %vm4585, %v5931, 0.0
        %5977 = vadd.xlane.f32.xlu0 %v5976
        %v5978 = vpop.xlane.xlu0 %5977
        %v5979 = vmul.f32 %v5978, %v4497
        %v5980 = vsub.f32 %v5931, %v5979
        %v5981 = vmul.f32 %v5980, %v5980
        %v5982 = vsel %vm4585, %v5981, 0.0
        %5983 = vadd.xlane.f32.xlu0 %v5982
        %v5984 = vpop.xlane.xlu0 %5983
        %v5985 = vmul.f32 %v5984, %v4497
        %v5986 = vadd.f32 %v5985, 1e-05
        %v5987 = vrsqrt.pop %v5986
        %v5988 = vmul.f32 %v5980, %v5987
        %v5989 = vmul.f32 %v5988, %v5958
        %v5990 = vadd.f32 %v5989, %v5967
        %v5991 = vld [vmem:[%s51] sm:$0xf]
        %v5992 = vld [vmem:[%s51 + $0x4] sm:$0xf]
        %v5993 = vld [vmem:[%s51 + $0x8] sm:$0xf]
        %v5994 = vld [vmem:[%s51 + $0xc] sm:$0xf]
        %v5995 = vpack.c.bf16 %v5975, %v5974
        %v5996 = vld [vmem:[%s53] sm:$0x1]
        %v5998 = vlaneseq
        %v5999 = vshrl.u32 %v5998, 7
        %v6000 = vsub.s32 0, %v5999
        %v6001 = vrot.slane %v5996, %v6000
        %v6007 = vunpack.c.l.b16 %v5991
        %v6008 = vunpack.c.l.b16 %v5992
        %v6009 = vunpack.c.l.b16 %v5993
        %v6010 = vunpack.c.l.b16 %v5994
        %v6011 = vpack.c.b16 %v6008, %v6007
        %v6012 = vpack.c.b16 %v6010, %v6009
        %v6016 = vsel %vm4490, %v5995, 0
        %6018 = vmatprep.subr.bf16.mxu0 0
        %6019 = vmatpush1.bf16.msra.mxu0 %v6011
        %6020 = vmatprep.subr.bf16.mxu0 0
        %6021 = vmatpush1.bf16.msra.mxu0 %v6012
        %6022 = vmatprep.subr.bf16.mxu0 0
        %6023 = vmatpush1.bf16.msra.mxu0 0
        %6024 = vmatprep.subr.bf16.mxu0 0
        %6025 = vmatpush1.bf16.msra.mxu0 0
        %6026 = vmatprep.subr.bf16.mxu0 0
        %6027 = vmatpush1.bf16.msra.mxu0 0
        %6028 = vmatprep.subr.bf16.mxu0 0
        %6029 = vmatpush1.bf16.msra.mxu0 0
        %6030 = vmatprep.subr.bf16.mxu0 0
        %6031 = vmatpush1.bf16.msra.mxu0 0
        %6032 = vmatprep.subr.bf16.mxu0 0
        %6033 = vmatpush1.bf16.msra.mxu0 0
        %6034 = vmatprep.subr.bf16.mxu0 0
        %6035 = vmatpush1.bf16.msra.mxu0 0
        %6036 = vmatprep.subr.bf16.mxu0 0
        %6037 = vmatpush1.bf16.msra.mxu0 0
        %6038 = vmatprep.subr.bf16.mxu0 0
        %6039 = vmatpush1.bf16.msra.mxu0 0
        %6040 = vmatprep.subr.bf16.mxu0 0
        %6041 = vmatpush1.bf16.msra.mxu0 0
        %6042 = vmatprep.subr.bf16.mxu0 0
        %6043 = vmatpush1.bf16.msra.mxu0 0
        %6044 = vmatprep.subr.bf16.mxu0 0
        %6045 = vmatpush1.bf16.msra.mxu0 0
        %6046 = vmatprep.subr.bf16.mxu0 0
        %6047 = vmatpush1.bf16.msra.mxu0 0
        %6048 = vmatprep.subr.bf16.mxu0 0
        %6049 = vmatpush1.bf16.msra.mxu0 0
        %6050 = vmatprep.mubr.bf16.mxu0 0
        %6051 = vmatmul.mubr.bf16.gmra.mrb[0].mxu0 %v6016
        %v6052 = vpop.f32.mrb[0].mxu0
        %v6053 = vadd.f32 %v6001, %v6052
        %v6054 = vpop.f32.mrb[0].mxu0
        %v6055 = vpop.f32.mrb[0].mxu0
        %v6056 = vadd.f32 %v6001, %v6055
        %v6057 = vpop.f32.mrb[0].mxu0
        %6058 = vdwg.mxu0
        %v6059 = vmul.f32 %v6053, 0.5
        %v6060 = vmul.f32 %v6056, 0.5
        %v6061 = vmul.f32 %v6053, 0.044715
        %v6062 = vmul.f32 %v6056, 0.044715
        %v6063 = vmul.f32 %v6061, %v6053
        %v6064 = vmul.f32 %v6062, %v6056
        %v6065 = vmul.f32 %v6063, %v6053
        %v6066 = vmul.f32 %v6064, %v6056
        %v6067 = vadd.f32 %v6053, %v6065
        %v6068 = vadd.f32 %v6056, %v6066
        %v6069 = vmul.f32 %v6067, 0.7978846
        %v6070 = vmul.f32 %v6068, 0.7978846
        %v6071 = vtanh.pop %v6069
        %v6072 = vtanh.pop %v6070
        %v6073 = vadd.f32 %v6071, 1.0
        %v6074 = vadd.f32 %v6072, 1.0
        %v6075 = vmul.f32 %v6059, %v6073
        %v6076 = vmul.f32 %v6060, %v6074
        %v6077 = vld [vmem:[%s55] sm:$0xf]
        %v6078 = vld [vmem:[%s55 + $0x4] sm:$0xf]
        %v6079 = vld [vmem:[%s55 + $0x8] sm:$0xf]
        %v6080 = vld [vmem:[%s55 + $0xc] sm:$0xf]
        %v6081 = vld [vmem:[%s55 + $0x10] sm:$0xf]
        %v6082 = vld [vmem:[%s55 + $0x14] sm:$0xf]
        %v6083 = vld [vmem:[%s55 + $0x18] sm:$0xf]
        %v6084 = vld [vmem:[%s55 + $0x1c] sm:$0xf]
        %v6085 = vpack.c.bf16 %v6076, %v6075
        %v6086 = vld [vmem:[%s57] sm:$0x1]
        %v6088 = vlaneseq
        %v6089 = vshrl.u32 %v6088, 7
        %v6090 = vsub.s32 0, %v6089
        %v6091 = vrot.slane %v6086, %v6090
        %v6101 = vunpack.c.l.b16 %v6077
        %v6102 = vunpack.c.l.b16 %v6078
        %v6103 = vunpack.c.l.b16 %v6079
        %v6104 = vunpack.c.l.b16 %v6080
        %v6105 = vunpack.c.l.b16 %v6081
        %v6106 = vunpack.c.l.b16 %v6082
        %v6107 = vunpack.c.l.b16 %v6083
        %v6108 = vunpack.c.l.b16 %v6084
        %v6109 = vpack.c.b16 %v6102, %v6101
        %v6110 = vpack.c.b16 %v6104, %v6103
        %v6111 = vpack.c.b16 %v6106, %v6105
        %v6112 = vpack.c.b16 %v6108, %v6107
        %v6118 = vsel %vm2940, %v6085, 0
        %6120 = vmatprep.subr.bf16.mxu0 0
        %6121 = vmatpush1.bf16.msra.mxu0 %v6109
        %6122 = vmatprep.subr.bf16.mxu0 0
        %6123 = vmatpush1.bf16.msra.mxu0 %v6110
        %6124 = vmatprep.subr.bf16.mxu0 0
        %6125 = vmatpush1.bf16.msra.mxu0 %v6111
        %6126 = vmatprep.subr.bf16.mxu0 0
        %6127 = vmatpush1.bf16.msra.mxu0 %v6112
        %6128 = vmatprep.subr.bf16.mxu0 0
        %6129 = vmatpush1.bf16.msra.mxu0 0
        %6130 = vmatprep.subr.bf16.mxu0 0
        %6131 = vmatpush1.bf16.msra.mxu0 0
        %6132 = vmatprep.subr.bf16.mxu0 0
        %6133 = vmatpush1.bf16.msra.mxu0 0
        %6134 = vmatprep.subr.bf16.mxu0 0
        %6135 = vmatpush1.bf16.msra.mxu0 0
        %6136 = vmatprep.subr.bf16.mxu0 0
        %6137 = vmatpush1.bf16.msra.mxu0 0
        %6138 = vmatprep.subr.bf16.mxu0 0
        %6139 = vmatpush1.bf16.msra.mxu0 0
        %6140 = vmatprep.subr.bf16.mxu0 0
        %6141 = vmatpush1.bf16.msra.mxu0 0
        %6142 = vmatprep.subr.bf16.mxu0 0
        %6143 = vmatpush1.bf16.msra.mxu0 0
        %6144 = vmatprep.subr.bf16.mxu0 0
        %6145 = vmatpush1.bf16.msra.mxu0 0
        %6146 = vmatprep.subr.bf16.mxu0 0
        %6147 = vmatpush1.bf16.msra.mxu0 0
        %6148 = vmatprep.subr.bf16.mxu0 0
        %6149 = vmatpush1.bf16.msra.mxu0 0
        %6150 = vmatprep.subr.bf16.mxu0 0
        %6151 = vmatpush1.bf16.msra.mxu0 0
        %6152 = vmatprep.mubr.bf16.mxu0 0
        %6153 = vmatmul.mubr.bf16.gmra.mrb[0].mxu0 %v6118
        %v6154 = vpop.f32.mrb[0].mxu0
        %v6155 = vadd.f32 %v6091, %v6154
        %v6156 = vpop.f32.mrb[0].mxu0
        %v6157 = vpop.f32.mrb[0].mxu0
        %v6158 = vadd.f32 %v6091, %v6157
        %v6159 = vpop.f32.mrb[0].mxu0
        %6160 = vdwg.mxu0
        %v6161 = vpack.c.bf16 %v5990, %v5990
        %v6163 = vsel %vm4490, %v6161, 0
        %6165 = vmatprep.subr.bf16.mxu0 0
        %6166 = vmatpush1.bf16.msra.mxu0 %v6011
        %6167 = vmatprep.subr.bf16.mxu0 0
        %6168 = vmatpush1.bf16.msra.mxu0 %v6012
        %6169 = vmatprep.subr.bf16.mxu0 0
        %6170 = vmatpush1.bf16.msra.mxu0 0
        %6171 = vmatprep.subr.bf16.mxu0 0
        %6172 = vmatpush1.bf16.msra.mxu0 0
        %6173 = vmatprep.subr.bf16.mxu0 0
        %6174 = vmatpush1.bf16.msra.mxu0 0
        %6175 = vmatprep.subr.bf16.mxu0 0
        %6176 = vmatpush1.bf16.msra.mxu0 0
        %6177 = vmatprep.subr.bf16.mxu0 0
        %6178 = vmatpush1.bf16.msra.mxu0 0
        %6179 = vmatprep.subr.bf16.mxu0 0
        %6180 = vmatpush1.bf16.msra.mxu0 0
        %6181 = vmatprep.subr.bf16.mxu0 0
        %6182 = vmatpush1.bf16.msra.mxu0 0
        %6183 = vmatprep.subr.bf16.mxu0 0
        %6184 = vmatpush1.bf16.msra.mxu0 0
        %6185 = vmatprep.subr.bf16.mxu0 0
        %6186 = vmatpush1.bf16.msra.mxu0 0
        %6187 = vmatprep.subr.bf16.mxu0 0
        %6188 = vmatpush1.bf16.msra.mxu0 0
        %6189 = vmatprep.subr.bf16.mxu0 0
        %6190 = vmatpush1.bf16.msra.mxu0 0
        %6191 = vmatprep.subr.bf16.mxu0 0
        %6192 = vmatpush1.bf16.msra.mxu0 0
        %6193 = vmatprep.subr.bf16.mxu0 0
        %6194 = vmatpush1.bf16.msra.mxu0 0
        %6195 = vmatprep.subr.bf16.mxu0 0
        %6196 = vmatpush1.bf16.msra.mxu0 0
        %6197 = vmatprep.mubr.bf16.mxu0 0
        %6198 = vmatmul.mubr.bf16.gmra.mrb[0].mxu0 %v6163
        %v6199 = vpop.f32.mrb[0].mxu0
        %v6200 = vadd.f32 %v5996, %v6199
        %v6201 = vpop.f32.mrb[0].mxu0
        %v6202 = vpop.f32.mrb[0].mxu0
        %v6203 = vpop.f32.mrb[0].mxu0
        %6204 = vdwg.mxu0
        %v6205 = vmul.f32 %v6200, 0.5
        %v6206 = vmul.f32 %v6200, 0.044715
        %v6207 = vmul.f32 %v6206, %v6200
        %v6208 = vmul.f32 %v6207, %v6200
        %v6209 = vadd.f32 %v6200, %v6208
        %v6210 = vmul.f32 %v6209, 0.7978846
        %v6211 = vtanh.pop %v6210
        %v6212 = vadd.f32 %v6211, 1.0
        %v6213 = vmul.f32 %v6205, %v6212
        %v6214 = vpack.c.bf16 %v6213, %v6213
        %v6216 = vsel %vm2940, %v6214, 0
        %6218 = vmatprep.subr.bf16.mxu0 0
        %6219 = vmatpush1.bf16.msra.mxu0 %v6109
        %6220 = vmatprep.subr.bf16.mxu0 0
        %6221 = vmatpush1.bf16.msra.mxu0 %v6110
        %6222 = vmatprep.subr.bf16.mxu0 0
        %6223 = vmatpush1.bf16.msra.mxu0 %v6111
        %6224 = vmatprep.subr.bf16.mxu0 0
        %6225 = vmatpush1.bf16.msra.mxu0 %v6112
        %6226 = vmatprep.subr.bf16.mxu0 0
        %6227 = vmatpush1.bf16.msra.mxu0 0
        %6228 = vmatprep.subr.bf16.mxu0 0
        %6229 = vmatpush1.bf16.msra.mxu0 0
        %6230 = vmatprep.subr.bf16.mxu0 0
        %6231 = vmatpush1.bf16.msra.mxu0 0
        %6232 = vmatprep.subr.bf16.mxu0 0
        %6233 = vmatpush1.bf16.msra.mxu0 0
        %6234 = vmatprep.subr.bf16.mxu0 0
        %6235 = vmatpush1.bf16.msra.mxu0 0
        %6236 = vmatprep.subr.bf16.mxu0 0
        %6237 = vmatpush1.bf16.msra.mxu0 0
        %6238 = vmatprep.subr.bf16.mxu0 0
        %6239 = vmatpush1.bf16.msra.mxu0 0
        %6240 = vmatprep.subr.bf16.mxu0 0
        %6241 = vmatpush1.bf16.msra.mxu0 0
        %6242 = vmatprep.subr.bf16.mxu0 0
        %6243 = vmatpush1.bf16.msra.mxu0 0
        %6244 = vmatprep.subr.bf16.mxu0 0
        %6245 = vmatpush1.bf16.msra.mxu0 0
        %6246 = vmatprep.subr.bf16.mxu0 0
        %6247 = vmatpush1.bf16.msra.mxu0 0
        %6248 = vmatprep.subr.bf16.mxu0 0
        %6249 = vmatpush1.bf16.msra.mxu0 0
        %6250 = vmatprep.mubr.bf16.mxu0 0
        %6251 = vmatmul.mubr.bf16.gmra.mrb[0].mxu0 %v6216
        %v6252 = vpop.f32.mrb[0].mxu0
        %v6253 = vadd.f32 %v6086, %v6252
        %v6254 = vpop.f32.mrb[0].mxu0
        %v6255 = vpop.f32.mrb[0].mxu0
        %v6256 = vpop.f32.mrb[0].mxu0
        %6257 = vdwg.mxu0
        %v6258 = vadd.f32 %v5928, %v6155
        %v6259 = vadd.f32 %v5929, %v6158
        %v6260 = vadd.f32 %v5931, %v6253
        %v6261 = vsel %vm4490, %v6258, 0.0
        %6262 = vadd.xlane.f32.xlu0 %v6261
        %v6263 = vpop.xlane.xlu0 %6262
        %v6264 = vsel %vm4490, %v6259, 0.0
        %6265 = vadd.xlane.f32.xlu0 %v6264
        %v6266 = vpop.xlane.xlu0 %6265
        %v6267 = vmul.f32 %v6263, %v4497
        %v6268 = vmul.f32 %v6266, %v4497
        %v6269 = vsub.f32 %v6258, %v6267
        %v6270 = vsub.f32 %v6259, %v6268
        %v6271 = vmul.f32 %v6269, %v6269
        %v6272 = vmul.f32 %v6270, %v6270
        %v6273 = vsel %vm4490, %v6271, 0.0
        %6274 = vadd.xlane.f32.xlu0 %v6273
        %v6275 = vpop.xlane.xlu0 %6274
        %v6276 = vsel %vm4490, %v6272, 0.0
        %6277 = vadd.xlane.f32.xlu0 %v6276
        %v6278 = vpop.xlane.xlu0 %6277
        %v6279 = vmul.f32 %v6275, %v4497
        %v6280 = vmul.f32 %v6278, %v4497
        %v6281 = vadd.f32 %v6279, 1e-05
        %v6282 = vadd.f32 %v6280, 1e-05
        %v6283 = vrsqrt.pop %v6281
        %v6284 = vrsqrt.pop %v6282
        %v6285 = vmul.f32 %v6269, %v6283
        %v6286 = vmul.f32 %v6270, %v6284
        %v6287 = vld [vmem:[%s59] sm:$0x1]
        %v6289 = vlaneseq
        %v6290 = vshrl.u32 %v6289, 7
        %v6291 = vsub.s32 0, %v6290
        %v6292 = vrot.slane %v6287, %v6291
        %v6294 = vmul.f32 %v6285, %v6292
        %v6295 = vmul.f32 %v6286, %v6292
        %v6296 = vld [vmem:[%s61] sm:$0x1]
        %v6298 = vlaneseq
        %v6299 = vshrl.u32 %v6298, 7
        %v6300 = vsub.s32 0, %v6299
        %v6301 = vrot.slane %v6296, %v6300
        %v6303 = vadd.f32 %v6294, %v6301
        %v6304 = vadd.f32 %v6295, %v6301
        %v6305 = vsel %vm4585, %v6260, 0.0
        %6306 = vadd.xlane.f32.xlu0 %v6305
        %v6307 = vpop.xlane.xlu0 %6306
        %v6308 = vmul.f32 %v6307, %v4497
        %v6309 = vsub.f32 %v6260, %v6308
        %v6310 = vmul.f32 %v6309, %v6309
        %v6311 = vsel %vm4585, %v6310, 0.0
        %6312 = vadd.xlane.f32.xlu0 %v6311
        %v6313 = vpop.xlane.xlu0 %6312
        %v6314 = vmul.f32 %v6313, %v4497
        %v6315 = vadd.f32 %v6314, 1e-05
        %v6316 = vrsqrt.pop %v6315
        %v6317 = vmul.f32 %v6309, %v6316
        %v6318 = vmul.f32 %v6317, %v6287
        %v6319 = vadd.f32 %v6318, %v6296
        %v6320 = vld [vmem:[%s63] sm:$0xf]
        %v6321 = vld [vmem:[%s63 + $0x4] sm:$0xf]
        %v6322 = vld [vmem:[%s63 + $0x8] sm:$0xf]
        %v6323 = vld [vmem:[%s63 + $0xc] sm:$0xf]
        %s6324 = scalar_lea.vmem %s63, 32
        %v6325 = vld [vmem:[%s6324] sm:$0xf]
        %v6326 = vld [vmem:[%s6324 + $0x4] sm:$0xf]
        %v6327 = vld [vmem:[%s6324 + $0x8] sm:$0xf]
        %v6328 = vld [vmem:[%s6324 + $0xc] sm:$0xf]
        %s6329 = scalar_lea.vmem %s63, 64
        %v6330 = vld [vmem:[%s6329] sm:$0xf]
        %v6331 = vld [vmem:[%s6329 + $0x4] sm:$0xf]
        %v6332 = vld [vmem:[%s6329 + $0x8] sm:$0xf]
        %v6333 = vld [vmem:[%s6329 + $0xc] sm:$0xf]
        %v6334 = vpack.c.bf16 %v6304, %v6303
        %v6339 = vunpack.c.l.b16 %v6325
        %v6340 = vunpack.c.l.b16 %v6326
        %v6341 = vunpack.c.l.b16 %v6327
        %v6342 = vunpack.c.l.b16 %v6328
        %v6343 = vpack.c.b16 %v6340, %v6339
        %v6344 = vpack.c.b16 %v6342, %v6341
        %v6348 = vsel %vm4490, %v6334, 0
        %6350 = vmatprep.subr.bf16.mxu0 0
        %6351 = vmatpush1.bf16.msra.mxu0 %v6343
        %6352 = vmatprep.subr.bf16.mxu0 0
        %6353 = vmatpush1.bf16.msra.mxu0 %v6344
        %6354 = vmatprep.subr.bf16.mxu0 0
        %6355 = vmatpush1.bf16.msra.mxu0 0
        %6356 = vmatprep.subr.bf16.mxu0 0
        %6357 = vmatpush1.bf16.msra.mxu0 0
        %6358 = vmatprep.subr.bf16.mxu0 0
        %6359 = vmatpush1.bf16.msra.mxu0 0
        %6360 = vmatprep.subr.bf16.mxu0 0
        %6361 = vmatpush1.bf16.msra.mxu0 0
        %6362 = vmatprep.subr.bf16.mxu0 0
        %6363 = vmatpush1.bf16.msra.mxu0 0
        %6364 = vmatprep.subr.bf16.mxu0 0
        %6365 = vmatpush1.bf16.msra.mxu0 0
        %6366 = vmatprep.subr.bf16.mxu0 0
        %6367 = vmatpush1.bf16.msra.mxu0 0
        %6368 = vmatprep.subr.bf16.mxu0 0
        %6369 = vmatpush1.bf16.msra.mxu0 0
        %6370 = vmatprep.subr.bf16.mxu0 0
        %6371 = vmatpush1.bf16.msra.mxu0 0
        %6372 = vmatprep.subr.bf16.mxu0 0
        %6373 = vmatpush1.bf16.msra.mxu0 0
        %6374 = vmatprep.subr.bf16.mxu0 0
        %6375 = vmatpush1.bf16.msra.mxu0 0
        %6376 = vmatprep.subr.bf16.mxu0 0
        %6377 = vmatpush1.bf16.msra.mxu0 0
        %6378 = vmatprep.subr.bf16.mxu0 0
        %6379 = vmatpush1.bf16.msra.mxu0 0
        %6380 = vmatprep.subr.bf16.mxu0 0
        %6381 = vmatpush1.bf16.msra.mxu0 0
        %6382 = vmatprep.mubr.bf16.mxu0 0
        %6383 = vmatmul.mubr.bf16.gmra.mrb[0].mxu0 %v6348
        %v6384 = vpop.f32.mrb[0].mxu0
        %v6385 = vadd.f32 0.0, %v6384
        %v6386 = vpop.f32.mrb[0].mxu0
        %v6387 = vpop.f32.mrb[0].mxu0
        %v6388 = vadd.f32 0.0, %v6387
        %v6389 = vpop.f32.mrb[0].mxu0
        %6390 = vdwg.mxu0
        %v6395 = vunpack.c.l.b16 %v6330
        %v6396 = vunpack.c.l.b16 %v6331
        %v6397 = vunpack.c.l.b16 %v6332
        %v6398 = vunpack.c.l.b16 %v6333
        %v6399 = vpack.c.b16 %v6396, %v6395
        %v6400 = vpack.c.b16 %v6398, %v6397
        %6403 = vmatprep.subr.bf16.mxu0 0
        %6404 = vmatpush1.bf16.msra.mxu0 %v6399
        %6405 = vmatprep.subr.bf16.mxu0 0
        %6406 = vmatpush1.bf16.msra.mxu0 %v6400
        %6407 = vmatprep.subr.bf16.mxu0 0
        %6408 = vmatpush1.bf16.msra.mxu0 0
        %6409 = vmatprep.subr.bf16.mxu0 0
        %6410 = vmatpush1.bf16.msra.mxu0 0
        %6411 = vmatprep.subr.bf16.mxu0 0
        %6412 = vmatpush1.bf16.msra.mxu0 0
        %6413 = vmatprep.subr.bf16.mxu0 0
        %6414 = vmatpush1.bf16.msra.mxu0 0
        %6415 = vmatprep.subr.bf16.mxu0 0
        %6416 = vmatpush1.bf16.msra.mxu0 0
        %6417 = vmatprep.subr.bf16.mxu0 0
        %6418 = vmatpush1.bf16.msra.mxu0 0
        %6419 = vmatprep.subr.bf16.mxu0 0
        %6420 = vmatpush1.bf16.msra.mxu0 0
        %6421 = vmatprep.subr.bf16.mxu0 0
        %6422 = vmatpush1.bf16.msra.mxu0 0
        %6423 = vmatprep.subr.bf16.mxu0 0
        %6424 = vmatpush1.bf16.msra.mxu0 0
        %6425 = vmatprep.subr.bf16.mxu0 0
        %6426 = vmatpush1.bf16.msra.mxu0 0
        %6427 = vmatprep.subr.bf16.mxu0 0
        %6428 = vmatpush1.bf16.msra.mxu0 0
        %6429 = vmatprep.subr.bf16.mxu0 0
        %6430 = vmatpush1.bf16.msra.mxu0 0
        %6431 = vmatprep.subr.bf16.mxu0 0
        %6432 = vmatpush1.bf16.msra.mxu0 0
        %6433 = vmatprep.subr.bf16.mxu0 0
        %6434 = vmatpush1.bf16.msra.mxu0 0
        %6435 = vmatprep.mubr.bf16.mxu0 0
        %6436 = vmatmul.mubr.bf16.gmra.mrb[0].mxu0 %v6348
        %v6437 = vpop.f32.mrb[0].mxu0
        %v6438 = vadd.f32 0.0, %v6437
        %v6439 = vpop.f32.mrb[0].mxu0
        %v6440 = vpop.f32.mrb[0].mxu0
        %v6441 = vadd.f32 0.0, %v6440
        %v6442 = vpop.f32.mrb[0].mxu0
        %6443 = vdwg.mxu0
        %v6444 = vpack.c.bf16 %v6319, %v6319
        %v6449 = vunpack.c.l.b16 %v6320
        %v6450 = vunpack.c.l.b16 %v6321
        %v6451 = vunpack.c.l.b16 %v6322
        %v6452 = vunpack.c.l.b16 %v6323
        %v6453 = vpack.c.b16 %v6450, %v6449
        %v6454 = vpack.c.b16 %v6452, %v6451
        %v6458 = vsel %vm4490, %v6444, 0
        %6460 = vmatprep.subr.bf16.mxu0 0
        %6461 = vmatpush1.bf16.msra.mxu0 %v6453
        %6462 = vmatprep.subr.bf16.mxu0 0
        %6463 = vmatpush1.bf16.msra.mxu0 %v6454
        %6464 = vmatprep.subr.bf16.mxu0 0
        %6465 = vmatpush1.bf16.msra.mxu0 0
        %6466 = vmatprep.subr.bf16.mxu0 0
        %6467 = vmatpush1.bf16.msra.mxu0 0
        %6468 = vmatprep.subr.bf16.mxu0 0
        %6469 = vmatpush1.bf16.msra.mxu0 0
        %6470 = vmatprep.subr.bf16.mxu0 0
        %6471 = vmatpush1.bf16.msra.mxu0 0
        %6472 = vmatprep.subr.bf16.mxu0 0
        %6473 = vmatpush1.bf16.msra.mxu0 0
        %6474 = vmatprep.subr.bf16.mxu0 0
        %6475 = vmatpush1.bf16.msra.mxu0 0
        %6476 = vmatprep.subr.bf16.mxu0 0
        %6477 = vmatpush1.bf16.msra.mxu0 0
        %6478 = vmatprep.subr.bf16.mxu0 0
        %6479 = vmatpush1.bf16.msra.mxu0 0
        %6480 = vmatprep.subr.bf16.mxu0 0
        %6481 = vmatpush1.bf16.msra.mxu0 0
        %6482 = vmatprep.subr.bf16.mxu0 0
        %6483 = vmatpush1.bf16.msra.mxu0 0
        %6484 = vmatprep.subr.bf16.mxu0 0
        %6485 = vmatpush1.bf16.msra.mxu0 0
        %6486 = vmatprep.subr.bf16.mxu0 0
        %6487 = vmatpush1.bf16.msra.mxu0 0
        %6488 = vmatprep.subr.bf16.mxu0 0
        %6489 = vmatpush1.bf16.msra.mxu0 0
        %6490 = vmatprep.subr.bf16.mxu0 0
        %6491 = vmatpush1.bf16.msra.mxu0 0
        %6492 = vmatprep.mubr.bf16.mxu0 0
        %6493 = vmatmul.mubr.bf16.gmra.mrb[0].mxu0 %v6458
        %v6494 = vpop.f32.mrb[0].mxu0
        %v6495 = vadd.f32 0.0, %v6494
        %v6496 = vpop.f32.mrb[0].mxu0
        %v6497 = vpop.f32.mrb[0].mxu0
        %v6498 = vpop.f32.mrb[0].mxu0
        %6499 = vdwg.mxu0
        %6500 = vmatprep.subr.bf16.mxu0 0
        %6501 = vmatpush1.bf16.msra.mxu0 %v6343
        %6502 = vmatprep.subr.bf16.mxu0 0
        %6503 = vmatpush1.bf16.msra.mxu0 %v6344
        %6504 = vmatprep.subr.bf16.mxu0 0
        %6505 = vmatpush1.bf16.msra.mxu0 0
        %6506 = vmatprep.subr.bf16.mxu0 0
        %6507 = vmatpush1.bf16.msra.mxu0 0
        %6508 = vmatprep.subr.bf16.mxu0 0
        %6509 = vmatpush1.bf16.msra.mxu0 0
        %6510 = vmatprep.subr.bf16.mxu0 0
        %6511 = vmatpush1.bf16.msra.mxu0 0
        %6512 = vmatprep.subr.bf16.mxu0 0
        %6513 = vmatpush1.bf16.msra.mxu0 0
        %6514 = vmatprep.subr.bf16.mxu0 0
        %6515 = vmatpush1.bf16.msra.mxu0 0
        %6516 = vmatprep.subr.bf16.mxu0 0
        %6517 = vmatpush1.bf16.msra.mxu0 0
        %6518 = vmatprep.subr.bf16.mxu0 0
        %6519 = vmatpush1.bf16.msra.mxu0 0
        %6520 = vmatprep.subr.bf16.mxu0 0
        %6521 = vmatpush1.bf16.msra.mxu0 0
        %6522 = vmatprep.subr.bf16.mxu0 0
        %6523 = vmatpush1.bf16.msra.mxu0 0
        %6524 = vmatprep.subr.bf16.mxu0 0
        %6525 = vmatpush1.bf16.msra.mxu0 0
        %6526 = vmatprep.subr.bf16.mxu0 0
        %6527 = vmatpush1.bf16.msra.mxu0 0
        %6528 = vmatprep.subr.bf16.mxu0 0
        %6529 = vmatpush1.bf16.msra.mxu0 0
        %6530 = vmatprep.subr.bf16.mxu0 0
        %6531 = vmatpush1.bf16.msra.mxu0 0
        %6532 = vmatprep.mubr.bf16.mxu0 0
        %6533 = vmatmul.mubr.bf16.gmra.mrb[0].mxu0 %v6458
        %v6534 = vpop.f32.mrb[0].mxu0
        %v6535 = vadd.f32 0.0, %v6534
        %v6536 = vpop.f32.mrb[0].mxu0
        %v6537 = vpop.f32.mrb[0].mxu0
        %v6538 = vpop.f32.mrb[0].mxu0
        %6539 = vdwg.mxu0
        %6540 = vmatprep.subr.bf16.mxu0 0
        %6541 = vmatpush1.bf16.msra.mxu0 %v6399
        %6542 = vmatprep.subr.bf16.mxu0 0
        %6543 = vmatpush1.bf16.msra.mxu0 %v6400
        %6544 = vmatprep.subr.bf16.mxu0 0
        %6545 = vmatpush1.bf16.msra.mxu0 0
        %6546 = vmatprep.subr.bf16.mxu0 0
        %6547 = vmatpush1.bf16.msra.mxu0 0
        %6548 = vmatprep.subr.bf16.mxu0 0
        %6549 = vmatpush1.bf16.msra.mxu0 0
        %6550 = vmatprep.subr.bf16.mxu0 0
        %6551 = vmatpush1.bf16.msra.mxu0 0
        %6552 = vmatprep.subr.bf16.mxu0 0
        %6553 = vmatpush1.bf16.msra.mxu0 0
        %6554 = vmatprep.subr.bf16.mxu0 0
        %6555 = vmatpush1.bf16.msra.mxu0 0
        %6556 = vmatprep.subr.bf16.mxu0 0
        %6557 = vmatpush1.bf16.msra.mxu0 0
        %6558 = vmatprep.subr.bf16.mxu0 0
        %6559 = vmatpush1.bf16.msra.mxu0 0
        %6560 = vmatprep.subr.bf16.mxu0 0
        %6561 = vmatpush1.bf16.msra.mxu0 0
        %6562 = vmatprep.subr.bf16.mxu0 0
        %6563 = vmatpush1.bf16.msra.mxu0 0
        %6564 = vmatprep.subr.bf16.mxu0 0
        %6565 = vmatpush1.bf16.msra.mxu0 0
        %6566 = vmatprep.subr.bf16.mxu0 0
        %6567 = vmatpush1.bf16.msra.mxu0 0
        %6568 = vmatprep.subr.bf16.mxu0 0
        %6569 = vmatpush1.bf16.msra.mxu0 0
        %6570 = vmatprep.subr.bf16.mxu0 0
        %6571 = vmatpush1.bf16.msra.mxu0 0
        %6572 = vmatprep.mubr.bf16.mxu0 0
        %6573 = vmatmul.mubr.bf16.gmra.mrb[0].mxu0 %v6458
        %v6574 = vpop.f32.mrb[0].mxu0
        %v6575 = vadd.f32 0.0, %v6574
        %v6576 = vpop.f32.mrb[0].mxu0
        %v6577 = vpop.f32.mrb[0].mxu0
        %v6578 = vpop.f32.mrb[0].mxu0
        %6579 = vdwg.mxu0
        %v6580 = vld [vmem:[%s65] sm:$0xf]
        %v6581 = vld [vmem:[%s65 + $0x4] sm:$0xf]
        %v6582 = vpack.c.bf16 %v6495, %v6495
        %v6583 = vpack.c.bf16 %v6388, %v6385
        %v6585 = vsel %vm4906, %v6582, 0
        %v6588 = vsel %vm4906, %v6583, 0
        %6590 = vmatprep.subr.bf16.mxu0 0
        %6591 = vmatpush1.bf16.xpose.msra.mxu0 %v6588
        %6592 = vmatprep.subr.bf16.mxu0 0
        %6593 = vmatpush1.bf16.xpose.msra.mxu0 0
        %6594 = vmatprep.subr.bf16.mxu0 0
        %6595 = vmatpush1.bf16.xpose.msra.mxu0 0
        %6596 = vmatprep.subr.bf16.mxu0 0
        %6597 = vmatpush1.bf16.xpose.msra.mxu0 0
        %6598 = vmatprep.subr.bf16.mxu0 0
        %6599 = vmatpush1.bf16.xpose.msra.mxu0 0
        %6600 = vmatprep.subr.bf16.mxu0 0
        %6601 = vmatpush1.bf16.xpose.msra.mxu0 0
        %6602 = vmatprep.subr.bf16.mxu0 0
        %6603 = vmatpush1.bf16.xpose.msra.mxu0 0
        %6604 = vmatprep.subr.bf16.mxu0 0
        %6605 = vmatpush1.bf16.xpose.msra.mxu0 0
        %6606 = vmatprep.subr.bf16.mxu0 0
        %6607 = vmatpush1.bf16.xpose.msra.mxu0 0
        %6608 = vmatprep.subr.bf16.mxu0 0
        %6609 = vmatpush1.bf16.xpose.msra.mxu0 0
        %6610 = vmatprep.subr.bf16.mxu0 0
        %6611 = vmatpush1.bf16.xpose.msra.mxu0 0
        %6612 = vmatprep.subr.bf16.mxu0 0
        %6613 = vmatpush1.bf16.xpose.msra.mxu0 0
        %6614 = vmatprep.subr.bf16.mxu0 0
        %6615 = vmatpush1.bf16.xpose.msra.mxu0 0
        %6616 = vmatprep.subr.bf16.mxu0 0
        %6617 = vmatpush1.bf16.xpose.msra.mxu0 0
        %6618 = vmatprep.subr.bf16.mxu0 0
        %6619 = vmatpush1.bf16.xpose.msra.mxu0 0
        %6620 = vmatprep.subr.bf16.mxu0 0
        %6621 = vmatpush1.bf16.xpose.msra.mxu0 0
        %6622 = vmatprep.mubr.bf16.mxu0 0
        %6623 = vmatmul.mubr.bf16.gmra.mrb[0].mxu0 %v6585
        %v6624 = vpop.f32.mrb[0].mxu0
        %v6625 = vadd.f32 0.0, %v6624
        %v6626 = vpop.f32.mrb[0].mxu0
        %v6627 = vpop.f32.mrb[0].mxu0
        %v6628 = vpop.f32.mrb[0].mxu0
        %6629 = vdwg.mxu0
        %v6630 = vmul.f32 %v6625, 0.25
        %v6631 = vmul.f32 %v6495, %v6535
        %v6632 = vsel %vm5103, %v6631, 0.0
        %6633 = vadd.xlane.f32.xlu0 %v6632
        %v6634 = vpop.xlane.xlu0 %6633
        %v6635 = vmul.f32 %v6634, 0.25
        %v6636 = vsel %vm5103, %v6630, -inf
        %6637 = vmax.xlane.f32.xlu0 %v6636
        %v6638 = vpop.xlane.xlu0 %6637
        %v6639 = vmax.f32 %v6638, %v6635
        %v6640 = vsub.f32 %v6630, %v6639
        %v6641 = vmul.f32 %v6640, 1.442695
        %v6642 = vpow.pop %v6641
        %v6643 = vsub.f32 %v6635, %v6639
        %v6644 = vmul.f32 %v6643, 1.442695
        %v6645 = vpow.pop %v6644
        %v6646 = vsel %vm5103, %v6642, 0.0
        %6647 = vadd.xlane.f32.xlu0 %v6646
        %v6648 = vpop.xlane.xlu0 %6647
        %v6649 = vadd.f32 %v6648, %v6645
        %v6650 = vrcp.pop %v6649
        %v6651 = vmul.f32 %v6642, %v6650
        %v6652 = vpack.c.bf16 %v6651, %v6651
        %v6653 = vpack.c.bf16 %v6441, %v6438
        %v6654 = vmul.f32 %v6645, %v6650
        %v6655 = vmul.f32 %v6654, %v6575
        %v6657 = vsel %vm4906, %v6652, 0
        %6659 = vmatprep.subr.bf16.mxu0 0
        %6660 = vmatpush1.bf16.msra.mxu0 %v6653
        %6661 = vmatprep.subr.bf16.mxu0 0
        %6662 = vmatpush1.bf16.msra.mxu0 0
        %6663 = vmatprep.subr.bf16.mxu0 0
        %6664 = vmatpush1.bf16.msra.mxu0 0
        %6665 = vmatprep.subr.bf16.mxu0 0
        %6666 = vmatpush1.bf16.msra.mxu0 0
        %6667 = vmatprep.subr.bf16.mxu0 0
        %6668 = vmatpush1.bf16.msra.mxu0 0
        %6669 = vmatprep.subr.bf16.mxu0 0
        %6670 = vmatpush1.bf16.msra.mxu0 0
        %6671 = vmatprep.subr.bf16.mxu0 0
        %6672 = vmatpush1.bf16.msra.mxu0 0
        %6673 = vmatprep.subr.bf16.mxu0 0
        %6674 = vmatpush1.bf16.msra.mxu0 0
        %6675 = vmatprep.subr.bf16.mxu0 0
        %6676 = vmatpush1.bf16.msra.mxu0 0
        %6677 = vmatprep.subr.bf16.mxu0 0
        %6678 = vmatpush1.bf16.msra.mxu0 0
        %6679 = vmatprep.subr.bf16.mxu0 0
        %6680 = vmatpush1.bf16.msra.mxu0 0
        %6681 = vmatprep.subr.bf16.mxu0 0
        %6682 = vmatpush1.bf16.msra.mxu0 0
        %6683 = vmatprep.subr.bf16.mxu0 0
        %6684 = vmatpush1.bf16.msra.mxu0 0
        %6685 = vmatprep.subr.bf16.mxu0 0
        %6686 = vmatpush1.bf16.msra.mxu0 0
        %6687 = vmatprep.subr.bf16.mxu0 0
        %6688 = vmatpush1.bf16.msra.mxu0 0
        %6689 = vmatprep.subr.bf16.mxu0 0
        %6690 = vmatpush1.bf16.msra.mxu0 0
        %6691 = vmatprep.mubr.bf16.mxu0 0
        %6692 = vmatmul.mubr.bf16.gmra.mrb[0].mxu0 %v6657
        %v6693 = vpop.f32.mrb[0].mxu0
        %v6694 = vadd.f32 %v6655, %v6693
        %v6695 = vpop.f32.mrb[0].mxu0
        %v6696 = vpop.f32.mrb[0].mxu0
        %v6697 = vpop.f32.mrb[0].mxu0
        %6698 = vdwg.mxu0
        %v6699 = vpack.c.bf16 %v6694, %v6694
        %s6700 = scalar_lea.vmem %s63, 16
        %v6701 = vld [vmem:[%s6700] sm:$0xf]
        %v6702 = vld [vmem:[%s6700 + $0x4] sm:$0xf]
        %v6703 = vld [vmem:[%s6700 + $0x8] sm:$0xf]
        %v6704 = vld [vmem:[%s6700 + $0xc] sm:$0xf]
        %s6705 = scalar_lea.vmem %s63, 48
        %v6706 = vld [vmem:[%s6705] sm:$0xf]
        %v6707 = vld [vmem:[%s6705 + $0x4] sm:$0xf]
        %v6708 = vld [vmem:[%s6705 + $0x8] sm:$0xf]
        %v6709 = vld [vmem:[%s6705 + $0xc] sm:$0xf]
        %s6710 = scalar_lea.vmem %s63, 80
        %v6711 = vld [vmem:[%s6710] sm:$0xf]
        %v6712 = vld [vmem:[%s6710 + $0x4] sm:$0xf]
        %v6713 = vld [vmem:[%s6710 + $0x8] sm:$0xf]
        %v6714 = vld [vmem:[%s6710 + $0xc] sm:$0xf]
        %v6719 = vunpack.c.l.b16 %v6706
        %v6720 = vunpack.c.l.b16 %v6707
        %v6721 = vunpack.c.l.b16 %v6708
        %v6722 = vunpack.c.l.b16 %v6709
        %v6723 = vpack.c.b16 %v6720, %v6719
        %v6724 = vpack.c.b16 %v6722, %v6721
        %6727 = vmatprep.subr.bf16.mxu0 0
        %6728 = vmatpush1.bf16.msra.mxu0 %v6723
        %6729 = vmatprep.subr.bf16.mxu0 0
        %6730 = vmatpush1.bf16.msra.mxu0 %v6724
        %6731 = vmatprep.subr.bf16.mxu0 0
        %6732 = vmatpush1.bf16.msra.mxu0 0
        %6733 = vmatprep.subr.bf16.mxu0 0
        %6734 = vmatpush1.bf16.msra.mxu0 0
        %6735 = vmatprep.subr.bf16.mxu0 0
        %6736 = vmatpush1.bf16.msra.mxu0 0
        %6737 = vmatprep.subr.bf16.mxu0 0
        %6738 = vmatpush1.bf16.msra.mxu0 0
        %6739 = vmatprep.subr.bf16.mxu0 0
        %6740 = vmatpush1.bf16.msra.mxu0 0
        %6741 = vmatprep.subr.bf16.mxu0 0
        %6742 = vmatpush1.bf16.msra.mxu0 0
        %6743 = vmatprep.subr.bf16.mxu0 0
        %6744 = vmatpush1.bf16.msra.mxu0 0
        %6745 = vmatprep.subr.bf16.mxu0 0
        %6746 = vmatpush1.bf16.msra.mxu0 0
        %6747 = vmatprep.subr.bf16.mxu0 0
        %6748 = vmatpush1.bf16.msra.mxu0 0
        %6749 = vmatprep.subr.bf16.mxu0 0
        %6750 = vmatpush1.bf16.msra.mxu0 0
        %6751 = vmatprep.subr.bf16.mxu0 0
        %6752 = vmatpush1.bf16.msra.mxu0 0
        %6753 = vmatprep.subr.bf16.mxu0 0
        %6754 = vmatpush1.bf16.msra.mxu0 0
        %6755 = vmatprep.subr.bf16.mxu0 0
        %6756 = vmatpush1.bf16.msra.mxu0 0
        %6757 = vmatprep.subr.bf16.mxu0 0
        %6758 = vmatpush1.bf16.msra.mxu0 0
        %6759 = vmatprep.mubr.bf16.mxu0 0
        %6760 = vmatmul.mubr.bf16.gmra.mrb[0].mxu0 %v6348
        %v6761 = vpop.f32.mrb[0].mxu0
        %v6762 = vadd.f32 0.0, %v6761
        %v6763 = vpop.f32.mrb[0].mxu0
        %v6764 = vpop.f32.mrb[0].mxu0
        %v6765 = vadd.f32 0.0, %v6764
        %v6766 = vpop.f32.mrb[0].mxu0
        %6767 = vdwg.mxu0
        %v6772 = vunpack.c.l.b16 %v6711
        %v6773 = vunpack.c.l.b16 %v6712
        %v6774 = vunpack.c.l.b16 %v6713
        %v6775 = vunpack.c.l.b16 %v6714
        %v6776 = vpack.c.b16 %v6773, %v6772
        %v6777 = vpack.c.b16 %v6775, %v6774
        %6780 = vmatprep.subr.bf16.mxu0 0
        %6781 = vmatpush1.bf16.msra.mxu0 %v6776
        %6782 = vmatprep.subr.bf16.mxu0 0
        %6783 = vmatpush1.bf16.msra.mxu0 %v6777
        %6784 = vmatprep.subr.bf16.mxu0 0
        %6785 = vmatpush1.bf16.msra.mxu0 0
        %6786 = vmatprep.subr.bf16.mxu0 0
        %6787 = vmatpush1.bf16.msra.mxu0 0
        %6788 = vmatprep.subr.bf16.mxu0 0
        %6789 = vmatpush1.bf16.msra.mxu0 0
        %6790 = vmatprep.subr.bf16.mxu0 0
        %6791 = vmatpush1.bf16.msra.mxu0 0
        %6792 = vmatprep.subr.bf16.mxu0 0
        %6793 = vmatpush1.bf16.msra.mxu0 0
        %6794 = vmatprep.subr.bf16.mxu0 0
        %6795 = vmatpush1.bf16.msra.mxu0 0
        %6796 = vmatprep.subr.bf16.mxu0 0
        %6797 = vmatpush1.bf16.msra.mxu0 0
        %6798 = vmatprep.subr.bf16.mxu0 0
        %6799 = vmatpush1.bf16.msra.mxu0 0
        %6800 = vmatprep.subr.bf16.mxu0 0
        %6801 = vmatpush1.bf16.msra.mxu0 0
        %6802 = vmatprep.subr.bf16.mxu0 0
        %6803 = vmatpush1.bf16.msra.mxu0 0
        %6804 = vmatprep.subr.bf16.mxu0 0
        %6805 = vmatpush1.bf16.msra.mxu0 0
        %6806 = vmatprep.subr.bf16.mxu0 0
        %6807 = vmatpush1.bf16.msra.mxu0 0
        %6808 = vmatprep.subr.bf16.mxu0 0
        %6809 = vmatpush1.bf16.msra.mxu0 0
        %6810 = vmatprep.subr.bf16.mxu0 0
        %6811 = vmatpush1.bf16.msra.mxu0 0
        %6812 = vmatprep.mubr.bf16.mxu0 0
        %6813 = vmatmul.mubr.bf16.gmra.mrb[0].mxu0 %v6348
        %v6814 = vpop.f32.mrb[0].mxu0
        %v6815 = vadd.f32 0.0, %v6814
        %v6816 = vpop.f32.mrb[0].mxu0
        %v6817 = vpop.f32.mrb[0].mxu0
        %v6818 = vadd.f32 0.0, %v6817
        %v6819 = vpop.f32.mrb[0].mxu0
        %6820 = vdwg.mxu0
        %v6825 = vunpack.c.l.b16 %v6701
        %v6826 = vunpack.c.l.b16 %v6702
        %v6827 = vunpack.c.l.b16 %v6703
        %v6828 = vunpack.c.l.b16 %v6704
        %v6829 = vpack.c.b16 %v6826, %v6825
        %v6830 = vpack.c.b16 %v6828, %v6827
        %6833 = vmatprep.subr.bf16.mxu0 0
        %6834 = vmatpush1.bf16.msra.mxu0 %v6829
        %6835 = vmatprep.subr.bf16.mxu0 0
        %6836 = vmatpush1.bf16.msra.mxu0 %v6830
        %6837 = vmatprep.subr.bf16.mxu0 0
        %6838 = vmatpush1.bf16.msra.mxu0 0
        %6839 = vmatprep.subr.bf16.mxu0 0
        %6840 = vmatpush1.bf16.msra.mxu0 0
        %6841 = vmatprep.subr.bf16.mxu0 0
        %6842 = vmatpush1.bf16.msra.mxu0 0
        %6843 = vmatprep.subr.bf16.mxu0 0
        %6844 = vmatpush1.bf16.msra.mxu0 0
        %6845 = vmatprep.subr.bf16.mxu0 0
        %6846 = vmatpush1.bf16.msra.mxu0 0
        %6847 = vmatprep.subr.bf16.mxu0 0
        %6848 = vmatpush1.bf16.msra.mxu0 0
        %6849 = vmatprep.subr.bf16.mxu0 0
        %6850 = vmatpush1.bf16.msra.mxu0 0
        %6851 = vmatprep.subr.bf16.mxu0 0
        %6852 = vmatpush1.bf16.msra.mxu0 0
        %6853 = vmatprep.subr.bf16.mxu0 0
        %6854 = vmatpush1.bf16.msra.mxu0 0
        %6855 = vmatprep.subr.bf16.mxu0 0
        %6856 = vmatpush1.bf16.msra.mxu0 0
        %6857 = vmatprep.subr.bf16.mxu0 0
        %6858 = vmatpush1.bf16.msra.mxu0 0
        %6859 = vmatprep.subr.bf16.mxu0 0
        %6860 = vmatpush1.bf16.msra.mxu0 0
        %6861 = vmatprep.subr.bf16.mxu0 0
        %6862 = vmatpush1.bf16.msra.mxu0 0
        %6863 = vmatprep.subr.bf16.mxu0 0
        %6864 = vmatpush1.bf16.msra.mxu0 0
        %6865 = vmatprep.mubr.bf16.mxu0 0
        %6866 = vmatmul.mubr.bf16.gmra.mrb[0].mxu0 %v6458
        %v6867 = vpop.f32.mrb[0].mxu0
        %v6868 = vadd.f32 0.0, %v6867
        %v6869 = vpop.f32.mrb[0].mxu0
        %v6870 = vpop.f32.mrb[0].mxu0
        %v6871 = vpop.f32.mrb[0].mxu0
        %6872 = vdwg.mxu0
        %6873 = vmatprep.subr.bf16.mxu0 0
        %6874 = vmatpush1.bf16.msra.mxu0 %v6723
        %6875 = vmatprep.subr.bf16.mxu0 0
        %6876 = vmatpush1.bf16.msra.mxu0 %v6724
        %6877 = vmatprep.subr.bf16.mxu0 0
        %6878 = vmatpush1.bf16.msra.mxu0 0
        %6879 = vmatprep.subr.bf16.mxu0 0
        %6880 = vmatpush1.bf16.msra.mxu0 0
        %6881 = vmatprep.subr.bf16.mxu0 0
        %6882 = vmatpush1.bf16.msra.mxu0 0
        %6883 = vmatprep.subr.bf16.mxu0 0
        %6884 = vmatpush1.bf16.msra.mxu0 0
        %6885 = vmatprep.subr.bf16.mxu0 0
        %6886 = vmatpush1.bf16.msra.mxu0 0
        %6887 = vmatprep.subr.bf16.mxu0 0
        %6888 = vmatpush1.bf16.msra.mxu0 0
        %6889 = vmatprep.subr.bf16.mxu0 0
        %6890 = vmatpush1.bf16.msra.mxu0 0
        %6891 = vmatprep.subr.bf16.mxu0 0
        %6892 = vmatpush1.bf16.msra.mxu0 0
        %6893 = vmatprep.subr.bf16.mxu0 0
        %6894 = vmatpush1.bf16.msra.mxu0 0
        %6895 = vmatprep.subr.bf16.mxu0 0
        %6896 = vmatpush1.bf16.msra.mxu0 0
        %6897 = vmatprep.subr.bf16.mxu0 0
        %6898 = vmatpush1.bf16.msra.mxu0 0
        %6899 = vmatprep.subr.bf16.mxu0 0
        %6900 = vmatpush1.bf16.msra.mxu0 0
        %6901 = vmatprep.subr.bf16.mxu0 0
        %6902 = vmatpush1.bf16.msra.mxu0 0
        %6903 = vmatprep.subr.bf16.mxu0 0
        %6904 = vmatpush1.bf16.msra.mxu0 0
        %6905 = vmatprep.mubr.bf16.mxu0 0
        %6906 = vmatmul.mubr.bf16.gmra.mrb[0].mxu0 %v6458
        %v6907 = vpop.f32.mrb[0].mxu0
        %v6908 = vadd.f32 0.0, %v6907
        %v6909 = vpop.f32.mrb[0].mxu0
        %v6910 = vpop.f32.mrb[0].mxu0
        %v6911 = vpop.f32.mrb[0].mxu0
        %6912 = vdwg.mxu0
        %6913 = vmatprep.subr.bf16.mxu0 0
        %6914 = vmatpush1.bf16.msra.mxu0 %v6776
        %6915 = vmatprep.subr.bf16.mxu0 0
        %6916 = vmatpush1.bf16.msra.mxu0 %v6777
        %6917 = vmatprep.subr.bf16.mxu0 0
        %6918 = vmatpush1.bf16.msra.mxu0 0
        %6919 = vmatprep.subr.bf16.mxu0 0
        %6920 = vmatpush1.bf16.msra.mxu0 0
        %6921 = vmatprep.subr.bf16.mxu0 0
        %6922 = vmatpush1.bf16.msra.mxu0 0
        %6923 = vmatprep.subr.bf16.mxu0 0
        %6924 = vmatpush1.bf16.msra.mxu0 0
        %6925 = vmatprep.subr.bf16.mxu0 0
        %6926 = vmatpush1.bf16.msra.mxu0 0
        %6927 = vmatprep.subr.bf16.mxu0 0
        %6928 = vmatpush1.bf16.msra.mxu0 0
        %6929 = vmatprep.subr.bf16.mxu0 0
        %6930 = vmatpush1.bf16.msra.mxu0 0
        %6931 = vmatprep.subr.bf16.mxu0 0
        %6932 = vmatpush1.bf16.msra.mxu0 0
        %6933 = vmatprep.subr.bf16.mxu0 0
        %6934 = vmatpush1.bf16.msra.mxu0 0
        %6935 = vmatprep.subr.bf16.mxu0 0
        %6936 = vmatpush1.bf16.msra.mxu0 0
        %6937 = vmatprep.subr.bf16.mxu0 0
        %6938 = vmatpush1.bf16.msra.mxu0 0
        %6939 = vmatprep.subr.bf16.mxu0 0
        %6940 = vmatpush1.bf16.msra.mxu0 0
        %6941 = vmatprep.subr.bf16.mxu0 0
        %6942 = vmatpush1.bf16.msra.mxu0 0
        %6943 = vmatprep.subr.bf16.mxu0 0
        %6944 = vmatpush1.bf16.msra.mxu0 0
        %6945 = vmatprep.mubr.bf16.mxu0 0
        %6946 = vmatmul.mubr.bf16.gmra.mrb[0].mxu0 %v6458
        %v6947 = vpop.f32.mrb[0].mxu0
        %v6948 = vadd.f32 0.0, %v6947
        %v6949 = vpop.f32.mrb[0].mxu0
        %v6950 = vpop.f32.mrb[0].mxu0
        %v6951 = vpop.f32.mrb[0].mxu0
        %6952 = vdwg.mxu0
        %s6953 = scalar_lea.vmem %s65, 8
        %v6954 = vld [vmem:[%s6953] sm:$0xf]
        %v6955 = vld [vmem:[%s6953 + $0x4] sm:$0xf]
        %v6956 = vpack.c.bf16 %v6868, %v6868
        %v6957 = vpack.c.bf16 %v6765, %v6762
        %v6959 = vsel %vm4906, %v6956, 0
        %v6962 = vsel %vm4906, %v6957, 0
        %6964 = vmatprep.subr.bf16.mxu0 0
        %6965 = vmatpush1.bf16.xpose.msra.mxu0 %v6962
        %6966 = vmatprep.subr.bf16.mxu0 0
        %6967 = vmatpush1.bf16.xpose.msra.mxu0 0
        %6968 = vmatprep.subr.bf16.mxu0 0
        %6969 = vmatpush1.bf16.xpose.msra.mxu0 0
        %6970 = vmatprep.subr.bf16.mxu0 0
        %6971 = vmatpush1.bf16.xpose.msra.mxu0 0
        %6972 = vmatprep.subr.bf16.mxu0 0
        %6973 = vmatpush1.bf16.xpose.msra.mxu0 0
        %6974 = vmatprep.subr.bf16.mxu0 0
        %6975 = vmatpush1.bf16.xpose.msra.mxu0 0
        %6976 = vmatprep.subr.bf16.mxu0 0
        %6977 = vmatpush1.bf16.xpose.msra.mxu0 0
        %6978 = vmatprep.subr.bf16.mxu0 0
        %6979 = vmatpush1.bf16.xpose.msra.mxu0 0
        %6980 = vmatprep.subr.bf16.mxu0 0
        %6981 = vmatpush1.bf16.xpose.msra.mxu0 0
        %6982 = vmatprep.subr.bf16.mxu0 0
        %6983 = vmatpush1.bf16.xpose.msra.mxu0 0
        %6984 = vmatprep.subr.bf16.mxu0 0
        %6985 = vmatpush1.bf16.xpose.msra.mxu0 0
        %6986 = vmatprep.subr.bf16.mxu0 0
        %6987 = vmatpush1.bf16.xpose.msra.mxu0 0
        %6988 = vmatprep.subr.bf16.mxu0 0
        %6989 = vmatpush1.bf16.xpose.msra.mxu0 0
        %6990 = vmatprep.subr.bf16.mxu0 0
        %6991 = vmatpush1.bf16.xpose.msra.mxu0 0
        %6992 = vmatprep.subr.bf16.mxu0 0
        %6993 = vmatpush1.bf16.xpose.msra.mxu0 0
        %6994 = vmatprep.subr.bf16.mxu0 0
        %6995 = vmatpush1.bf16.xpose.msra.mxu0 0
        %6996 = vmatprep.mubr.bf16.mxu0 0
        %6997 = vmatmul.mubr.bf16.gmra.mrb[0].mxu0 %v6959
        %v6998 = vpop.f32.mrb[0].mxu0
        %v6999 = vadd.f32 0.0, %v6998
        %v7000 = vpop.f32.mrb[0].mxu0
        %v7001 = vpop.f32.mrb[0].mxu0
        %v7002 = vpop.f32.mrb[0].mxu0
        %7003 = vdwg.mxu0
        %v7004 = vmul.f32 %v6999, 0.25
        %v7005 = vmul.f32 %v6868, %v6908
        %v7006 = vsel %vm5103, %v7005, 0.0
        %7007 = vadd.xlane.f32.xlu0 %v7006
        %v7008 = vpop.xlane.xlu0 %7007
        %v7009 = vmul.f32 %v7008, 0.25
        %v7010 = vsel %vm5103, %v7004, -inf
        %7011 = vmax.xlane.f32.xlu0 %v7010
        %v7012 = vpop.xlane.xlu0 %7011
        %v7013 = vmax.f32 %v7012, %v7009
        %v7014 = vsub.f32 %v7004, %v7013
        %v7015 = vmul.f32 %v7014, 1.442695
        %v7016 = vpow.pop %v7015
        %v7017 = vsub.f32 %v7009, %v7013
        %v7018 = vmul.f32 %v7017, 1.442695
        %v7019 = vpow.pop %v7018
        %v7020 = vsel %vm5103, %v7016, 0.0
        %7021 = vadd.xlane.f32.xlu0 %v7020
        %v7022 = vpop.xlane.xlu0 %7021
        %v7023 = vadd.f32 %v7022, %v7019
        %v7024 = vrcp.pop %v7023
        %v7025 = vmul.f32 %v7016, %v7024
        %v7026 = vpack.c.bf16 %v7025, %v7025
        %v7027 = vpack.c.bf16 %v6818, %v6815
        %v7028 = vmul.f32 %v7019, %v7024
        %v7029 = vmul.f32 %v7028, %v6948
        %v7031 = vsel %vm4906, %v7026, 0
        %7033 = vmatprep.subr.bf16.mxu0 0
        %7034 = vmatpush1.bf16.msra.mxu0 %v7027
        %7035 = vmatprep.subr.bf16.mxu0 0
        %7036 = vmatpush1.bf16.msra.mxu0 0
        %7037 = vmatprep.subr.bf16.mxu0 0
        %7038 = vmatpush1.bf16.msra.mxu0 0
        %7039 = vmatprep.subr.bf16.mxu0 0
        %7040 = vmatpush1.bf16.msra.mxu0 0
        %7041 = vmatprep.subr.bf16.mxu0 0
        %7042 = vmatpush1.bf16.msra.mxu0 0
        %7043 = vmatprep.subr.bf16.mxu0 0
        %7044 = vmatpush1.bf16.msra.mxu0 0
        %7045 = vmatprep.subr.bf16.mxu0 0
        %7046 = vmatpush1.bf16.msra.mxu0 0
        %7047 = vmatprep.subr.bf16.mxu0 0
        %7048 = vmatpush1.bf16.msra.mxu0 0
        %7049 = vmatprep.subr.bf16.mxu0 0
        %7050 = vmatpush1.bf16.msra.mxu0 0
        %7051 = vmatprep.subr.bf16.mxu0 0
        %7052 = vmatpush1.bf16.msra.mxu0 0
        %7053 = vmatprep.subr.bf16.mxu0 0
        %7054 = vmatpush1.bf16.msra.mxu0 0
        %7055 = vmatprep.subr.bf16.mxu0 0
        %7056 = vmatpush1.bf16.msra.mxu0 0
        %7057 = vmatprep.subr.bf16.mxu0 0
        %7058 = vmatpush1.bf16.msra.mxu0 0
        %7059 = vmatprep.subr.bf16.mxu0 0
        %7060 = vmatpush1.bf16.msra.mxu0 0
        %7061 = vmatprep.subr.bf16.mxu0 0
        %7062 = vmatpush1.bf16.msra.mxu0 0
        %7063 = vmatprep.subr.bf16.mxu0 0
        %7064 = vmatpush1.bf16.msra.mxu0 0
        %7065 = vmatprep.mubr.bf16.mxu0 0
        %7066 = vmatmul.mubr.bf16.gmra.mrb[0].mxu0 %v7031
        %v7067 = vpop.f32.mrb[0].mxu0
        %v7068 = vadd.f32 %v7029, %v7067
        %v7069 = vpop.f32.mrb[0].mxu0
        %v7070 = vpop.f32.mrb[0].mxu0
        %v7071 = vpop.f32.mrb[0].mxu0
        %7072 = vdwg.mxu0
        %v7073 = vpack.c.bf16 %v7068, %v7068
        %v7076 = vunpack.c.l.b16 %v6954
        %v7077 = vunpack.c.l.b16 %v6955
        %v7078 = vpack.c.b16 %v7077, %v7076
        %v7081 = vsel %vm4906, %v7073, 0
        %7083 = vmatprep.subr.bf16.mxu0 0
        %7084 = vmatpush1.bf16.msra.mxu0 %v7078
        %7085 = vmatprep.subr.bf16.mxu0 0
        %7086 = vmatpush1.bf16.msra.mxu0 0
        %7087 = vmatprep.subr.bf16.mxu0 0
        %7088 = vmatpush1.bf16.msra.mxu0 0
        %7089 = vmatprep.subr.bf16.mxu0 0
        %7090 = vmatpush1.bf16.msra.mxu0 0
        %7091 = vmatprep.subr.bf16.mxu0 0
        %7092 = vmatpush1.bf16.msra.mxu0 0
        %7093 = vmatprep.subr.bf16.mxu0 0
        %7094 = vmatpush1.bf16.msra.mxu0 0
        %7095 = vmatprep.subr.bf16.mxu0 0
        %7096 = vmatpush1.bf16.msra.mxu0 0
        %7097 = vmatprep.subr.bf16.mxu0 0
        %7098 = vmatpush1.bf16.msra.mxu0 0
        %7099 = vmatprep.subr.bf16.mxu0 0
        %7100 = vmatpush1.bf16.msra.mxu0 0
        %7101 = vmatprep.subr.bf16.mxu0 0
        %7102 = vmatpush1.bf16.msra.mxu0 0
        %7103 = vmatprep.subr.bf16.mxu0 0
        %7104 = vmatpush1.bf16.msra.mxu0 0
        %7105 = vmatprep.subr.bf16.mxu0 0
        %7106 = vmatpush1.bf16.msra.mxu0 0
        %7107 = vmatprep.subr.bf16.mxu0 0
        %7108 = vmatpush1.bf16.msra.mxu0 0
        %7109 = vmatprep.subr.bf16.mxu0 0
        %7110 = vmatpush1.bf16.msra.mxu0 0
        %7111 = vmatprep.subr.bf16.mxu0 0
        %7112 = vmatpush1.bf16.msra.mxu0 0
        %7113 = vmatprep.subr.bf16.mxu0 0
        %7114 = vmatpush1.bf16.msra.mxu0 0
        %7115 = vmatprep.mubr.bf16.mxu0 0
        %7116 = vmatmul.mubr.bf16.gmra.mrb[0].mxu0 %v7081
        %v7117 = vpop.f32.mrb[0].mxu0
        %v7118 = vadd.f32 0.0, %v7117
        %v7119 = vpop.f32.mrb[0].mxu0
        %v7120 = vpop.f32.mrb[0].mxu0
        %v7121 = vpop.f32.mrb[0].mxu0
        %7122 = vdwg.mxu0
        %v7125 = vunpack.c.l.b16 %v6580
        %v7126 = vunpack.c.l.b16 %v6581
        %v7127 = vpack.c.b16 %v7126, %v7125
        %v7130 = vsel %vm4906, %v6699, 0
        %7132 = vmatprep.subr.bf16.mxu0 0
        %7133 = vmatpush1.bf16.msra.mxu0 %v7127
        %7134 = vmatprep.subr.bf16.mxu0 0
        %7135 = vmatpush1.bf16.msra.mxu0 0
        %7136 = vmatprep.subr.bf16.mxu0 0
        %7137 = vmatpush1.bf16.msra.mxu0 0
        %7138 = vmatprep.subr.bf16.mxu0 0
        %7139 = vmatpush1.bf16.msra.mxu0 0
        %7140 = vmatprep.subr.bf16.mxu0 0
        %7141 = vmatpush1.bf16.msra.mxu0 0
        %7142 = vmatprep.subr.bf16.mxu0 0
        %7143 = vmatpush1.bf16.msra.mxu0 0
        %7144 = vmatprep.subr.bf16.mxu0 0
        %7145 = vmatpush1.bf16.msra.mxu0 0
        %7146 = vmatprep.subr.bf16.mxu0 0
        %7147 = vmatpush1.bf16.msra.mxu0 0
        %7148 = vmatprep.subr.bf16.mxu0 0
        %7149 = vmatpush1.bf16.msra.mxu0 0
        %7150 = vmatprep.subr.bf16.mxu0 0
        %7151 = vmatpush1.bf16.msra.mxu0 0
        %7152 = vmatprep.subr.bf16.mxu0 0
        %7153 = vmatpush1.bf16.msra.mxu0 0
        %7154 = vmatprep.subr.bf16.mxu0 0
        %7155 = vmatpush1.bf16.msra.mxu0 0
        %7156 = vmatprep.subr.bf16.mxu0 0
        %7157 = vmatpush1.bf16.msra.mxu0 0
        %7158 = vmatprep.subr.bf16.mxu0 0
        %7159 = vmatpush1.bf16.msra.mxu0 0
        %7160 = vmatprep.subr.bf16.mxu0 0
        %7161 = vmatpush1.bf16.msra.mxu0 0
        %7162 = vmatprep.subr.bf16.mxu0 0
        %7163 = vmatpush1.bf16.msra.mxu0 0
        %7164 = vmatprep.mubr.bf16.mxu0 0
        %7165 = vmatmul.mubr.bf16.gmra.mrb[0].mxu0 %v7130
        %v7166 = vpop.f32.mrb[0].mxu0
        %v7167 = vadd.f32 %v7118, %v7166
        %v7168 = vpop.f32.mrb[0].mxu0
        %v7169 = vpop.f32.mrb[0].mxu0
        %v7170 = vpop.f32.mrb[0].mxu0
        %7171 = vdwg.mxu0
        %v7172 = vadd.f32 %v6260, %v7167
        %v7173 = vld [vmem:[%s67] sm:$0x1]
        %v7174 = vadd.f32 %v7172, %v7173
        %v7175 = vsel %vm4585, %v7174, 0.0
        %7176 = vadd.xlane.f32.xlu0 %v7175
        %v7177 = vpop.xlane.xlu0 %7176
        %v7178 = vmul.f32 %v7177, %v4497
        %v7179 = vsub.f32 %v7174, %v7178
        %v7180 = vmul.f32 %v7179, %v7179
        %v7181 = vsel %vm4585, %v7180, 0.0
        %7182 = vadd.xlane.f32.xlu0 %v7181
        %v7183 = vpop.xlane.xlu0 %7182
        %v7184 = vmul.f32 %v7183, %v4497
        %v7185 = vadd.f32 %v7184, 1e-05
        %v7186 = vrsqrt.pop %v7185
        %v7187 = vmul.f32 %v7179, %v7186
        %v7188 = vld [vmem:[%s69] sm:$0x1]
        %v7189 = vmul.f32 %v7187, %v7188
        %v7190 = vld [vmem:[%s71] sm:$0x1]
        %v7191 = vadd.f32 %v7189, %v7190
        %v7192 = vld [vmem:[%s73] sm:$0xf]
        %v7193 = vld [vmem:[%s73 + $0x4] sm:$0xf]
        %v7194 = vld [vmem:[%s73 + $0x8] sm:$0xf]
        %v7195 = vld [vmem:[%s73 + $0xc] sm:$0xf]
        %v7196 = vpack.c.bf16 %v7191, %v7191
        %v7197 = vld [vmem:[%s75] sm:$0x1]
        %v7202 = vunpack.c.l.b16 %v7192
        %v7203 = vunpack.c.l.b16 %v7193
        %v7204 = vunpack.c.l.b16 %v7194
        %v7205 = vunpack.c.l.b16 %v7195
        %v7206 = vpack.c.b16 %v7203, %v7202
        %v7207 = vpack.c.b16 %v7205, %v7204
        %v7211 = vsel %vm4490, %v7196, 0
        %7213 = vmatprep.subr.bf16.mxu0 0
        %7214 = vmatpush1.bf16.msra.mxu0 %v7206
        %7215 = vmatprep.subr.bf16.mxu0 0
        %7216 = vmatpush1.bf16.msra.mxu0 %v7207
        %7217 = vmatprep.subr.bf16.mxu0 0
        %7218 = vmatpush1.bf16.msra.mxu0 0
        %7219 = vmatprep.subr.bf16.mxu0 0
        %7220 = vmatpush1.bf16.msra.mxu0 0
        %7221 = vmatprep.subr.bf16.mxu0 0
        %7222 = vmatpush1.bf16.msra.mxu0 0
        %7223 = vmatprep.subr.bf16.mxu0 0
        %7224 = vmatpush1.bf16.msra.mxu0 0
        %7225 = vmatprep.subr.bf16.mxu0 0
        %7226 = vmatpush1.bf16.msra.mxu0 0
        %7227 = vmatprep.subr.bf16.mxu0 0
        %7228 = vmatpush1.bf16.msra.mxu0 0
        %7229 = vmatprep.subr.bf16.mxu0 0
        %7230 = vmatpush1.bf16.msra.mxu0 0
        %7231 = vmatprep.subr.bf16.mxu0 0
        %7232 = vmatpush1.bf16.msra.mxu0 0
        %7233 = vmatprep.subr.bf16.mxu0 0
        %7234 = vmatpush1.bf16.msra.mxu0 0
        %7235 = vmatprep.subr.bf16.mxu0 0
        %7236 = vmatpush1.bf16.msra.mxu0 0
        %7237 = vmatprep.subr.bf16.mxu0 0
        %7238 = vmatpush1.bf16.msra.mxu0 0
        %7239 = vmatprep.subr.bf16.mxu0 0
        %7240 = vmatpush1.bf16.msra.mxu0 0
        %7241 = vmatprep.subr.bf16.mxu0 0
        %7242 = vmatpush1.bf16.msra.mxu0 0
        %7243 = vmatprep.subr.bf16.mxu0 0
        %7244 = vmatpush1.bf16.msra.mxu0 0
        %7245 = vmatprep.mubr.bf16.mxu0 0
        %7246 = vmatmul.mubr.bf16.gmra.mrb[0].mxu0 %v7211
        %v7247 = vpop.f32.mrb[0].mxu0
        %v7248 = vadd.f32 %v7197, %v7247
        %v7249 = vpop.f32.mrb[0].mxu0
        %v7250 = vpop.f32.mrb[0].mxu0
        %v7251 = vpop.f32.mrb[0].mxu0
        %7252 = vdwg.mxu0
        %v7253 = vmul.f32 %v7248, 0.5
        %v7254 = vmul.f32 %v7248, 0.044715
        %v7255 = vmul.f32 %v7254, %v7248
        %v7256 = vmul.f32 %v7255, %v7248
        %v7257 = vadd.f32 %v7248, %v7256
        %v7258 = vmul.f32 %v7257, 0.7978846
        %v7259 = vtanh.pop %v7258
        %v7260 = vadd.f32 %v7259, 1.0
        %v7261 = vmul.f32 %v7253, %v7260
        %v7262 = vld [vmem:[%s77] sm:$0xf]
        %v7263 = vld [vmem:[%s77 + $0x4] sm:$0xf]
        %v7264 = vld [vmem:[%s77 + $0x8] sm:$0xf]
        %v7265 = vld [vmem:[%s77 + $0xc] sm:$0xf]
        %v7266 = vld [vmem:[%s77 + $0x10] sm:$0xf]
        %v7267 = vld [vmem:[%s77 + $0x14] sm:$0xf]
        %v7268 = vld [vmem:[%s77 + $0x18] sm:$0xf]
        %v7269 = vld [vmem:[%s77 + $0x1c] sm:$0xf]
        %v7270 = vpack.c.bf16 %v7261, %v7261
        %v7271 = vld [vmem:[%s79] sm:$0x1]
        %v7280 = vunpack.c.l.b16 %v7262
        %v7281 = vunpack.c.l.b16 %v7263
        %v7282 = vunpack.c.l.b16 %v7264
        %v7283 = vunpack.c.l.b16 %v7265
        %v7284 = vunpack.c.l.b16 %v7266
        %v7285 = vunpack.c.l.b16 %v7267
        %v7286 = vunpack.c.l.b16 %v7268
        %v7287 = vunpack.c.l.b16 %v7269
        %v7288 = vpack.c.b16 %v7281, %v7280
        %v7289 = vpack.c.b16 %v7283, %v7282
        %v7290 = vpack.c.b16 %v7285, %v7284
        %v7291 = vpack.c.b16 %v7287, %v7286
        %v7297 = vsel %vm2940, %v7270, 0
        %7299 = vmatprep.subr.bf16.mxu0 0
        %7300 = vmatpush1.bf16.msra.mxu0 %v7288
        %7301 = vmatprep.subr.bf16.mxu0 0
        %7302 = vmatpush1.bf16.msra.mxu0 %v7289
        %7303 = vmatprep.subr.bf16.mxu0 0
        %7304 = vmatpush1.bf16.msra.mxu0 %v7290
        %7305 = vmatprep.subr.bf16.mxu0 0
        %7306 = vmatpush1.bf16.msra.mxu0 %v7291
        %7307 = vmatprep.subr.bf16.mxu0 0
        %7308 = vmatpush1.bf16.msra.mxu0 0
        %7309 = vmatprep.subr.bf16.mxu0 0
        %7310 = vmatpush1.bf16.msra.mxu0 0
        %7311 = vmatprep.subr.bf16.mxu0 0
        %7312 = vmatpush1.bf16.msra.mxu0 0
        %7313 = vmatprep.subr.bf16.mxu0 0
        %7314 = vmatpush1.bf16.msra.mxu0 0
        %7315 = vmatprep.subr.bf16.mxu0 0
        %7316 = vmatpush1.bf16.msra.mxu0 0
        %7317 = vmatprep.subr.bf16.mxu0 0
        %7318 = vmatpush1.bf16.msra.mxu0 0
        %7319 = vmatprep.subr.bf16.mxu0 0
        %7320 = vmatpush1.bf16.msra.mxu0 0
        %7321 = vmatprep.subr.bf16.mxu0 0
        %7322 = vmatpush1.bf16.msra.mxu0 0
        %7323 = vmatprep.subr.bf16.mxu0 0
        %7324 = vmatpush1.bf16.msra.mxu0 0
        %7325 = vmatprep.subr.bf16.mxu0 0
        %7326 = vmatpush1.bf16.msra.mxu0 0
        %7327 = vmatprep.subr.bf16.mxu0 0
        %7328 = vmatpush1.bf16.msra.mxu0 0
        %7329 = vmatprep.subr.bf16.mxu0 0
        %7330 = vmatpush1.bf16.msra.mxu0 0
        %7331 = vmatprep.mubr.bf16.mxu0 0
        %7332 = vmatmul.mubr.bf16.gmra.mrb[0].mxu0 %v7297
        %v7333 = vpop.f32.mrb[0].mxu0
        %v7334 = vadd.f32 %v7271, %v7333
        %v7335 = vpop.f32.mrb[0].mxu0
        %v7336 = vpop.f32.mrb[0].mxu0
        %v7337 = vpop.f32.mrb[0].mxu0
        %7338 = vdwg.mxu0
        %v7339 = vadd.f32 %v7174, %v7334
        %v7340 = vsel %vm4585, %v7339, 0.0
        %7341 = vadd.xlane.f32.xlu0 %v7340
        %v7342 = vpop.xlane.xlu0 %7341
        %v7343 = vmul.f32 %v7342, %v4497
        %v7344 = vsub.f32 %v7339, %v7343
        %v7345 = vmul.f32 %v7344, %v7344
        %v7346 = vsel %vm4585, %v7345, 0.0
        %7347 = vadd.xlane.f32.xlu0 %v7346
        %v7348 = vpop.xlane.xlu0 %7347
        %v7349 = vmul.f32 %v7348, %v4497
        %v7350 = vadd.f32 %v7349, 1e-05
        %v7351 = vrsqrt.pop %v7350
        %v7352 = vmul.f32 %v7344, %v7351
        %v7353 = vld [vmem:[%s81] sm:$0x1]
        %v7354 = vmul.f32 %v7352, %v7353
        %v7355 = vld [vmem:[%s83] sm:$0x1]
        %v7356 = vadd.f32 %v7354, %v7355
        %v7357 = vld [vmem:[%s85] sm:$0xf]
        %v7358 = vld [vmem:[%s85 + $0x4] sm:$0xf]
        %v7359 = vld [vmem:[%s85 + $0x8] sm:$0xf]
        %v7360 = vld [vmem:[%s85 + $0xc] sm:$0xf]
        %v7361 = vpack.c.bf16 %v7356, %v7356
        %v7362 = vld [vmem:[%s87] sm:$0x1]
        %v7367 = vunpack.c.l.b16 %v7357
        %v7368 = vunpack.c.l.b16 %v7358
        %v7369 = vunpack.c.l.b16 %v7359
        %v7370 = vunpack.c.l.b16 %v7360
        %v7371 = vpack.c.b16 %v7368, %v7367
        %v7372 = vpack.c.b16 %v7370, %v7369
        %v7376 = vsel %vm4490, %v7361, 0
        %7378 = vmatprep.subr.bf16.mxu0 0
        %7379 = vmatpush1.bf16.msra.mxu0 %v7371
        %7380 = vmatprep.subr.bf16.mxu0 0
        %7381 = vmatpush1.bf16.msra.mxu0 %v7372
        %7382 = vmatprep.subr.bf16.mxu0 0
        %7383 = vmatpush1.bf16.msra.mxu0 0
        %7384 = vmatprep.subr.bf16.mxu0 0
        %7385 = vmatpush1.bf16.msra.mxu0 0
        %7386 = vmatprep.subr.bf16.mxu0 0
        %7387 = vmatpush1.bf16.msra.mxu0 0
        %7388 = vmatprep.subr.bf16.mxu0 0
        %7389 = vmatpush1.bf16.msra.mxu0 0
        %7390 = vmatprep.subr.bf16.mxu0 0
        %7391 = vmatpush1.bf16.msra.mxu0 0
        %7392 = vmatprep.subr.bf16.mxu0 0
        %7393 = vmatpush1.bf16.msra.mxu0 0
        %7394 = vmatprep.subr.bf16.mxu0 0
        %7395 = vmatpush1.bf16.msra.mxu0 0
        %7396 = vmatprep.subr.bf16.mxu0 0
        %7397 = vmatpush1.bf16.msra.mxu0 0
        %7398 = vmatprep.subr.bf16.mxu0 0
        %7399 = vmatpush1.bf16.msra.mxu0 0
        %7400 = vmatprep.subr.bf16.mxu0 0
        %7401 = vmatpush1.bf16.msra.mxu0 0
        %7402 = vmatprep.subr.bf16.mxu0 0
        %7403 = vmatpush1.bf16.msra.mxu0 0
        %7404 = vmatprep.subr.bf16.mxu0 0
        %7405 = vmatpush1.bf16.msra.mxu0 0
        %7406 = vmatprep.subr.bf16.mxu0 0
        %7407 = vmatpush1.bf16.msra.mxu0 0
        %7408 = vmatprep.subr.bf16.mxu0 0
        %7409 = vmatpush1.bf16.msra.mxu0 0
        %7410 = vmatprep.mubr.bf16.mxu0 0
        %7411 = vmatmul.mubr.bf16.gmra.mrb[0].mxu0 %v7376
        %v7412 = vpop.f32.mrb[0].mxu0
        %v7413 = vadd.f32 %v7362, %v7412
        %v7414 = vpop.f32.mrb[0].mxu0
        %v7415 = vpop.f32.mrb[0].mxu0
        %v7416 = vpop.f32.mrb[0].mxu0
        %7417 = vdwg.mxu0
        %vm7418 = vcmask 204800
        %7419 = vst.msk [vmem:[%s1314] sm:$0x1] %vm7418, %v7413
        %s7420 = sand.u32 %s1040, 1
        %s7421 = scalar_lea.sflag [#allocation3], %s7420
        %s7422 = sand.u32 %s1040, 1
        %s7423 = scalar_lea.vmem [#allocation2], %s7422
        // Predicated region
        $region197: #{separated_forward.1} parent=195 // pred_check
          %p7424 = pneg %p1050
        $region198: #{separated_forward.1} parent=195 // pred_check_branch
          %7426 = sbr.rel (%p7424) target = $region200
        $region199: #{separated_forward.1} parent=195 // pred_region
          %s7428 = ssub.s32 16, 16
          %7429 = vsyncadd %s7421, %s7428
          %s7430 = smul.addr %s103, 16
          %s7431 = scalar_lea.hbm %s89, %s7430
          %s7433 = sshll.u32 %s7423, 4
          %s7434 = int_to_ptr.vmem [resolvable:$true] %s7433
          %7436 = dma.vmem_to_hbm [thread:$0]  %s7434, 16, %s7431, %s7421
        $region200: #{separated_forward.1} parent=195 // pred_fallthru
          _
      $region196: #{separated_forward.1} parent=5 // pred_fallthru
        _
      %p7437 = scmp.le.s32.totalorder 2, %s98
      // Predicated region
      $region201: #{separated_forward.1} parent=5 // pred_check
        %p7438 = pneg %p7437
      $region202: #{separated_forward.1} parent=5 // pred_check_branch
        %7440 = sbr.rel (%p7438) target = $region204
      $region203: #{separated_forward.1} parent=5 // pred_region
        %s7441 = ssub.s32 %s98, 2
        // Predicated region
        $region205: #{separated_forward.1} parent=203 // pred_check
          %p7442 = pneg %p1056
        $region206: #{separated_forward.1} parent=203 // pred_check_branch
          %7444 = sbr.rel (%p7442) target = $region208
        $region207: #{separated_forward.1} parent=203 // pred_region
          %s7445 = sand.u32 %s1041, 1
          %s7446 = scalar_lea.sflag [#allocation3], %s7445
          %s7447 = sand.u32 %s1041, 1
          %s7448 = scalar_lea.vmem [#allocation2], %s7447
          %7449 = dma.done %s7446, 16
        $region208: #{separated_forward.1} parent=203 // pred_fallthru
          _
      $region204: #{separated_forward.1} parent=5 // pred_fallthru
        _
    $region6: #{separated_forward.1} parent=1 // loop_footer
      %s102 = sadd.s32 1, %s98
    $region7: #{separated_forward.1} parent=1 // loop_footer_branch
      %97 = sbr.rel target = $region3
    $region8: #{separated_forward.1} parent=1 // loop_exit
      _
    %7450 = vsyncpa [#allocation3], 1
    %s7451 = scalar_lea.sflag [#allocation3], 1
    %7452 = vsyncpa %s7451, 1

</llo_original>
